<compile_context>
chip_gen: v7x
topology: tpu7x:2x2x1
jax: 0.10.0
libtpu: 0.0.40
codegen_flags: <defaults>
</compile_context>

<pallas_src>
import functools

import jax
import jax.numpy as jnp
import numpy as np
from jax.experimental import pallas as pl
from jax.experimental.pallas import tpu as pltpu

# ----------------------------------------------------------------------------
# Configuration (mirrors NetworkParams fields exercised by forward()).
# ----------------------------------------------------------------------------
HIDDEN = 64        # human_node_output_size == feature_gru hidden size
ATTN = 64          # attention_size
EDGE_EMBED = 64    # human_human_edge_embed_size
TEMP_IN = 32       # human_human_edge_input_size (temporal edge features)
SPAT_IN = 32       # spatial_edges feature size (from obs_space_dict)
ROBOT_IN = 7       # robot_node feature size (robot_linear in_features)
HUMAN_NUM = 5      # obs_space_dict['spatial_edges'].shape[0]
SEQ_LEN = 1
NENV = 2
BATCH = SEQ_LEN * NENV

BM = 128                 # batch tile (MXU-filling); batch is zero-padded to a multiple
BLOB_W = 128             # lane width of the packed parameter blob
OUT_W = 4 * HIDDEN       # 256-wide lane-dense output slab: [hnew | actor | critic_wide]


# ----------------------------------------------------------------------------
# Pallas kernel: the full per-step forward for one batch tile.
# ----------------------------------------------------------------------------
def _nav_kernel(layout, temporal_ref, spatial_ref, robot_ref, h0_ref, blob_ref,
                out_ref):
    f32 = jnp.float32

    def W(name):
        r0, r, c = layout[name]          # static python ints -> static slices
        return blob_ref[r0:r0 + r, 0:c]

    def mm(a, wname, bname=None):
        y = jnp.dot(a, W(wname), preferred_element_type=f32)
        if bname is not None:
            y = y + W(bname)
        return y

    temporal = temporal_ref[...]         # (BM, TEMP_IN)
    spat_all = spatial_ref[...]          # (HUMAN_NUM*BM, SPAT_IN), human-major within tile
    robot = robot_ref[...]               # (BM, ROBOT_IN)
    h0 = h0_ref[...]                     # (BM, HIDDEN)

    # --- edge embeddings (Linear + ReLU) ------------------------------------
    out_temporal = jax.nn.relu(mm(temporal, "w_temp", "b_temp"))       # (BM, 64)
    out_robot = jax.nn.relu(mm(out_temporal, "w_hr", "b_hr"))          # (BM, 64)
    emb_all = jax.nn.relu(mm(spat_all, "w_spat", "b_spat"))            # (H*BM, 64)

    # --- merged attention (temporal & robot queries stacked on sublanes) ----
    # wq @ wk.T pre-fused on host:  q.k == (query @ Wqk) . emb
    q2 = jnp.concatenate([out_temporal, out_robot], axis=0)            # (2*BM, 64)
    p2 = mm(q2, "wqk")                                                 # (2*BM, 64)

    scale = 1.0 / float(np.sqrt(ATTN))
    embs2, cols = [], []
    for h in range(HUMAN_NUM):
        e_h = emb_all[h * BM:(h + 1) * BM, :]                          # sublane slice
        e2 = jnp.concatenate([e_h, e_h], axis=0)                       # (2*BM, 64)
        embs2.append(e2)
        cols.append(jnp.sum(p2 * e2, axis=-1, keepdims=True) * scale)  # (2*BM, 1)

    m = cols[0]
    for h in range(1, HUMAN_NUM):
        m = jnp.maximum(m, cols[h])
    exps = [jnp.exp(c - m) for c in cols]
    denom = exps[0]
    for h in range(1, HUMAN_NUM):
        denom = denom + exps[h]
    inv = 1.0 / denom

    attn2 = (exps[0] * inv) * embs2[0]
    for h in range(1, HUMAN_NUM):
        attn2 = attn2 + (exps[h] * inv) * embs2[h]                     # (2*BM, 64)
    hh_attn = attn2[0:BM, :]
    hr_attn = attn2[BM:2 * BM, :]

    robot_feat = mm(robot, "w_rl", "b_rl")                             # (BM, 64)

    # --- feature GRU (single step, gates r,z,n) ------------------------------
    # No 192-wide concat / no 64-lane gate slicing: weights pre-split per gate and
    # per input piece on the host; every tile here is lane-aligned 64 wide.
    # NOTE(v5e): sigmoid x2 + tanh x4 per row lands on the single EUP; acceptable
    # at these shapes but the first thing to watch if BM is raised further.
    def gate(g):
        gi = (jnp.dot(hh_attn, W("wih_" + g + "_hh"), preferred_element_type=f32)
              + jnp.dot(hr_attn, W("wih_" + g + "_hr"), preferred_element_type=f32)
              + jnp.dot(robot_feat, W("wih_" + g + "_rf"), preferred_element_type=f32)
              + W("bih_" + g))
        gh = jnp.dot(h0, W("whh_" + g), preferred_element_type=f32) + W("bhh_" + g)
        return gi, gh

    gi_r, gh_r = gate("r")
    gi_z, gh_z = gate("z")
    gi_n, gh_n = gate("n")
    r = jax.nn.sigmoid(gi_r + gh_r)
    z = jax.nn.sigmoid(gi_z + gh_z)
    n = jnp.tanh(gi_n + r * gh_n)
    hnew = (1.0 - z) * n + z * h0                                      # (BM, 64)

    # --- fused actor / critic heads ------------------------------------------
    # w_head1 = [wa1 | wc1] (64,128); second layers zero-padded so no lane slicing.
    h1 = jnp.tanh(mm(hnew, "w_head1", "b_head1"))                      # (BM, 128)
    actor = jnp.tanh(mm(h1, "w2a", "b2a"))                             # (BM, 64)
    critic_wide = mm(h1, "w2c", "b2c")                                 # (BM, 128), col 0 = critic

    # single lane-dense output slab: [hnew(64) | actor(64) | critic_wide(128)]
    out_ref[...] = jnp.concatenate([hnew, actor, critic_wide], axis=-1)


# ----------------------------------------------------------------------------
# Parameter fusion + packing into one lane-dense blob.
# ----------------------------------------------------------------------------
def _pack_params(p):
    H = HIDDEN
    entries = []

    def add(name, a):
        entries.append((name, jnp.asarray(a, jnp.float32)))

    add("w_temp", p["w_temp"]); add("b_temp", p["b_temp"])
    add("w_spat", p["w_spat"]); add("b_spat", p["b_spat"])
    add("w_hr", p["w_hr"]);     add("b_hr", p["b_hr"])
    add("wqk", p["wq"] @ p["wk"].T)                       # algebraic attention fusion
    add("w_rl", p["w_rl"]);     add("b_rl", p["b_rl"])

    # GRU weights pre-split per gate (r,z,n) and per input piece (hh, hr, robot_feat)
    pieces = (("hh", 0, H), ("hr", H, 2 * H), ("rf", 2 * H, 3 * H))
    for gi, g in enumerate(("r", "z", "n")):
        c0, c1 = gi * H, (gi + 1) * H
        for pname, r0, r1 in pieces:
            add("wih_" + g + "_" + pname, p["w_ih"][r0:r1, c0:c1])     # (64, 64)
        add("whh_" + g, p["w_hh"][:, c0:c1])                           # (64, 64)
        add("bih_" + g, p["b_ih"][:, c0:c1])                           # (1, 64)
        add("bhh_" + g, p["b_hh"][:, c0:c1])                           # (1, 64)

    # fused head first layer; zero-padded second layers
    add("w_head1", jnp.concatenate([p["wa1"], p["wc1"]], axis=1))      # (64, 128)
    add("b_head1", jnp.concatenate([p["ba1"], p["bc1"]], axis=1))      # (1, 128)
    add("w2a", jnp.concatenate([p["wa2"], jnp.zeros((H, H), jnp.float32)], axis=0))  # (128, 64)
    add("b2a", p["ba2"])                                               # (1, 64)
    w2c = jnp.zeros((2 * H, 2 * H), jnp.float32).at[H:2 * H, 0:1].set(p["wc2"])
    add("w2c", w2c)                                                    # (128, 128)
    b2c = jnp.zeros((1, 2 * H), jnp.float32).at[0, 0].set(p["bc2"][0, 0])
    add("b2c", b2c)                                                    # (1, 128)

    blocks, layout, row = [], {}, 0
    for name, a in entries:
        r, c = a.shape
        rp = ((r + 7) // 8) * 8                                        # sublane-pad
        buf = jnp.zeros((rp, BLOB_W), jnp.float32).at[:r, :c].set(a)
        blocks.append(buf)
        layout[name] = (row, r, c)
        row += rp
    return jnp.concatenate(blocks, axis=0), layout


# ----------------------------------------------------------------------------
# Host wrapper: layout plumbing + pallas_call.
# ----------------------------------------------------------------------------
def social_robot_nav(temporal, spatial, robot, h0, params):
    """temporal: (B, TEMP_IN)  spatial: (B, HUMAN_NUM, SPAT_IN)
       robot:    (B, ROBOT_IN) h0:      (B, HIDDEN)
       returns (critic (B,1), actor (B,HIDDEN), new_gru_hidden (B,HIDDEN))."""
    B = temporal.shape[0]
    Bp = pl.cdiv(B, BM) * BM
    pad = Bp - B
    ntiles = Bp // BM

    def pad_rows(x):
        cfg = [(0, pad)] + [(0, 0)] * (x.ndim - 1)
        return jnp.pad(x.astype(jnp.float32), cfg)

    temporal_p = pad_rows(temporal)
    robot_p = pad_rows(robot)
    h0_p = pad_rows(h0)
    # human-major within each batch tile: row = tile*(H*BM) + h*BM + b_local
    spat_p = pad_rows(spatial)                                        # (Bp, H, S)
    spat_tiles = (spat_p.reshape(ntiles, BM, HUMAN_NUM, SPAT_IN)
                  .transpose(0, 2, 1, 3)
                  .reshape(ntiles * HUMAN_NUM * BM, SPAT_IN))

    blob, layout = _pack_params(params)
    kernel = functools.partial(_nav_kernel, layout)

    in_specs = [
        pl.BlockSpec((BM, TEMP_IN), lambda i: (i, 0)),
        pl.BlockSpec((HUMAN_NUM * BM, SPAT_IN), lambda i: (i, 0)),
        pl.BlockSpec((BM, ROBOT_IN), lambda i: (i, 0)),
        pl.BlockSpec((BM, HIDDEN), lambda i: (i, 0)),
        pl.BlockSpec(blob.shape, lambda i: (0, 0)),       # constant index: fetched once
    ]
    out_specs = pl.BlockSpec((BM, OUT_W), lambda i: (i, 0))
    out_shape = jax.ShapeDtypeStruct((Bp, OUT_W), jnp.float32)

    out = pl.pallas_call(
        kernel,
        out_shape=out_shape,
        grid=(ntiles,),
        in_specs=in_specs,
        out_specs=out_specs,
        compiler_params=pltpu.CompilerParams(
            dimension_semantics=("parallel",)),           # v7x: shard tiles over 2 TCs
    )(temporal_p, spat_tiles, robot_p, h0_p, blob)

    hnew = out[:B, 0:HIDDEN]
    actor = out[:B, HIDDEN:2 * HIDDEN]
    critic = out[:B, 2 * HIDDEN:2 * HIDDEN + 1]
    return critic, actor, hnew


# ----------------------------------------------------------------------------
# Pure-JAX reference (same math, unfused, unpadded) for verification.
# ----------------------------------------------------------------------------
def reference_forward(temporal, spatial, robot, h0, p):
    out_temporal = jax.nn.relu(temporal @ p["w_temp"] + p["b_temp"])
    out_spatial = jax.nn.relu(spatial @ p["w_spat"] + p["b_spat"][None])   # (B,H,E)
    out_robot = jax.nn.relu(out_temporal @ p["w_hr"] + p["b_hr"])

    keys = out_spatial @ p["wk"]
    scale = 1.0 / np.sqrt(ATTN)

    def attend(query):
        q = query @ p["wq"]
        scores = jnp.einsum("ba,bha->bh", q, keys) * scale
        w = jax.nn.softmax(scores, axis=-1)
        return jnp.einsum("bh,bhe->be", w, out_spatial)

    hh = attend(out_temporal)
    hr = attend(out_robot)
    robot_feat = robot @ p["w_rl"] + p["b_rl"]

    x = jnp.concatenate([hh, hr, robot_feat], axis=-1)
    gi = x @ p["w_ih"] + p["b_ih"]
    gh = h0 @ p["w_hh"] + p["b_hh"]
    r = jax.nn.sigmoid(gi[:, :HIDDEN] + gh[:, :HIDDEN])
    z = jax.nn.sigmoid(gi[:, HIDDEN:2 * HIDDEN] + gh[:, HIDDEN:2 * HIDDEN])
    n = jnp.tanh(gi[:, 2 * HIDDEN:] + r * gh[:, 2 * HIDDEN:])
    hnew = (1.0 - z) * n + z * h0

    a = jnp.tanh(jnp.tanh(hnew @ p["wa1"] + p["ba1"]) @ p["wa2"] + p["ba2"])
    c = jnp.tanh(hnew @ p["wc1"] + p["bc1"]) @ p["wc2"] + p["bc2"]
    return c, a, hnew


# ----------------------------------------------------------------------------
# Deterministic parameter construction (synthetic init; no checkpoint).
# ----------------------------------------------------------------------------
def make_params(key):
    ks = jax.random.split(key, 16)
    w = lambda k, s: (jax.random.normal(k, s, jnp.float32) * 0.1)
    z = lambda *s: jnp.zeros(s, jnp.float32)
    return {
        "w_temp": w(ks[0], (TEMP_IN, EDGE_EMBED)), "b_temp": z(1, EDGE_EMBED),
        "w_spat": w(ks[1], (SPAT_IN, EDGE_EMBED)), "b_spat": z(1, EDGE_EMBED),
        "w_hr":   w(ks[2], (EDGE_EMBED, EDGE_EMBED)), "b_hr": z(1, EDGE_EMBED),
        "wq":     w(ks[3], (EDGE_EMBED, ATTN)),
        "wk":     w(ks[4], (EDGE_EMBED, ATTN)),
        "w_rl":   w(ks[5], (ROBOT_IN, HIDDEN)), "b_rl": z(1, HIDDEN),
        "w_ih":   w(ks[6], (3 * HIDDEN, 3 * HIDDEN)),   # (input=192, gates=192: r,z,n)
        "w_hh":   w(ks[7], (HIDDEN, 3 * HIDDEN)),
        "b_ih":   z(1, 3 * HIDDEN), "b_hh": z(1, 3 * HIDDEN),
        "wa1":    w(ks[8], (HIDDEN, HIDDEN)), "ba1": z(1, HIDDEN),
        "wa2":    w(ks[9], (HIDDEN, HIDDEN)), "ba2": z(1, HIDDEN),
        "wc1":    w(ks[10], (HIDDEN, HIDDEN)), "bc1": z(1, HIDDEN),
        "wc2":    w(ks[11], (HIDDEN, 1)), "bc2": z(1, 1),
    }


if __name__ == "__main__":
    key = jax.random.PRNGKey(0)
    k_in, k_par = jax.random.split(key)
    ki = jax.random.split(k_in, 5)

    # example inputs (already flattened over seq*nenv, as torch .view(-1,...) does)
    temporal_edges = jax.random.normal(ki[0], (BATCH, TEMP_IN), jnp.float32)
    spatial_edges = jax.random.normal(ki[1], (BATCH, HUMAN_NUM, SPAT_IN), jnp.float32)
    robot_node = jax.random.normal(ki[2], (BATCH, ROBOT_IN), jnp.float32)
    gru_hidden = jax.random.normal(ki[3], (BATCH, HIDDEN), jnp.float32)
    _robot_human_edges = jax.random.normal(ki[4], (BATCH, HUMAN_NUM, SPAT_IN), jnp.float32)  # unused (see TODO)

    params = make_params(k_par)

    critic, actor, hnew = social_robot_nav(
        temporal_edges, spatial_edges, robot_node, gru_hidden, params)
    jax.block_until_ready((critic, actor, hnew))

    c_ref, a_ref, h_ref = reference_forward(
        temporal_edges, spatial_edges, robot_node, gru_hidden, params)

    np.testing.assert_allclose(np.asarray(critic), np.asarray(c_ref), atol=1e-4, rtol=1e-4)
    np.testing.assert_allclose(np.asarray(actor), np.asarray(a_ref), atol=1e-4, rtol=1e-4)
    np.testing.assert_allclose(np.asarray(hnew), np.asarray(h_ref), atol=1e-4, rtol=1e-4)

    assert critic.shape == (BATCH, 1) and actor.shape == (BATCH, HIDDEN) and hnew.shape == (BATCH, HIDDEN)
    print("KERNEL_OK")
</pallas_src>

<mosaic_0001>
module attributes {stable_mosaic.version = 11 : i64} {
  func.func @_nav_kernel(%arg0: i32, %arg1: memref<128x32xf32, #tpu.memory_space<vmem>>, %arg2: memref<640x32xf32, #tpu.memory_space<vmem>>, %arg3: memref<128x7xf32, #tpu.memory_space<vmem>>, %arg4: memref<128x64xf32, #tpu.memory_space<vmem>>, %arg5: memref<1392x128xf32, #tpu.memory_space<vmem>>, %arg6: memref<128x256xf32, #tpu.memory_space<vmem>>) attributes {dimension_semantics = [#tpu.dimension_semantics<parallel>], iteration_bounds = array<i64: 1>, scalar_prefetch = 0 : i64, scratch_operands = 0 : i64, tpu.core_type = #tpu.core_type<tc>, window_params = [{transform_indices = @transform_0, window_bounds = array<i64: 128, 32>}, {transform_indices = @transform_1, window_bounds = array<i64: 640, 32>}, {transform_indices = @transform_2, window_bounds = array<i64: 128, 7>}, {transform_indices = @transform_3, window_bounds = array<i64: 128, 64>}, {pipeline_mode = #tpu.pipeline_mode<synchronous>, transform_indices = @transform_4, window_bounds = array<i64: 1392, 128>}, {transform_indices = @transform_5, window_bounds = array<i64: 128, 256>}]} {
    %c0 = arith.constant 0 : index
    %c0_0 = arith.constant 0 : index
    %0 = vector.load %arg1[%c0, %c0_0] : memref<128x32xf32, #tpu.memory_space<vmem>>, vector<128x32xf32>
    %c0_1 = arith.constant 0 : index
    %c0_2 = arith.constant 0 : index
    %1 = vector.load %arg2[%c0_1, %c0_2] : memref<640x32xf32, #tpu.memory_space<vmem>>, vector<640x32xf32>
    %c0_3 = arith.constant 0 : index
    %c0_4 = arith.constant 0 : index
    %2 = vector.load %arg3[%c0_3, %c0_4] : memref<128x7xf32, #tpu.memory_space<vmem>>, vector<128x7xf32>
    %c0_5 = arith.constant 0 : index
    %c0_6 = arith.constant 0 : index
    %3 = vector.load %arg4[%c0_5, %c0_6] : memref<128x64xf32, #tpu.memory_space<vmem>>, vector<128x64xf32>
    %c0_7 = arith.constant 0 : index
    %c0_8 = arith.constant 0 : index
    %4 = vector.load %arg5[%c0_7, %c0_8] : memref<1392x128xf32, #tpu.memory_space<vmem>>, vector<32x64xf32>
    %cst = arith.constant dense<0.000000e+00> : vector<128x64xf32>
    %5 = tpu.matmul %0, %4, %cst {dimension_numbers = #tpu.dot_dimension_numbers<[1], [0], [0], [1], [0, 0, 1, 1], [], []>} : vector<128x32xf32>, vector<32x64xf32>, vector<128x64xf32> -> vector<128x64xf32>
    %c32 = arith.constant 32 : index
    %c0_9 = arith.constant 0 : index
    %6 = vector.load %arg5[%c32, %c0_9] : memref<1392x128xf32, #tpu.memory_space<vmem>>, vector<1x64xf32>
    %7 = vector.broadcast %6 : vector<1x64xf32> to vector<128x64xf32>
    %8 = arith.addf %5, %7 : vector<128x64xf32>
    %cst_10 = arith.constant 0.000000e+00 : f32
    %9 = vector.broadcast %cst_10 : f32 to vector<128x64xf32>
    %10 = arith.maximumf %8, %9 : vector<128x64xf32>
    %c80 = arith.constant 80 : index
    %c0_11 = arith.constant 0 : index
    %11 = vector.load %arg5[%c80, %c0_11] : memref<1392x128xf32, #tpu.memory_space<vmem>>, vector<64x64xf32>
    %cst_12 = arith.constant dense<0.000000e+00> : vector<128x64xf32>
    %12 = tpu.matmul %10, %11, %cst_12 {dimension_numbers = #tpu.dot_dimension_numbers<[1], [0], [0], [1], [0, 0, 1, 1], [], []>} : vector<128x64xf32>, vector<64x64xf32>, vector<128x64xf32> -> vector<128x64xf32>
    %c144 = arith.constant 144 : index
    %c0_13 = arith.constant 0 : index
    %13 = vector.load %arg5[%c144, %c0_13] : memref<1392x128xf32, #tpu.memory_space<vmem>>, vector<1x64xf32>
    %14 = vector.broadcast %13 : vector<1x64xf32> to vector<128x64xf32>
    %15 = arith.addf %12, %14 : vector<128x64xf32>
    %cst_14 = arith.constant 0.000000e+00 : f32
    %16 = vector.broadcast %cst_14 : f32 to vector<128x64xf32>
    %17 = arith.maximumf %15, %16 : vector<128x64xf32>
    %c40 = arith.constant 40 : index
    %c0_15 = arith.constant 0 : index
    %18 = vector.load %arg5[%c40, %c0_15] : memref<1392x128xf32, #tpu.memory_space<vmem>>, vector<32x64xf32>
    %cst_16 = arith.constant dense<0.000000e+00> : vector<640x64xf32>
    %19 = tpu.matmul %1, %18, %cst_16 {dimension_numbers = #tpu.dot_dimension_numbers<[1], [0], [0], [1], [0, 0, 1, 1], [], []>} : vector<640x32xf32>, vector<32x64xf32>, vector<640x64xf32> -> vector<640x64xf32>
    %c72 = arith.constant 72 : index
    %c0_17 = arith.constant 0 : index
    %20 = vector.load %arg5[%c72, %c0_17] : memref<1392x128xf32, #tpu.memory_space<vmem>>, vector<1x64xf32>
    %21 = vector.broadcast %20 : vector<1x64xf32> to vector<640x64xf32>
    %22 = arith.addf %19, %21 : vector<640x64xf32>
    %cst_18 = arith.constant 0.000000e+00 : f32
    %23 = vector.broadcast %cst_18 : f32 to vector<640x64xf32>
    %24 = arith.maximumf %22, %23 : vector<640x64xf32>
    %25 = tpu.concatenate %10, %17 in 0 : vector<128x64xf32>, vector<128x64xf32> -> vector<256x64xf32>
    %c152 = arith.constant 152 : index
    %c0_19 = arith.constant 0 : index
    %26 = vector.load %arg5[%c152, %c0_19] : memref<1392x128xf32, #tpu.memory_space<vmem>>, vector<64x64xf32>
    %cst_20 = arith.constant dense<0.000000e+00> : vector<256x64xf32>
    %27 = tpu.matmul %25, %26, %cst_20 {dimension_numbers = #tpu.dot_dimension_numbers<[1], [0], [0], [1], [0, 0, 1, 1], [], []>} : vector<256x64xf32>, vector<64x64xf32>, vector<256x64xf32> -> vector<256x64xf32>
    %28 = vector.extract_strided_slice %24 {offsets = [0, 0], sizes = [128, 64], strides = [1, 1]} : vector<640x64xf32> to vector<128x64xf32>
    %29 = tpu.concatenate %28, %28 in 0 : vector<128x64xf32>, vector<128x64xf32> -> vector<256x64xf32>
    %30 = arith.mulf %27, %29 : vector<256x64xf32>
    %cst_21 = arith.constant dense<0.000000e+00> : vector<256xf32>
    %31 = vector.multi_reduction <add>, %30, %cst_21 [1] : vector<256x64xf32> to vector<256xf32>
    %32 = vector.shape_cast %31 : vector<256xf32> to vector<256x1xf32>
    %cst_22 = arith.constant 1.250000e-01 : f32
    %33 = vector.broadcast %cst_22 : f32 to vector<256x1xf32>
    %34 = arith.mulf %32, %33 : vector<256x1xf32>
    %35 = vector.extract_strided_slice %24 {offsets = [128, 0], sizes = [128, 64], strides = [1, 1]} : vector<640x64xf32> to vector<128x64xf32>
    %36 = tpu.concatenate %35, %35 in 0 : vector<128x64xf32>, vector<128x64xf32> -> vector<256x64xf32>
    %37 = arith.mulf %27, %36 : vector<256x64xf32>
    %cst_23 = arith.constant dense<0.000000e+00> : vector<256xf32>
    %38 = vector.multi_reduction <add>, %37, %cst_23 [1] : vector<256x64xf32> to vector<256xf32>
    %39 = vector.shape_cast %38 : vector<256xf32> to vector<256x1xf32>
    %cst_24 = arith.constant 1.250000e-01 : f32
    %40 = vector.broadcast %cst_24 : f32 to vector<256x1xf32>
    %41 = arith.mulf %39, %40 : vector<256x1xf32>
    %42 = vector.extract_strided_slice %24 {offsets = [256, 0], sizes = [128, 64], strides = [1, 1]} : vector<640x64xf32> to vector<128x64xf32>
    %43 = tpu.concatenate %42, %42 in 0 : vector<128x64xf32>, vector<128x64xf32> -> vector<256x64xf32>
    %44 = arith.mulf %27, %43 : vector<256x64xf32>
    %cst_25 = arith.constant dense<0.000000e+00> : vector<256xf32>
    %45 = vector.multi_reduction <add>, %44, %cst_25 [1] : vector<256x64xf32> to vector<256xf32>
    %46 = vector.shape_cast %45 : vector<256xf32> to vector<256x1xf32>
    %cst_26 = arith.constant 1.250000e-01 : f32
    %47 = vector.broadcast %cst_26 : f32 to vector<256x1xf32>
    %48 = arith.mulf %46, %47 : vector<256x1xf32>
    %49 = vector.extract_strided_slice %24 {offsets = [384, 0], sizes = [128, 64], strides = [1, 1]} : vector<640x64xf32> to vector<128x64xf32>
    %50 = tpu.concatenate %49, %49 in 0 : vector<128x64xf32>, vector<128x64xf32> -> vector<256x64xf32>
    %51 = arith.mulf %27, %50 : vector<256x64xf32>
    %cst_27 = arith.constant dense<0.000000e+00> : vector<256xf32>
    %52 = vector.multi_reduction <add>, %51, %cst_27 [1] : vector<256x64xf32> to vector<256xf32>
    %53 = vector.shape_cast %52 : vector<256xf32> to vector<256x1xf32>
    %cst_28 = arith.constant 1.250000e-01 : f32
    %54 = vector.broadcast %cst_28 : f32 to vector<256x1xf32>
    %55 = arith.mulf %53, %54 : vector<256x1xf32>
    %56 = vector.extract_strided_slice %24 {offsets = [512, 0], sizes = [128, 64], strides = [1, 1]} : vector<640x64xf32> to vector<128x64xf32>
    %57 = tpu.concatenate %56, %56 in 0 : vector<128x64xf32>, vector<128x64xf32> -> vector<256x64xf32>
    %58 = arith.mulf %27, %57 : vector<256x64xf32>
    %cst_29 = arith.constant dense<0.000000e+00> : vector<256xf32>
    %59 = vector.multi_reduction <add>, %58, %cst_29 [1] : vector<256x64xf32> to vector<256xf32>
    %60 = vector.shape_cast %59 : vector<256xf32> to vector<256x1xf32>
    %cst_30 = arith.constant 1.250000e-01 : f32
    %61 = vector.broadcast %cst_30 : f32 to vector<256x1xf32>
    %62 = arith.mulf %60, %61 : vector<256x1xf32>
    %63 = arith.maximumf %34, %41 : vector<256x1xf32>
    %64 = arith.maximumf %63, %48 : vector<256x1xf32>
    %65 = arith.maximumf %64, %55 : vector<256x1xf32>
    %66 = arith.maximumf %65, %62 : vector<256x1xf32>
    %67 = arith.subf %34, %66 : vector<256x1xf32>
    %68 = math.exp %67 : vector<256x1xf32>
    %69 = arith.subf %41, %66 : vector<256x1xf32>
    %70 = math.exp %69 : vector<256x1xf32>
    %71 = arith.subf %48, %66 : vector<256x1xf32>
    %72 = math.exp %71 : vector<256x1xf32>
    %73 = arith.subf %55, %66 : vector<256x1xf32>
    %74 = math.exp %73 : vector<256x1xf32>
    %75 = arith.subf %62, %66 : vector<256x1xf32>
    %76 = math.exp %75 : vector<256x1xf32>
    %77 = arith.addf %68, %70 : vector<256x1xf32>
    %78 = arith.addf %77, %72 : vector<256x1xf32>
    %79 = arith.addf %78, %74 : vector<256x1xf32>
    %80 = arith.addf %79, %76 : vector<256x1xf32>
    %cst_31 = arith.constant 1.000000e+00 : f32
    %81 = vector.broadcast %cst_31 : f32 to vector<256x1xf32>
    %82 = arith.divf %81, %80 : vector<256x1xf32>
    %83 = arith.mulf %68, %82 : vector<256x1xf32>
    %84 = vector.broadcast %83 : vector<256x1xf32> to vector<256x64xf32>
    %85 = arith.mulf %84, %29 : vector<256x64xf32>
    %86 = arith.mulf %70, %82 : vector<256x1xf32>
    %87 = vector.broadcast %86 : vector<256x1xf32> to vector<256x64xf32>
    %88 = arith.mulf %87, %36 : vector<256x64xf32>
    %89 = arith.addf %85, %88 : vector<256x64xf32>
    %90 = arith.mulf %72, %82 : vector<256x1xf32>
    %91 = vector.broadcast %90 : vector<256x1xf32> to vector<256x64xf32>
    %92 = arith.mulf %91, %43 : vector<256x64xf32>
    %93 = arith.addf %89, %92 : vector<256x64xf32>
    %94 = arith.mulf %74, %82 : vector<256x1xf32>
    %95 = vector.broadcast %94 : vector<256x1xf32> to vector<256x64xf32>
    %96 = arith.mulf %95, %50 : vector<256x64xf32>
    %97 = arith.addf %93, %96 : vector<256x64xf32>
    %98 = arith.mulf %76, %82 : vector<256x1xf32>
    %99 = vector.broadcast %98 : vector<256x1xf32> to vector<256x64xf32>
    %100 = arith.mulf %99, %57 : vector<256x64xf32>
    %101 = arith.addf %97, %100 : vector<256x64xf32>
    %102 = vector.extract_strided_slice %101 {offsets = [0, 0], sizes = [128, 64], strides = [1, 1]} : vector<256x64xf32> to vector<128x64xf32>
    %103 = vector.extract_strided_slice %101 {offsets = [128, 0], sizes = [128, 64], strides = [1, 1]} : vector<256x64xf32> to vector<128x64xf32>
    %c216 = arith.constant 216 : index
    %c0_32 = arith.constant 0 : index
    %104 = vector.load %arg5[%c216, %c0_32] : memref<1392x128xf32, #tpu.memory_space<vmem>>, vector<7x64xf32>
    %cst_33 = arith.constant dense<0.000000e+00> : vector<128x64xf32>
    %105 = tpu.matmul %2, %104, %cst_33 {dimension_numbers = #tpu.dot_dimension_numbers<[1], [0], [0], [1], [0, 0, 1, 1], [], []>} : vector<128x7xf32>, vector<7x64xf32>, vector<128x64xf32> -> vector<128x64xf32>
    %c224 = arith.constant 224 : index
    %c0_34 = arith.constant 0 : index
    %106 = vector.load %arg5[%c224, %c0_34] : memref<1392x128xf32, #tpu.memory_space<vmem>>, vector<1x64xf32>
    %107 = vector.broadcast %106 : vector<1x64xf32> to vector<128x64xf32>
    %108 = arith.addf %105, %107 : vector<128x64xf32>
    %c232 = arith.constant 232 : index
    %c0_35 = arith.constant 0 : index
    %109 = vector.load %arg5[%c232, %c0_35] : memref<1392x128xf32, #tpu.memory_space<vmem>>, vector<64x64xf32>
    %cst_36 = arith.constant dense<0.000000e+00> : vector<128x64xf32>
    %110 = tpu.matmul %102, %109, %cst_36 {dimension_numbers = #tpu.dot_dimension_numbers<[1], [0], [0], [1], [0, 0, 1, 1], [], []>} : vector<128x64xf32>, vector<64x64xf32>, vector<128x64xf32> -> vector<128x64xf32>
    %c296 = arith.constant 296 : index
    %c0_37 = arith.constant 0 : index
    %111 = vector.load %arg5[%c296, %c0_37] : memref<1392x128xf32, #tpu.memory_space<vmem>>, vector<64x64xf32>
    %cst_38 = arith.constant dense<0.000000e+00> : vector<128x64xf32>
    %112 = tpu.matmul %103, %111, %cst_38 {dimension_numbers = #tpu.dot_dimension_numbers<[1], [0], [0], [1], [0, 0, 1, 1], [], []>} : vector<128x64xf32>, vector<64x64xf32>, vector<128x64xf32> -> vector<128x64xf32>
    %113 = arith.addf %110, %112 : vector<128x64xf32>
    %c360 = arith.constant 360 : index
    %c0_39 = arith.constant 0 : index
    %114 = vector.load %arg5[%c360, %c0_39] : memref<1392x128xf32, #tpu.memory_space<vmem>>, vector<64x64xf32>
    %cst_40 = arith.constant dense<0.000000e+00> : vector<128x64xf32>
    %115 = tpu.matmul %108, %114, %cst_40 {dimension_numbers = #tpu.dot_dimension_numbers<[1], [0], [0], [1], [0, 0, 1, 1], [], []>} : vector<128x64xf32>, vector<64x64xf32>, vector<128x64xf32> -> vector<128x64xf32>
    %116 = arith.addf %113, %115 : vector<128x64xf32>
    %c488 = arith.constant 488 : index
    %c0_41 = arith.constant 0 : index
    %117 = vector.load %arg5[%c488, %c0_41] : memref<1392x128xf32, #tpu.memory_space<vmem>>, vector<1x64xf32>
    %118 = vector.broadcast %117 : vector<1x64xf32> to vector<128x64xf32>
    %119 = arith.addf %116, %118 : vector<128x64xf32>
    %c424 = arith.constant 424 : index
    %c0_42 = arith.constant 0 : index
    %120 = vector.load %arg5[%c424, %c0_42] : memref<1392x128xf32, #tpu.memory_space<vmem>>, vector<64x64xf32>
    %cst_43 = arith.constant dense<0.000000e+00> : vector<128x64xf32>
    %121 = tpu.matmul %3, %120, %cst_43 {dimension_numbers = #tpu.dot_dimension_numbers<[1], [0], [0], [1], [0, 0, 1, 1], [], []>} : vector<128x64xf32>, vector<64x64xf32>, vector<128x64xf32> -> vector<128x64xf32>
    %c496 = arith.constant 496 : index
    %c0_44 = arith.constant 0 : index
    %122 = vector.load %arg5[%c496, %c0_44] : memref<1392x128xf32, #tpu.memory_space<vmem>>, vector<1x64xf32>
    %123 = vector.broadcast %122 : vector<1x64xf32> to vector<128x64xf32>
    %124 = arith.addf %121, %123 : vector<128x64xf32>
    %c504 = arith.constant 504 : index
    %c0_45 = arith.constant 0 : index
    %125 = vector.load %arg5[%c504, %c0_45] : memref<1392x128xf32, #tpu.memory_space<vmem>>, vector<64x64xf32>
    %cst_46 = arith.constant dense<0.000000e+00> : vector<128x64xf32>
    %126 = tpu.matmul %102, %125, %cst_46 {dimension_numbers = #tpu.dot_dimension_numbers<[1], [0], [0], [1], [0, 0, 1, 1], [], []>} : vector<128x64xf32>, vector<64x64xf32>, vector<128x64xf32> -> vector<128x64xf32>
    %c568 = arith.constant 568 : index
    %c0_47 = arith.constant 0 : index
    %127 = vector.load %arg5[%c568, %c0_47] : memref<1392x128xf32, #tpu.memory_space<vmem>>, vector<64x64xf32>
    %cst_48 = arith.constant dense<0.000000e+00> : vector<128x64xf32>
    %128 = tpu.matmul %103, %127, %cst_48 {dimension_numbers = #tpu.dot_dimension_numbers<[1], [0], [0], [1], [0, 0, 1, 1], [], []>} : vector<128x64xf32>, vector<64x64xf32>, vector<128x64xf32> -> vector<128x64xf32>
    %129 = arith.addf %126, %128 : vector<128x64xf32>
    %c632 = arith.constant 632 : index
    %c0_49 = arith.constant 0 : index
    %130 = vector.load %arg5[%c632, %c0_49] : memref<1392x128xf32, #tpu.memory_space<vmem>>, vector<64x64xf32>
    %cst_50 = arith.constant dense<0.000000e+00> : vector<128x64xf32>
    %131 = tpu.matmul %108, %130, %cst_50 {dimension_numbers = #tpu.dot_dimension_numbers<[1], [0], [0], [1], [0, 0, 1, 1], [], []>} : vector<128x64xf32>, vector<64x64xf32>, vector<128x64xf32> -> vector<128x64xf32>
    %132 = arith.addf %129, %131 : vector<128x64xf32>
    %c760 = arith.constant 760 : index
    %c0_51 = arith.constant 0 : index
    %133 = vector.load %arg5[%c760, %c0_51] : memref<1392x128xf32, #tpu.memory_space<vmem>>, vector<1x64xf32>
    %134 = vector.broadcast %133 : vector<1x64xf32> to vector<128x64xf32>
    %135 = arith.addf %132, %134 : vector<128x64xf32>
    %c696 = arith.constant 696 : index
    %c0_52 = arith.constant 0 : index
    %136 = vector.load %arg5[%c696, %c0_52] : memref<1392x128xf32, #tpu.memory_space<vmem>>, vector<64x64xf32>
    %cst_53 = arith.constant dense<0.000000e+00> : vector<128x64xf32>
    %137 = tpu.matmul %3, %136, %cst_53 {dimension_numbers = #tpu.dot_dimension_numbers<[1], [0], [0], [1], [0, 0, 1, 1], [], []>} : vector<128x64xf32>, vector<64x64xf32>, vector<128x64xf32> -> vector<128x64xf32>
    %c768 = arith.constant 768 : index
    %c0_54 = arith.constant 0 : index
    %138 = vector.load %arg5[%c768, %c0_54] : memref<1392x128xf32, #tpu.memory_space<vmem>>, vector<1x64xf32>
    %139 = vector.broadcast %138 : vector<1x64xf32> to vector<128x64xf32>
    %140 = arith.addf %137, %139 : vector<128x64xf32>
    %c776 = arith.constant 776 : index
    %c0_55 = arith.constant 0 : index
    %141 = vector.load %arg5[%c776, %c0_55] : memref<1392x128xf32, #tpu.memory_space<vmem>>, vector<64x64xf32>
    %cst_56 = arith.constant dense<0.000000e+00> : vector<128x64xf32>
    %142 = tpu.matmul %102, %141, %cst_56 {dimension_numbers = #tpu.dot_dimension_numbers<[1], [0], [0], [1], [0, 0, 1, 1], [], []>} : vector<128x64xf32>, vector<64x64xf32>, vector<128x64xf32> -> vector<128x64xf32>
    %c840 = arith.constant 840 : index
    %c0_57 = arith.constant 0 : index
    %143 = vector.load %arg5[%c840, %c0_57] : memref<1392x128xf32, #tpu.memory_space<vmem>>, vector<64x64xf32>
    %cst_58 = arith.constant dense<0.000000e+00> : vector<128x64xf32>
    %144 = tpu.matmul %103, %143, %cst_58 {dimension_numbers = #tpu.dot_dimension_numbers<[1], [0], [0], [1], [0, 0, 1, 1], [], []>} : vector<128x64xf32>, vector<64x64xf32>, vector<128x64xf32> -> vector<128x64xf32>
    %145 = arith.addf %142, %144 : vector<128x64xf32>
    %c904 = arith.constant 904 : index
    %c0_59 = arith.constant 0 : index
    %146 = vector.load %arg5[%c904, %c0_59] : memref<1392x128xf32, #tpu.memory_space<vmem>>, vector<64x64xf32>
    %cst_60 = arith.constant dense<0.000000e+00> : vector<128x64xf32>
    %147 = tpu.matmul %108, %146, %cst_60 {dimension_numbers = #tpu.dot_dimension_numbers<[1], [0], [0], [1], [0, 0, 1, 1], [], []>} : vector<128x64xf32>, vector<64x64xf32>, vector<128x64xf32> -> vector<128x64xf32>
    %148 = arith.addf %145, %147 : vector<128x64xf32>
    %c1032 = arith.constant 1032 : index
    %c0_61 = arith.constant 0 : index
    %149 = vector.load %arg5[%c1032, %c0_61] : memref<1392x128xf32, #tpu.memory_space<vmem>>, vector<1x64xf32>
    %150 = vector.broadcast %149 : vector<1x64xf32> to vector<128x64xf32>
    %151 = arith.addf %148, %150 : vector<128x64xf32>
    %c968 = arith.constant 968 : index
    %c0_62 = arith.constant 0 : index
    %152 = vector.load %arg5[%c968, %c0_62] : memref<1392x128xf32, #tpu.memory_space<vmem>>, vector<64x64xf32>
    %cst_63 = arith.constant dense<0.000000e+00> : vector<128x64xf32>
    %153 = tpu.matmul %3, %152, %cst_63 {dimension_numbers = #tpu.dot_dimension_numbers<[1], [0], [0], [1], [0, 0, 1, 1], [], []>} : vector<128x64xf32>, vector<64x64xf32>, vector<128x64xf32> -> vector<128x64xf32>
    %c1040 = arith.constant 1040 : index
    %c0_64 = arith.constant 0 : index
    %154 = vector.load %arg5[%c1040, %c0_64] : memref<1392x128xf32, #tpu.memory_space<vmem>>, vector<1x64xf32>
    %155 = vector.broadcast %154 : vector<1x64xf32> to vector<128x64xf32>
    %156 = arith.addf %153, %155 : vector<128x64xf32>
    %157 = arith.addf %119, %124 : vector<128x64xf32>
    %158 = arith.negf %157 : vector<128x64xf32>
    %159 = math.exp %158 : vector<128x64xf32>
    %cst_65 = arith.constant 1.000000e+00 : f32
    %160 = vector.broadcast %cst_65 : f32 to vector<128x64xf32>
    %161 = arith.addf %160, %159 : vector<128x64xf32>
    %162 = arith.divf %160, %161 : vector<128x64xf32>
    %163 = arith.addf %135, %140 : vector<128x64xf32>
    %164 = arith.negf %163 : vector<128x64xf32>
    %165 = math.exp %164 : vector<128x64xf32>
    %cst_66 = arith.constant 1.000000e+00 : f32
    %166 = vector.broadcast %cst_66 : f32 to vector<128x64xf32>
    %167 = arith.addf %166, %165 : vector<128x64xf32>
    %168 = arith.divf %166, %167 : vector<128x64xf32>
    %169 = arith.mulf %162, %156 : vector<128x64xf32>
    %170 = arith.addf %151, %169 : vector<128x64xf32>
    %171 = math.tanh %170 : vector<128x64xf32>
    %cst_67 = arith.constant 1.000000e+00 : f32
    %172 = vector.broadcast %cst_67 : f32 to vector<128x64xf32>
    %173 = arith.subf %172, %168 : vector<128x64xf32>
    %174 = arith.mulf %173, %171 : vector<128x64xf32>
    %175 = arith.mulf %168, %3 : vector<128x64xf32>
    %176 = arith.addf %174, %175 : vector<128x64xf32>
    %c1048 = arith.constant 1048 : index
    %c0_68 = arith.constant 0 : index
    %177 = vector.load %arg5[%c1048, %c0_68] : memref<1392x128xf32, #tpu.memory_space<vmem>>, vector<64x128xf32>
    %cst_69 = arith.constant dense<0.000000e+00> : vector<128x128xf32>
    %178 = tpu.matmul %176, %177, %cst_69 {dimension_numbers = #tpu.dot_dimension_numbers<[1], [0], [0], [1], [0, 0, 1, 1], [], []>} : vector<128x64xf32>, vector<64x128xf32>, vector<128x128xf32> -> vector<128x128xf32>
    %c1112 = arith.constant 1112 : index
    %c0_70 = arith.constant 0 : index
    %179 = vector.load %arg5[%c1112, %c0_70] : memref<1392x128xf32, #tpu.memory_space<vmem>>, vector<1x128xf32>
    %180 = vector.broadcast %179 : vector<1x128xf32> to vector<128x128xf32>
    %181 = arith.addf %178, %180 : vector<128x128xf32>
    %182 = math.tanh %181 : vector<128x128xf32>
    %c1120 = arith.constant 1120 : index
    %c0_71 = arith.constant 0 : index
    %183 = vector.load %arg5[%c1120, %c0_71] : memref<1392x128xf32, #tpu.memory_space<vmem>>, vector<128x64xf32>
    %cst_72 = arith.constant dense<0.000000e+00> : vector<128x64xf32>
    %184 = tpu.matmul %182, %183, %cst_72 {dimension_numbers = #tpu.dot_dimension_numbers<[1], [0], [0], [1], [0, 0, 1, 1], [], []>} : vector<128x128xf32>, vector<128x64xf32>, vector<128x64xf32> -> vector<128x64xf32>
    %c1248 = arith.constant 1248 : index
    %c0_73 = arith.constant 0 : index
    %185 = vector.load %arg5[%c1248, %c0_73] : memref<1392x128xf32, #tpu.memory_space<vmem>>, vector<1x64xf32>
    %186 = vector.broadcast %185 : vector<1x64xf32> to vector<128x64xf32>
    %187 = arith.addf %184, %186 : vector<128x64xf32>
    %188 = math.tanh %187 : vector<128x64xf32>
    %c1256 = arith.constant 1256 : index
    %c0_74 = arith.constant 0 : index
    %189 = vector.load %arg5[%c1256, %c0_74] : memref<1392x128xf32, #tpu.memory_space<vmem>>, vector<128x128xf32>
    %cst_75 = arith.constant dense<0.000000e+00> : vector<128x128xf32>
    %190 = tpu.matmul %182, %189, %cst_75 {dimension_numbers = #tpu.dot_dimension_numbers<[1], [0], [0], [1], [0, 0, 1, 1], [], []>} : vector<128x128xf32>, vector<128x128xf32>, vector<128x128xf32> -> vector<128x128xf32>
    %c1384 = arith.constant 1384 : index
    %c0_76 = arith.constant 0 : index
    %191 = vector.load %arg5[%c1384, %c0_76] : memref<1392x128xf32, #tpu.memory_space<vmem>>, vector<1x128xf32>
    %192 = vector.broadcast %191 : vector<1x128xf32> to vector<128x128xf32>
    %193 = arith.addf %190, %192 : vector<128x128xf32>
    %194 = tpu.concatenate %176, %188, %193 in 1 : vector<128x64xf32>, vector<128x64xf32>, vector<128x128xf32> -> vector<128x256xf32>
    %c0_77 = arith.constant 0 : index
    %c0_78 = arith.constant 0 : index
    %195 = vector.load %arg6[%c0_77, %c0_78] : memref<128x256xf32, #tpu.memory_space<vmem>>, vector<128x256xf32>
    tpu.vector_store %arg6[%c0_77, %c0_78], %194 {strides = array<i32>} : memref<128x256xf32, #tpu.memory_space<vmem>>, vector<128x256xf32>,
    return
  }
  func.func @transform_0(%arg0: i32) -> (i32, i32) {
    %c0_i32 = arith.constant 0 : i32
    %c0_i32_0 = arith.constant 0 : i32
    return %arg0, %c0_i32 : i32, i32
  }
  func.func @transform_1(%arg0: i32) -> (i32, i32) {
    %c0_i32 = arith.constant 0 : i32
    %c0_i32_0 = arith.constant 0 : i32
    return %arg0, %c0_i32 : i32, i32
  }
  func.func @transform_2(%arg0: i32) -> (i32, i32) {
    %c0_i32 = arith.constant 0 : i32
    %c0_i32_0 = arith.constant 0 : i32
    return %arg0, %c0_i32 : i32, i32
  }
  func.func @transform_3(%arg0: i32) -> (i32, i32) {
    %c0_i32 = arith.constant 0 : i32
    %c0_i32_0 = arith.constant 0 : i32
    return %arg0, %c0_i32 : i32, i32
  }
  func.func @transform_4(%arg0: i32) -> (i32, i32) {
    %c0_i32 = arith.constant 0 : i32
    %c0_i32_0 = arith.constant 0 : i32
    %c0_i32_1 = arith.constant 0 : i32
    return %c0_i32, %c0_i32_0 : i32, i32
  }
  func.func @transform_5(%arg0: i32) -> (i32, i32) {
    %c0_i32 = arith.constant 0 : i32
    %c0_i32_0 = arith.constant 0 : i32
    return %arg0, %c0_i32 : i32, i32
  }
}

</mosaic_0001>

<llo_original>
// kernel: tpu_custom_call.1
$region0: #{tpu_custom_call.1}
  #allocation0 [shape = 'u32[]', space=smem, size = 0x4, offset = 0x4, fixed_abs, tag = 'smem constant byte address 0x4 - core index']
  #allocation1 [shape = 'u32[144,128]{1,0:T(1,128)}', space=vmem, size = 0x12000, scoped, tag = 'internal scratch']
  %s0 = inlined_call_operand.vmem [shape: f32[128,32], index: 0, kind: input, shape index: {}]
  %s1 = inlined_call_operand.vmem [shape: f32[640,32], index: 1, kind: input, shape index: {}]
  %s2 = inlined_call_operand.vmem [shape: f32[128,7], index: 2, kind: input, shape index: {}]
  %s3 = inlined_call_operand.vmem [shape: f32[128,64], index: 3, kind: input, shape index: {}]
  %s4 = inlined_call_operand.hbm [shape: f32[1392,128], index: 4, kind: input, shape index: {}]
  %s5 = inlined_call_operand.hbm [shape: f32[128,256], index: 5, kind: output, shape index: {}]
  %s6 = sld [smem:[#allocation0]]
  $region34: #{tpu_custom_call.1} parent=0
    _
  %s8 = ssub.s32 1, %s6
  %s9 = scalar_select 0, %s8, %s6
  $region1: #{tpu_custom_call.1} parent=0
    #allocation2 [shape = 'u8[712704]{0}', space=vmem, size = 0xae000, scoped, tag = 'input window, operand 4, single buffered']
    #allocation3 [shape = 's32[1]{0}', space=sflag, size = 0x4, scoped, tag = 'scoped memory for tpu_custom_call.1']
    #allocation4 [shape = 's32[1]{0}', space=sflag, size = 0x4, scoped, tag = 'scoped memory for tpu_custom_call.1']
    #allocation5 [shape = 'u8[131072]{0}', space=vmem, size = 0x20000, scoped, tag = 'output window, operand 0, single buffered']
    %10 = vsyncpa [#allocation3], 0
    %11 = vsyncpa [#allocation4], 0
    // Predicated region
    $region2: #{tpu_custom_call.1} parent=1 // pred_check
      _
    $region3: #{tpu_custom_call.1} parent=1 // pred_check_branch
      %13 = sbr.rel (0) target = $region5
    $region4: #{tpu_custom_call.1} parent=1 // pred_region
      _
    $region5: #{tpu_custom_call.1} parent=1 // pred_fallthru
      _
    // Predicated region
    $region6: #{tpu_custom_call.1} parent=1 // pred_check
      _
    $region7: #{tpu_custom_call.1} parent=1 // pred_check_branch
      %15 = sbr.rel (0) target = $region9
    $region8: #{tpu_custom_call.1} parent=1 // pred_region
      _
    $region9: #{tpu_custom_call.1} parent=1 // pred_fallthru
      _
    // Predicated region
    $region10: #{tpu_custom_call.1} parent=1 // pred_check
      _
    $region11: #{tpu_custom_call.1} parent=1 // pred_check_branch
      %17 = sbr.rel (0) target = $region13
    $region12: #{tpu_custom_call.1} parent=1 // pred_region
      _
    $region13: #{tpu_custom_call.1} parent=1 // pred_fallthru
      _
    // Predicated region
    $region14: #{tpu_custom_call.1} parent=1 // pred_check
      _
    $region15: #{tpu_custom_call.1} parent=1 // pred_check_branch
      %19 = sbr.rel (0) target = $region17
    $region16: #{tpu_custom_call.1} parent=1 // pred_region
      _
    $region17: #{tpu_custom_call.1} parent=1 // pred_fallthru
      _
    // Predicated region
    $region18: #{tpu_custom_call.1} parent=1 // pred_check
      _
    $region19: #{tpu_custom_call.1} parent=1 // pred_check_branch
      %21 = sbr.rel (0) target = $region21
    $region20: #{tpu_custom_call.1} parent=1 // pred_region
      %s23 = ssub.s32 22272, 22272
      %24 = vsyncadd [#allocation3], %s23
      %s25 = sshll.u32 [#allocation2], 4
      %s26 = int_to_ptr.vmem [resolvable:$true] %s25
      %31 = dma.hbm_to_vmem [thread:$0]  %s4, 22272, %s26, [#allocation3], 128, 128, 8
    $region21: #{tpu_custom_call.1} parent=1 // pred_fallthru
      _
    // Predicated region
    $region22: #{tpu_custom_call.1} parent=1 // pred_check
      _
    $region23: #{tpu_custom_call.1} parent=1 // pred_check_branch
      %33 = sbr.rel (0) target = $region25
    $region24: #{tpu_custom_call.1} parent=1 // pred_region
      %34 = dma.done [#allocation3], 22272
    $region25: #{tpu_custom_call.1} parent=1 // pred_fallthru
      _
    %v35 = vld [vmem:[%s0] sm:$0xff]
    %v36 = vld [vmem:[%s0 + $0x8] sm:$0xff]
    %v37 = vld [vmem:[%s0 + $0x10] sm:$0xff]
    %v38 = vld [vmem:[%s0 + $0x18] sm:$0xff]
    %v39 = vld [vmem:[%s0 + $0x20] sm:$0xff]
    %v40 = vld [vmem:[%s0 + $0x28] sm:$0xff]
    %v41 = vld [vmem:[%s0 + $0x30] sm:$0xff]
    %v42 = vld [vmem:[%s0 + $0x38] sm:$0xff]
    %v43 = vld [vmem:[%s0 + $0x40] sm:$0xff]
    %v44 = vld [vmem:[%s0 + $0x48] sm:$0xff]
    %v45 = vld [vmem:[%s0 + $0x50] sm:$0xff]
    %v46 = vld [vmem:[%s0 + $0x58] sm:$0xff]
    %v47 = vld [vmem:[%s0 + $0x60] sm:$0xff]
    %v48 = vld [vmem:[%s0 + $0x68] sm:$0xff]
    %v49 = vld [vmem:[%s0 + $0x70] sm:$0xff]
    %v50 = vld [vmem:[%s0 + $0x78] sm:$0xff]
    %v51 = vld [vmem:[%s1] sm:$0xff]
    %v52 = vld [vmem:[%s1 + $0x8] sm:$0xff]
    %v53 = vld [vmem:[%s1 + $0x10] sm:$0xff]
    %v54 = vld [vmem:[%s1 + $0x18] sm:$0xff]
    %v55 = vld [vmem:[%s1 + $0x20] sm:$0xff]
    %v56 = vld [vmem:[%s1 + $0x28] sm:$0xff]
    %v57 = vld [vmem:[%s1 + $0x30] sm:$0xff]
    %v58 = vld [vmem:[%s1 + $0x38] sm:$0xff]
    %v59 = vld [vmem:[%s1 + $0x40] sm:$0xff]
    %v60 = vld [vmem:[%s1 + $0x48] sm:$0xff]
    %v61 = vld [vmem:[%s1 + $0x50] sm:$0xff]
    %v62 = vld [vmem:[%s1 + $0x58] sm:$0xff]
    %v63 = vld [vmem:[%s1 + $0x60] sm:$0xff]
    %v64 = vld [vmem:[%s1 + $0x68] sm:$0xff]
    %v65 = vld [vmem:[%s1 + $0x70] sm:$0xff]
    %v66 = vld [vmem:[%s1 + $0x78] sm:$0xff]
    %v67 = vld [vmem:[%s1 + $0x80] sm:$0xff]
    %v68 = vld [vmem:[%s1 + $0x88] sm:$0xff]
    %v69 = vld [vmem:[%s1 + $0x90] sm:$0xff]
    %v70 = vld [vmem:[%s1 + $0x98] sm:$0xff]
    %v71 = vld [vmem:[%s1 + $0xa0] sm:$0xff]
    %v72 = vld [vmem:[%s1 + $0xa8] sm:$0xff]
    %v73 = vld [vmem:[%s1 + $0xb0] sm:$0xff]
    %v74 = vld [vmem:[%s1 + $0xb8] sm:$0xff]
    %v75 = vld [vmem:[%s1 + $0xc0] sm:$0xff]
    %v76 = vld [vmem:[%s1 + $0xc8] sm:$0xff]
    %v77 = vld [vmem:[%s1 + $0xd0] sm:$0xff]
    %v78 = vld [vmem:[%s1 + $0xd8] sm:$0xff]
    %v79 = vld [vmem:[%s1 + $0xe0] sm:$0xff]
    %v80 = vld [vmem:[%s1 + $0xe8] sm:$0xff]
    %v81 = vld [vmem:[%s1 + $0xf0] sm:$0xff]
    %v82 = vld [vmem:[%s1 + $0xf8] sm:$0xff]
    %v83 = vld [vmem:[%s1 + $0x100] sm:$0xff]
    %v84 = vld [vmem:[%s1 + $0x108] sm:$0xff]
    %v85 = vld [vmem:[%s1 + $0x110] sm:$0xff]
    %v86 = vld [vmem:[%s1 + $0x118] sm:$0xff]
    %v87 = vld [vmem:[%s1 + $0x120] sm:$0xff]
    %v88 = vld [vmem:[%s1 + $0x128] sm:$0xff]
    %v89 = vld [vmem:[%s1 + $0x130] sm:$0xff]
    %v90 = vld [vmem:[%s1 + $0x138] sm:$0xff]
    %v91 = vld [vmem:[%s1 + $0x140] sm:$0xff]
    %v92 = vld [vmem:[%s1 + $0x148] sm:$0xff]
    %v93 = vld [vmem:[%s1 + $0x150] sm:$0xff]
    %v94 = vld [vmem:[%s1 + $0x158] sm:$0xff]
    %v95 = vld [vmem:[%s1 + $0x160] sm:$0xff]
    %v96 = vld [vmem:[%s1 + $0x168] sm:$0xff]
    %v97 = vld [vmem:[%s1 + $0x170] sm:$0xff]
    %v98 = vld [vmem:[%s1 + $0x178] sm:$0xff]
    %v99 = vld [vmem:[%s1 + $0x180] sm:$0xff]
    %v100 = vld [vmem:[%s1 + $0x188] sm:$0xff]
    %v101 = vld [vmem:[%s1 + $0x190] sm:$0xff]
    %v102 = vld [vmem:[%s1 + $0x198] sm:$0xff]
    %v103 = vld [vmem:[%s1 + $0x1a0] sm:$0xff]
    %v104 = vld [vmem:[%s1 + $0x1a8] sm:$0xff]
    %v105 = vld [vmem:[%s1 + $0x1b0] sm:$0xff]
    %v106 = vld [vmem:[%s1 + $0x1b8] sm:$0xff]
    %v107 = vld [vmem:[%s1 + $0x1c0] sm:$0xff]
    %v108 = vld [vmem:[%s1 + $0x1c8] sm:$0xff]
    %v109 = vld [vmem:[%s1 + $0x1d0] sm:$0xff]
    %v110 = vld [vmem:[%s1 + $0x1d8] sm:$0xff]
    %v111 = vld [vmem:[%s1 + $0x1e0] sm:$0xff]
    %v112 = vld [vmem:[%s1 + $0x1e8] sm:$0xff]
    %v113 = vld [vmem:[%s1 + $0x1f0] sm:$0xff]
    %v114 = vld [vmem:[%s1 + $0x1f8] sm:$0xff]
    %v115 = vld [vmem:[%s1 + $0x200] sm:$0xff]
    %v116 = vld [vmem:[%s1 + $0x208] sm:$0xff]
    %v117 = vld [vmem:[%s1 + $0x210] sm:$0xff]
    %v118 = vld [vmem:[%s1 + $0x218] sm:$0xff]
    %v119 = vld [vmem:[%s1 + $0x220] sm:$0xff]
    %v120 = vld [vmem:[%s1 + $0x228] sm:$0xff]
    %v121 = vld [vmem:[%s1 + $0x230] sm:$0xff]
    %v122 = vld [vmem:[%s1 + $0x238] sm:$0xff]
    %v123 = vld [vmem:[%s1 + $0x240] sm:$0xff]
    %v124 = vld [vmem:[%s1 + $0x248] sm:$0xff]
    %v125 = vld [vmem:[%s1 + $0x250] sm:$0xff]
    %v126 = vld [vmem:[%s1 + $0x258] sm:$0xff]
    %v127 = vld [vmem:[%s1 + $0x260] sm:$0xff]
    %v128 = vld [vmem:[%s1 + $0x268] sm:$0xff]
    %v129 = vld [vmem:[%s1 + $0x270] sm:$0xff]
    %v130 = vld [vmem:[%s1 + $0x278] sm:$0xff]
    %v131 = vld [vmem:[%s2] sm:$0xff]
    %v132 = vld [vmem:[%s2 + $0x8] sm:$0xff]
    %v133 = vld [vmem:[%s2 + $0x10] sm:$0xff]
    %v134 = vld [vmem:[%s2 + $0x18] sm:$0xff]
    %v135 = vld [vmem:[%s2 + $0x20] sm:$0xff]
    %v136 = vld [vmem:[%s2 + $0x28] sm:$0xff]
    %v137 = vld [vmem:[%s2 + $0x30] sm:$0xff]
    %v138 = vld [vmem:[%s2 + $0x38] sm:$0xff]
    %v139 = vld [vmem:[%s2 + $0x40] sm:$0xff]
    %v140 = vld [vmem:[%s2 + $0x48] sm:$0xff]
    %v141 = vld [vmem:[%s2 + $0x50] sm:$0xff]
    %v142 = vld [vmem:[%s2 + $0x58] sm:$0xff]
    %v143 = vld [vmem:[%s2 + $0x60] sm:$0xff]
    %v144 = vld [vmem:[%s2 + $0x68] sm:$0xff]
    %v145 = vld [vmem:[%s2 + $0x70] sm:$0xff]
    %v146 = vld [vmem:[%s2 + $0x78] sm:$0xff]
    %v147 = vld [vmem:[%s3] sm:$0xff]
    %v148 = vld [vmem:[%s3 + $0x8] sm:$0xff]
    %v149 = vld [vmem:[%s3 + $0x10] sm:$0xff]
    %v150 = vld [vmem:[%s3 + $0x18] sm:$0xff]
    %v151 = vld [vmem:[%s3 + $0x20] sm:$0xff]
    %v152 = vld [vmem:[%s3 + $0x28] sm:$0xff]
    %v153 = vld [vmem:[%s3 + $0x30] sm:$0xff]
    %v154 = vld [vmem:[%s3 + $0x38] sm:$0xff]
    %v155 = vld [vmem:[%s3 + $0x40] sm:$0xff]
    %v156 = vld [vmem:[%s3 + $0x48] sm:$0xff]
    %v157 = vld [vmem:[%s3 + $0x50] sm:$0xff]
    %v158 = vld [vmem:[%s3 + $0x58] sm:$0xff]
    %v159 = vld [vmem:[%s3 + $0x60] sm:$0xff]
    %v160 = vld [vmem:[%s3 + $0x68] sm:$0xff]
    %v161 = vld [vmem:[%s3 + $0x70] sm:$0xff]
    %v162 = vld [vmem:[%s3 + $0x78] sm:$0xff]
    %v163 = vld [vmem:[#allocation2] sm:$0xff]
    %v164 = vld [vmem:[#allocation2 + $0x8] sm:$0xff]
    %v165 = vld [vmem:[#allocation2 + $0x10] sm:$0xff]
    %v166 = vld [vmem:[#allocation2 + $0x18] sm:$0xff]
    %v167 = vld [vmem:[#allocation2 + $0x20] sm:$0x1]
    %v168 = vlaneseq
    %v169 = vshrl.u32 %v168, 7
    %v170 = vsub.s32 0, %v169
    %v171 = vrot.slane %v167, %v170
    %vm172 = vcmask 261120
    %v174 = vsel %vm172, %v35, 0
    %v177 = vsel %vm172, %v36, 0
    %v180 = vsel %vm172, %v37, 0
    %v183 = vsel %vm172, %v38, 0
    %v186 = vsel %vm172, %v39, 0
    %v189 = vsel %vm172, %v40, 0
    %v192 = vsel %vm172, %v41, 0
    %v195 = vsel %vm172, %v42, 0
    %v198 = vsel %vm172, %v43, 0
    %v201 = vsel %vm172, %v44, 0
    %v204 = vsel %vm172, %v45, 0
    %v207 = vsel %vm172, %v46, 0
    %v210 = vsel %vm172, %v47, 0
    %v213 = vsel %vm172, %v48, 0
    %v216 = vsel %vm172, %v49, 0
    %v219 = vsel %vm172, %v50, 0
    %221 = vmatprep.subr.mxu0 0.0
    %222 = vmatpush1.msra.mxu0 %v163
    %223 = vmatprep.subr.mxu0 0.0
    %224 = vmatpush1.msra.mxu0 %v164
    %225 = vmatprep.subr.mxu0 0.0
    %226 = vmatpush1.msra.mxu0 %v165
    %227 = vmatprep.subr.mxu0 0.0
    %228 = vmatpush1.msra.mxu0 %v166
    %229 = vmatprep.subr.mxu0 0.0
    %230 = vmatpush1.msra.mxu0 0.0
    %231 = vmatprep.subr.mxu0 0.0
    %232 = vmatpush1.msra.mxu0 0.0
    %233 = vmatprep.subr.mxu0 0.0
    %234 = vmatpush1.msra.mxu0 0.0
    %235 = vmatprep.subr.mxu0 0.0
    %236 = vmatpush1.msra.mxu0 0.0
    %237 = vmatprep.subr.mxu0 0.0
    %238 = vmatpush1.msra.mxu0 0.0
    %239 = vmatprep.subr.mxu0 0.0
    %240 = vmatpush1.msra.mxu0 0.0
    %241 = vmatprep.subr.mxu0 0.0
    %242 = vmatpush1.msra.mxu0 0.0
    %243 = vmatprep.subr.mxu0 0.0
    %244 = vmatpush1.msra.mxu0 0.0
    %245 = vmatprep.subr.mxu0 0.0
    %246 = vmatpush1.msra.mxu0 0.0
    %247 = vmatprep.subr.mxu0 0.0
    %248 = vmatpush1.msra.mxu0 0.0
    %249 = vmatprep.subr.mxu0 0.0
    %250 = vmatpush1.msra.mxu0 0.0
    %251 = vmatprep.subr.mxu0 0.0
    %252 = vmatpush1.msra.mxu0 0.0
    %253 = vmatprep.subr.mxu0 0.0
    %254 = vmatpush1.msra.mxu0 0.0
    %255 = vmatprep.subr.mxu0 0.0
    %256 = vmatpush1.msra.mxu0 0.0
    %257 = vmatprep.subr.mxu0 0.0
    %258 = vmatpush1.msra.mxu0 0.0
    %259 = vmatprep.subr.mxu0 0.0
    %260 = vmatpush1.msra.mxu0 0.0
    %261 = vmatprep.subr.mxu0 0.0
    %262 = vmatpush1.msra.mxu0 0.0
    %263 = vmatprep.subr.mxu0 0.0
    %264 = vmatpush1.msra.mxu0 0.0
    %265 = vmatprep.subr.mxu0 0.0
    %266 = vmatpush1.msra.mxu0 0.0
    %267 = vmatprep.subr.mxu0 0.0
    %268 = vmatpush1.msra.mxu0 0.0
    %269 = vmatprep.subr.mxu0 0.0
    %270 = vmatpush1.msra.mxu0 0.0
    %271 = vmatprep.subr.mxu0 0.0
    %272 = vmatpush1.msra.mxu0 0.0
    %273 = vmatprep.subr.mxu0 0.0
    %274 = vmatpush1.msra.mxu0 0.0
    %275 = vmatprep.subr.mxu0 0.0
    %276 = vmatpush1.msra.mxu0 0.0
    %277 = vmatprep.subr.mxu0 0.0
    %278 = vmatpush1.msra.mxu0 0.0
    %279 = vmatprep.subr.mxu0 0.0
    %280 = vmatpush1.msra.mxu0 0.0
    %281 = vmatprep.subr.mxu0 0.0
    %282 = vmatpush1.msra.mxu0 0.0
    %283 = vmatprep.subr.mxu0 0.0
    %284 = vmatpush1.msra.mxu0 0.0
    %285 = vmatprep.mubr.f32.mxu0 0.0
    %286 = vmatmul.mubr.f32.gmra.mrb[0].mxu0 %v174
    %v287 = vpop.f32.mrb[0].mxu0
    %v288 = vadd.f32 %v171, %v287
    %v289 = vpop.f32.mrb[0].mxu0
    %290 = vmatprep.mubr.f32.mxu0 0.0
    %291 = vmatmul.mubr.f32.gmra.mrb[0].mxu0 %v177
    %v292 = vpop.f32.mrb[0].mxu0
    %v293 = vadd.f32 %v171, %v292
    %v294 = vpop.f32.mrb[0].mxu0
    %295 = vmatprep.mubr.f32.mxu0 0.0
    %296 = vmatmul.mubr.f32.gmra.mrb[0].mxu0 %v180
    %v297 = vpop.f32.mrb[0].mxu0
    %v298 = vadd.f32 %v171, %v297
    %v299 = vpop.f32.mrb[0].mxu0
    %300 = vmatprep.mubr.f32.mxu0 0.0
    %301 = vmatmul.mubr.f32.gmra.mrb[0].mxu0 %v183
    %v302 = vpop.f32.mrb[0].mxu0
    %v303 = vadd.f32 %v171, %v302
    %v304 = vpop.f32.mrb[0].mxu0
    %305 = vmatprep.mubr.f32.mxu0 0.0
    %306 = vmatmul.mubr.f32.gmra.mrb[0].mxu0 %v186
    %v307 = vpop.f32.mrb[0].mxu0
    %v308 = vadd.f32 %v171, %v307
    %v309 = vpop.f32.mrb[0].mxu0
    %310 = vmatprep.mubr.f32.mxu0 0.0
    %311 = vmatmul.mubr.f32.gmra.mrb[0].mxu0 %v189
    %v312 = vpop.f32.mrb[0].mxu0
    %v313 = vadd.f32 %v171, %v312
    %v314 = vpop.f32.mrb[0].mxu0
    %315 = vmatprep.mubr.f32.mxu0 0.0
    %316 = vmatmul.mubr.f32.gmra.mrb[0].mxu0 %v192
    %v317 = vpop.f32.mrb[0].mxu0
    %v318 = vadd.f32 %v171, %v317
    %v319 = vpop.f32.mrb[0].mxu0
    %320 = vmatprep.mubr.f32.mxu0 0.0
    %321 = vmatmul.mubr.f32.gmra.mrb[0].mxu0 %v195
    %v322 = vpop.f32.mrb[0].mxu0
    %v323 = vadd.f32 %v171, %v322
    %v324 = vpop.f32.mrb[0].mxu0
    %325 = vmatprep.mubr.f32.mxu0 0.0
    %326 = vmatmul.mubr.f32.gmra.mrb[0].mxu0 %v198
    %v327 = vpop.f32.mrb[0].mxu0
    %v328 = vadd.f32 %v171, %v327
    %v329 = vpop.f32.mrb[0].mxu0
    %330 = vmatprep.mubr.f32.mxu0 0.0
    %331 = vmatmul.mubr.f32.gmra.mrb[0].mxu0 %v201
    %v332 = vpop.f32.mrb[0].mxu0
    %v333 = vadd.f32 %v171, %v332
    %v334 = vpop.f32.mrb[0].mxu0
    %335 = vmatprep.mubr.f32.mxu0 0.0
    %336 = vmatmul.mubr.f32.gmra.mrb[0].mxu0 %v204
    %v337 = vpop.f32.mrb[0].mxu0
    %v338 = vadd.f32 %v171, %v337
    %v339 = vpop.f32.mrb[0].mxu0
    %340 = vmatprep.mubr.f32.mxu0 0.0
    %341 = vmatmul.mubr.f32.gmra.mrb[0].mxu0 %v207
    %v342 = vpop.f32.mrb[0].mxu0
    %v343 = vadd.f32 %v171, %v342
    %v344 = vpop.f32.mrb[0].mxu0
    %345 = vmatprep.mubr.f32.mxu0 0.0
    %346 = vmatmul.mubr.f32.gmra.mrb[0].mxu0 %v210
    %v347 = vpop.f32.mrb[0].mxu0
    %v348 = vadd.f32 %v171, %v347
    %v349 = vpop.f32.mrb[0].mxu0
    %350 = vmatprep.mubr.f32.mxu0 0.0
    %351 = vmatmul.mubr.f32.gmra.mrb[0].mxu0 %v213
    %v352 = vpop.f32.mrb[0].mxu0
    %v353 = vadd.f32 %v171, %v352
    %v354 = vpop.f32.mrb[0].mxu0
    %355 = vmatprep.mubr.f32.mxu0 0.0
    %356 = vmatmul.mubr.f32.gmra.mrb[0].mxu0 %v216
    %v357 = vpop.f32.mrb[0].mxu0
    %v358 = vadd.f32 %v171, %v357
    %v359 = vpop.f32.mrb[0].mxu0
    %360 = vmatprep.mubr.f32.mxu0 0.0
    %361 = vmatmul.mubr.f32.gmra.mrb[0].mxu0 %v219
    %v362 = vpop.f32.mrb[0].mxu0
    %v363 = vadd.f32 %v171, %v362
    %v364 = vpop.f32.mrb[0].mxu0
    %365 = vdwg.mxu0
    %v366 = vmax.f32 %v288, 0.0
    %v367 = vmax.f32 %v293, 0.0
    %v368 = vmax.f32 %v298, 0.0
    %v369 = vmax.f32 %v303, 0.0
    %v370 = vmax.f32 %v308, 0.0
    %v371 = vmax.f32 %v313, 0.0
    %v372 = vmax.f32 %v318, 0.0
    %v373 = vmax.f32 %v323, 0.0
    %v374 = vmax.f32 %v328, 0.0
    %v375 = vmax.f32 %v333, 0.0
    %v376 = vmax.f32 %v338, 0.0
    %v377 = vmax.f32 %v343, 0.0
    %v378 = vmax.f32 %v348, 0.0
    %v379 = vmax.f32 %v353, 0.0
    %v380 = vmax.f32 %v358, 0.0
    %v381 = vmax.f32 %v363, 0.0
    %v382 = vld [vmem:[#allocation2 + $0x50] sm:$0xff]
    %v383 = vld [vmem:[#allocation2 + $0x58] sm:$0xff]
    %v384 = vld [vmem:[#allocation2 + $0x60] sm:$0xff]
    %v385 = vld [vmem:[#allocation2 + $0x68] sm:$0xff]
    %v386 = vld [vmem:[#allocation2 + $0x70] sm:$0xff]
    %v387 = vld [vmem:[#allocation2 + $0x78] sm:$0xff]
    %v388 = vld [vmem:[#allocation2 + $0x80] sm:$0xff]
    %v389 = vld [vmem:[#allocation2 + $0x88] sm:$0xff]
    %v390 = vld [vmem:[#allocation2 + $0x90] sm:$0x1]
    %v391 = vlaneseq
    %v392 = vshrl.u32 %v391, 7
    %v393 = vsub.s32 0, %v392
    %v394 = vrot.slane %v390, %v393
    %vm395 = vcmask 523264
    %v397 = vsel %vm395, %v366, 0
    %v400 = vsel %vm395, %v367, 0
    %v403 = vsel %vm395, %v368, 0
    %v406 = vsel %vm395, %v369, 0
    %v409 = vsel %vm395, %v370, 0
    %v412 = vsel %vm395, %v371, 0
    %v415 = vsel %vm395, %v372, 0
    %v418 = vsel %vm395, %v373, 0
    %v421 = vsel %vm395, %v374, 0
    %v424 = vsel %vm395, %v375, 0
    %v427 = vsel %vm395, %v376, 0
    %v430 = vsel %vm395, %v377, 0
    %v433 = vsel %vm395, %v378, 0
    %v436 = vsel %vm395, %v379, 0
    %v439 = vsel %vm395, %v380, 0
    %v442 = vsel %vm395, %v381, 0
    %444 = vmatprep.subr.mxu0 0.0
    %445 = vmatpush1.msra.mxu0 %v382
    %446 = vmatprep.subr.mxu0 0.0
    %447 = vmatpush1.msra.mxu0 %v383
    %448 = vmatprep.subr.mxu0 0.0
    %449 = vmatpush1.msra.mxu0 %v384
    %450 = vmatprep.subr.mxu0 0.0
    %451 = vmatpush1.msra.mxu0 %v385
    %452 = vmatprep.subr.mxu0 0.0
    %453 = vmatpush1.msra.mxu0 %v386
    %454 = vmatprep.subr.mxu0 0.0
    %455 = vmatpush1.msra.mxu0 %v387
    %456 = vmatprep.subr.mxu0 0.0
    %457 = vmatpush1.msra.mxu0 %v388
    %458 = vmatprep.subr.mxu0 0.0
    %459 = vmatpush1.msra.mxu0 %v389
    %460 = vmatprep.subr.mxu0 0.0
    %461 = vmatpush1.msra.mxu0 0.0
    %462 = vmatprep.subr.mxu0 0.0
    %463 = vmatpush1.msra.mxu0 0.0
    %464 = vmatprep.subr.mxu0 0.0
    %465 = vmatpush1.msra.mxu0 0.0
    %466 = vmatprep.subr.mxu0 0.0
    %467 = vmatpush1.msra.mxu0 0.0
    %468 = vmatprep.subr.mxu0 0.0
    %469 = vmatpush1.msra.mxu0 0.0
    %470 = vmatprep.subr.mxu0 0.0
    %471 = vmatpush1.msra.mxu0 0.0
    %472 = vmatprep.subr.mxu0 0.0
    %473 = vmatpush1.msra.mxu0 0.0
    %474 = vmatprep.subr.mxu0 0.0
    %475 = vmatpush1.msra.mxu0 0.0
    %476 = vmatprep.subr.mxu0 0.0
    %477 = vmatpush1.msra.mxu0 0.0
    %478 = vmatprep.subr.mxu0 0.0
    %479 = vmatpush1.msra.mxu0 0.0
    %480 = vmatprep.subr.mxu0 0.0
    %481 = vmatpush1.msra.mxu0 0.0
    %482 = vmatprep.subr.mxu0 0.0
    %483 = vmatpush1.msra.mxu0 0.0
    %484 = vmatprep.subr.mxu0 0.0
    %485 = vmatpush1.msra.mxu0 0.0
    %486 = vmatprep.subr.mxu0 0.0
    %487 = vmatpush1.msra.mxu0 0.0
    %488 = vmatprep.subr.mxu0 0.0
    %489 = vmatpush1.msra.mxu0 0.0
    %490 = vmatprep.subr.mxu0 0.0
    %491 = vmatpush1.msra.mxu0 0.0
    %492 = vmatprep.subr.mxu0 0.0
    %493 = vmatpush1.msra.mxu0 0.0
    %494 = vmatprep.subr.mxu0 0.0
    %495 = vmatpush1.msra.mxu0 0.0
    %496 = vmatprep.subr.mxu0 0.0
    %497 = vmatpush1.msra.mxu0 0.0
    %498 = vmatprep.subr.mxu0 0.0
    %499 = vmatpush1.msra.mxu0 0.0
    %500 = vmatprep.subr.mxu0 0.0
    %501 = vmatpush1.msra.mxu0 0.0
    %502 = vmatprep.subr.mxu0 0.0
    %503 = vmatpush1.msra.mxu0 0.0
    %504 = vmatprep.subr.mxu0 0.0
    %505 = vmatpush1.msra.mxu0 0.0
    %506 = vmatprep.subr.mxu0 0.0
    %507 = vmatpush1.msra.mxu0 0.0
    %508 = vmatprep.mubr.f32.mxu0 0.0
    %509 = vmatmul.mubr.f32.gmra.mrb[0].mxu0 %v397
    %v510 = vpop.f32.mrb[0].mxu0
    %v511 = vadd.f32 %v394, %v510
    %v512 = vpop.f32.mrb[0].mxu0
    %513 = vmatprep.mubr.f32.mxu0 0.0
    %514 = vmatmul.mubr.f32.gmra.mrb[0].mxu0 %v400
    %v515 = vpop.f32.mrb[0].mxu0
    %v516 = vadd.f32 %v394, %v515
    %v517 = vpop.f32.mrb[0].mxu0
    %518 = vmatprep.mubr.f32.mxu0 0.0
    %519 = vmatmul.mubr.f32.gmra.mrb[0].mxu0 %v403
    %v520 = vpop.f32.mrb[0].mxu0
    %v521 = vadd.f32 %v394, %v520
    %v522 = vpop.f32.mrb[0].mxu0
    %523 = vmatprep.mubr.f32.mxu0 0.0
    %524 = vmatmul.mubr.f32.gmra.mrb[0].mxu0 %v406
    %v525 = vpop.f32.mrb[0].mxu0
    %v526 = vadd.f32 %v394, %v525
    %v527 = vpop.f32.mrb[0].mxu0
    %528 = vmatprep.mubr.f32.mxu0 0.0
    %529 = vmatmul.mubr.f32.gmra.mrb[0].mxu0 %v409
    %v530 = vpop.f32.mrb[0].mxu0
    %v531 = vadd.f32 %v394, %v530
    %v532 = vpop.f32.mrb[0].mxu0
    %533 = vmatprep.mubr.f32.mxu0 0.0
    %534 = vmatmul.mubr.f32.gmra.mrb[0].mxu0 %v412
    %v535 = vpop.f32.mrb[0].mxu0
    %v536 = vadd.f32 %v394, %v535
    %v537 = vpop.f32.mrb[0].mxu0
    %538 = vmatprep.mubr.f32.mxu0 0.0
    %539 = vmatmul.mubr.f32.gmra.mrb[0].mxu0 %v415
    %v540 = vpop.f32.mrb[0].mxu0
    %v541 = vadd.f32 %v394, %v540
    %v542 = vpop.f32.mrb[0].mxu0
    %543 = vmatprep.mubr.f32.mxu0 0.0
    %544 = vmatmul.mubr.f32.gmra.mrb[0].mxu0 %v418
    %v545 = vpop.f32.mrb[0].mxu0
    %v546 = vadd.f32 %v394, %v545
    %v547 = vpop.f32.mrb[0].mxu0
    %548 = vmatprep.mubr.f32.mxu0 0.0
    %549 = vmatmul.mubr.f32.gmra.mrb[0].mxu0 %v421
    %v550 = vpop.f32.mrb[0].mxu0
    %v551 = vadd.f32 %v394, %v550
    %v552 = vpop.f32.mrb[0].mxu0
    %553 = vmatprep.mubr.f32.mxu0 0.0
    %554 = vmatmul.mubr.f32.gmra.mrb[0].mxu0 %v424
    %v555 = vpop.f32.mrb[0].mxu0
    %v556 = vadd.f32 %v394, %v555
    %v557 = vpop.f32.mrb[0].mxu0
    %558 = vmatprep.mubr.f32.mxu0 0.0
    %559 = vmatmul.mubr.f32.gmra.mrb[0].mxu0 %v427
    %v560 = vpop.f32.mrb[0].mxu0
    %v561 = vadd.f32 %v394, %v560
    %v562 = vpop.f32.mrb[0].mxu0
    %563 = vmatprep.mubr.f32.mxu0 0.0
    %564 = vmatmul.mubr.f32.gmra.mrb[0].mxu0 %v430
    %v565 = vpop.f32.mrb[0].mxu0
    %v566 = vadd.f32 %v394, %v565
    %v567 = vpop.f32.mrb[0].mxu0
    %568 = vmatprep.mubr.f32.mxu0 0.0
    %569 = vmatmul.mubr.f32.gmra.mrb[0].mxu0 %v433
    %v570 = vpop.f32.mrb[0].mxu0
    %v571 = vadd.f32 %v394, %v570
    %v572 = vpop.f32.mrb[0].mxu0
    %573 = vmatprep.mubr.f32.mxu0 0.0
    %574 = vmatmul.mubr.f32.gmra.mrb[0].mxu0 %v436
    %v575 = vpop.f32.mrb[0].mxu0
    %v576 = vadd.f32 %v394, %v575
    %v577 = vpop.f32.mrb[0].mxu0
    %578 = vmatprep.mubr.f32.mxu0 0.0
    %579 = vmatmul.mubr.f32.gmra.mrb[0].mxu0 %v439
    %v580 = vpop.f32.mrb[0].mxu0
    %v581 = vadd.f32 %v394, %v580
    %v582 = vpop.f32.mrb[0].mxu0
    %583 = vmatprep.mubr.f32.mxu0 0.0
    %584 = vmatmul.mubr.f32.gmra.mrb[0].mxu0 %v442
    %v585 = vpop.f32.mrb[0].mxu0
    %v586 = vadd.f32 %v394, %v585
    %v587 = vpop.f32.mrb[0].mxu0
    %588 = vdwg.mxu0
    %v589 = vmax.f32 %v511, 0.0
    %v590 = vmax.f32 %v516, 0.0
    %v591 = vmax.f32 %v521, 0.0
    %v592 = vmax.f32 %v526, 0.0
    %v593 = vmax.f32 %v531, 0.0
    %v594 = vmax.f32 %v536, 0.0
    %v595 = vmax.f32 %v541, 0.0
    %v596 = vmax.f32 %v546, 0.0
    %v597 = vmax.f32 %v551, 0.0
    %v598 = vmax.f32 %v556, 0.0
    %v599 = vmax.f32 %v561, 0.0
    %v600 = vmax.f32 %v566, 0.0
    %v601 = vmax.f32 %v571, 0.0
    %v602 = vmax.f32 %v576, 0.0
    %v603 = vmax.f32 %v581, 0.0
    %v604 = vmax.f32 %v586, 0.0
    %v605 = vld [vmem:[#allocation2 + $0x28] sm:$0xff]
    %v606 = vld [vmem:[#allocation2 + $0x30] sm:$0xff]
    %v607 = vld [vmem:[#allocation2 + $0x38] sm:$0xff]
    %v608 = vld [vmem:[#allocation2 + $0x40] sm:$0xff]
    %v609 = vld [vmem:[#allocation2 + $0x48] sm:$0x1]
    %v610 = vlaneseq
    %v611 = vshrl.u32 %v610, 7
    %v612 = vsub.s32 0, %v611
    %v613 = vrot.slane %v609, %v612
    %v615 = vsel %vm172, %v51, 0
    %v618 = vsel %vm172, %v52, 0
    %v621 = vsel %vm172, %v53, 0
    %v624 = vsel %vm172, %v54, 0
    %v627 = vsel %vm172, %v55, 0
    %v630 = vsel %vm172, %v56, 0
    %v633 = vsel %vm172, %v57, 0
    %v636 = vsel %vm172, %v58, 0
    %v639 = vsel %vm172, %v59, 0
    %v642 = vsel %vm172, %v60, 0
    %v645 = vsel %vm172, %v61, 0
    %v648 = vsel %vm172, %v62, 0
    %v651 = vsel %vm172, %v63, 0
    %v654 = vsel %vm172, %v64, 0
    %v657 = vsel %vm172, %v65, 0
    %v660 = vsel %vm172, %v66, 0
    %v663 = vsel %vm172, %v67, 0
    %v666 = vsel %vm172, %v68, 0
    %v669 = vsel %vm172, %v69, 0
    %v672 = vsel %vm172, %v70, 0
    %v675 = vsel %vm172, %v71, 0
    %v678 = vsel %vm172, %v72, 0
    %v681 = vsel %vm172, %v73, 0
    %v684 = vsel %vm172, %v74, 0
    %v687 = vsel %vm172, %v75, 0
    %v690 = vsel %vm172, %v76, 0
    %v693 = vsel %vm172, %v77, 0
    %v696 = vsel %vm172, %v78, 0
    %v699 = vsel %vm172, %v79, 0
    %v702 = vsel %vm172, %v80, 0
    %v705 = vsel %vm172, %v81, 0
    %v708 = vsel %vm172, %v82, 0
    %v711 = vsel %vm172, %v83, 0
    %v714 = vsel %vm172, %v84, 0
    %v717 = vsel %vm172, %v85, 0
    %v720 = vsel %vm172, %v86, 0
    %v723 = vsel %vm172, %v87, 0
    %v726 = vsel %vm172, %v88, 0
    %v729 = vsel %vm172, %v89, 0
    %v732 = vsel %vm172, %v90, 0
    %v735 = vsel %vm172, %v91, 0
    %v738 = vsel %vm172, %v92, 0
    %v741 = vsel %vm172, %v93, 0
    %v744 = vsel %vm172, %v94, 0
    %v747 = vsel %vm172, %v95, 0
    %v750 = vsel %vm172, %v96, 0
    %v753 = vsel %vm172, %v97, 0
    %v756 = vsel %vm172, %v98, 0
    %v759 = vsel %vm172, %v99, 0
    %v762 = vsel %vm172, %v100, 0
    %v765 = vsel %vm172, %v101, 0
    %v768 = vsel %vm172, %v102, 0
    %v771 = vsel %vm172, %v103, 0
    %v774 = vsel %vm172, %v104, 0
    %v777 = vsel %vm172, %v105, 0
    %v780 = vsel %vm172, %v106, 0
    %v783 = vsel %vm172, %v107, 0
    %v786 = vsel %vm172, %v108, 0
    %v789 = vsel %vm172, %v109, 0
    %v792 = vsel %vm172, %v110, 0
    %v795 = vsel %vm172, %v111, 0
    %v798 = vsel %vm172, %v112, 0
    %v801 = vsel %vm172, %v113, 0
    %v804 = vsel %vm172, %v114, 0
    %v807 = vsel %vm172, %v115, 0
    %v810 = vsel %vm172, %v116, 0
    %v813 = vsel %vm172, %v117, 0
    %v816 = vsel %vm172, %v118, 0
    %v819 = vsel %vm172, %v119, 0
    %v822 = vsel %vm172, %v120, 0
    %v825 = vsel %vm172, %v121, 0
    %v828 = vsel %vm172, %v122, 0
    %v831 = vsel %vm172, %v123, 0
    %v834 = vsel %vm172, %v124, 0
    %v837 = vsel %vm172, %v125, 0
    %v840 = vsel %vm172, %v126, 0
    %v843 = vsel %vm172, %v127, 0
    %v846 = vsel %vm172, %v128, 0
    %v849 = vsel %vm172, %v129, 0
    %v852 = vsel %vm172, %v130, 0
    %854 = vmatprep.subr.mxu0 0.0
    %855 = vmatpush1.msra.mxu0 %v605
    %856 = vmatprep.subr.mxu0 0.0
    %857 = vmatpush1.msra.mxu0 %v606
    %858 = vmatprep.subr.mxu0 0.0
    %859 = vmatpush1.msra.mxu0 %v607
    %860 = vmatprep.subr.mxu0 0.0
    %861 = vmatpush1.msra.mxu0 %v608
    %862 = vmatprep.subr.mxu0 0.0
    %863 = vmatpush1.msra.mxu0 0.0
    %864 = vmatprep.subr.mxu0 0.0
    %865 = vmatpush1.msra.mxu0 0.0
    %866 = vmatprep.subr.mxu0 0.0
    %867 = vmatpush1.msra.mxu0 0.0
    %868 = vmatprep.subr.mxu0 0.0
    %869 = vmatpush1.msra.mxu0 0.0
    %870 = vmatprep.subr.mxu0 0.0
    %871 = vmatpush1.msra.mxu0 0.0
    %872 = vmatprep.subr.mxu0 0.0
    %873 = vmatpush1.msra.mxu0 0.0
    %874 = vmatprep.subr.mxu0 0.0
    %875 = vmatpush1.msra.mxu0 0.0
    %876 = vmatprep.subr.mxu0 0.0
    %877 = vmatpush1.msra.mxu0 0.0
    %878 = vmatprep.subr.mxu0 0.0
    %879 = vmatpush1.msra.mxu0 0.0
    %880 = vmatprep.subr.mxu0 0.0
    %881 = vmatpush1.msra.mxu0 0.0
    %882 = vmatprep.subr.mxu0 0.0
    %883 = vmatpush1.msra.mxu0 0.0
    %884 = vmatprep.subr.mxu0 0.0
    %885 = vmatpush1.msra.mxu0 0.0
    %886 = vmatprep.subr.mxu0 0.0
    %887 = vmatpush1.msra.mxu0 0.0
    %888 = vmatprep.subr.mxu0 0.0
    %889 = vmatpush1.msra.mxu0 0.0
    %890 = vmatprep.subr.mxu0 0.0
    %891 = vmatpush1.msra.mxu0 0.0
    %892 = vmatprep.subr.mxu0 0.0
    %893 = vmatpush1.msra.mxu0 0.0
    %894 = vmatprep.subr.mxu0 0.0
    %895 = vmatpush1.msra.mxu0 0.0
    %896 = vmatprep.subr.mxu0 0.0
    %897 = vmatpush1.msra.mxu0 0.0
    %898 = vmatprep.subr.mxu0 0.0
    %899 = vmatpush1.msra.mxu0 0.0
    %900 = vmatprep.subr.mxu0 0.0
    %901 = vmatpush1.msra.mxu0 0.0
    %902 = vmatprep.subr.mxu0 0.0
    %903 = vmatpush1.msra.mxu0 0.0
    %904 = vmatprep.subr.mxu0 0.0
    %905 = vmatpush1.msra.mxu0 0.0
    %906 = vmatprep.subr.mxu0 0.0
    %907 = vmatpush1.msra.mxu0 0.0
    %908 = vmatprep.subr.mxu0 0.0
    %909 = vmatpush1.msra.mxu0 0.0
    %910 = vmatprep.subr.mxu0 0.0
    %911 = vmatpush1.msra.mxu0 0.0
    %912 = vmatprep.subr.mxu0 0.0
    %913 = vmatpush1.msra.mxu0 0.0
    %914 = vmatprep.subr.mxu0 0.0
    %915 = vmatpush1.msra.mxu0 0.0
    %916 = vmatprep.subr.mxu0 0.0
    %917 = vmatpush1.msra.mxu0 0.0
    %918 = vmatprep.mubr.f32.mxu0 0.0
    %919 = vmatmul.mubr.f32.gmra.mrb[0].mxu0 %v615
    %v920 = vpop.f32.mrb[0].mxu0
    %v921 = vadd.f32 %v613, %v920
    %v922 = vpop.f32.mrb[0].mxu0
    %923 = vmatprep.mubr.f32.mxu0 0.0
    %924 = vmatmul.mubr.f32.gmra.mrb[0].mxu0 %v618
    %v925 = vpop.f32.mrb[0].mxu0
    %v926 = vadd.f32 %v613, %v925
    %v927 = vpop.f32.mrb[0].mxu0
    %928 = vmatprep.mubr.f32.mxu0 0.0
    %929 = vmatmul.mubr.f32.gmra.mrb[0].mxu0 %v621
    %v930 = vpop.f32.mrb[0].mxu0
    %v931 = vadd.f32 %v613, %v930
    %v932 = vpop.f32.mrb[0].mxu0
    %933 = vmatprep.mubr.f32.mxu0 0.0
    %934 = vmatmul.mubr.f32.gmra.mrb[0].mxu0 %v624
    %v935 = vpop.f32.mrb[0].mxu0
    %v936 = vadd.f32 %v613, %v935
    %v937 = vpop.f32.mrb[0].mxu0
    %938 = vmatprep.mubr.f32.mxu0 0.0
    %939 = vmatmul.mubr.f32.gmra.mrb[0].mxu0 %v627
    %v940 = vpop.f32.mrb[0].mxu0
    %v941 = vadd.f32 %v613, %v940
    %v942 = vpop.f32.mrb[0].mxu0
    %943 = vmatprep.mubr.f32.mxu0 0.0
    %944 = vmatmul.mubr.f32.gmra.mrb[0].mxu0 %v630
    %v945 = vpop.f32.mrb[0].mxu0
    %v946 = vadd.f32 %v613, %v945
    %v947 = vpop.f32.mrb[0].mxu0
    %948 = vmatprep.mubr.f32.mxu0 0.0
    %949 = vmatmul.mubr.f32.gmra.mrb[0].mxu0 %v633
    %v950 = vpop.f32.mrb[0].mxu0
    %v951 = vadd.f32 %v613, %v950
    %v952 = vpop.f32.mrb[0].mxu0
    %953 = vmatprep.mubr.f32.mxu0 0.0
    %954 = vmatmul.mubr.f32.gmra.mrb[0].mxu0 %v636
    %v955 = vpop.f32.mrb[0].mxu0
    %v956 = vadd.f32 %v613, %v955
    %v957 = vpop.f32.mrb[0].mxu0
    %958 = vmatprep.mubr.f32.mxu0 0.0
    %959 = vmatmul.mubr.f32.gmra.mrb[0].mxu0 %v639
    %v960 = vpop.f32.mrb[0].mxu0
    %v961 = vadd.f32 %v613, %v960
    %v962 = vpop.f32.mrb[0].mxu0
    %963 = vmatprep.mubr.f32.mxu0 0.0
    %964 = vmatmul.mubr.f32.gmra.mrb[0].mxu0 %v642
    %v965 = vpop.f32.mrb[0].mxu0
    %v966 = vadd.f32 %v613, %v965
    %v967 = vpop.f32.mrb[0].mxu0
    %968 = vmatprep.mubr.f32.mxu0 0.0
    %969 = vmatmul.mubr.f32.gmra.mrb[0].mxu0 %v645
    %v970 = vpop.f32.mrb[0].mxu0
    %v971 = vadd.f32 %v613, %v970
    %v972 = vpop.f32.mrb[0].mxu0
    %973 = vmatprep.mubr.f32.mxu0 0.0
    %974 = vmatmul.mubr.f32.gmra.mrb[0].mxu0 %v648
    %v975 = vpop.f32.mrb[0].mxu0
    %v976 = vadd.f32 %v613, %v975
    %v977 = vpop.f32.mrb[0].mxu0
    %978 = vmatprep.mubr.f32.mxu0 0.0
    %979 = vmatmul.mubr.f32.gmra.mrb[0].mxu0 %v651
    %v980 = vpop.f32.mrb[0].mxu0
    %v981 = vadd.f32 %v613, %v980
    %v982 = vpop.f32.mrb[0].mxu0
    %983 = vmatprep.mubr.f32.mxu0 0.0
    %984 = vmatmul.mubr.f32.gmra.mrb[0].mxu0 %v654
    %v985 = vpop.f32.mrb[0].mxu0
    %v986 = vadd.f32 %v613, %v985
    %v987 = vpop.f32.mrb[0].mxu0
    %988 = vmatprep.mubr.f32.mxu0 0.0
    %989 = vmatmul.mubr.f32.gmra.mrb[0].mxu0 %v657
    %v990 = vpop.f32.mrb[0].mxu0
    %v991 = vadd.f32 %v613, %v990
    %v992 = vpop.f32.mrb[0].mxu0
    %993 = vmatprep.mubr.f32.mxu0 0.0
    %994 = vmatmul.mubr.f32.gmra.mrb[0].mxu0 %v660
    %v995 = vpop.f32.mrb[0].mxu0
    %v996 = vadd.f32 %v613, %v995
    %v997 = vpop.f32.mrb[0].mxu0
    %998 = vmatprep.mubr.f32.mxu0 0.0
    %999 = vmatmul.mubr.f32.gmra.mrb[0].mxu0 %v663
    %v1000 = vpop.f32.mrb[0].mxu0
    %v1001 = vadd.f32 %v613, %v1000
    %v1002 = vpop.f32.mrb[0].mxu0
    %1003 = vmatprep.mubr.f32.mxu0 0.0
    %1004 = vmatmul.mubr.f32.gmra.mrb[0].mxu0 %v666
    %v1005 = vpop.f32.mrb[0].mxu0
    %v1006 = vadd.f32 %v613, %v1005
    %v1007 = vpop.f32.mrb[0].mxu0
    %1008 = vmatprep.mubr.f32.mxu0 0.0
    %1009 = vmatmul.mubr.f32.gmra.mrb[0].mxu0 %v669
    %v1010 = vpop.f32.mrb[0].mxu0
    %v1011 = vadd.f32 %v613, %v1010
    %v1012 = vpop.f32.mrb[0].mxu0
    %1013 = vmatprep.mubr.f32.mxu0 0.0
    %1014 = vmatmul.mubr.f32.gmra.mrb[0].mxu0 %v672
    %v1015 = vpop.f32.mrb[0].mxu0
    %v1016 = vadd.f32 %v613, %v1015
    %v1017 = vpop.f32.mrb[0].mxu0
    %1018 = vmatprep.mubr.f32.mxu0 0.0
    %1019 = vmatmul.mubr.f32.gmra.mrb[0].mxu0 %v675
    %v1020 = vpop.f32.mrb[0].mxu0
    %v1021 = vadd.f32 %v613, %v1020
    %v1022 = vpop.f32.mrb[0].mxu0
    %1023 = vmatprep.mubr.f32.mxu0 0.0
    %1024 = vmatmul.mubr.f32.gmra.mrb[0].mxu0 %v678
    %v1025 = vpop.f32.mrb[0].mxu0
    %v1026 = vadd.f32 %v613, %v1025
    %v1027 = vpop.f32.mrb[0].mxu0
    %1028 = vmatprep.mubr.f32.mxu0 0.0
    %1029 = vmatmul.mubr.f32.gmra.mrb[0].mxu0 %v681
    %v1030 = vpop.f32.mrb[0].mxu0
    %v1031 = vadd.f32 %v613, %v1030
    %v1032 = vpop.f32.mrb[0].mxu0
    %1033 = vmatprep.mubr.f32.mxu0 0.0
    %1034 = vmatmul.mubr.f32.gmra.mrb[0].mxu0 %v684
    %v1035 = vpop.f32.mrb[0].mxu0
    %v1036 = vadd.f32 %v613, %v1035
    %v1037 = vpop.f32.mrb[0].mxu0
    %1038 = vmatprep.mubr.f32.mxu0 0.0
    %1039 = vmatmul.mubr.f32.gmra.mrb[0].mxu0 %v687
    %v1040 = vpop.f32.mrb[0].mxu0
    %v1041 = vadd.f32 %v613, %v1040
    %v1042 = vpop.f32.mrb[0].mxu0
    %1043 = vmatprep.mubr.f32.mxu0 0.0
    %1044 = vmatmul.mubr.f32.gmra.mrb[0].mxu0 %v690
    %v1045 = vpop.f32.mrb[0].mxu0
    %v1046 = vadd.f32 %v613, %v1045
    %v1047 = vpop.f32.mrb[0].mxu0
    %1048 = vmatprep.mubr.f32.mxu0 0.0
    %1049 = vmatmul.mubr.f32.gmra.mrb[0].mxu0 %v693
    %v1050 = vpop.f32.mrb[0].mxu0
    %v1051 = vadd.f32 %v613, %v1050
    %v1052 = vpop.f32.mrb[0].mxu0
    %1053 = vmatprep.mubr.f32.mxu0 0.0
    %1054 = vmatmul.mubr.f32.gmra.mrb[0].mxu0 %v696
    %v1055 = vpop.f32.mrb[0].mxu0
    %v1056 = vadd.f32 %v613, %v1055
    %v1057 = vpop.f32.mrb[0].mxu0
    %1058 = vmatprep.mubr.f32.mxu0 0.0
    %1059 = vmatmul.mubr.f32.gmra.mrb[0].mxu0 %v699
    %v1060 = vpop.f32.mrb[0].mxu0
    %v1061 = vadd.f32 %v613, %v1060
    %v1062 = vpop.f32.mrb[0].mxu0
    %1063 = vmatprep.mubr.f32.mxu0 0.0
    %1064 = vmatmul.mubr.f32.gmra.mrb[0].mxu0 %v702
    %v1065 = vpop.f32.mrb[0].mxu0
    %v1066 = vadd.f32 %v613, %v1065
    %v1067 = vpop.f32.mrb[0].mxu0
    %1068 = vmatprep.mubr.f32.mxu0 0.0
    %1069 = vmatmul.mubr.f32.gmra.mrb[0].mxu0 %v705
    %v1070 = vpop.f32.mrb[0].mxu0
    %v1071 = vadd.f32 %v613, %v1070
    %v1072 = vpop.f32.mrb[0].mxu0
    %1073 = vmatprep.mubr.f32.mxu0 0.0
    %1074 = vmatmul.mubr.f32.gmra.mrb[0].mxu0 %v708
    %v1075 = vpop.f32.mrb[0].mxu0
    %v1076 = vadd.f32 %v613, %v1075
    %v1077 = vpop.f32.mrb[0].mxu0
    %1078 = vmatprep.mubr.f32.mxu0 0.0
    %1079 = vmatmul.mubr.f32.gmra.mrb[0].mxu0 %v711
    %v1080 = vpop.f32.mrb[0].mxu0
    %v1081 = vadd.f32 %v613, %v1080
    %v1082 = vpop.f32.mrb[0].mxu0
    %1083 = vmatprep.mubr.f32.mxu0 0.0
    %1084 = vmatmul.mubr.f32.gmra.mrb[0].mxu0 %v714
    %v1085 = vpop.f32.mrb[0].mxu0
    %v1086 = vadd.f32 %v613, %v1085
    %v1087 = vpop.f32.mrb[0].mxu0
    %1088 = vmatprep.mubr.f32.mxu0 0.0
    %1089 = vmatmul.mubr.f32.gmra.mrb[0].mxu0 %v717
    %v1090 = vpop.f32.mrb[0].mxu0
    %v1091 = vadd.f32 %v613, %v1090
    %v1092 = vpop.f32.mrb[0].mxu0
    %1093 = vmatprep.mubr.f32.mxu0 0.0
    %1094 = vmatmul.mubr.f32.gmra.mrb[0].mxu0 %v720
    %v1095 = vpop.f32.mrb[0].mxu0
    %v1096 = vadd.f32 %v613, %v1095
    %v1097 = vpop.f32.mrb[0].mxu0
    %1098 = vmatprep.mubr.f32.mxu0 0.0
    %1099 = vmatmul.mubr.f32.gmra.mrb[0].mxu0 %v723
    %v1100 = vpop.f32.mrb[0].mxu0
    %v1101 = vadd.f32 %v613, %v1100
    %v1102 = vpop.f32.mrb[0].mxu0
    %1103 = vmatprep.mubr.f32.mxu0 0.0
    %1104 = vmatmul.mubr.f32.gmra.mrb[0].mxu0 %v726
    %v1105 = vpop.f32.mrb[0].mxu0
    %v1106 = vadd.f32 %v613, %v1105
    %v1107 = vpop.f32.mrb[0].mxu0
    %1108 = vmatprep.mubr.f32.mxu0 0.0
    %1109 = vmatmul.mubr.f32.gmra.mrb[0].mxu0 %v729
    %v1110 = vpop.f32.mrb[0].mxu0
    %v1111 = vadd.f32 %v613, %v1110
    %v1112 = vpop.f32.mrb[0].mxu0
    %1113 = vmatprep.mubr.f32.mxu0 0.0
    %1114 = vmatmul.mubr.f32.gmra.mrb[0].mxu0 %v732
    %v1115 = vpop.f32.mrb[0].mxu0
    %v1116 = vadd.f32 %v613, %v1115
    %v1117 = vpop.f32.mrb[0].mxu0
    %1118 = vmatprep.mubr.f32.mxu0 0.0
    %1119 = vmatmul.mubr.f32.gmra.mrb[0].mxu0 %v735
    %v1120 = vpop.f32.mrb[0].mxu0
    %v1121 = vadd.f32 %v613, %v1120
    %v1122 = vpop.f32.mrb[0].mxu0
    %1123 = vmatprep.mubr.f32.mxu0 0.0
    %1124 = vmatmul.mubr.f32.gmra.mrb[0].mxu0 %v738
    %v1125 = vpop.f32.mrb[0].mxu0
    %v1126 = vadd.f32 %v613, %v1125
    %v1127 = vpop.f32.mrb[0].mxu0
    %1128 = vmatprep.mubr.f32.mxu0 0.0
    %1129 = vmatmul.mubr.f32.gmra.mrb[0].mxu0 %v741
    %v1130 = vpop.f32.mrb[0].mxu0
    %v1131 = vadd.f32 %v613, %v1130
    %v1132 = vpop.f32.mrb[0].mxu0
    %1133 = vmatprep.mubr.f32.mxu0 0.0
    %1134 = vmatmul.mubr.f32.gmra.mrb[0].mxu0 %v744
    %v1135 = vpop.f32.mrb[0].mxu0
    %v1136 = vadd.f32 %v613, %v1135
    %v1137 = vpop.f32.mrb[0].mxu0
    %1138 = vmatprep.mubr.f32.mxu0 0.0
    %1139 = vmatmul.mubr.f32.gmra.mrb[0].mxu0 %v747
    %v1140 = vpop.f32.mrb[0].mxu0
    %v1141 = vadd.f32 %v613, %v1140
    %v1142 = vpop.f32.mrb[0].mxu0
    %1143 = vmatprep.mubr.f32.mxu0 0.0
    %1144 = vmatmul.mubr.f32.gmra.mrb[0].mxu0 %v750
    %v1145 = vpop.f32.mrb[0].mxu0
    %v1146 = vadd.f32 %v613, %v1145
    %v1147 = vpop.f32.mrb[0].mxu0
    %1148 = vmatprep.mubr.f32.mxu0 0.0
    %1149 = vmatmul.mubr.f32.gmra.mrb[0].mxu0 %v753
    %v1150 = vpop.f32.mrb[0].mxu0
    %v1151 = vadd.f32 %v613, %v1150
    %v1152 = vpop.f32.mrb[0].mxu0
    %1153 = vmatprep.mubr.f32.mxu0 0.0
    %1154 = vmatmul.mubr.f32.gmra.mrb[0].mxu0 %v756
    %v1155 = vpop.f32.mrb[0].mxu0
    %v1156 = vadd.f32 %v613, %v1155
    %v1157 = vpop.f32.mrb[0].mxu0
    %1158 = vmatprep.mubr.f32.mxu0 0.0
    %1159 = vmatmul.mubr.f32.gmra.mrb[0].mxu0 %v759
    %v1160 = vpop.f32.mrb[0].mxu0
    %v1161 = vadd.f32 %v613, %v1160
    %v1162 = vpop.f32.mrb[0].mxu0
    %1163 = vmatprep.mubr.f32.mxu0 0.0
    %1164 = vmatmul.mubr.f32.gmra.mrb[0].mxu0 %v762
    %v1165 = vpop.f32.mrb[0].mxu0
    %v1166 = vadd.f32 %v613, %v1165
    %v1167 = vpop.f32.mrb[0].mxu0
    %1168 = vmatprep.mubr.f32.mxu0 0.0
    %1169 = vmatmul.mubr.f32.gmra.mrb[0].mxu0 %v765
    %v1170 = vpop.f32.mrb[0].mxu0
    %v1171 = vadd.f32 %v613, %v1170
    %v1172 = vpop.f32.mrb[0].mxu0
    %1173 = vmatprep.mubr.f32.mxu0 0.0
    %1174 = vmatmul.mubr.f32.gmra.mrb[0].mxu0 %v768
    %v1175 = vpop.f32.mrb[0].mxu0
    %v1176 = vadd.f32 %v613, %v1175
    %v1177 = vpop.f32.mrb[0].mxu0
    %1178 = vmatprep.mubr.f32.mxu0 0.0
    %1179 = vmatmul.mubr.f32.gmra.mrb[0].mxu0 %v771
    %v1180 = vpop.f32.mrb[0].mxu0
    %v1181 = vadd.f32 %v613, %v1180
    %v1182 = vpop.f32.mrb[0].mxu0
    %1183 = vmatprep.mubr.f32.mxu0 0.0
    %1184 = vmatmul.mubr.f32.gmra.mrb[0].mxu0 %v774
    %v1185 = vpop.f32.mrb[0].mxu0
    %v1186 = vadd.f32 %v613, %v1185
    %v1187 = vpop.f32.mrb[0].mxu0
    %1188 = vmatprep.mubr.f32.mxu0 0.0
    %1189 = vmatmul.mubr.f32.gmra.mrb[0].mxu0 %v777
    %v1190 = vpop.f32.mrb[0].mxu0
    %v1191 = vadd.f32 %v613, %v1190
    %v1192 = vpop.f32.mrb[0].mxu0
    %1193 = vmatprep.mubr.f32.mxu0 0.0
    %1194 = vmatmul.mubr.f32.gmra.mrb[0].mxu0 %v780
    %v1195 = vpop.f32.mrb[0].mxu0
    %v1196 = vadd.f32 %v613, %v1195
    %v1197 = vpop.f32.mrb[0].mxu0
    %1198 = vmatprep.mubr.f32.mxu0 0.0
    %1199 = vmatmul.mubr.f32.gmra.mrb[0].mxu0 %v783
    %v1200 = vpop.f32.mrb[0].mxu0
    %v1201 = vadd.f32 %v613, %v1200
    %v1202 = vpop.f32.mrb[0].mxu0
    %1203 = vmatprep.mubr.f32.mxu0 0.0
    %1204 = vmatmul.mubr.f32.gmra.mrb[0].mxu0 %v786
    %v1205 = vpop.f32.mrb[0].mxu0
    %v1206 = vadd.f32 %v613, %v1205
    %v1207 = vpop.f32.mrb[0].mxu0
    %1208 = vmatprep.mubr.f32.mxu0 0.0
    %1209 = vmatmul.mubr.f32.gmra.mrb[0].mxu0 %v789
    %v1210 = vpop.f32.mrb[0].mxu0
    %v1211 = vadd.f32 %v613, %v1210
    %v1212 = vpop.f32.mrb[0].mxu0
    %1213 = vmatprep.mubr.f32.mxu0 0.0
    %1214 = vmatmul.mubr.f32.gmra.mrb[0].mxu0 %v792
    %v1215 = vpop.f32.mrb[0].mxu0
    %v1216 = vadd.f32 %v613, %v1215
    %v1217 = vpop.f32.mrb[0].mxu0
    %1218 = vmatprep.mubr.f32.mxu0 0.0
    %1219 = vmatmul.mubr.f32.gmra.mrb[0].mxu0 %v795
    %v1220 = vpop.f32.mrb[0].mxu0
    %v1221 = vadd.f32 %v613, %v1220
    %v1222 = vpop.f32.mrb[0].mxu0
    %1223 = vmatprep.mubr.f32.mxu0 0.0
    %1224 = vmatmul.mubr.f32.gmra.mrb[0].mxu0 %v798
    %v1225 = vpop.f32.mrb[0].mxu0
    %v1226 = vadd.f32 %v613, %v1225
    %v1227 = vpop.f32.mrb[0].mxu0
    %1228 = vmatprep.mubr.f32.mxu0 0.0
    %1229 = vmatmul.mubr.f32.gmra.mrb[0].mxu0 %v801
    %v1230 = vpop.f32.mrb[0].mxu0
    %v1231 = vadd.f32 %v613, %v1230
    %v1232 = vpop.f32.mrb[0].mxu0
    %1233 = vmatprep.mubr.f32.mxu0 0.0
    %1234 = vmatmul.mubr.f32.gmra.mrb[0].mxu0 %v804
    %v1235 = vpop.f32.mrb[0].mxu0
    %v1236 = vadd.f32 %v613, %v1235
    %v1237 = vpop.f32.mrb[0].mxu0
    %1238 = vmatprep.mubr.f32.mxu0 0.0
    %1239 = vmatmul.mubr.f32.gmra.mrb[0].mxu0 %v807
    %v1240 = vpop.f32.mrb[0].mxu0
    %v1241 = vadd.f32 %v613, %v1240
    %v1242 = vpop.f32.mrb[0].mxu0
    %1243 = vmatprep.mubr.f32.mxu0 0.0
    %1244 = vmatmul.mubr.f32.gmra.mrb[0].mxu0 %v810
    %v1245 = vpop.f32.mrb[0].mxu0
    %v1246 = vadd.f32 %v613, %v1245
    %v1247 = vpop.f32.mrb[0].mxu0
    %1248 = vmatprep.mubr.f32.mxu0 0.0
    %1249 = vmatmul.mubr.f32.gmra.mrb[0].mxu0 %v813
    %v1250 = vpop.f32.mrb[0].mxu0
    %v1251 = vadd.f32 %v613, %v1250
    %v1252 = vpop.f32.mrb[0].mxu0
    %1253 = vmatprep.mubr.f32.mxu0 0.0
    %1254 = vmatmul.mubr.f32.gmra.mrb[0].mxu0 %v816
    %v1255 = vpop.f32.mrb[0].mxu0
    %v1256 = vadd.f32 %v613, %v1255
    %v1257 = vpop.f32.mrb[0].mxu0
    %1258 = vmatprep.mubr.f32.mxu0 0.0
    %1259 = vmatmul.mubr.f32.gmra.mrb[0].mxu0 %v819
    %v1260 = vpop.f32.mrb[0].mxu0
    %v1261 = vadd.f32 %v613, %v1260
    %v1262 = vpop.f32.mrb[0].mxu0
    %1263 = vmatprep.mubr.f32.mxu0 0.0
    %1264 = vmatmul.mubr.f32.gmra.mrb[0].mxu0 %v822
    %v1265 = vpop.f32.mrb[0].mxu0
    %v1266 = vadd.f32 %v613, %v1265
    %v1267 = vpop.f32.mrb[0].mxu0
    %1268 = vmatprep.mubr.f32.mxu0 0.0
    %1269 = vmatmul.mubr.f32.gmra.mrb[0].mxu0 %v825
    %v1270 = vpop.f32.mrb[0].mxu0
    %v1271 = vadd.f32 %v613, %v1270
    %v1272 = vpop.f32.mrb[0].mxu0
    %1273 = vmatprep.mubr.f32.mxu0 0.0
    %1274 = vmatmul.mubr.f32.gmra.mrb[0].mxu0 %v828
    %v1275 = vpop.f32.mrb[0].mxu0
    %v1276 = vadd.f32 %v613, %v1275
    %v1277 = vpop.f32.mrb[0].mxu0
    %1278 = vmatprep.mubr.f32.mxu0 0.0
    %1279 = vmatmul.mubr.f32.gmra.mrb[0].mxu0 %v831
    %v1280 = vpop.f32.mrb[0].mxu0
    %v1281 = vadd.f32 %v613, %v1280
    %v1282 = vpop.f32.mrb[0].mxu0
    %1283 = vmatprep.mubr.f32.mxu0 0.0
    %1284 = vmatmul.mubr.f32.gmra.mrb[0].mxu0 %v834
    %v1285 = vpop.f32.mrb[0].mxu0
    %v1286 = vadd.f32 %v613, %v1285
    %v1287 = vpop.f32.mrb[0].mxu0
    %1288 = vmatprep.mubr.f32.mxu0 0.0
    %1289 = vmatmul.mubr.f32.gmra.mrb[0].mxu0 %v837
    %v1290 = vpop.f32.mrb[0].mxu0
    %v1291 = vadd.f32 %v613, %v1290
    %v1292 = vpop.f32.mrb[0].mxu0
    %1293 = vmatprep.mubr.f32.mxu0 0.0
    %1294 = vmatmul.mubr.f32.gmra.mrb[0].mxu0 %v840
    %v1295 = vpop.f32.mrb[0].mxu0
    %v1296 = vadd.f32 %v613, %v1295
    %v1297 = vpop.f32.mrb[0].mxu0
    %1298 = vmatprep.mubr.f32.mxu0 0.0
    %1299 = vmatmul.mubr.f32.gmra.mrb[0].mxu0 %v843
    %v1300 = vpop.f32.mrb[0].mxu0
    %v1301 = vadd.f32 %v613, %v1300
    %v1302 = vpop.f32.mrb[0].mxu0
    %1303 = vmatprep.mubr.f32.mxu0 0.0
    %1304 = vmatmul.mubr.f32.gmra.mrb[0].mxu0 %v846
    %v1305 = vpop.f32.mrb[0].mxu0
    %v1306 = vadd.f32 %v613, %v1305
    %v1307 = vpop.f32.mrb[0].mxu0
    %1308 = vmatprep.mubr.f32.mxu0 0.0
    %1309 = vmatmul.mubr.f32.gmra.mrb[0].mxu0 %v849
    %v1310 = vpop.f32.mrb[0].mxu0
    %v1311 = vadd.f32 %v613, %v1310
    %v1312 = vpop.f32.mrb[0].mxu0
    %1313 = vmatprep.mubr.f32.mxu0 0.0
    %1314 = vmatmul.mubr.f32.gmra.mrb[0].mxu0 %v852
    %v1315 = vpop.f32.mrb[0].mxu0
    %v1316 = vadd.f32 %v613, %v1315
    %v1317 = vpop.f32.mrb[0].mxu0
    %1318 = vdwg.mxu0
    %v1319 = vmax.f32 %v921, 0.0
    %v1320 = vmax.f32 %v926, 0.0
    %v1321 = vmax.f32 %v931, 0.0
    %v1322 = vmax.f32 %v936, 0.0
    %v1323 = vmax.f32 %v941, 0.0
    %v1324 = vmax.f32 %v946, 0.0
    %v1325 = vmax.f32 %v951, 0.0
    %v1326 = vmax.f32 %v956, 0.0
    %v1327 = vmax.f32 %v961, 0.0
    %v1328 = vmax.f32 %v966, 0.0
    %v1329 = vmax.f32 %v971, 0.0
    %v1330 = vmax.f32 %v976, 0.0
    %v1331 = vmax.f32 %v981, 0.0
    %v1332 = vmax.f32 %v986, 0.0
    %v1333 = vmax.f32 %v991, 0.0
    %v1334 = vmax.f32 %v996, 0.0
    %v1335 = vmax.f32 %v1001, 0.0
    %v1336 = vmax.f32 %v1006, 0.0
    %v1337 = vmax.f32 %v1011, 0.0
    %v1338 = vmax.f32 %v1016, 0.0
    %v1339 = vmax.f32 %v1021, 0.0
    %v1340 = vmax.f32 %v1026, 0.0
    %v1341 = vmax.f32 %v1031, 0.0
    %v1342 = vmax.f32 %v1036, 0.0
    %v1343 = vmax.f32 %v1041, 0.0
    %v1344 = vmax.f32 %v1046, 0.0
    %v1345 = vmax.f32 %v1051, 0.0
    %v1346 = vmax.f32 %v1056, 0.0
    %v1347 = vmax.f32 %v1061, 0.0
    %v1348 = vmax.f32 %v1066, 0.0
    %v1349 = vmax.f32 %v1071, 0.0
    %v1350 = vmax.f32 %v1076, 0.0
    %v1351 = vmax.f32 %v1081, 0.0
    %v1352 = vmax.f32 %v1086, 0.0
    %v1353 = vmax.f32 %v1091, 0.0
    %v1354 = vmax.f32 %v1096, 0.0
    %v1355 = vmax.f32 %v1101, 0.0
    %v1356 = vmax.f32 %v1106, 0.0
    %v1357 = vmax.f32 %v1111, 0.0
    %v1358 = vmax.f32 %v1116, 0.0
    %v1359 = vmax.f32 %v1121, 0.0
    %v1360 = vmax.f32 %v1126, 0.0
    %v1361 = vmax.f32 %v1131, 0.0
    %v1362 = vmax.f32 %v1136, 0.0
    %v1363 = vmax.f32 %v1141, 0.0
    %v1364 = vmax.f32 %v1146, 0.0
    %v1365 = vmax.f32 %v1151, 0.0
    %v1366 = vmax.f32 %v1156, 0.0
    %v1367 = vmax.f32 %v1161, 0.0
    %v1368 = vmax.f32 %v1166, 0.0
    %v1369 = vmax.f32 %v1171, 0.0
    %v1370 = vmax.f32 %v1176, 0.0
    %v1371 = vmax.f32 %v1181, 0.0
    %v1372 = vmax.f32 %v1186, 0.0
    %v1373 = vmax.f32 %v1191, 0.0
    %v1374 = vmax.f32 %v1196, 0.0
    %v1375 = vmax.f32 %v1201, 0.0
    %v1376 = vmax.f32 %v1206, 0.0
    %v1377 = vmax.f32 %v1211, 0.0
    %v1378 = vmax.f32 %v1216, 0.0
    %v1379 = vmax.f32 %v1221, 0.0
    %v1380 = vmax.f32 %v1226, 0.0
    %v1381 = vmax.f32 %v1231, 0.0
    %v1382 = vmax.f32 %v1236, 0.0
    %v1383 = vmax.f32 %v1241, 0.0
    %v1384 = vmax.f32 %v1246, 0.0
    %v1385 = vmax.f32 %v1251, 0.0
    %v1386 = vmax.f32 %v1256, 0.0
    %v1387 = vmax.f32 %v1261, 0.0
    %v1388 = vmax.f32 %v1266, 0.0
    %v1389 = vmax.f32 %v1271, 0.0
    %v1390 = vmax.f32 %v1276, 0.0
    %v1391 = vmax.f32 %v1281, 0.0
    %v1392 = vmax.f32 %v1286, 0.0
    %v1393 = vmax.f32 %v1291, 0.0
    %v1394 = vmax.f32 %v1296, 0.0
    %v1395 = vmax.f32 %v1301, 0.0
    %v1396 = vmax.f32 %v1306, 0.0
    %v1397 = vmax.f32 %v1311, 0.0
    %v1398 = vmax.f32 %v1316, 0.0
    %v1399 = vld [vmem:[#allocation2 + $0x98] sm:$0xff]
    %v1400 = vld [vmem:[#allocation2 + $0xa0] sm:$0xff]
    %v1401 = vld [vmem:[#allocation2 + $0xa8] sm:$0xff]
    %v1402 = vld [vmem:[#allocation2 + $0xb0] sm:$0xff]
    %v1403 = vld [vmem:[#allocation2 + $0xb8] sm:$0xff]
    %v1404 = vld [vmem:[#allocation2 + $0xc0] sm:$0xff]
    %v1405 = vld [vmem:[#allocation2 + $0xc8] sm:$0xff]
    %v1406 = vld [vmem:[#allocation2 + $0xd0] sm:$0xff]
    %v1408 = vsel %vm395, %v589, 0
    %v1411 = vsel %vm395, %v590, 0
    %v1414 = vsel %vm395, %v591, 0
    %v1417 = vsel %vm395, %v592, 0
    %v1420 = vsel %vm395, %v593, 0
    %v1423 = vsel %vm395, %v594, 0
    %v1426 = vsel %vm395, %v595, 0
    %v1429 = vsel %vm395, %v596, 0
    %v1432 = vsel %vm395, %v597, 0
    %v1435 = vsel %vm395, %v598, 0
    %v1438 = vsel %vm395, %v599, 0
    %v1441 = vsel %vm395, %v600, 0
    %v1444 = vsel %vm395, %v601, 0
    %v1447 = vsel %vm395, %v602, 0
    %v1450 = vsel %vm395, %v603, 0
    %v1453 = vsel %vm395, %v604, 0
    %1455 = vmatprep.subr.mxu0 0.0
    %1456 = vmatpush1.msra.mxu0 %v1399
    %1457 = vmatprep.subr.mxu0 0.0
    %1458 = vmatpush1.msra.mxu0 %v1400
    %1459 = vmatprep.subr.mxu0 0.0
    %1460 = vmatpush1.msra.mxu0 %v1401
    %1461 = vmatprep.subr.mxu0 0.0
    %1462 = vmatpush1.msra.mxu0 %v1402
    %1463 = vmatprep.subr.mxu0 0.0
    %1464 = vmatpush1.msra.mxu0 %v1403
    %1465 = vmatprep.subr.mxu0 0.0
    %1466 = vmatpush1.msra.mxu0 %v1404
    %1467 = vmatprep.subr.mxu0 0.0
    %1468 = vmatpush1.msra.mxu0 %v1405
    %1469 = vmatprep.subr.mxu0 0.0
    %1470 = vmatpush1.msra.mxu0 %v1406
    %1471 = vmatprep.subr.mxu0 0.0
    %1472 = vmatpush1.msra.mxu0 0.0
    %1473 = vmatprep.subr.mxu0 0.0
    %1474 = vmatpush1.msra.mxu0 0.0
    %1475 = vmatprep.subr.mxu0 0.0
    %1476 = vmatpush1.msra.mxu0 0.0
    %1477 = vmatprep.subr.mxu0 0.0
    %1478 = vmatpush1.msra.mxu0 0.0
    %1479 = vmatprep.subr.mxu0 0.0
    %1480 = vmatpush1.msra.mxu0 0.0
    %1481 = vmatprep.subr.mxu0 0.0
    %1482 = vmatpush1.msra.mxu0 0.0
    %1483 = vmatprep.subr.mxu0 0.0
    %1484 = vmatpush1.msra.mxu0 0.0
    %1485 = vmatprep.subr.mxu0 0.0
    %1486 = vmatpush1.msra.mxu0 0.0
    %1487 = vmatprep.subr.mxu0 0.0
    %1488 = vmatpush1.msra.mxu0 0.0
    %1489 = vmatprep.subr.mxu0 0.0
    %1490 = vmatpush1.msra.mxu0 0.0
    %1491 = vmatprep.subr.mxu0 0.0
    %1492 = vmatpush1.msra.mxu0 0.0
    %1493 = vmatprep.subr.mxu0 0.0
    %1494 = vmatpush1.msra.mxu0 0.0
    %1495 = vmatprep.subr.mxu0 0.0
    %1496 = vmatpush1.msra.mxu0 0.0
    %1497 = vmatprep.subr.mxu0 0.0
    %1498 = vmatpush1.msra.mxu0 0.0
    %1499 = vmatprep.subr.mxu0 0.0
    %1500 = vmatpush1.msra.mxu0 0.0
    %1501 = vmatprep.subr.mxu0 0.0
    %1502 = vmatpush1.msra.mxu0 0.0
    %1503 = vmatprep.subr.mxu0 0.0
    %1504 = vmatpush1.msra.mxu0 0.0
    %1505 = vmatprep.subr.mxu0 0.0
    %1506 = vmatpush1.msra.mxu0 0.0
    %1507 = vmatprep.subr.mxu0 0.0
    %1508 = vmatpush1.msra.mxu0 0.0
    %1509 = vmatprep.subr.mxu0 0.0
    %1510 = vmatpush1.msra.mxu0 0.0
    %1511 = vmatprep.subr.mxu0 0.0
    %1512 = vmatpush1.msra.mxu0 0.0
    %1513 = vmatprep.subr.mxu0 0.0
    %1514 = vmatpush1.msra.mxu0 0.0
    %1515 = vmatprep.subr.mxu0 0.0
    %1516 = vmatpush1.msra.mxu0 0.0
    %1517 = vmatprep.subr.mxu0 0.0
    %1518 = vmatpush1.msra.mxu0 0.0
    %1519 = vmatprep.mubr.f32.mxu0 0.0
    %1520 = vmatmul.mubr.f32.gmra.mrb[0].mxu0 %v397
    %v1521 = vpop.f32.mrb[0].mxu0
    %v1522 = vadd.f32 0.0, %v1521
    %v1523 = vpop.f32.mrb[0].mxu0
    %1524 = vmatprep.mubr.f32.mxu0 0.0
    %1525 = vmatmul.mubr.f32.gmra.mrb[0].mxu0 %v400
    %v1526 = vpop.f32.mrb[0].mxu0
    %v1527 = vadd.f32 0.0, %v1526
    %v1528 = vpop.f32.mrb[0].mxu0
    %1529 = vmatprep.mubr.f32.mxu0 0.0
    %1530 = vmatmul.mubr.f32.gmra.mrb[0].mxu0 %v403
    %v1531 = vpop.f32.mrb[0].mxu0
    %v1532 = vadd.f32 0.0, %v1531
    %v1533 = vpop.f32.mrb[0].mxu0
    %1534 = vmatprep.mubr.f32.mxu0 0.0
    %1535 = vmatmul.mubr.f32.gmra.mrb[0].mxu0 %v406
    %v1536 = vpop.f32.mrb[0].mxu0
    %v1537 = vadd.f32 0.0, %v1536
    %v1538 = vpop.f32.mrb[0].mxu0
    %1539 = vmatprep.mubr.f32.mxu0 0.0
    %1540 = vmatmul.mubr.f32.gmra.mrb[0].mxu0 %v409
    %v1541 = vpop.f32.mrb[0].mxu0
    %v1542 = vadd.f32 0.0, %v1541
    %v1543 = vpop.f32.mrb[0].mxu0
    %1544 = vmatprep.mubr.f32.mxu0 0.0
    %1545 = vmatmul.mubr.f32.gmra.mrb[0].mxu0 %v412
    %v1546 = vpop.f32.mrb[0].mxu0
    %v1547 = vadd.f32 0.0, %v1546
    %v1548 = vpop.f32.mrb[0].mxu0
    %1549 = vmatprep.mubr.f32.mxu0 0.0
    %1550 = vmatmul.mubr.f32.gmra.mrb[0].mxu0 %v415
    %v1551 = vpop.f32.mrb[0].mxu0
    %v1552 = vadd.f32 0.0, %v1551
    %v1553 = vpop.f32.mrb[0].mxu0
    %1554 = vmatprep.mubr.f32.mxu0 0.0
    %1555 = vmatmul.mubr.f32.gmra.mrb[0].mxu0 %v418
    %v1556 = vpop.f32.mrb[0].mxu0
    %v1557 = vadd.f32 0.0, %v1556
    %v1558 = vpop.f32.mrb[0].mxu0
    %1559 = vmatprep.mubr.f32.mxu0 0.0
    %1560 = vmatmul.mubr.f32.gmra.mrb[0].mxu0 %v421
    %v1561 = vpop.f32.mrb[0].mxu0
    %v1562 = vadd.f32 0.0, %v1561
    %v1563 = vpop.f32.mrb[0].mxu0
    %1564 = vmatprep.mubr.f32.mxu0 0.0
    %1565 = vmatmul.mubr.f32.gmra.mrb[0].mxu0 %v424
    %v1566 = vpop.f32.mrb[0].mxu0
    %v1567 = vadd.f32 0.0, %v1566
    %v1568 = vpop.f32.mrb[0].mxu0
    %1569 = vmatprep.mubr.f32.mxu0 0.0
    %1570 = vmatmul.mubr.f32.gmra.mrb[0].mxu0 %v427
    %v1571 = vpop.f32.mrb[0].mxu0
    %v1572 = vadd.f32 0.0, %v1571
    %v1573 = vpop.f32.mrb[0].mxu0
    %1574 = vmatprep.mubr.f32.mxu0 0.0
    %1575 = vmatmul.mubr.f32.gmra.mrb[0].mxu0 %v430
    %v1576 = vpop.f32.mrb[0].mxu0
    %v1577 = vadd.f32 0.0, %v1576
    %v1578 = vpop.f32.mrb[0].mxu0
    %1579 = vmatprep.mubr.f32.mxu0 0.0
    %1580 = vmatmul.mubr.f32.gmra.mrb[0].mxu0 %v433
    %v1581 = vpop.f32.mrb[0].mxu0
    %v1582 = vadd.f32 0.0, %v1581
    %v1583 = vpop.f32.mrb[0].mxu0
    %1584 = vmatprep.mubr.f32.mxu0 0.0
    %1585 = vmatmul.mubr.f32.gmra.mrb[0].mxu0 %v436
    %v1586 = vpop.f32.mrb[0].mxu0
    %v1587 = vadd.f32 0.0, %v1586
    %v1588 = vpop.f32.mrb[0].mxu0
    %1589 = vmatprep.mubr.f32.mxu0 0.0
    %1590 = vmatmul.mubr.f32.gmra.mrb[0].mxu0 %v439
    %v1591 = vpop.f32.mrb[0].mxu0
    %v1592 = vadd.f32 0.0, %v1591
    %v1593 = vpop.f32.mrb[0].mxu0
    %1594 = vmatprep.mubr.f32.mxu0 0.0
    %1595 = vmatmul.mubr.f32.gmra.mrb[0].mxu0 %v442
    %v1596 = vpop.f32.mrb[0].mxu0
    %v1597 = vadd.f32 0.0, %v1596
    %v1598 = vpop.f32.mrb[0].mxu0
    %1599 = vmatprep.mubr.f32.mxu0 0.0
    %1600 = vmatmul.mubr.f32.gmra.mrb[0].mxu0 %v1408
    %v1601 = vpop.f32.mrb[0].mxu0
    %v1602 = vadd.f32 0.0, %v1601
    %v1603 = vpop.f32.mrb[0].mxu0
    %1604 = vmatprep.mubr.f32.mxu0 0.0
    %1605 = vmatmul.mubr.f32.gmra.mrb[0].mxu0 %v1411
    %v1606 = vpop.f32.mrb[0].mxu0
    %v1607 = vadd.f32 0.0, %v1606
    %v1608 = vpop.f32.mrb[0].mxu0
    %1609 = vmatprep.mubr.f32.mxu0 0.0
    %1610 = vmatmul.mubr.f32.gmra.mrb[0].mxu0 %v1414
    %v1611 = vpop.f32.mrb[0].mxu0
    %v1612 = vadd.f32 0.0, %v1611
    %v1613 = vpop.f32.mrb[0].mxu0
    %1614 = vmatprep.mubr.f32.mxu0 0.0
    %1615 = vmatmul.mubr.f32.gmra.mrb[0].mxu0 %v1417
    %v1616 = vpop.f32.mrb[0].mxu0
    %v1617 = vadd.f32 0.0, %v1616
    %v1618 = vpop.f32.mrb[0].mxu0
    %1619 = vmatprep.mubr.f32.mxu0 0.0
    %1620 = vmatmul.mubr.f32.gmra.mrb[0].mxu0 %v1420
    %v1621 = vpop.f32.mrb[0].mxu0
    %v1622 = vadd.f32 0.0, %v1621
    %v1623 = vpop.f32.mrb[0].mxu0
    %1624 = vmatprep.mubr.f32.mxu0 0.0
    %1625 = vmatmul.mubr.f32.gmra.mrb[0].mxu0 %v1423
    %v1626 = vpop.f32.mrb[0].mxu0
    %v1627 = vadd.f32 0.0, %v1626
    %v1628 = vpop.f32.mrb[0].mxu0
    %1629 = vmatprep.mubr.f32.mxu0 0.0
    %1630 = vmatmul.mubr.f32.gmra.mrb[0].mxu0 %v1426
    %v1631 = vpop.f32.mrb[0].mxu0
    %v1632 = vadd.f32 0.0, %v1631
    %v1633 = vpop.f32.mrb[0].mxu0
    %1634 = vmatprep.mubr.f32.mxu0 0.0
    %1635 = vmatmul.mubr.f32.gmra.mrb[0].mxu0 %v1429
    %v1636 = vpop.f32.mrb[0].mxu0
    %v1637 = vadd.f32 0.0, %v1636
    %v1638 = vpop.f32.mrb[0].mxu0
    %1639 = vmatprep.mubr.f32.mxu0 0.0
    %1640 = vmatmul.mubr.f32.gmra.mrb[0].mxu0 %v1432
    %v1641 = vpop.f32.mrb[0].mxu0
    %v1642 = vadd.f32 0.0, %v1641
    %v1643 = vpop.f32.mrb[0].mxu0
    %1644 = vmatprep.mubr.f32.mxu0 0.0
    %1645 = vmatmul.mubr.f32.gmra.mrb[0].mxu0 %v1435
    %v1646 = vpop.f32.mrb[0].mxu0
    %v1647 = vadd.f32 0.0, %v1646
    %v1648 = vpop.f32.mrb[0].mxu0
    %1649 = vmatprep.mubr.f32.mxu0 0.0
    %1650 = vmatmul.mubr.f32.gmra.mrb[0].mxu0 %v1438
    %v1651 = vpop.f32.mrb[0].mxu0
    %v1652 = vadd.f32 0.0, %v1651
    %v1653 = vpop.f32.mrb[0].mxu0
    %1654 = vmatprep.mubr.f32.mxu0 0.0
    %1655 = vmatmul.mubr.f32.gmra.mrb[0].mxu0 %v1441
    %v1656 = vpop.f32.mrb[0].mxu0
    %v1657 = vadd.f32 0.0, %v1656
    %v1658 = vpop.f32.mrb[0].mxu0
    %1659 = vmatprep.mubr.f32.mxu0 0.0
    %1660 = vmatmul.mubr.f32.gmra.mrb[0].mxu0 %v1444
    %v1661 = vpop.f32.mrb[0].mxu0
    %v1662 = vadd.f32 0.0, %v1661
    %v1663 = vpop.f32.mrb[0].mxu0
    %1664 = vmatprep.mubr.f32.mxu0 0.0
    %1665 = vmatmul.mubr.f32.gmra.mrb[0].mxu0 %v1447
    %v1666 = vpop.f32.mrb[0].mxu0
    %v1667 = vadd.f32 0.0, %v1666
    %v1668 = vpop.f32.mrb[0].mxu0
    %1669 = vmatprep.mubr.f32.mxu0 0.0
    %1670 = vmatmul.mubr.f32.gmra.mrb[0].mxu0 %v1450
    %v1671 = vpop.f32.mrb[0].mxu0
    %v1672 = vadd.f32 0.0, %v1671
    %v1673 = vpop.f32.mrb[0].mxu0
    %1674 = vmatprep.mubr.f32.mxu0 0.0
    %1675 = vmatmul.mubr.f32.gmra.mrb[0].mxu0 %v1453
    %v1676 = vpop.f32.mrb[0].mxu0
    %v1677 = vadd.f32 0.0, %v1676
    %v1678 = vpop.f32.mrb[0].mxu0
    %1679 = vdwg.mxu0
    %v1680 = vmul.f32 %v1522, %v1319
    %v1681 = vmul.f32 %v1527, %v1320
    %v1682 = vmul.f32 %v1532, %v1321
    %v1683 = vmul.f32 %v1537, %v1322
    %v1684 = vmul.f32 %v1542, %v1323
    %v1685 = vmul.f32 %v1547, %v1324
    %v1686 = vmul.f32 %v1552, %v1325
    %v1687 = vmul.f32 %v1557, %v1326
    %v1688 = vmul.f32 %v1562, %v1327
    %v1689 = vmul.f32 %v1567, %v1328
    %v1690 = vmul.f32 %v1572, %v1329
    %v1691 = vmul.f32 %v1577, %v1330
    %v1692 = vmul.f32 %v1582, %v1331
    %v1693 = vmul.f32 %v1587, %v1332
    %v1694 = vmul.f32 %v1592, %v1333
    %v1695 = vmul.f32 %v1597, %v1334
    %v1696 = vmul.f32 %v1602, %v1319
    %v1697 = vmul.f32 %v1607, %v1320
    %v1698 = vmul.f32 %v1612, %v1321
    %v1699 = vmul.f32 %v1617, %v1322
    %v1700 = vmul.f32 %v1622, %v1323
    %v1701 = vmul.f32 %v1627, %v1324
    %v1702 = vmul.f32 %v1632, %v1325
    %v1703 = vmul.f32 %v1637, %v1326
    %v1704 = vmul.f32 %v1642, %v1327
    %v1705 = vmul.f32 %v1647, %v1328
    %v1706 = vmul.f32 %v1652, %v1329
    %v1707 = vmul.f32 %v1657, %v1330
    %v1708 = vmul.f32 %v1662, %v1331
    %v1709 = vmul.f32 %v1667, %v1332
    %v1710 = vmul.f32 %v1672, %v1333
    %v1711 = vmul.f32 %v1677, %v1334
    %v1712 = vsel %vm395, %v1680, 0.0
    %1713 = vadd.xlane.f32.xlu0 %v1712
    %v1714 = vpop.xlane.xlu0 %1713
    %v1715 = vsel %vm395, %v1681, 0.0
    %1716 = vadd.xlane.f32.xlu0 %v1715
    %v1717 = vpop.xlane.xlu0 %1716
    %v1718 = vsel %vm395, %v1682, 0.0
    %1719 = vadd.xlane.f32.xlu0 %v1718
    %v1720 = vpop.xlane.xlu0 %1719
    %v1721 = vsel %vm395, %v1683, 0.0
    %1722 = vadd.xlane.f32.xlu0 %v1721
    %v1723 = vpop.xlane.xlu0 %1722
    %v1724 = vsel %vm395, %v1684, 0.0
    %1725 = vadd.xlane.f32.xlu0 %v1724
    %v1726 = vpop.xlane.xlu0 %1725
    %v1727 = vsel %vm395, %v1685, 0.0
    %1728 = vadd.xlane.f32.xlu0 %v1727
    %v1729 = vpop.xlane.xlu0 %1728
    %v1730 = vsel %vm395, %v1686, 0.0
    %1731 = vadd.xlane.f32.xlu0 %v1730
    %v1732 = vpop.xlane.xlu0 %1731
    %v1733 = vsel %vm395, %v1687, 0.0
    %1734 = vadd.xlane.f32.xlu0 %v1733
    %v1735 = vpop.xlane.xlu0 %1734
    %v1736 = vsel %vm395, %v1688, 0.0
    %1737 = vadd.xlane.f32.xlu0 %v1736
    %v1738 = vpop.xlane.xlu0 %1737
    %v1739 = vsel %vm395, %v1689, 0.0
    %1740 = vadd.xlane.f32.xlu0 %v1739
    %v1741 = vpop.xlane.xlu0 %1740
    %v1742 = vsel %vm395, %v1690, 0.0
    %1743 = vadd.xlane.f32.xlu0 %v1742
    %v1744 = vpop.xlane.xlu0 %1743
    %v1745 = vsel %vm395, %v1691, 0.0
    %1746 = vadd.xlane.f32.xlu0 %v1745
    %v1747 = vpop.xlane.xlu0 %1746
    %v1748 = vsel %vm395, %v1692, 0.0
    %1749 = vadd.xlane.f32.xlu0 %v1748
    %v1750 = vpop.xlane.xlu0 %1749
    %v1751 = vsel %vm395, %v1693, 0.0
    %1752 = vadd.xlane.f32.xlu0 %v1751
    %v1753 = vpop.xlane.xlu0 %1752
    %v1754 = vsel %vm395, %v1694, 0.0
    %1755 = vadd.xlane.f32.xlu0 %v1754
    %v1756 = vpop.xlane.xlu0 %1755
    %v1757 = vsel %vm395, %v1695, 0.0
    %1758 = vadd.xlane.f32.xlu0 %v1757
    %v1759 = vpop.xlane.xlu0 %1758
    %v1760 = vsel %vm395, %v1696, 0.0
    %1761 = vadd.xlane.f32.xlu0 %v1760
    %v1762 = vpop.xlane.xlu0 %1761
    %v1763 = vsel %vm395, %v1697, 0.0
    %1764 = vadd.xlane.f32.xlu0 %v1763
    %v1765 = vpop.xlane.xlu0 %1764
    %v1766 = vsel %vm395, %v1698, 0.0
    %1767 = vadd.xlane.f32.xlu0 %v1766
    %v1768 = vpop.xlane.xlu0 %1767
    %v1769 = vsel %vm395, %v1699, 0.0
    %1770 = vadd.xlane.f32.xlu0 %v1769
    %v1771 = vpop.xlane.xlu0 %1770
    %v1772 = vsel %vm395, %v1700, 0.0
    %1773 = vadd.xlane.f32.xlu0 %v1772
    %v1774 = vpop.xlane.xlu0 %1773
    %v1775 = vsel %vm395, %v1701, 0.0
    %1776 = vadd.xlane.f32.xlu0 %v1775
    %v1777 = vpop.xlane.xlu0 %1776
    %v1778 = vsel %vm395, %v1702, 0.0
    %1779 = vadd.xlane.f32.xlu0 %v1778
    %v1780 = vpop.xlane.xlu0 %1779
    %v1781 = vsel %vm395, %v1703, 0.0
    %1782 = vadd.xlane.f32.xlu0 %v1781
    %v1783 = vpop.xlane.xlu0 %1782
    %v1784 = vsel %vm395, %v1704, 0.0
    %1785 = vadd.xlane.f32.xlu0 %v1784
    %v1786 = vpop.xlane.xlu0 %1785
    %v1787 = vsel %vm395, %v1705, 0.0
    %1788 = vadd.xlane.f32.xlu0 %v1787
    %v1789 = vpop.xlane.xlu0 %1788
    %v1790 = vsel %vm395, %v1706, 0.0
    %1791 = vadd.xlane.f32.xlu0 %v1790
    %v1792 = vpop.xlane.xlu0 %1791
    %v1793 = vsel %vm395, %v1707, 0.0
    %1794 = vadd.xlane.f32.xlu0 %v1793
    %v1795 = vpop.xlane.xlu0 %1794
    %v1796 = vsel %vm395, %v1708, 0.0
    %1797 = vadd.xlane.f32.xlu0 %v1796
    %v1798 = vpop.xlane.xlu0 %1797
    %v1799 = vsel %vm395, %v1709, 0.0
    %1800 = vadd.xlane.f32.xlu0 %v1799
    %v1801 = vpop.xlane.xlu0 %1800
    %v1802 = vsel %vm395, %v1710, 0.0
    %1803 = vadd.xlane.f32.xlu0 %v1802
    %v1804 = vpop.xlane.xlu0 %1803
    %v1805 = vsel %vm395, %v1711, 0.0
    %1806 = vadd.xlane.f32.xlu0 %v1805
    %v1807 = vpop.xlane.xlu0 %1806
    %v1808 = vmul.f32 %v1714, 0.125
    %v1809 = vmul.f32 %v1717, 0.125
    %v1810 = vmul.f32 %v1720, 0.125
    %v1811 = vmul.f32 %v1723, 0.125
    %v1812 = vmul.f32 %v1726, 0.125
    %v1813 = vmul.f32 %v1729, 0.125
    %v1814 = vmul.f32 %v1732, 0.125
    %v1815 = vmul.f32 %v1735, 0.125
    %v1816 = vmul.f32 %v1738, 0.125
    %v1817 = vmul.f32 %v1741, 0.125
    %v1818 = vmul.f32 %v1744, 0.125
    %v1819 = vmul.f32 %v1747, 0.125
    %v1820 = vmul.f32 %v1750, 0.125
    %v1821 = vmul.f32 %v1753, 0.125
    %v1822 = vmul.f32 %v1756, 0.125
    %v1823 = vmul.f32 %v1759, 0.125
    %v1824 = vmul.f32 %v1762, 0.125
    %v1825 = vmul.f32 %v1765, 0.125
    %v1826 = vmul.f32 %v1768, 0.125
    %v1827 = vmul.f32 %v1771, 0.125
    %v1828 = vmul.f32 %v1774, 0.125
    %v1829 = vmul.f32 %v1777, 0.125
    %v1830 = vmul.f32 %v1780, 0.125
    %v1831 = vmul.f32 %v1783, 0.125
    %v1832 = vmul.f32 %v1786, 0.125
    %v1833 = vmul.f32 %v1789, 0.125
    %v1834 = vmul.f32 %v1792, 0.125
    %v1835 = vmul.f32 %v1795, 0.125
    %v1836 = vmul.f32 %v1798, 0.125
    %v1837 = vmul.f32 %v1801, 0.125
    %v1838 = vmul.f32 %v1804, 0.125
    %v1839 = vmul.f32 %v1807, 0.125
    %v1840 = vmul.f32 %v1522, %v1335
    %v1841 = vmul.f32 %v1527, %v1336
    %v1842 = vmul.f32 %v1532, %v1337
    %v1843 = vmul.f32 %v1537, %v1338
    %v1844 = vmul.f32 %v1542, %v1339
    %v1845 = vmul.f32 %v1547, %v1340
    %v1846 = vmul.f32 %v1552, %v1341
    %v1847 = vmul.f32 %v1557, %v1342
    %v1848 = vmul.f32 %v1562, %v1343
    %v1849 = vmul.f32 %v1567, %v1344
    %v1850 = vmul.f32 %v1572, %v1345
    %v1851 = vmul.f32 %v1577, %v1346
    %v1852 = vmul.f32 %v1582, %v1347
    %v1853 = vmul.f32 %v1587, %v1348
    %v1854 = vmul.f32 %v1592, %v1349
    %v1855 = vmul.f32 %v1597, %v1350
    %v1856 = vmul.f32 %v1602, %v1335
    %v1857 = vmul.f32 %v1607, %v1336
    %v1858 = vmul.f32 %v1612, %v1337
    %v1859 = vmul.f32 %v1617, %v1338
    %v1860 = vmul.f32 %v1622, %v1339
    %v1861 = vmul.f32 %v1627, %v1340
    %v1862 = vmul.f32 %v1632, %v1341
    %v1863 = vmul.f32 %v1637, %v1342
    %v1864 = vmul.f32 %v1642, %v1343
    %v1865 = vmul.f32 %v1647, %v1344
    %v1866 = vmul.f32 %v1652, %v1345
    %v1867 = vmul.f32 %v1657, %v1346
    %v1868 = vmul.f32 %v1662, %v1347
    %v1869 = vmul.f32 %v1667, %v1348
    %v1870 = vmul.f32 %v1672, %v1349
    %v1871 = vmul.f32 %v1677, %v1350
    %v1872 = vsel %vm395, %v1840, 0.0
    %1873 = vadd.xlane.f32.xlu0 %v1872
    %v1874 = vpop.xlane.xlu0 %1873
    %v1875 = vsel %vm395, %v1841, 0.0
    %1876 = vadd.xlane.f32.xlu0 %v1875
    %v1877 = vpop.xlane.xlu0 %1876
    %v1878 = vsel %vm395, %v1842, 0.0
    %1879 = vadd.xlane.f32.xlu0 %v1878
    %v1880 = vpop.xlane.xlu0 %1879
    %v1881 = vsel %vm395, %v1843, 0.0
    %1882 = vadd.xlane.f32.xlu0 %v1881
    %v1883 = vpop.xlane.xlu0 %1882
    %v1884 = vsel %vm395, %v1844, 0.0
    %1885 = vadd.xlane.f32.xlu0 %v1884
    %v1886 = vpop.xlane.xlu0 %1885
    %v1887 = vsel %vm395, %v1845, 0.0
    %1888 = vadd.xlane.f32.xlu0 %v1887
    %v1889 = vpop.xlane.xlu0 %1888
    %v1890 = vsel %vm395, %v1846, 0.0
    %1891 = vadd.xlane.f32.xlu0 %v1890
    %v1892 = vpop.xlane.xlu0 %1891
    %v1893 = vsel %vm395, %v1847, 0.0
    %1894 = vadd.xlane.f32.xlu0 %v1893
    %v1895 = vpop.xlane.xlu0 %1894
    %v1896 = vsel %vm395, %v1848, 0.0
    %1897 = vadd.xlane.f32.xlu0 %v1896
    %v1898 = vpop.xlane.xlu0 %1897
    %v1899 = vsel %vm395, %v1849, 0.0
    %1900 = vadd.xlane.f32.xlu0 %v1899
    %v1901 = vpop.xlane.xlu0 %1900
    %v1902 = vsel %vm395, %v1850, 0.0
    %1903 = vadd.xlane.f32.xlu0 %v1902
    %v1904 = vpop.xlane.xlu0 %1903
    %v1905 = vsel %vm395, %v1851, 0.0
    %1906 = vadd.xlane.f32.xlu0 %v1905
    %v1907 = vpop.xlane.xlu0 %1906
    %v1908 = vsel %vm395, %v1852, 0.0
    %1909 = vadd.xlane.f32.xlu0 %v1908
    %v1910 = vpop.xlane.xlu0 %1909
    %v1911 = vsel %vm395, %v1853, 0.0
    %1912 = vadd.xlane.f32.xlu0 %v1911
    %v1913 = vpop.xlane.xlu0 %1912
    %v1914 = vsel %vm395, %v1854, 0.0
    %1915 = vadd.xlane.f32.xlu0 %v1914
    %v1916 = vpop.xlane.xlu0 %1915
    %v1917 = vsel %vm395, %v1855, 0.0
    %1918 = vadd.xlane.f32.xlu0 %v1917
    %v1919 = vpop.xlane.xlu0 %1918
    %v1920 = vsel %vm395, %v1856, 0.0
    %1921 = vadd.xlane.f32.xlu0 %v1920
    %v1922 = vpop.xlane.xlu0 %1921
    %v1923 = vsel %vm395, %v1857, 0.0
    %1924 = vadd.xlane.f32.xlu0 %v1923
    %v1925 = vpop.xlane.xlu0 %1924
    %v1926 = vsel %vm395, %v1858, 0.0
    %1927 = vadd.xlane.f32.xlu0 %v1926
    %v1928 = vpop.xlane.xlu0 %1927
    %v1929 = vsel %vm395, %v1859, 0.0
    %1930 = vadd.xlane.f32.xlu0 %v1929
    %v1931 = vpop.xlane.xlu0 %1930
    %v1932 = vsel %vm395, %v1860, 0.0
    %1933 = vadd.xlane.f32.xlu0 %v1932
    %v1934 = vpop.xlane.xlu0 %1933
    %v1935 = vsel %vm395, %v1861, 0.0
    %1936 = vadd.xlane.f32.xlu0 %v1935
    %v1937 = vpop.xlane.xlu0 %1936
    %v1938 = vsel %vm395, %v1862, 0.0
    %1939 = vadd.xlane.f32.xlu0 %v1938
    %v1940 = vpop.xlane.xlu0 %1939
    %v1941 = vsel %vm395, %v1863, 0.0
    %1942 = vadd.xlane.f32.xlu0 %v1941
    %v1943 = vpop.xlane.xlu0 %1942
    %v1944 = vsel %vm395, %v1864, 0.0
    %1945 = vadd.xlane.f32.xlu0 %v1944
    %v1946 = vpop.xlane.xlu0 %1945
    %v1947 = vsel %vm395, %v1865, 0.0
    %1948 = vadd.xlane.f32.xlu0 %v1947
    %v1949 = vpop.xlane.xlu0 %1948
    %v1950 = vsel %vm395, %v1866, 0.0
    %1951 = vadd.xlane.f32.xlu0 %v1950
    %v1952 = vpop.xlane.xlu0 %1951
    %v1953 = vsel %vm395, %v1867, 0.0
    %1954 = vadd.xlane.f32.xlu0 %v1953
    %v1955 = vpop.xlane.xlu0 %1954
    %v1956 = vsel %vm395, %v1868, 0.0
    %1957 = vadd.xlane.f32.xlu0 %v1956
    %v1958 = vpop.xlane.xlu0 %1957
    %v1959 = vsel %vm395, %v1869, 0.0
    %1960 = vadd.xlane.f32.xlu0 %v1959
    %v1961 = vpop.xlane.xlu0 %1960
    %v1962 = vsel %vm395, %v1870, 0.0
    %1963 = vadd.xlane.f32.xlu0 %v1962
    %v1964 = vpop.xlane.xlu0 %1963
    %v1965 = vsel %vm395, %v1871, 0.0
    %1966 = vadd.xlane.f32.xlu0 %v1965
    %v1967 = vpop.xlane.xlu0 %1966
    %v1968 = vmul.f32 %v1874, 0.125
    %v1969 = vmul.f32 %v1877, 0.125
    %v1970 = vmul.f32 %v1880, 0.125
    %v1971 = vmul.f32 %v1883, 0.125
    %v1972 = vmul.f32 %v1886, 0.125
    %v1973 = vmul.f32 %v1889, 0.125
    %v1974 = vmul.f32 %v1892, 0.125
    %v1975 = vmul.f32 %v1895, 0.125
    %v1976 = vmul.f32 %v1898, 0.125
    %v1977 = vmul.f32 %v1901, 0.125
    %v1978 = vmul.f32 %v1904, 0.125
    %v1979 = vmul.f32 %v1907, 0.125
    %v1980 = vmul.f32 %v1910, 0.125
    %v1981 = vmul.f32 %v1913, 0.125
    %v1982 = vmul.f32 %v1916, 0.125
    %v1983 = vmul.f32 %v1919, 0.125
    %v1984 = vmul.f32 %v1922, 0.125
    %v1985 = vmul.f32 %v1925, 0.125
    %v1986 = vmul.f32 %v1928, 0.125
    %v1987 = vmul.f32 %v1931, 0.125
    %v1988 = vmul.f32 %v1934, 0.125
    %v1989 = vmul.f32 %v1937, 0.125
    %v1990 = vmul.f32 %v1940, 0.125
    %v1991 = vmul.f32 %v1943, 0.125
    %v1992 = vmul.f32 %v1946, 0.125
    %v1993 = vmul.f32 %v1949, 0.125
    %v1994 = vmul.f32 %v1952, 0.125
    %v1995 = vmul.f32 %v1955, 0.125
    %v1996 = vmul.f32 %v1958, 0.125
    %v1997 = vmul.f32 %v1961, 0.125
    %v1998 = vmul.f32 %v1964, 0.125
    %v1999 = vmul.f32 %v1967, 0.125
    %v2000 = vmul.f32 %v1522, %v1351
    %v2001 = vmul.f32 %v1527, %v1352
    %v2002 = vmul.f32 %v1532, %v1353
    %v2003 = vmul.f32 %v1537, %v1354
    %v2004 = vmul.f32 %v1542, %v1355
    %v2005 = vmul.f32 %v1547, %v1356
    %v2006 = vmul.f32 %v1552, %v1357
    %v2007 = vmul.f32 %v1557, %v1358
    %v2008 = vmul.f32 %v1562, %v1359
    %v2009 = vmul.f32 %v1567, %v1360
    %v2010 = vmul.f32 %v1572, %v1361
    %v2011 = vmul.f32 %v1577, %v1362
    %v2012 = vmul.f32 %v1582, %v1363
    %v2013 = vmul.f32 %v1587, %v1364
    %v2014 = vmul.f32 %v1592, %v1365
    %v2015 = vmul.f32 %v1597, %v1366
    %v2016 = vmul.f32 %v1602, %v1351
    %v2017 = vmul.f32 %v1607, %v1352
    %v2018 = vmul.f32 %v1612, %v1353
    %v2019 = vmul.f32 %v1617, %v1354
    %v2020 = vmul.f32 %v1622, %v1355
    %v2021 = vmul.f32 %v1627, %v1356
    %v2022 = vmul.f32 %v1632, %v1357
    %v2023 = vmul.f32 %v1637, %v1358
    %v2024 = vmul.f32 %v1642, %v1359
    %v2025 = vmul.f32 %v1647, %v1360
    %v2026 = vmul.f32 %v1652, %v1361
    %v2027 = vmul.f32 %v1657, %v1362
    %v2028 = vmul.f32 %v1662, %v1363
    %v2029 = vmul.f32 %v1667, %v1364
    %v2030 = vmul.f32 %v1672, %v1365
    %v2031 = vmul.f32 %v1677, %v1366
    %v2032 = vsel %vm395, %v2000, 0.0
    %2033 = vadd.xlane.f32.xlu0 %v2032
    %v2034 = vpop.xlane.xlu0 %2033
    %v2035 = vsel %vm395, %v2001, 0.0
    %2036 = vadd.xlane.f32.xlu0 %v2035
    %v2037 = vpop.xlane.xlu0 %2036
    %v2038 = vsel %vm395, %v2002, 0.0
    %2039 = vadd.xlane.f32.xlu0 %v2038
    %v2040 = vpop.xlane.xlu0 %2039
    %v2041 = vsel %vm395, %v2003, 0.0
    %2042 = vadd.xlane.f32.xlu0 %v2041
    %v2043 = vpop.xlane.xlu0 %2042
    %v2044 = vsel %vm395, %v2004, 0.0
    %2045 = vadd.xlane.f32.xlu0 %v2044
    %v2046 = vpop.xlane.xlu0 %2045
    %v2047 = vsel %vm395, %v2005, 0.0
    %2048 = vadd.xlane.f32.xlu0 %v2047
    %v2049 = vpop.xlane.xlu0 %2048
    %v2050 = vsel %vm395, %v2006, 0.0
    %2051 = vadd.xlane.f32.xlu0 %v2050
    %v2052 = vpop.xlane.xlu0 %2051
    %v2053 = vsel %vm395, %v2007, 0.0
    %2054 = vadd.xlane.f32.xlu0 %v2053
    %v2055 = vpop.xlane.xlu0 %2054
    %v2056 = vsel %vm395, %v2008, 0.0
    %2057 = vadd.xlane.f32.xlu0 %v2056
    %v2058 = vpop.xlane.xlu0 %2057
    %v2059 = vsel %vm395, %v2009, 0.0
    %2060 = vadd.xlane.f32.xlu0 %v2059
    %v2061 = vpop.xlane.xlu0 %2060
    %v2062 = vsel %vm395, %v2010, 0.0
    %2063 = vadd.xlane.f32.xlu0 %v2062
    %v2064 = vpop.xlane.xlu0 %2063
    %v2065 = vsel %vm395, %v2011, 0.0
    %2066 = vadd.xlane.f32.xlu0 %v2065
    %v2067 = vpop.xlane.xlu0 %2066
    %v2068 = vsel %vm395, %v2012, 0.0
    %2069 = vadd.xlane.f32.xlu0 %v2068
    %v2070 = vpop.xlane.xlu0 %2069
    %v2071 = vsel %vm395, %v2013, 0.0
    %2072 = vadd.xlane.f32.xlu0 %v2071
    %v2073 = vpop.xlane.xlu0 %2072
    %v2074 = vsel %vm395, %v2014, 0.0
    %2075 = vadd.xlane.f32.xlu0 %v2074
    %v2076 = vpop.xlane.xlu0 %2075
    %v2077 = vsel %vm395, %v2015, 0.0
    %2078 = vadd.xlane.f32.xlu0 %v2077
    %v2079 = vpop.xlane.xlu0 %2078
    %v2080 = vsel %vm395, %v2016, 0.0
    %2081 = vadd.xlane.f32.xlu0 %v2080
    %v2082 = vpop.xlane.xlu0 %2081
    %v2083 = vsel %vm395, %v2017, 0.0
    %2084 = vadd.xlane.f32.xlu0 %v2083
    %v2085 = vpop.xlane.xlu0 %2084
    %v2086 = vsel %vm395, %v2018, 0.0
    %2087 = vadd.xlane.f32.xlu0 %v2086
    %v2088 = vpop.xlane.xlu0 %2087
    %v2089 = vsel %vm395, %v2019, 0.0
    %2090 = vadd.xlane.f32.xlu0 %v2089
    %v2091 = vpop.xlane.xlu0 %2090
    %v2092 = vsel %vm395, %v2020, 0.0
    %2093 = vadd.xlane.f32.xlu0 %v2092
    %v2094 = vpop.xlane.xlu0 %2093
    %v2095 = vsel %vm395, %v2021, 0.0
    %2096 = vadd.xlane.f32.xlu0 %v2095
    %v2097 = vpop.xlane.xlu0 %2096
    %v2098 = vsel %vm395, %v2022, 0.0
    %2099 = vadd.xlane.f32.xlu0 %v2098
    %v2100 = vpop.xlane.xlu0 %2099
    %v2101 = vsel %vm395, %v2023, 0.0
    %2102 = vadd.xlane.f32.xlu0 %v2101
    %v2103 = vpop.xlane.xlu0 %2102
    %v2104 = vsel %vm395, %v2024, 0.0
    %2105 = vadd.xlane.f32.xlu0 %v2104
    %v2106 = vpop.xlane.xlu0 %2105
    %v2107 = vsel %vm395, %v2025, 0.0
    %2108 = vadd.xlane.f32.xlu0 %v2107
    %v2109 = vpop.xlane.xlu0 %2108
    %v2110 = vsel %vm395, %v2026, 0.0
    %2111 = vadd.xlane.f32.xlu0 %v2110
    %v2112 = vpop.xlane.xlu0 %2111
    %v2113 = vsel %vm395, %v2027, 0.0
    %2114 = vadd.xlane.f32.xlu0 %v2113
    %v2115 = vpop.xlane.xlu0 %2114
    %v2116 = vsel %vm395, %v2028, 0.0
    %2117 = vadd.xlane.f32.xlu0 %v2116
    %v2118 = vpop.xlane.xlu0 %2117
    %v2119 = vsel %vm395, %v2029, 0.0
    %2120 = vadd.xlane.f32.xlu0 %v2119
    %v2121 = vpop.xlane.xlu0 %2120
    %v2122 = vsel %vm395, %v2030, 0.0
    %2123 = vadd.xlane.f32.xlu0 %v2122
    %v2124 = vpop.xlane.xlu0 %2123
    %v2125 = vsel %vm395, %v2031, 0.0
    %2126 = vadd.xlane.f32.xlu0 %v2125
    %v2127 = vpop.xlane.xlu0 %2126
    %v2128 = vmul.f32 %v2034, 0.125
    %v2129 = vmul.f32 %v2037, 0.125
    %v2130 = vmul.f32 %v2040, 0.125
    %v2131 = vmul.f32 %v2043, 0.125
    %v2132 = vmul.f32 %v2046, 0.125
    %v2133 = vmul.f32 %v2049, 0.125
    %v2134 = vmul.f32 %v2052, 0.125
    %v2135 = vmul.f32 %v2055, 0.125
    %v2136 = vmul.f32 %v2058, 0.125
    %v2137 = vmul.f32 %v2061, 0.125
    %v2138 = vmul.f32 %v2064, 0.125
    %v2139 = vmul.f32 %v2067, 0.125
    %v2140 = vmul.f32 %v2070, 0.125
    %v2141 = vmul.f32 %v2073, 0.125
    %v2142 = vmul.f32 %v2076, 0.125
    %v2143 = vmul.f32 %v2079, 0.125
    %v2144 = vmul.f32 %v2082, 0.125
    %v2145 = vmul.f32 %v2085, 0.125
    %v2146 = vmul.f32 %v2088, 0.125
    %v2147 = vmul.f32 %v2091, 0.125
    %v2148 = vmul.f32 %v2094, 0.125
    %v2149 = vmul.f32 %v2097, 0.125
    %v2150 = vmul.f32 %v2100, 0.125
    %v2151 = vmul.f32 %v2103, 0.125
    %v2152 = vmul.f32 %v2106, 0.125
    %v2153 = vmul.f32 %v2109, 0.125
    %v2154 = vmul.f32 %v2112, 0.125
    %v2155 = vmul.f32 %v2115, 0.125
    %v2156 = vmul.f32 %v2118, 0.125
    %v2157 = vmul.f32 %v2121, 0.125
    %v2158 = vmul.f32 %v2124, 0.125
    %v2159 = vmul.f32 %v2127, 0.125
    %v2160 = vmul.f32 %v1522, %v1367
    %v2161 = vmul.f32 %v1527, %v1368
    %v2162 = vmul.f32 %v1532, %v1369
    %v2163 = vmul.f32 %v1537, %v1370
    %v2164 = vmul.f32 %v1542, %v1371
    %v2165 = vmul.f32 %v1547, %v1372
    %v2166 = vmul.f32 %v1552, %v1373
    %v2167 = vmul.f32 %v1557, %v1374
    %v2168 = vmul.f32 %v1562, %v1375
    %v2169 = vmul.f32 %v1567, %v1376
    %v2170 = vmul.f32 %v1572, %v1377
    %v2171 = vmul.f32 %v1577, %v1378
    %v2172 = vmul.f32 %v1582, %v1379
    %v2173 = vmul.f32 %v1587, %v1380
    %v2174 = vmul.f32 %v1592, %v1381
    %v2175 = vmul.f32 %v1597, %v1382
    %v2176 = vmul.f32 %v1602, %v1367
    %v2177 = vmul.f32 %v1607, %v1368
    %v2178 = vmul.f32 %v1612, %v1369
    %v2179 = vmul.f32 %v1617, %v1370
    %v2180 = vmul.f32 %v1622, %v1371
    %v2181 = vmul.f32 %v1627, %v1372
    %v2182 = vmul.f32 %v1632, %v1373
    %v2183 = vmul.f32 %v1637, %v1374
    %v2184 = vmul.f32 %v1642, %v1375
    %v2185 = vmul.f32 %v1647, %v1376
    %v2186 = vmul.f32 %v1652, %v1377
    %v2187 = vmul.f32 %v1657, %v1378
    %v2188 = vmul.f32 %v1662, %v1379
    %v2189 = vmul.f32 %v1667, %v1380
    %v2190 = vmul.f32 %v1672, %v1381
    %v2191 = vmul.f32 %v1677, %v1382
    %v2192 = vsel %vm395, %v2160, 0.0
    %2193 = vadd.xlane.f32.xlu0 %v2192
    %v2194 = vpop.xlane.xlu0 %2193
    %v2195 = vsel %vm395, %v2161, 0.0
    %2196 = vadd.xlane.f32.xlu0 %v2195
    %v2197 = vpop.xlane.xlu0 %2196
    %v2198 = vsel %vm395, %v2162, 0.0
    %2199 = vadd.xlane.f32.xlu0 %v2198
    %v2200 = vpop.xlane.xlu0 %2199
    %v2201 = vsel %vm395, %v2163, 0.0
    %2202 = vadd.xlane.f32.xlu0 %v2201
    %v2203 = vpop.xlane.xlu0 %2202
    %v2204 = vsel %vm395, %v2164, 0.0
    %2205 = vadd.xlane.f32.xlu0 %v2204
    %v2206 = vpop.xlane.xlu0 %2205
    %v2207 = vsel %vm395, %v2165, 0.0
    %2208 = vadd.xlane.f32.xlu0 %v2207
    %v2209 = vpop.xlane.xlu0 %2208
    %v2210 = vsel %vm395, %v2166, 0.0
    %2211 = vadd.xlane.f32.xlu0 %v2210
    %v2212 = vpop.xlane.xlu0 %2211
    %v2213 = vsel %vm395, %v2167, 0.0
    %2214 = vadd.xlane.f32.xlu0 %v2213
    %v2215 = vpop.xlane.xlu0 %2214
    %v2216 = vsel %vm395, %v2168, 0.0
    %2217 = vadd.xlane.f32.xlu0 %v2216
    %v2218 = vpop.xlane.xlu0 %2217
    %v2219 = vsel %vm395, %v2169, 0.0
    %2220 = vadd.xlane.f32.xlu0 %v2219
    %v2221 = vpop.xlane.xlu0 %2220
    %v2222 = vsel %vm395, %v2170, 0.0
    %2223 = vadd.xlane.f32.xlu0 %v2222
    %v2224 = vpop.xlane.xlu0 %2223
    %v2225 = vsel %vm395, %v2171, 0.0
    %2226 = vadd.xlane.f32.xlu0 %v2225
    %v2227 = vpop.xlane.xlu0 %2226
    %v2228 = vsel %vm395, %v2172, 0.0
    %2229 = vadd.xlane.f32.xlu0 %v2228
    %v2230 = vpop.xlane.xlu0 %2229
    %v2231 = vsel %vm395, %v2173, 0.0
    %2232 = vadd.xlane.f32.xlu0 %v2231
    %v2233 = vpop.xlane.xlu0 %2232
    %v2234 = vsel %vm395, %v2174, 0.0
    %2235 = vadd.xlane.f32.xlu0 %v2234
    %v2236 = vpop.xlane.xlu0 %2235
    %v2237 = vsel %vm395, %v2175, 0.0
    %2238 = vadd.xlane.f32.xlu0 %v2237
    %v2239 = vpop.xlane.xlu0 %2238
    %v2240 = vsel %vm395, %v2176, 0.0
    %2241 = vadd.xlane.f32.xlu0 %v2240
    %v2242 = vpop.xlane.xlu0 %2241
    %v2243 = vsel %vm395, %v2177, 0.0
    %2244 = vadd.xlane.f32.xlu0 %v2243
    %v2245 = vpop.xlane.xlu0 %2244
    %v2246 = vsel %vm395, %v2178, 0.0
    %2247 = vadd.xlane.f32.xlu0 %v2246
    %v2248 = vpop.xlane.xlu0 %2247
    %v2249 = vsel %vm395, %v2179, 0.0
    %2250 = vadd.xlane.f32.xlu0 %v2249
    %v2251 = vpop.xlane.xlu0 %2250
    %v2252 = vsel %vm395, %v2180, 0.0
    %2253 = vadd.xlane.f32.xlu0 %v2252
    %v2254 = vpop.xlane.xlu0 %2253
    %v2255 = vsel %vm395, %v2181, 0.0
    %2256 = vadd.xlane.f32.xlu0 %v2255
    %v2257 = vpop.xlane.xlu0 %2256
    %v2258 = vsel %vm395, %v2182, 0.0
    %2259 = vadd.xlane.f32.xlu0 %v2258
    %v2260 = vpop.xlane.xlu0 %2259
    %v2261 = vsel %vm395, %v2183, 0.0
    %2262 = vadd.xlane.f32.xlu0 %v2261
    %v2263 = vpop.xlane.xlu0 %2262
    %v2264 = vsel %vm395, %v2184, 0.0
    %2265 = vadd.xlane.f32.xlu0 %v2264
    %v2266 = vpop.xlane.xlu0 %2265
    %v2267 = vsel %vm395, %v2185, 0.0
    %2268 = vadd.xlane.f32.xlu0 %v2267
    %v2269 = vpop.xlane.xlu0 %2268
    %v2270 = vsel %vm395, %v2186, 0.0
    %2271 = vadd.xlane.f32.xlu0 %v2270
    %v2272 = vpop.xlane.xlu0 %2271
    %v2273 = vsel %vm395, %v2187, 0.0
    %2274 = vadd.xlane.f32.xlu0 %v2273
    %v2275 = vpop.xlane.xlu0 %2274
    %v2276 = vsel %vm395, %v2188, 0.0
    %2277 = vadd.xlane.f32.xlu0 %v2276
    %v2278 = vpop.xlane.xlu0 %2277
    %v2279 = vsel %vm395, %v2189, 0.0
    %2280 = vadd.xlane.f32.xlu0 %v2279
    %v2281 = vpop.xlane.xlu0 %2280
    %v2282 = vsel %vm395, %v2190, 0.0
    %2283 = vadd.xlane.f32.xlu0 %v2282
    %v2284 = vpop.xlane.xlu0 %2283
    %v2285 = vsel %vm395, %v2191, 0.0
    %2286 = vadd.xlane.f32.xlu0 %v2285
    %v2287 = vpop.xlane.xlu0 %2286
    %v2288 = vmul.f32 %v2194, 0.125
    %v2289 = vmul.f32 %v2197, 0.125
    %v2290 = vmul.f32 %v2200, 0.125
    %v2291 = vmul.f32 %v2203, 0.125
    %v2292 = vmul.f32 %v2206, 0.125
    %v2293 = vmul.f32 %v2209, 0.125
    %v2294 = vmul.f32 %v2212, 0.125
    %v2295 = vmul.f32 %v2215, 0.125
    %v2296 = vmul.f32 %v2218, 0.125
    %v2297 = vmul.f32 %v2221, 0.125
    %v2298 = vmul.f32 %v2224, 0.125
    %v2299 = vmul.f32 %v2227, 0.125
    %v2300 = vmul.f32 %v2230, 0.125
    %v2301 = vmul.f32 %v2233, 0.125
    %v2302 = vmul.f32 %v2236, 0.125
    %v2303 = vmul.f32 %v2239, 0.125
    %v2304 = vmul.f32 %v2242, 0.125
    %v2305 = vmul.f32 %v2245, 0.125
    %v2306 = vmul.f32 %v2248, 0.125
    %v2307 = vmul.f32 %v2251, 0.125
    %v2308 = vmul.f32 %v2254, 0.125
    %v2309 = vmul.f32 %v2257, 0.125
    %v2310 = vmul.f32 %v2260, 0.125
    %v2311 = vmul.f32 %v2263, 0.125
    %v2312 = vmul.f32 %v2266, 0.125
    %v2313 = vmul.f32 %v2269, 0.125
    %v2314 = vmul.f32 %v2272, 0.125
    %v2315 = vmul.f32 %v2275, 0.125
    %v2316 = vmul.f32 %v2278, 0.125
    %v2317 = vmul.f32 %v2281, 0.125
    %v2318 = vmul.f32 %v2284, 0.125
    %v2319 = vmul.f32 %v2287, 0.125
    %v2320 = vmul.f32 %v1522, %v1383
    %v2321 = vmul.f32 %v1527, %v1384
    %v2322 = vmul.f32 %v1532, %v1385
    %v2323 = vmul.f32 %v1537, %v1386
    %v2324 = vmul.f32 %v1542, %v1387
    %v2325 = vmul.f32 %v1547, %v1388
    %v2326 = vmul.f32 %v1552, %v1389
    %v2327 = vmul.f32 %v1557, %v1390
    %v2328 = vmul.f32 %v1562, %v1391
    %v2329 = vmul.f32 %v1567, %v1392
    %v2330 = vmul.f32 %v1572, %v1393
    %v2331 = vmul.f32 %v1577, %v1394
    %v2332 = vmul.f32 %v1582, %v1395
    %v2333 = vmul.f32 %v1587, %v1396
    %v2334 = vmul.f32 %v1592, %v1397
    %v2335 = vmul.f32 %v1597, %v1398
    %v2336 = vmul.f32 %v1602, %v1383
    %v2337 = vmul.f32 %v1607, %v1384
    %v2338 = vmul.f32 %v1612, %v1385
    %v2339 = vmul.f32 %v1617, %v1386
    %v2340 = vmul.f32 %v1622, %v1387
    %v2341 = vmul.f32 %v1627, %v1388
    %v2342 = vmul.f32 %v1632, %v1389
    %v2343 = vmul.f32 %v1637, %v1390
    %v2344 = vmul.f32 %v1642, %v1391
    %v2345 = vmul.f32 %v1647, %v1392
    %v2346 = vmul.f32 %v1652, %v1393
    %v2347 = vmul.f32 %v1657, %v1394
    %v2348 = vmul.f32 %v1662, %v1395
    %v2349 = vmul.f32 %v1667, %v1396
    %v2350 = vmul.f32 %v1672, %v1397
    %v2351 = vmul.f32 %v1677, %v1398
    %v2352 = vsel %vm395, %v2320, 0.0
    %2353 = vadd.xlane.f32.xlu0 %v2352
    %v2354 = vpop.xlane.xlu0 %2353
    %v2355 = vsel %vm395, %v2321, 0.0
    %2356 = vadd.xlane.f32.xlu0 %v2355
    %v2357 = vpop.xlane.xlu0 %2356
    %v2358 = vsel %vm395, %v2322, 0.0
    %2359 = vadd.xlane.f32.xlu0 %v2358
    %v2360 = vpop.xlane.xlu0 %2359
    %v2361 = vsel %vm395, %v2323, 0.0
    %2362 = vadd.xlane.f32.xlu0 %v2361
    %v2363 = vpop.xlane.xlu0 %2362
    %v2364 = vsel %vm395, %v2324, 0.0
    %2365 = vadd.xlane.f32.xlu0 %v2364
    %v2366 = vpop.xlane.xlu0 %2365
    %v2367 = vsel %vm395, %v2325, 0.0
    %2368 = vadd.xlane.f32.xlu0 %v2367
    %v2369 = vpop.xlane.xlu0 %2368
    %v2370 = vsel %vm395, %v2326, 0.0
    %2371 = vadd.xlane.f32.xlu0 %v2370
    %v2372 = vpop.xlane.xlu0 %2371
    %v2373 = vsel %vm395, %v2327, 0.0
    %2374 = vadd.xlane.f32.xlu0 %v2373
    %v2375 = vpop.xlane.xlu0 %2374
    %v2376 = vsel %vm395, %v2328, 0.0
    %2377 = vadd.xlane.f32.xlu0 %v2376
    %v2378 = vpop.xlane.xlu0 %2377
    %v2379 = vsel %vm395, %v2329, 0.0
    %2380 = vadd.xlane.f32.xlu0 %v2379
    %v2381 = vpop.xlane.xlu0 %2380
    %v2382 = vsel %vm395, %v2330, 0.0
    %2383 = vadd.xlane.f32.xlu0 %v2382
    %v2384 = vpop.xlane.xlu0 %2383
    %v2385 = vsel %vm395, %v2331, 0.0
    %2386 = vadd.xlane.f32.xlu0 %v2385
    %v2387 = vpop.xlane.xlu0 %2386
    %v2388 = vsel %vm395, %v2332, 0.0
    %2389 = vadd.xlane.f32.xlu0 %v2388
    %v2390 = vpop.xlane.xlu0 %2389
    %v2391 = vsel %vm395, %v2333, 0.0
    %2392 = vadd.xlane.f32.xlu0 %v2391
    %v2393 = vpop.xlane.xlu0 %2392
    %v2394 = vsel %vm395, %v2334, 0.0
    %2395 = vadd.xlane.f32.xlu0 %v2394
    %v2396 = vpop.xlane.xlu0 %2395
    %v2397 = vsel %vm395, %v2335, 0.0
    %2398 = vadd.xlane.f32.xlu0 %v2397
    %v2399 = vpop.xlane.xlu0 %2398
    %v2400 = vsel %vm395, %v2336, 0.0
    %2401 = vadd.xlane.f32.xlu0 %v2400
    %v2402 = vpop.xlane.xlu0 %2401
    %v2403 = vsel %vm395, %v2337, 0.0
    %2404 = vadd.xlane.f32.xlu0 %v2403
    %v2405 = vpop.xlane.xlu0 %2404
    %v2406 = vsel %vm395, %v2338, 0.0
    %2407 = vadd.xlane.f32.xlu0 %v2406
    %v2408 = vpop.xlane.xlu0 %2407
    %v2409 = vsel %vm395, %v2339, 0.0
    %2410 = vadd.xlane.f32.xlu0 %v2409
    %v2411 = vpop.xlane.xlu0 %2410
    %v2412 = vsel %vm395, %v2340, 0.0
    %2413 = vadd.xlane.f32.xlu0 %v2412
    %v2414 = vpop.xlane.xlu0 %2413
    %v2415 = vsel %vm395, %v2341, 0.0
    %2416 = vadd.xlane.f32.xlu0 %v2415
    %v2417 = vpop.xlane.xlu0 %2416
    %v2418 = vsel %vm395, %v2342, 0.0
    %2419 = vadd.xlane.f32.xlu0 %v2418
    %v2420 = vpop.xlane.xlu0 %2419
    %v2421 = vsel %vm395, %v2343, 0.0
    %2422 = vadd.xlane.f32.xlu0 %v2421
    %v2423 = vpop.xlane.xlu0 %2422
    %v2424 = vsel %vm395, %v2344, 0.0
    %2425 = vadd.xlane.f32.xlu0 %v2424
    %v2426 = vpop.xlane.xlu0 %2425
    %v2427 = vsel %vm395, %v2345, 0.0
    %2428 = vadd.xlane.f32.xlu0 %v2427
    %v2429 = vpop.xlane.xlu0 %2428
    %v2430 = vsel %vm395, %v2346, 0.0
    %2431 = vadd.xlane.f32.xlu0 %v2430
    %v2432 = vpop.xlane.xlu0 %2431
    %v2433 = vsel %vm395, %v2347, 0.0
    %2434 = vadd.xlane.f32.xlu0 %v2433
    %v2435 = vpop.xlane.xlu0 %2434
    %v2436 = vsel %vm395, %v2348, 0.0
    %2437 = vadd.xlane.f32.xlu0 %v2436
    %v2438 = vpop.xlane.xlu0 %2437
    %v2439 = vsel %vm395, %v2349, 0.0
    %2440 = vadd.xlane.f32.xlu0 %v2439
    %v2441 = vpop.xlane.xlu0 %2440
    %v2442 = vsel %vm395, %v2350, 0.0
    %2443 = vadd.xlane.f32.xlu0 %v2442
    %v2444 = vpop.xlane.xlu0 %2443
    %v2445 = vsel %vm395, %v2351, 0.0
    %2446 = vadd.xlane.f32.xlu0 %v2445
    %v2447 = vpop.xlane.xlu0 %2446
    %v2448 = vmul.f32 %v2354, 0.125
    %v2449 = vmul.f32 %v2357, 0.125
    %v2450 = vmul.f32 %v2360, 0.125
    %v2451 = vmul.f32 %v2363, 0.125
    %v2452 = vmul.f32 %v2366, 0.125
    %v2453 = vmul.f32 %v2369, 0.125
    %v2454 = vmul.f32 %v2372, 0.125
    %v2455 = vmul.f32 %v2375, 0.125
    %v2456 = vmul.f32 %v2378, 0.125
    %v2457 = vmul.f32 %v2381, 0.125
    %v2458 = vmul.f32 %v2384, 0.125
    %v2459 = vmul.f32 %v2387, 0.125
    %v2460 = vmul.f32 %v2390, 0.125
    %v2461 = vmul.f32 %v2393, 0.125
    %v2462 = vmul.f32 %v2396, 0.125
    %v2463 = vmul.f32 %v2399, 0.125
    %v2464 = vmul.f32 %v2402, 0.125
    %v2465 = vmul.f32 %v2405, 0.125
    %v2466 = vmul.f32 %v2408, 0.125
    %v2467 = vmul.f32 %v2411, 0.125
    %v2468 = vmul.f32 %v2414, 0.125
    %v2469 = vmul.f32 %v2417, 0.125
    %v2470 = vmul.f32 %v2420, 0.125
    %v2471 = vmul.f32 %v2423, 0.125
    %v2472 = vmul.f32 %v2426, 0.125
    %v2473 = vmul.f32 %v2429, 0.125
    %v2474 = vmul.f32 %v2432, 0.125
    %v2475 = vmul.f32 %v2435, 0.125
    %v2476 = vmul.f32 %v2438, 0.125
    %v2477 = vmul.f32 %v2441, 0.125
    %v2478 = vmul.f32 %v2444, 0.125
    %v2479 = vmul.f32 %v2447, 0.125
    %v2480 = vmax.f32 %v1808, %v1968
    %v2481 = vmax.f32 %v1809, %v1969
    %v2482 = vmax.f32 %v1810, %v1970
    %v2483 = vmax.f32 %v1811, %v1971
    %v2484 = vmax.f32 %v1812, %v1972
    %v2485 = vmax.f32 %v1813, %v1973
    %v2486 = vmax.f32 %v1814, %v1974
    %v2487 = vmax.f32 %v1815, %v1975
    %v2488 = vmax.f32 %v1816, %v1976
    %v2489 = vmax.f32 %v1817, %v1977
    %v2490 = vmax.f32 %v1818, %v1978
    %v2491 = vmax.f32 %v1819, %v1979
    %v2492 = vmax.f32 %v1820, %v1980
    %v2493 = vmax.f32 %v1821, %v1981
    %v2494 = vmax.f32 %v1822, %v1982
    %v2495 = vmax.f32 %v1823, %v1983
    %v2496 = vmax.f32 %v1824, %v1984
    %v2497 = vmax.f32 %v1825, %v1985
    %v2498 = vmax.f32 %v1826, %v1986
    %v2499 = vmax.f32 %v1827, %v1987
    %v2500 = vmax.f32 %v1828, %v1988
    %v2501 = vmax.f32 %v1829, %v1989
    %v2502 = vmax.f32 %v1830, %v1990
    %v2503 = vmax.f32 %v1831, %v1991
    %v2504 = vmax.f32 %v1832, %v1992
    %v2505 = vmax.f32 %v1833, %v1993
    %v2506 = vmax.f32 %v1834, %v1994
    %v2507 = vmax.f32 %v1835, %v1995
    %v2508 = vmax.f32 %v1836, %v1996
    %v2509 = vmax.f32 %v1837, %v1997
    %v2510 = vmax.f32 %v1838, %v1998
    %v2511 = vmax.f32 %v1839, %v1999
    %v2512 = vmax.f32 %v2480, %v2128
    %v2513 = vmax.f32 %v2481, %v2129
    %v2514 = vmax.f32 %v2482, %v2130
    %v2515 = vmax.f32 %v2483, %v2131
    %v2516 = vmax.f32 %v2484, %v2132
    %v2517 = vmax.f32 %v2485, %v2133
    %v2518 = vmax.f32 %v2486, %v2134
    %v2519 = vmax.f32 %v2487, %v2135
    %v2520 = vmax.f32 %v2488, %v2136
    %v2521 = vmax.f32 %v2489, %v2137
    %v2522 = vmax.f32 %v2490, %v2138
    %v2523 = vmax.f32 %v2491, %v2139
    %v2524 = vmax.f32 %v2492, %v2140
    %v2525 = vmax.f32 %v2493, %v2141
    %v2526 = vmax.f32 %v2494, %v2142
    %v2527 = vmax.f32 %v2495, %v2143
    %v2528 = vmax.f32 %v2496, %v2144
    %v2529 = vmax.f32 %v2497, %v2145
    %v2530 = vmax.f32 %v2498, %v2146
    %v2531 = vmax.f32 %v2499, %v2147
    %v2532 = vmax.f32 %v2500, %v2148
    %v2533 = vmax.f32 %v2501, %v2149
    %v2534 = vmax.f32 %v2502, %v2150
    %v2535 = vmax.f32 %v2503, %v2151
    %v2536 = vmax.f32 %v2504, %v2152
    %v2537 = vmax.f32 %v2505, %v2153
    %v2538 = vmax.f32 %v2506, %v2154
    %v2539 = vmax.f32 %v2507, %v2155
    %v2540 = vmax.f32 %v2508, %v2156
    %v2541 = vmax.f32 %v2509, %v2157
    %v2542 = vmax.f32 %v2510, %v2158
    %v2543 = vmax.f32 %v2511, %v2159
    %v2544 = vmax.f32 %v2512, %v2288
    %v2545 = vmax.f32 %v2513, %v2289
    %v2546 = vmax.f32 %v2514, %v2290
    %v2547 = vmax.f32 %v2515, %v2291
    %v2548 = vmax.f32 %v2516, %v2292
    %v2549 = vmax.f32 %v2517, %v2293
    %v2550 = vmax.f32 %v2518, %v2294
    %v2551 = vmax.f32 %v2519, %v2295
    %v2552 = vmax.f32 %v2520, %v2296
    %v2553 = vmax.f32 %v2521, %v2297
    %v2554 = vmax.f32 %v2522, %v2298
    %v2555 = vmax.f32 %v2523, %v2299
    %v2556 = vmax.f32 %v2524, %v2300
    %v2557 = vmax.f32 %v2525, %v2301
    %v2558 = vmax.f32 %v2526, %v2302
    %v2559 = vmax.f32 %v2527, %v2303
    %v2560 = vmax.f32 %v2528, %v2304
    %v2561 = vmax.f32 %v2529, %v2305
    %v2562 = vmax.f32 %v2530, %v2306
    %v2563 = vmax.f32 %v2531, %v2307
    %v2564 = vmax.f32 %v2532, %v2308
    %v2565 = vmax.f32 %v2533, %v2309
    %v2566 = vmax.f32 %v2534, %v2310
    %v2567 = vmax.f32 %v2535, %v2311
    %v2568 = vmax.f32 %v2536, %v2312
    %v2569 = vmax.f32 %v2537, %v2313
    %v2570 = vmax.f32 %v2538, %v2314
    %v2571 = vmax.f32 %v2539, %v2315
    %v2572 = vmax.f32 %v2540, %v2316
    %v2573 = vmax.f32 %v2541, %v2317
    %v2574 = vmax.f32 %v2542, %v2318
    %v2575 = vmax.f32 %v2543, %v2319
    %v2576 = vmax.f32 %v2544, %v2448
    %v2577 = vmax.f32 %v2545, %v2449
    %v2578 = vmax.f32 %v2546, %v2450
    %v2579 = vmax.f32 %v2547, %v2451
    %v2580 = vmax.f32 %v2548, %v2452
    %v2581 = vmax.f32 %v2549, %v2453
    %v2582 = vmax.f32 %v2550, %v2454
    %v2583 = vmax.f32 %v2551, %v2455
    %v2584 = vmax.f32 %v2552, %v2456
    %v2585 = vmax.f32 %v2553, %v2457
    %v2586 = vmax.f32 %v2554, %v2458
    %v2587 = vmax.f32 %v2555, %v2459
    %v2588 = vmax.f32 %v2556, %v2460
    %v2589 = vmax.f32 %v2557, %v2461
    %v2590 = vmax.f32 %v2558, %v2462
    %v2591 = vmax.f32 %v2559, %v2463
    %v2592 = vmax.f32 %v2560, %v2464
    %v2593 = vmax.f32 %v2561, %v2465
    %v2594 = vmax.f32 %v2562, %v2466
    %v2595 = vmax.f32 %v2563, %v2467
    %v2596 = vmax.f32 %v2564, %v2468
    %v2597 = vmax.f32 %v2565, %v2469
    %v2598 = vmax.f32 %v2566, %v2470
    %v2599 = vmax.f32 %v2567, %v2471
    %v2600 = vmax.f32 %v2568, %v2472
    %v2601 = vmax.f32 %v2569, %v2473
    %v2602 = vmax.f32 %v2570, %v2474
    %v2603 = vmax.f32 %v2571, %v2475
    %v2604 = vmax.f32 %v2572, %v2476
    %v2605 = vmax.f32 %v2573, %v2477
    %v2606 = vmax.f32 %v2574, %v2478
    %v2607 = vmax.f32 %v2575, %v2479
    %v2608 = vsub.f32 %v1808, %v2576
    %v2609 = vsub.f32 %v1809, %v2577
    %v2610 = vsub.f32 %v1810, %v2578
    %v2611 = vsub.f32 %v1811, %v2579
    %v2612 = vsub.f32 %v1812, %v2580
    %v2613 = vsub.f32 %v1813, %v2581
    %v2614 = vsub.f32 %v1814, %v2582
    %v2615 = vsub.f32 %v1815, %v2583
    %v2616 = vsub.f32 %v1816, %v2584
    %v2617 = vsub.f32 %v1817, %v2585
    %v2618 = vsub.f32 %v1818, %v2586
    %v2619 = vsub.f32 %v1819, %v2587
    %v2620 = vsub.f32 %v1820, %v2588
    %v2621 = vsub.f32 %v1821, %v2589
    %v2622 = vsub.f32 %v1822, %v2590
    %v2623 = vsub.f32 %v1823, %v2591
    %v2624 = vsub.f32 %v1824, %v2592
    %v2625 = vsub.f32 %v1825, %v2593
    %v2626 = vsub.f32 %v1826, %v2594
    %v2627 = vsub.f32 %v1827, %v2595
    %v2628 = vsub.f32 %v1828, %v2596
    %v2629 = vsub.f32 %v1829, %v2597
    %v2630 = vsub.f32 %v1830, %v2598
    %v2631 = vsub.f32 %v1831, %v2599
    %v2632 = vsub.f32 %v1832, %v2600
    %v2633 = vsub.f32 %v1833, %v2601
    %v2634 = vsub.f32 %v1834, %v2602
    %v2635 = vsub.f32 %v1835, %v2603
    %v2636 = vsub.f32 %v1836, %v2604
    %v2637 = vsub.f32 %v1837, %v2605
    %v2638 = vsub.f32 %v1838, %v2606
    %v2639 = vsub.f32 %v1839, %v2607
    %v2640 = vmul.f32 %v2608, 1.442695
    %v2641 = vpow.pop %v2640
    %v2642 = vmul.f32 %v2609, 1.442695
    %v2643 = vpow.pop %v2642
    %v2644 = vmul.f32 %v2610, 1.442695
    %v2645 = vpow.pop %v2644
    %v2646 = vmul.f32 %v2611, 1.442695
    %v2647 = vpow.pop %v2646
    %v2648 = vmul.f32 %v2612, 1.442695
    %v2649 = vpow.pop %v2648
    %v2650 = vmul.f32 %v2613, 1.442695
    %v2651 = vpow.pop %v2650
    %v2652 = vmul.f32 %v2614, 1.442695
    %v2653 = vpow.pop %v2652
    %v2654 = vmul.f32 %v2615, 1.442695
    %v2655 = vpow.pop %v2654
    %v2656 = vmul.f32 %v2616, 1.442695
    %v2657 = vpow.pop %v2656
    %v2658 = vmul.f32 %v2617, 1.442695
    %v2659 = vpow.pop %v2658
    %v2660 = vmul.f32 %v2618, 1.442695
    %v2661 = vpow.pop %v2660
    %v2662 = vmul.f32 %v2619, 1.442695
    %v2663 = vpow.pop %v2662
    %v2664 = vmul.f32 %v2620, 1.442695
    %v2665 = vpow.pop %v2664
    %v2666 = vmul.f32 %v2621, 1.442695
    %v2667 = vpow.pop %v2666
    %v2668 = vmul.f32 %v2622, 1.442695
    %v2669 = vpow.pop %v2668
    %v2670 = vmul.f32 %v2623, 1.442695
    %v2671 = vpow.pop %v2670
    %v2672 = vmul.f32 %v2624, 1.442695
    %v2673 = vpow.pop %v2672
    %v2674 = vmul.f32 %v2625, 1.442695
    %v2675 = vpow.pop %v2674
    %v2676 = vmul.f32 %v2626, 1.442695
    %v2677 = vpow.pop %v2676
    %v2678 = vmul.f32 %v2627, 1.442695
    %v2679 = vpow.pop %v2678
    %v2680 = vmul.f32 %v2628, 1.442695
    %v2681 = vpow.pop %v2680
    %v2682 = vmul.f32 %v2629, 1.442695
    %v2683 = vpow.pop %v2682
    %v2684 = vmul.f32 %v2630, 1.442695
    %v2685 = vpow.pop %v2684
    %v2686 = vmul.f32 %v2631, 1.442695
    %v2687 = vpow.pop %v2686
    %v2688 = vmul.f32 %v2632, 1.442695
    %v2689 = vpow.pop %v2688
    %v2690 = vmul.f32 %v2633, 1.442695
    %v2691 = vpow.pop %v2690
    %v2692 = vmul.f32 %v2634, 1.442695
    %v2693 = vpow.pop %v2692
    %v2694 = vmul.f32 %v2635, 1.442695
    %v2695 = vpow.pop %v2694
    %v2696 = vmul.f32 %v2636, 1.442695
    %v2697 = vpow.pop %v2696
    %v2698 = vmul.f32 %v2637, 1.442695
    %v2699 = vpow.pop %v2698
    %v2700 = vmul.f32 %v2638, 1.442695
    %v2701 = vpow.pop %v2700
    %v2702 = vmul.f32 %v2639, 1.442695
    %v2703 = vpow.pop %v2702
    %v2704 = vsub.f32 %v1968, %v2576
    %v2705 = vsub.f32 %v1969, %v2577
    %v2706 = vsub.f32 %v1970, %v2578
    %v2707 = vsub.f32 %v1971, %v2579
    %v2708 = vsub.f32 %v1972, %v2580
    %v2709 = vsub.f32 %v1973, %v2581
    %v2710 = vsub.f32 %v1974, %v2582
    %v2711 = vsub.f32 %v1975, %v2583
    %v2712 = vsub.f32 %v1976, %v2584
    %v2713 = vsub.f32 %v1977, %v2585
    %v2714 = vsub.f32 %v1978, %v2586
    %v2715 = vsub.f32 %v1979, %v2587
    %v2716 = vsub.f32 %v1980, %v2588
    %v2717 = vsub.f32 %v1981, %v2589
    %v2718 = vsub.f32 %v1982, %v2590
    %v2719 = vsub.f32 %v1983, %v2591
    %v2720 = vsub.f32 %v1984, %v2592
    %v2721 = vsub.f32 %v1985, %v2593
    %v2722 = vsub.f32 %v1986, %v2594
    %v2723 = vsub.f32 %v1987, %v2595
    %v2724 = vsub.f32 %v1988, %v2596
    %v2725 = vsub.f32 %v1989, %v2597
    %v2726 = vsub.f32 %v1990, %v2598
    %v2727 = vsub.f32 %v1991, %v2599
    %v2728 = vsub.f32 %v1992, %v2600
    %v2729 = vsub.f32 %v1993, %v2601
    %v2730 = vsub.f32 %v1994, %v2602
    %v2731 = vsub.f32 %v1995, %v2603
    %v2732 = vsub.f32 %v1996, %v2604
    %v2733 = vsub.f32 %v1997, %v2605
    %v2734 = vsub.f32 %v1998, %v2606
    %v2735 = vsub.f32 %v1999, %v2607
    %v2736 = vmul.f32 %v2704, 1.442695
    %v2737 = vpow.pop %v2736
    %v2738 = vmul.f32 %v2705, 1.442695
    %v2739 = vpow.pop %v2738
    %v2740 = vmul.f32 %v2706, 1.442695
    %v2741 = vpow.pop %v2740
    %v2742 = vmul.f32 %v2707, 1.442695
    %v2743 = vpow.pop %v2742
    %v2744 = vmul.f32 %v2708, 1.442695
    %v2745 = vpow.pop %v2744
    %v2746 = vmul.f32 %v2709, 1.442695
    %v2747 = vpow.pop %v2746
    %v2748 = vmul.f32 %v2710, 1.442695
    %v2749 = vpow.pop %v2748
    %v2750 = vmul.f32 %v2711, 1.442695
    %v2751 = vpow.pop %v2750
    %v2752 = vmul.f32 %v2712, 1.442695
    %v2753 = vpow.pop %v2752
    %v2754 = vmul.f32 %v2713, 1.442695
    %v2755 = vpow.pop %v2754
    %v2756 = vmul.f32 %v2714, 1.442695
    %v2757 = vpow.pop %v2756
    %v2758 = vmul.f32 %v2715, 1.442695
    %v2759 = vpow.pop %v2758
    %v2760 = vmul.f32 %v2716, 1.442695
    %v2761 = vpow.pop %v2760
    %v2762 = vmul.f32 %v2717, 1.442695
    %v2763 = vpow.pop %v2762
    %v2764 = vmul.f32 %v2718, 1.442695
    %v2765 = vpow.pop %v2764
    %v2766 = vmul.f32 %v2719, 1.442695
    %v2767 = vpow.pop %v2766
    %v2768 = vmul.f32 %v2720, 1.442695
    %v2769 = vpow.pop %v2768
    %v2770 = vmul.f32 %v2721, 1.442695
    %v2771 = vpow.pop %v2770
    %v2772 = vmul.f32 %v2722, 1.442695
    %v2773 = vpow.pop %v2772
    %v2774 = vmul.f32 %v2723, 1.442695
    %v2775 = vpow.pop %v2774
    %v2776 = vmul.f32 %v2724, 1.442695
    %v2777 = vpow.pop %v2776
    %v2778 = vmul.f32 %v2725, 1.442695
    %v2779 = vpow.pop %v2778
    %v2780 = vmul.f32 %v2726, 1.442695
    %v2781 = vpow.pop %v2780
    %v2782 = vmul.f32 %v2727, 1.442695
    %v2783 = vpow.pop %v2782
    %v2784 = vmul.f32 %v2728, 1.442695
    %v2785 = vpow.pop %v2784
    %v2786 = vmul.f32 %v2729, 1.442695
    %v2787 = vpow.pop %v2786
    %v2788 = vmul.f32 %v2730, 1.442695
    %v2789 = vpow.pop %v2788
    %v2790 = vmul.f32 %v2731, 1.442695
    %v2791 = vpow.pop %v2790
    %v2792 = vmul.f32 %v2732, 1.442695
    %v2793 = vpow.pop %v2792
    %v2794 = vmul.f32 %v2733, 1.442695
    %v2795 = vpow.pop %v2794
    %v2796 = vmul.f32 %v2734, 1.442695
    %v2797 = vpow.pop %v2796
    %v2798 = vmul.f32 %v2735, 1.442695
    %v2799 = vpow.pop %v2798
    %v2800 = vsub.f32 %v2128, %v2576
    %v2801 = vsub.f32 %v2129, %v2577
    %v2802 = vsub.f32 %v2130, %v2578
    %v2803 = vsub.f32 %v2131, %v2579
    %v2804 = vsub.f32 %v2132, %v2580
    %v2805 = vsub.f32 %v2133, %v2581
    %v2806 = vsub.f32 %v2134, %v2582
    %v2807 = vsub.f32 %v2135, %v2583
    %v2808 = vsub.f32 %v2136, %v2584
    %v2809 = vsub.f32 %v2137, %v2585
    %v2810 = vsub.f32 %v2138, %v2586
    %v2811 = vsub.f32 %v2139, %v2587
    %v2812 = vsub.f32 %v2140, %v2588
    %v2813 = vsub.f32 %v2141, %v2589
    %v2814 = vsub.f32 %v2142, %v2590
    %v2815 = vsub.f32 %v2143, %v2591
    %v2816 = vsub.f32 %v2144, %v2592
    %v2817 = vsub.f32 %v2145, %v2593
    %v2818 = vsub.f32 %v2146, %v2594
    %v2819 = vsub.f32 %v2147, %v2595
    %v2820 = vsub.f32 %v2148, %v2596
    %v2821 = vsub.f32 %v2149, %v2597
    %v2822 = vsub.f32 %v2150, %v2598
    %v2823 = vsub.f32 %v2151, %v2599
    %v2824 = vsub.f32 %v2152, %v2600
    %v2825 = vsub.f32 %v2153, %v2601
    %v2826 = vsub.f32 %v2154, %v2602
    %v2827 = vsub.f32 %v2155, %v2603
    %v2828 = vsub.f32 %v2156, %v2604
    %v2829 = vsub.f32 %v2157, %v2605
    %v2830 = vsub.f32 %v2158, %v2606
    %v2831 = vsub.f32 %v2159, %v2607
    %v2832 = vmul.f32 %v2800, 1.442695
    %v2833 = vpow.pop %v2832
    %v2834 = vmul.f32 %v2801, 1.442695
    %v2835 = vpow.pop %v2834
    %v2836 = vmul.f32 %v2802, 1.442695
    %v2837 = vpow.pop %v2836
    %v2838 = vmul.f32 %v2803, 1.442695
    %v2839 = vpow.pop %v2838
    %v2840 = vmul.f32 %v2804, 1.442695
    %v2841 = vpow.pop %v2840
    %v2842 = vmul.f32 %v2805, 1.442695
    %v2843 = vpow.pop %v2842
    %v2844 = vmul.f32 %v2806, 1.442695
    %v2845 = vpow.pop %v2844
    %v2846 = vmul.f32 %v2807, 1.442695
    %v2847 = vpow.pop %v2846
    %v2848 = vmul.f32 %v2808, 1.442695
    %v2849 = vpow.pop %v2848
    %v2850 = vmul.f32 %v2809, 1.442695
    %v2851 = vpow.pop %v2850
    %v2852 = vmul.f32 %v2810, 1.442695
    %v2853 = vpow.pop %v2852
    %v2854 = vmul.f32 %v2811, 1.442695
    %v2855 = vpow.pop %v2854
    %v2856 = vmul.f32 %v2812, 1.442695
    %v2857 = vpow.pop %v2856
    %v2858 = vmul.f32 %v2813, 1.442695
    %v2859 = vpow.pop %v2858
    %v2860 = vmul.f32 %v2814, 1.442695
    %v2861 = vpow.pop %v2860
    %v2862 = vmul.f32 %v2815, 1.442695
    %v2863 = vpow.pop %v2862
    %v2864 = vmul.f32 %v2816, 1.442695
    %v2865 = vpow.pop %v2864
    %v2866 = vmul.f32 %v2817, 1.442695
    %v2867 = vpow.pop %v2866
    %v2868 = vmul.f32 %v2818, 1.442695
    %v2869 = vpow.pop %v2868
    %v2870 = vmul.f32 %v2819, 1.442695
    %v2871 = vpow.pop %v2870
    %v2872 = vmul.f32 %v2820, 1.442695
    %v2873 = vpow.pop %v2872
    %v2874 = vmul.f32 %v2821, 1.442695
    %v2875 = vpow.pop %v2874
    %v2876 = vmul.f32 %v2822, 1.442695
    %v2877 = vpow.pop %v2876
    %v2878 = vmul.f32 %v2823, 1.442695
    %v2879 = vpow.pop %v2878
    %v2880 = vmul.f32 %v2824, 1.442695
    %v2881 = vpow.pop %v2880
    %v2882 = vmul.f32 %v2825, 1.442695
    %v2883 = vpow.pop %v2882
    %v2884 = vmul.f32 %v2826, 1.442695
    %v2885 = vpow.pop %v2884
    %v2886 = vmul.f32 %v2827, 1.442695
    %v2887 = vpow.pop %v2886
    %v2888 = vmul.f32 %v2828, 1.442695
    %v2889 = vpow.pop %v2888
    %v2890 = vmul.f32 %v2829, 1.442695
    %v2891 = vpow.pop %v2890
    %v2892 = vmul.f32 %v2830, 1.442695
    %v2893 = vpow.pop %v2892
    %v2894 = vmul.f32 %v2831, 1.442695
    %v2895 = vpow.pop %v2894
    %v2896 = vsub.f32 %v2288, %v2576
    %v2897 = vsub.f32 %v2289, %v2577
    %v2898 = vsub.f32 %v2290, %v2578
    %v2899 = vsub.f32 %v2291, %v2579
    %v2900 = vsub.f32 %v2292, %v2580
    %v2901 = vsub.f32 %v2293, %v2581
    %v2902 = vsub.f32 %v2294, %v2582
    %v2903 = vsub.f32 %v2295, %v2583
    %v2904 = vsub.f32 %v2296, %v2584
    %v2905 = vsub.f32 %v2297, %v2585
    %v2906 = vsub.f32 %v2298, %v2586
    %v2907 = vsub.f32 %v2299, %v2587
    %v2908 = vsub.f32 %v2300, %v2588
    %v2909 = vsub.f32 %v2301, %v2589
    %v2910 = vsub.f32 %v2302, %v2590
    %v2911 = vsub.f32 %v2303, %v2591
    %v2912 = vsub.f32 %v2304, %v2592
    %v2913 = vsub.f32 %v2305, %v2593
    %v2914 = vsub.f32 %v2306, %v2594
    %v2915 = vsub.f32 %v2307, %v2595
    %v2916 = vsub.f32 %v2308, %v2596
    %v2917 = vsub.f32 %v2309, %v2597
    %v2918 = vsub.f32 %v2310, %v2598
    %v2919 = vsub.f32 %v2311, %v2599
    %v2920 = vsub.f32 %v2312, %v2600
    %v2921 = vsub.f32 %v2313, %v2601
    %v2922 = vsub.f32 %v2314, %v2602
    %v2923 = vsub.f32 %v2315, %v2603
    %v2924 = vsub.f32 %v2316, %v2604
    %v2925 = vsub.f32 %v2317, %v2605
    %v2926 = vsub.f32 %v2318, %v2606
    %v2927 = vsub.f32 %v2319, %v2607
    %v2928 = vmul.f32 %v2896, 1.442695
    %v2929 = vpow.pop %v2928
    %v2930 = vmul.f32 %v2897, 1.442695
    %v2931 = vpow.pop %v2930
    %v2932 = vmul.f32 %v2898, 1.442695
    %v2933 = vpow.pop %v2932
    %v2934 = vmul.f32 %v2899, 1.442695
    %v2935 = vpow.pop %v2934
    %v2936 = vmul.f32 %v2900, 1.442695
    %v2937 = vpow.pop %v2936
    %v2938 = vmul.f32 %v2901, 1.442695
    %v2939 = vpow.pop %v2938
    %v2940 = vmul.f32 %v2902, 1.442695
    %v2941 = vpow.pop %v2940
    %v2942 = vmul.f32 %v2903, 1.442695
    %v2943 = vpow.pop %v2942
    %v2944 = vmul.f32 %v2904, 1.442695
    %v2945 = vpow.pop %v2944
    %v2946 = vmul.f32 %v2905, 1.442695
    %v2947 = vpow.pop %v2946
    %v2948 = vmul.f32 %v2906, 1.442695
    %v2949 = vpow.pop %v2948
    %v2950 = vmul.f32 %v2907, 1.442695
    %v2951 = vpow.pop %v2950
    %v2952 = vmul.f32 %v2908, 1.442695
    %v2953 = vpow.pop %v2952
    %v2954 = vmul.f32 %v2909, 1.442695
    %v2955 = vpow.pop %v2954
    %v2956 = vmul.f32 %v2910, 1.442695
    %v2957 = vpow.pop %v2956
    %v2958 = vmul.f32 %v2911, 1.442695
    %v2959 = vpow.pop %v2958
    %v2960 = vmul.f32 %v2912, 1.442695
    %v2961 = vpow.pop %v2960
    %v2962 = vmul.f32 %v2913, 1.442695
    %v2963 = vpow.pop %v2962
    %v2964 = vmul.f32 %v2914, 1.442695
    %v2965 = vpow.pop %v2964
    %v2966 = vmul.f32 %v2915, 1.442695
    %v2967 = vpow.pop %v2966
    %v2968 = vmul.f32 %v2916, 1.442695
    %v2969 = vpow.pop %v2968
    %v2970 = vmul.f32 %v2917, 1.442695
    %v2971 = vpow.pop %v2970
    %v2972 = vmul.f32 %v2918, 1.442695
    %v2973 = vpow.pop %v2972
    %v2974 = vmul.f32 %v2919, 1.442695
    %v2975 = vpow.pop %v2974
    %v2976 = vmul.f32 %v2920, 1.442695
    %v2977 = vpow.pop %v2976
    %v2978 = vmul.f32 %v2921, 1.442695
    %v2979 = vpow.pop %v2978
    %v2980 = vmul.f32 %v2922, 1.442695
    %v2981 = vpow.pop %v2980
    %v2982 = vmul.f32 %v2923, 1.442695
    %v2983 = vpow.pop %v2982
    %v2984 = vmul.f32 %v2924, 1.442695
    %v2985 = vpow.pop %v2984
    %v2986 = vmul.f32 %v2925, 1.442695
    %v2987 = vpow.pop %v2986
    %v2988 = vmul.f32 %v2926, 1.442695
    %v2989 = vpow.pop %v2988
    %v2990 = vmul.f32 %v2927, 1.442695
    %v2991 = vpow.pop %v2990
    %v2992 = vsub.f32 %v2448, %v2576
    %v2993 = vsub.f32 %v2449, %v2577
    %v2994 = vsub.f32 %v2450, %v2578
    %v2995 = vsub.f32 %v2451, %v2579
    %v2996 = vsub.f32 %v2452, %v2580
    %v2997 = vsub.f32 %v2453, %v2581
    %v2998 = vsub.f32 %v2454, %v2582
    %v2999 = vsub.f32 %v2455, %v2583
    %v3000 = vsub.f32 %v2456, %v2584
    %v3001 = vsub.f32 %v2457, %v2585
    %v3002 = vsub.f32 %v2458, %v2586
    %v3003 = vsub.f32 %v2459, %v2587
    %v3004 = vsub.f32 %v2460, %v2588
    %v3005 = vsub.f32 %v2461, %v2589
    %v3006 = vsub.f32 %v2462, %v2590
    %v3007 = vsub.f32 %v2463, %v2591
    %v3008 = vsub.f32 %v2464, %v2592
    %v3009 = vsub.f32 %v2465, %v2593
    %v3010 = vsub.f32 %v2466, %v2594
    %v3011 = vsub.f32 %v2467, %v2595
    %v3012 = vsub.f32 %v2468, %v2596
    %v3013 = vsub.f32 %v2469, %v2597
    %v3014 = vsub.f32 %v2470, %v2598
    %v3015 = vsub.f32 %v2471, %v2599
    %v3016 = vsub.f32 %v2472, %v2600
    %v3017 = vsub.f32 %v2473, %v2601
    %v3018 = vsub.f32 %v2474, %v2602
    %v3019 = vsub.f32 %v2475, %v2603
    %v3020 = vsub.f32 %v2476, %v2604
    %v3021 = vsub.f32 %v2477, %v2605
    %v3022 = vsub.f32 %v2478, %v2606
    %v3023 = vsub.f32 %v2479, %v2607
    %v3024 = vmul.f32 %v2992, 1.442695
    %v3025 = vpow.pop %v3024
    %v3026 = vmul.f32 %v2993, 1.442695
    %v3027 = vpow.pop %v3026
    %v3028 = vmul.f32 %v2994, 1.442695
    %v3029 = vpow.pop %v3028
    %v3030 = vmul.f32 %v2995, 1.442695
    %v3031 = vpow.pop %v3030
    %v3032 = vmul.f32 %v2996, 1.442695
    %v3033 = vpow.pop %v3032
    %v3034 = vmul.f32 %v2997, 1.442695
    %v3035 = vpow.pop %v3034
    %v3036 = vmul.f32 %v2998, 1.442695
    %v3037 = vpow.pop %v3036
    %v3038 = vmul.f32 %v2999, 1.442695
    %v3039 = vpow.pop %v3038
    %v3040 = vmul.f32 %v3000, 1.442695
    %v3041 = vpow.pop %v3040
    %v3042 = vmul.f32 %v3001, 1.442695
    %v3043 = vpow.pop %v3042
    %v3044 = vmul.f32 %v3002, 1.442695
    %v3045 = vpow.pop %v3044
    %v3046 = vmul.f32 %v3003, 1.442695
    %v3047 = vpow.pop %v3046
    %v3048 = vmul.f32 %v3004, 1.442695
    %v3049 = vpow.pop %v3048
    %v3050 = vmul.f32 %v3005, 1.442695
    %v3051 = vpow.pop %v3050
    %v3052 = vmul.f32 %v3006, 1.442695
    %v3053 = vpow.pop %v3052
    %v3054 = vmul.f32 %v3007, 1.442695
    %v3055 = vpow.pop %v3054
    %v3056 = vmul.f32 %v3008, 1.442695
    %v3057 = vpow.pop %v3056
    %v3058 = vmul.f32 %v3009, 1.442695
    %v3059 = vpow.pop %v3058
    %v3060 = vmul.f32 %v3010, 1.442695
    %v3061 = vpow.pop %v3060
    %v3062 = vmul.f32 %v3011, 1.442695
    %v3063 = vpow.pop %v3062
    %v3064 = vmul.f32 %v3012, 1.442695
    %v3065 = vpow.pop %v3064
    %v3066 = vmul.f32 %v3013, 1.442695
    %v3067 = vpow.pop %v3066
    %v3068 = vmul.f32 %v3014, 1.442695
    %v3069 = vpow.pop %v3068
    %v3070 = vmul.f32 %v3015, 1.442695
    %v3071 = vpow.pop %v3070
    %v3072 = vmul.f32 %v3016, 1.442695
    %v3073 = vpow.pop %v3072
    %v3074 = vmul.f32 %v3017, 1.442695
    %v3075 = vpow.pop %v3074
    %v3076 = vmul.f32 %v3018, 1.442695
    %v3077 = vpow.pop %v3076
    %v3078 = vmul.f32 %v3019, 1.442695
    %v3079 = vpow.pop %v3078
    %v3080 = vmul.f32 %v3020, 1.442695
    %v3081 = vpow.pop %v3080
    %v3082 = vmul.f32 %v3021, 1.442695
    %v3083 = vpow.pop %v3082
    %v3084 = vmul.f32 %v3022, 1.442695
    %v3085 = vpow.pop %v3084
    %v3086 = vmul.f32 %v3023, 1.442695
    %v3087 = vpow.pop %v3086
    %v3088 = vadd.f32 %v2641, %v2737
    %v3089 = vadd.f32 %v2643, %v2739
    %v3090 = vadd.f32 %v2645, %v2741
    %v3091 = vadd.f32 %v2647, %v2743
    %v3092 = vadd.f32 %v2649, %v2745
    %v3093 = vadd.f32 %v2651, %v2747
    %v3094 = vadd.f32 %v2653, %v2749
    %v3095 = vadd.f32 %v2655, %v2751
    %v3096 = vadd.f32 %v2657, %v2753
    %v3097 = vadd.f32 %v2659, %v2755
    %v3098 = vadd.f32 %v2661, %v2757
    %v3099 = vadd.f32 %v2663, %v2759
    %v3100 = vadd.f32 %v2665, %v2761
    %v3101 = vadd.f32 %v2667, %v2763
    %v3102 = vadd.f32 %v2669, %v2765
    %v3103 = vadd.f32 %v2671, %v2767
    %v3104 = vadd.f32 %v2673, %v2769
    %v3105 = vadd.f32 %v2675, %v2771
    %v3106 = vadd.f32 %v2677, %v2773
    %v3107 = vadd.f32 %v2679, %v2775
    %v3108 = vadd.f32 %v2681, %v2777
    %v3109 = vadd.f32 %v2683, %v2779
    %v3110 = vadd.f32 %v2685, %v2781
    %v3111 = vadd.f32 %v2687, %v2783
    %v3112 = vadd.f32 %v2689, %v2785
    %v3113 = vadd.f32 %v2691, %v2787
    %v3114 = vadd.f32 %v2693, %v2789
    %v3115 = vadd.f32 %v2695, %v2791
    %v3116 = vadd.f32 %v2697, %v2793
    %v3117 = vadd.f32 %v2699, %v2795
    %v3118 = vadd.f32 %v2701, %v2797
    %v3119 = vadd.f32 %v2703, %v2799
    %v3120 = vadd.f32 %v3088, %v2833
    %v3121 = vadd.f32 %v3089, %v2835
    %v3122 = vadd.f32 %v3090, %v2837
    %v3123 = vadd.f32 %v3091, %v2839
    %v3124 = vadd.f32 %v3092, %v2841
    %v3125 = vadd.f32 %v3093, %v2843
    %v3126 = vadd.f32 %v3094, %v2845
    %v3127 = vadd.f32 %v3095, %v2847
    %v3128 = vadd.f32 %v3096, %v2849
    %v3129 = vadd.f32 %v3097, %v2851
    %v3130 = vadd.f32 %v3098, %v2853
    %v3131 = vadd.f32 %v3099, %v2855
    %v3132 = vadd.f32 %v3100, %v2857
    %v3133 = vadd.f32 %v3101, %v2859
    %v3134 = vadd.f32 %v3102, %v2861
    %v3135 = vadd.f32 %v3103, %v2863
    %v3136 = vadd.f32 %v3104, %v2865
    %v3137 = vadd.f32 %v3105, %v2867
    %v3138 = vadd.f32 %v3106, %v2869
    %v3139 = vadd.f32 %v3107, %v2871
    %v3140 = vadd.f32 %v3108, %v2873
    %v3141 = vadd.f32 %v3109, %v2875
    %v3142 = vadd.f32 %v3110, %v2877
    %v3143 = vadd.f32 %v3111, %v2879
    %v3144 = vadd.f32 %v3112, %v2881
    %v3145 = vadd.f32 %v3113, %v2883
    %v3146 = vadd.f32 %v3114, %v2885
    %v3147 = vadd.f32 %v3115, %v2887
    %v3148 = vadd.f32 %v3116, %v2889
    %v3149 = vadd.f32 %v3117, %v2891
    %v3150 = vadd.f32 %v3118, %v2893
    %v3151 = vadd.f32 %v3119, %v2895
    %v3152 = vadd.f32 %v3120, %v2929
    %v3153 = vadd.f32 %v3121, %v2931
    %v3154 = vadd.f32 %v3122, %v2933
    %v3155 = vadd.f32 %v3123, %v2935
    %v3156 = vadd.f32 %v3124, %v2937
    %v3157 = vadd.f32 %v3125, %v2939
    %v3158 = vadd.f32 %v3126, %v2941
    %v3159 = vadd.f32 %v3127, %v2943
    %v3160 = vadd.f32 %v3128, %v2945
    %v3161 = vadd.f32 %v3129, %v2947
    %v3162 = vadd.f32 %v3130, %v2949
    %v3163 = vadd.f32 %v3131, %v2951
    %v3164 = vadd.f32 %v3132, %v2953
    %v3165 = vadd.f32 %v3133, %v2955
    %v3166 = vadd.f32 %v3134, %v2957
    %v3167 = vadd.f32 %v3135, %v2959
    %v3168 = vadd.f32 %v3136, %v2961
    %v3169 = vadd.f32 %v3137, %v2963
    %v3170 = vadd.f32 %v3138, %v2965
    %v3171 = vadd.f32 %v3139, %v2967
    %v3172 = vadd.f32 %v3140, %v2969
    %v3173 = vadd.f32 %v3141, %v2971
    %v3174 = vadd.f32 %v3142, %v2973
    %v3175 = vadd.f32 %v3143, %v2975
    %v3176 = vadd.f32 %v3144, %v2977
    %v3177 = vadd.f32 %v3145, %v2979
    %v3178 = vadd.f32 %v3146, %v2981
    %v3179 = vadd.f32 %v3147, %v2983
    %v3180 = vadd.f32 %v3148, %v2985
    %v3181 = vadd.f32 %v3149, %v2987
    %v3182 = vadd.f32 %v3150, %v2989
    %v3183 = vadd.f32 %v3151, %v2991
    %v3184 = vadd.f32 %v3152, %v3025
    %v3185 = vadd.f32 %v3153, %v3027
    %v3186 = vadd.f32 %v3154, %v3029
    %v3187 = vadd.f32 %v3155, %v3031
    %v3188 = vadd.f32 %v3156, %v3033
    %v3189 = vadd.f32 %v3157, %v3035
    %v3190 = vadd.f32 %v3158, %v3037
    %v3191 = vadd.f32 %v3159, %v3039
    %v3192 = vadd.f32 %v3160, %v3041
    %v3193 = vadd.f32 %v3161, %v3043
    %v3194 = vadd.f32 %v3162, %v3045
    %v3195 = vadd.f32 %v3163, %v3047
    %v3196 = vadd.f32 %v3164, %v3049
    %v3197 = vadd.f32 %v3165, %v3051
    %v3198 = vadd.f32 %v3166, %v3053
    %v3199 = vadd.f32 %v3167, %v3055
    %v3200 = vadd.f32 %v3168, %v3057
    %v3201 = vadd.f32 %v3169, %v3059
    %v3202 = vadd.f32 %v3170, %v3061
    %v3203 = vadd.f32 %v3171, %v3063
    %v3204 = vadd.f32 %v3172, %v3065
    %v3205 = vadd.f32 %v3173, %v3067
    %v3206 = vadd.f32 %v3174, %v3069
    %v3207 = vadd.f32 %v3175, %v3071
    %v3208 = vadd.f32 %v3176, %v3073
    %v3209 = vadd.f32 %v3177, %v3075
    %v3210 = vadd.f32 %v3178, %v3077
    %v3211 = vadd.f32 %v3179, %v3079
    %v3212 = vadd.f32 %v3180, %v3081
    %v3213 = vadd.f32 %v3181, %v3083
    %v3214 = vadd.f32 %v3182, %v3085
    %v3215 = vadd.f32 %v3183, %v3087
    %v3216 = vrcp.pop %v3184
    %v3217 = vmul.f32 1.0, %v3216
    %v3218 = vrcp.pop %v3185
    %v3219 = vmul.f32 1.0, %v3218
    %v3220 = vrcp.pop %v3186
    %v3221 = vmul.f32 1.0, %v3220
    %v3222 = vrcp.pop %v3187
    %v3223 = vmul.f32 1.0, %v3222
    %v3224 = vrcp.pop %v3188
    %v3225 = vmul.f32 1.0, %v3224
    %v3226 = vrcp.pop %v3189
    %v3227 = vmul.f32 1.0, %v3226
    %v3228 = vrcp.pop %v3190
    %v3229 = vmul.f32 1.0, %v3228
    %v3230 = vrcp.pop %v3191
    %v3231 = vmul.f32 1.0, %v3230
    %v3232 = vrcp.pop %v3192
    %v3233 = vmul.f32 1.0, %v3232
    %v3234 = vrcp.pop %v3193
    %v3235 = vmul.f32 1.0, %v3234
    %v3236 = vrcp.pop %v3194
    %v3237 = vmul.f32 1.0, %v3236
    %v3238 = vrcp.pop %v3195
    %v3239 = vmul.f32 1.0, %v3238
    %v3240 = vrcp.pop %v3196
    %v3241 = vmul.f32 1.0, %v3240
    %v3242 = vrcp.pop %v3197
    %v3243 = vmul.f32 1.0, %v3242
    %v3244 = vrcp.pop %v3198
    %v3245 = vmul.f32 1.0, %v3244
    %v3246 = vrcp.pop %v3199
    %v3247 = vmul.f32 1.0, %v3246
    %v3248 = vrcp.pop %v3200
    %v3249 = vmul.f32 1.0, %v3248
    %v3250 = vrcp.pop %v3201
    %v3251 = vmul.f32 1.0, %v3250
    %v3252 = vrcp.pop %v3202
    %v3253 = vmul.f32 1.0, %v3252
    %v3254 = vrcp.pop %v3203
    %v3255 = vmul.f32 1.0, %v3254
    %v3256 = vrcp.pop %v3204
    %v3257 = vmul.f32 1.0, %v3256
    %v3258 = vrcp.pop %v3205
    %v3259 = vmul.f32 1.0, %v3258
    %v3260 = vrcp.pop %v3206
    %v3261 = vmul.f32 1.0, %v3260
    %v3262 = vrcp.pop %v3207
    %v3263 = vmul.f32 1.0, %v3262
    %v3264 = vrcp.pop %v3208
    %v3265 = vmul.f32 1.0, %v3264
    %v3266 = vrcp.pop %v3209
    %v3267 = vmul.f32 1.0, %v3266
    %v3268 = vrcp.pop %v3210
    %v3269 = vmul.f32 1.0, %v3268
    %v3270 = vrcp.pop %v3211
    %v3271 = vmul.f32 1.0, %v3270
    %v3272 = vrcp.pop %v3212
    %v3273 = vmul.f32 1.0, %v3272
    %v3274 = vrcp.pop %v3213
    %v3275 = vmul.f32 1.0, %v3274
    %v3276 = vrcp.pop %v3214
    %v3277 = vmul.f32 1.0, %v3276
    %v3278 = vrcp.pop %v3215
    %v3279 = vmul.f32 1.0, %v3278
    %v3280 = vmul.f32 %v2641, %v3217
    %v3281 = vmul.f32 %v2643, %v3219
    %v3282 = vmul.f32 %v2645, %v3221
    %v3283 = vmul.f32 %v2647, %v3223
    %v3284 = vmul.f32 %v2649, %v3225
    %v3285 = vmul.f32 %v2651, %v3227
    %v3286 = vmul.f32 %v2653, %v3229
    %v3287 = vmul.f32 %v2655, %v3231
    %v3288 = vmul.f32 %v2657, %v3233
    %v3289 = vmul.f32 %v2659, %v3235
    %v3290 = vmul.f32 %v2661, %v3237
    %v3291 = vmul.f32 %v2663, %v3239
    %v3292 = vmul.f32 %v2665, %v3241
    %v3293 = vmul.f32 %v2667, %v3243
    %v3294 = vmul.f32 %v2669, %v3245
    %v3295 = vmul.f32 %v2671, %v3247
    %v3296 = vmul.f32 %v2673, %v3249
    %v3297 = vmul.f32 %v2675, %v3251
    %v3298 = vmul.f32 %v2677, %v3253
    %v3299 = vmul.f32 %v2679, %v3255
    %v3300 = vmul.f32 %v2681, %v3257
    %v3301 = vmul.f32 %v2683, %v3259
    %v3302 = vmul.f32 %v2685, %v3261
    %v3303 = vmul.f32 %v2687, %v3263
    %v3304 = vmul.f32 %v2689, %v3265
    %v3305 = vmul.f32 %v2691, %v3267
    %v3306 = vmul.f32 %v2693, %v3269
    %v3307 = vmul.f32 %v2695, %v3271
    %v3308 = vmul.f32 %v2697, %v3273
    %v3309 = vmul.f32 %v2699, %v3275
    %v3310 = vmul.f32 %v2701, %v3277
    %v3311 = vmul.f32 %v2703, %v3279
    %v3312 = vmul.f32 %v3280, %v1319
    %v3313 = vmul.f32 %v3281, %v1320
    %v3314 = vmul.f32 %v3282, %v1321
    %v3315 = vmul.f32 %v3283, %v1322
    %v3316 = vmul.f32 %v3284, %v1323
    %v3317 = vmul.f32 %v3285, %v1324
    %v3318 = vmul.f32 %v3286, %v1325
    %v3319 = vmul.f32 %v3287, %v1326
    %v3320 = vmul.f32 %v3288, %v1327
    %v3321 = vmul.f32 %v3289, %v1328
    %v3322 = vmul.f32 %v3290, %v1329
    %v3323 = vmul.f32 %v3291, %v1330
    %v3324 = vmul.f32 %v3292, %v1331
    %v3325 = vmul.f32 %v3293, %v1332
    %v3326 = vmul.f32 %v3294, %v1333
    %v3327 = vmul.f32 %v3295, %v1334
    %v3328 = vmul.f32 %v3296, %v1319
    %v3329 = vmul.f32 %v3297, %v1320
    %v3330 = vmul.f32 %v3298, %v1321
    %v3331 = vmul.f32 %v3299, %v1322
    %v3332 = vmul.f32 %v3300, %v1323
    %v3333 = vmul.f32 %v3301, %v1324
    %v3334 = vmul.f32 %v3302, %v1325
    %v3335 = vmul.f32 %v3303, %v1326
    %v3336 = vmul.f32 %v3304, %v1327
    %v3337 = vmul.f32 %v3305, %v1328
    %v3338 = vmul.f32 %v3306, %v1329
    %v3339 = vmul.f32 %v3307, %v1330
    %v3340 = vmul.f32 %v3308, %v1331
    %v3341 = vmul.f32 %v3309, %v1332
    %v3342 = vmul.f32 %v3310, %v1333
    %v3343 = vmul.f32 %v3311, %v1334
    %v3344 = vmul.f32 %v2737, %v3217
    %v3345 = vmul.f32 %v2739, %v3219
    %v3346 = vmul.f32 %v2741, %v3221
    %v3347 = vmul.f32 %v2743, %v3223
    %v3348 = vmul.f32 %v2745, %v3225
    %v3349 = vmul.f32 %v2747, %v3227
    %v3350 = vmul.f32 %v2749, %v3229
    %v3351 = vmul.f32 %v2751, %v3231
    %v3352 = vmul.f32 %v2753, %v3233
    %v3353 = vmul.f32 %v2755, %v3235
    %v3354 = vmul.f32 %v2757, %v3237
    %v3355 = vmul.f32 %v2759, %v3239
    %v3356 = vmul.f32 %v2761, %v3241
    %v3357 = vmul.f32 %v2763, %v3243
    %v3358 = vmul.f32 %v2765, %v3245
    %v3359 = vmul.f32 %v2767, %v3247
    %v3360 = vmul.f32 %v2769, %v3249
    %v3361 = vmul.f32 %v2771, %v3251
    %v3362 = vmul.f32 %v2773, %v3253
    %v3363 = vmul.f32 %v2775, %v3255
    %v3364 = vmul.f32 %v2777, %v3257
    %v3365 = vmul.f32 %v2779, %v3259
    %v3366 = vmul.f32 %v2781, %v3261
    %v3367 = vmul.f32 %v2783, %v3263
    %v3368 = vmul.f32 %v2785, %v3265
    %v3369 = vmul.f32 %v2787, %v3267
    %v3370 = vmul.f32 %v2789, %v3269
    %v3371 = vmul.f32 %v2791, %v3271
    %v3372 = vmul.f32 %v2793, %v3273
    %v3373 = vmul.f32 %v2795, %v3275
    %v3374 = vmul.f32 %v2797, %v3277
    %v3375 = vmul.f32 %v2799, %v3279
    %v3376 = vmul.f32 %v3344, %v1335
    %v3377 = vmul.f32 %v3345, %v1336
    %v3378 = vmul.f32 %v3346, %v1337
    %v3379 = vmul.f32 %v3347, %v1338
    %v3380 = vmul.f32 %v3348, %v1339
    %v3381 = vmul.f32 %v3349, %v1340
    %v3382 = vmul.f32 %v3350, %v1341
    %v3383 = vmul.f32 %v3351, %v1342
    %v3384 = vmul.f32 %v3352, %v1343
    %v3385 = vmul.f32 %v3353, %v1344
    %v3386 = vmul.f32 %v3354, %v1345
    %v3387 = vmul.f32 %v3355, %v1346
    %v3388 = vmul.f32 %v3356, %v1347
    %v3389 = vmul.f32 %v3357, %v1348
    %v3390 = vmul.f32 %v3358, %v1349
    %v3391 = vmul.f32 %v3359, %v1350
    %v3392 = vmul.f32 %v3360, %v1335
    %v3393 = vmul.f32 %v3361, %v1336
    %v3394 = vmul.f32 %v3362, %v1337
    %v3395 = vmul.f32 %v3363, %v1338
    %v3396 = vmul.f32 %v3364, %v1339
    %v3397 = vmul.f32 %v3365, %v1340
    %v3398 = vmul.f32 %v3366, %v1341
    %v3399 = vmul.f32 %v3367, %v1342
    %v3400 = vmul.f32 %v3368, %v1343
    %v3401 = vmul.f32 %v3369, %v1344
    %v3402 = vmul.f32 %v3370, %v1345
    %v3403 = vmul.f32 %v3371, %v1346
    %v3404 = vmul.f32 %v3372, %v1347
    %v3405 = vmul.f32 %v3373, %v1348
    %v3406 = vmul.f32 %v3374, %v1349
    %v3407 = vmul.f32 %v3375, %v1350
    %v3408 = vadd.f32 %v3312, %v3376
    %v3409 = vadd.f32 %v3313, %v3377
    %v3410 = vadd.f32 %v3314, %v3378
    %v3411 = vadd.f32 %v3315, %v3379
    %v3412 = vadd.f32 %v3316, %v3380
    %v3413 = vadd.f32 %v3317, %v3381
    %v3414 = vadd.f32 %v3318, %v3382
    %v3415 = vadd.f32 %v3319, %v3383
    %v3416 = vadd.f32 %v3320, %v3384
    %v3417 = vadd.f32 %v3321, %v3385
    %v3418 = vadd.f32 %v3322, %v3386
    %v3419 = vadd.f32 %v3323, %v3387
    %v3420 = vadd.f32 %v3324, %v3388
    %v3421 = vadd.f32 %v3325, %v3389
    %v3422 = vadd.f32 %v3326, %v3390
    %v3423 = vadd.f32 %v3327, %v3391
    %v3424 = vadd.f32 %v3328, %v3392
    %v3425 = vadd.f32 %v3329, %v3393
    %v3426 = vadd.f32 %v3330, %v3394
    %v3427 = vadd.f32 %v3331, %v3395
    %v3428 = vadd.f32 %v3332, %v3396
    %v3429 = vadd.f32 %v3333, %v3397
    %v3430 = vadd.f32 %v3334, %v3398
    %v3431 = vadd.f32 %v3335, %v3399
    %v3432 = vadd.f32 %v3336, %v3400
    %v3433 = vadd.f32 %v3337, %v3401
    %v3434 = vadd.f32 %v3338, %v3402
    %v3435 = vadd.f32 %v3339, %v3403
    %v3436 = vadd.f32 %v3340, %v3404
    %v3437 = vadd.f32 %v3341, %v3405
    %v3438 = vadd.f32 %v3342, %v3406
    %v3439 = vadd.f32 %v3343, %v3407
    %v3440 = vmul.f32 %v2833, %v3217
    %v3441 = vmul.f32 %v2835, %v3219
    %v3442 = vmul.f32 %v2837, %v3221
    %v3443 = vmul.f32 %v2839, %v3223
    %v3444 = vmul.f32 %v2841, %v3225
    %v3445 = vmul.f32 %v2843, %v3227
    %v3446 = vmul.f32 %v2845, %v3229
    %v3447 = vmul.f32 %v2847, %v3231
    %v3448 = vmul.f32 %v2849, %v3233
    %v3449 = vmul.f32 %v2851, %v3235
    %v3450 = vmul.f32 %v2853, %v3237
    %v3451 = vmul.f32 %v2855, %v3239
    %v3452 = vmul.f32 %v2857, %v3241
    %v3453 = vmul.f32 %v2859, %v3243
    %v3454 = vmul.f32 %v2861, %v3245
    %v3455 = vmul.f32 %v2863, %v3247
    %v3456 = vmul.f32 %v2865, %v3249
    %v3457 = vmul.f32 %v2867, %v3251
    %v3458 = vmul.f32 %v2869, %v3253
    %v3459 = vmul.f32 %v2871, %v3255
    %v3460 = vmul.f32 %v2873, %v3257
    %v3461 = vmul.f32 %v2875, %v3259
    %v3462 = vmul.f32 %v2877, %v3261
    %v3463 = vmul.f32 %v2879, %v3263
    %v3464 = vmul.f32 %v2881, %v3265
    %v3465 = vmul.f32 %v2883, %v3267
    %v3466 = vmul.f32 %v2885, %v3269
    %v3467 = vmul.f32 %v2887, %v3271
    %v3468 = vmul.f32 %v2889, %v3273
    %v3469 = vmul.f32 %v2891, %v3275
    %v3470 = vmul.f32 %v2893, %v3277
    %v3471 = vmul.f32 %v2895, %v3279
    %v3472 = vmul.f32 %v3440, %v1351
    %v3473 = vmul.f32 %v3441, %v1352
    %v3474 = vmul.f32 %v3442, %v1353
    %v3475 = vmul.f32 %v3443, %v1354
    %v3476 = vmul.f32 %v3444, %v1355
    %v3477 = vmul.f32 %v3445, %v1356
    %v3478 = vmul.f32 %v3446, %v1357
    %v3479 = vmul.f32 %v3447, %v1358
    %v3480 = vmul.f32 %v3448, %v1359
    %v3481 = vmul.f32 %v3449, %v1360
    %v3482 = vmul.f32 %v3450, %v1361
    %v3483 = vmul.f32 %v3451, %v1362
    %v3484 = vmul.f32 %v3452, %v1363
    %v3485 = vmul.f32 %v3453, %v1364
    %v3486 = vmul.f32 %v3454, %v1365
    %v3487 = vmul.f32 %v3455, %v1366
    %v3488 = vmul.f32 %v3456, %v1351
    %v3489 = vmul.f32 %v3457, %v1352
    %v3490 = vmul.f32 %v3458, %v1353
    %v3491 = vmul.f32 %v3459, %v1354
    %v3492 = vmul.f32 %v3460, %v1355
    %v3493 = vmul.f32 %v3461, %v1356
    %v3494 = vmul.f32 %v3462, %v1357
    %v3495 = vmul.f32 %v3463, %v1358
    %v3496 = vmul.f32 %v3464, %v1359
    %v3497 = vmul.f32 %v3465, %v1360
    %v3498 = vmul.f32 %v3466, %v1361
    %v3499 = vmul.f32 %v3467, %v1362
    %v3500 = vmul.f32 %v3468, %v1363
    %v3501 = vmul.f32 %v3469, %v1364
    %v3502 = vmul.f32 %v3470, %v1365
    %v3503 = vmul.f32 %v3471, %v1366
    %v3504 = vadd.f32 %v3408, %v3472
    %v3505 = vadd.f32 %v3409, %v3473
    %v3506 = vadd.f32 %v3410, %v3474
    %v3507 = vadd.f32 %v3411, %v3475
    %v3508 = vadd.f32 %v3412, %v3476
    %v3509 = vadd.f32 %v3413, %v3477
    %v3510 = vadd.f32 %v3414, %v3478
    %v3511 = vadd.f32 %v3415, %v3479
    %v3512 = vadd.f32 %v3416, %v3480
    %v3513 = vadd.f32 %v3417, %v3481
    %v3514 = vadd.f32 %v3418, %v3482
    %v3515 = vadd.f32 %v3419, %v3483
    %v3516 = vadd.f32 %v3420, %v3484
    %v3517 = vadd.f32 %v3421, %v3485
    %v3518 = vadd.f32 %v3422, %v3486
    %v3519 = vadd.f32 %v3423, %v3487
    %v3520 = vadd.f32 %v3424, %v3488
    %v3521 = vadd.f32 %v3425, %v3489
    %v3522 = vadd.f32 %v3426, %v3490
    %v3523 = vadd.f32 %v3427, %v3491
    %v3524 = vadd.f32 %v3428, %v3492
    %v3525 = vadd.f32 %v3429, %v3493
    %v3526 = vadd.f32 %v3430, %v3494
    %v3527 = vadd.f32 %v3431, %v3495
    %v3528 = vadd.f32 %v3432, %v3496
    %v3529 = vadd.f32 %v3433, %v3497
    %v3530 = vadd.f32 %v3434, %v3498
    %v3531 = vadd.f32 %v3435, %v3499
    %v3532 = vadd.f32 %v3436, %v3500
    %v3533 = vadd.f32 %v3437, %v3501
    %v3534 = vadd.f32 %v3438, %v3502
    %v3535 = vadd.f32 %v3439, %v3503
    %v3536 = vmul.f32 %v2929, %v3217
    %v3537 = vmul.f32 %v2931, %v3219
    %v3538 = vmul.f32 %v2933, %v3221
    %v3539 = vmul.f32 %v2935, %v3223
    %v3540 = vmul.f32 %v2937, %v3225
    %v3541 = vmul.f32 %v2939, %v3227
    %v3542 = vmul.f32 %v2941, %v3229
    %v3543 = vmul.f32 %v2943, %v3231
    %v3544 = vmul.f32 %v2945, %v3233
    %v3545 = vmul.f32 %v2947, %v3235
    %v3546 = vmul.f32 %v2949, %v3237
    %v3547 = vmul.f32 %v2951, %v3239
    %v3548 = vmul.f32 %v2953, %v3241
    %v3549 = vmul.f32 %v2955, %v3243
    %v3550 = vmul.f32 %v2957, %v3245
    %v3551 = vmul.f32 %v2959, %v3247
    %v3552 = vmul.f32 %v2961, %v3249
    %v3553 = vmul.f32 %v2963, %v3251
    %v3554 = vmul.f32 %v2965, %v3253
    %v3555 = vmul.f32 %v2967, %v3255
    %v3556 = vmul.f32 %v2969, %v3257
    %v3557 = vmul.f32 %v2971, %v3259
    %v3558 = vmul.f32 %v2973, %v3261
    %v3559 = vmul.f32 %v2975, %v3263
    %v3560 = vmul.f32 %v2977, %v3265
    %v3561 = vmul.f32 %v2979, %v3267
    %v3562 = vmul.f32 %v2981, %v3269
    %v3563 = vmul.f32 %v2983, %v3271
    %v3564 = vmul.f32 %v2985, %v3273
    %v3565 = vmul.f32 %v2987, %v3275
    %v3566 = vmul.f32 %v2989, %v3277
    %v3567 = vmul.f32 %v2991, %v3279
    %v3568 = vmul.f32 %v3536, %v1367
    %v3569 = vmul.f32 %v3537, %v1368
    %v3570 = vmul.f32 %v3538, %v1369
    %v3571 = vmul.f32 %v3539, %v1370
    %v3572 = vmul.f32 %v3540, %v1371
    %v3573 = vmul.f32 %v3541, %v1372
    %v3574 = vmul.f32 %v3542, %v1373
    %v3575 = vmul.f32 %v3543, %v1374
    %v3576 = vmul.f32 %v3544, %v1375
    %v3577 = vmul.f32 %v3545, %v1376
    %v3578 = vmul.f32 %v3546, %v1377
    %v3579 = vmul.f32 %v3547, %v1378
    %v3580 = vmul.f32 %v3548, %v1379
    %v3581 = vmul.f32 %v3549, %v1380
    %v3582 = vmul.f32 %v3550, %v1381
    %v3583 = vmul.f32 %v3551, %v1382
    %v3584 = vmul.f32 %v3552, %v1367
    %v3585 = vmul.f32 %v3553, %v1368
    %v3586 = vmul.f32 %v3554, %v1369
    %v3587 = vmul.f32 %v3555, %v1370
    %v3588 = vmul.f32 %v3556, %v1371
    %v3589 = vmul.f32 %v3557, %v1372
    %v3590 = vmul.f32 %v3558, %v1373
    %v3591 = vmul.f32 %v3559, %v1374
    %v3592 = vmul.f32 %v3560, %v1375
    %v3593 = vmul.f32 %v3561, %v1376
    %v3594 = vmul.f32 %v3562, %v1377
    %v3595 = vmul.f32 %v3563, %v1378
    %v3596 = vmul.f32 %v3564, %v1379
    %v3597 = vmul.f32 %v3565, %v1380
    %v3598 = vmul.f32 %v3566, %v1381
    %v3599 = vmul.f32 %v3567, %v1382
    %v3600 = vadd.f32 %v3504, %v3568
    %v3601 = vadd.f32 %v3505, %v3569
    %v3602 = vadd.f32 %v3506, %v3570
    %v3603 = vadd.f32 %v3507, %v3571
    %v3604 = vadd.f32 %v3508, %v3572
    %v3605 = vadd.f32 %v3509, %v3573
    %v3606 = vadd.f32 %v3510, %v3574
    %v3607 = vadd.f32 %v3511, %v3575
    %v3608 = vadd.f32 %v3512, %v3576
    %v3609 = vadd.f32 %v3513, %v3577
    %v3610 = vadd.f32 %v3514, %v3578
    %v3611 = vadd.f32 %v3515, %v3579
    %v3612 = vadd.f32 %v3516, %v3580
    %v3613 = vadd.f32 %v3517, %v3581
    %v3614 = vadd.f32 %v3518, %v3582
    %v3615 = vadd.f32 %v3519, %v3583
    %v3616 = vadd.f32 %v3520, %v3584
    %v3617 = vadd.f32 %v3521, %v3585
    %v3618 = vadd.f32 %v3522, %v3586
    %v3619 = vadd.f32 %v3523, %v3587
    %v3620 = vadd.f32 %v3524, %v3588
    %v3621 = vadd.f32 %v3525, %v3589
    %v3622 = vadd.f32 %v3526, %v3590
    %v3623 = vadd.f32 %v3527, %v3591
    %v3624 = vadd.f32 %v3528, %v3592
    %v3625 = vadd.f32 %v3529, %v3593
    %v3626 = vadd.f32 %v3530, %v3594
    %v3627 = vadd.f32 %v3531, %v3595
    %v3628 = vadd.f32 %v3532, %v3596
    %v3629 = vadd.f32 %v3533, %v3597
    %v3630 = vadd.f32 %v3534, %v3598
    %v3631 = vadd.f32 %v3535, %v3599
    %v3632 = vmul.f32 %v3025, %v3217
    %v3633 = vmul.f32 %v3027, %v3219
    %v3634 = vmul.f32 %v3029, %v3221
    %v3635 = vmul.f32 %v3031, %v3223
    %v3636 = vmul.f32 %v3033, %v3225
    %v3637 = vmul.f32 %v3035, %v3227
    %v3638 = vmul.f32 %v3037, %v3229
    %v3639 = vmul.f32 %v3039, %v3231
    %v3640 = vmul.f32 %v3041, %v3233
    %v3641 = vmul.f32 %v3043, %v3235
    %v3642 = vmul.f32 %v3045, %v3237
    %v3643 = vmul.f32 %v3047, %v3239
    %v3644 = vmul.f32 %v3049, %v3241
    %v3645 = vmul.f32 %v3051, %v3243
    %v3646 = vmul.f32 %v3053, %v3245
    %v3647 = vmul.f32 %v3055, %v3247
    %v3648 = vmul.f32 %v3057, %v3249
    %v3649 = vmul.f32 %v3059, %v3251
    %v3650 = vmul.f32 %v3061, %v3253
    %v3651 = vmul.f32 %v3063, %v3255
    %v3652 = vmul.f32 %v3065, %v3257
    %v3653 = vmul.f32 %v3067, %v3259
    %v3654 = vmul.f32 %v3069, %v3261
    %v3655 = vmul.f32 %v3071, %v3263
    %v3656 = vmul.f32 %v3073, %v3265
    %v3657 = vmul.f32 %v3075, %v3267
    %v3658 = vmul.f32 %v3077, %v3269
    %v3659 = vmul.f32 %v3079, %v3271
    %v3660 = vmul.f32 %v3081, %v3273
    %v3661 = vmul.f32 %v3083, %v3275
    %v3662 = vmul.f32 %v3085, %v3277
    %v3663 = vmul.f32 %v3087, %v3279
    %v3664 = vmul.f32 %v3632, %v1383
    %v3665 = vmul.f32 %v3633, %v1384
    %v3666 = vmul.f32 %v3634, %v1385
    %v3667 = vmul.f32 %v3635, %v1386
    %v3668 = vmul.f32 %v3636, %v1387
    %v3669 = vmul.f32 %v3637, %v1388
    %v3670 = vmul.f32 %v3638, %v1389
    %v3671 = vmul.f32 %v3639, %v1390
    %v3672 = vmul.f32 %v3640, %v1391
    %v3673 = vmul.f32 %v3641, %v1392
    %v3674 = vmul.f32 %v3642, %v1393
    %v3675 = vmul.f32 %v3643, %v1394
    %v3676 = vmul.f32 %v3644, %v1395
    %v3677 = vmul.f32 %v3645, %v1396
    %v3678 = vmul.f32 %v3646, %v1397
    %v3679 = vmul.f32 %v3647, %v1398
    %v3680 = vmul.f32 %v3648, %v1383
    %v3681 = vmul.f32 %v3649, %v1384
    %v3682 = vmul.f32 %v3650, %v1385
    %v3683 = vmul.f32 %v3651, %v1386
    %v3684 = vmul.f32 %v3652, %v1387
    %v3685 = vmul.f32 %v3653, %v1388
    %v3686 = vmul.f32 %v3654, %v1389
    %v3687 = vmul.f32 %v3655, %v1390
    %v3688 = vmul.f32 %v3656, %v1391
    %v3689 = vmul.f32 %v3657, %v1392
    %v3690 = vmul.f32 %v3658, %v1393
    %v3691 = vmul.f32 %v3659, %v1394
    %v3692 = vmul.f32 %v3660, %v1395
    %v3693 = vmul.f32 %v3661, %v1396
    %v3694 = vmul.f32 %v3662, %v1397
    %v3695 = vmul.f32 %v3663, %v1398
    %v3696 = vadd.f32 %v3600, %v3664
    %v3697 = vadd.f32 %v3601, %v3665
    %v3698 = vadd.f32 %v3602, %v3666
    %v3699 = vadd.f32 %v3603, %v3667
    %v3700 = vadd.f32 %v3604, %v3668
    %v3701 = vadd.f32 %v3605, %v3669
    %v3702 = vadd.f32 %v3606, %v3670
    %v3703 = vadd.f32 %v3607, %v3671
    %v3704 = vadd.f32 %v3608, %v3672
    %v3705 = vadd.f32 %v3609, %v3673
    %v3706 = vadd.f32 %v3610, %v3674
    %v3707 = vadd.f32 %v3611, %v3675
    %v3708 = vadd.f32 %v3612, %v3676
    %v3709 = vadd.f32 %v3613, %v3677
    %v3710 = vadd.f32 %v3614, %v3678
    %v3711 = vadd.f32 %v3615, %v3679
    %v3712 = vadd.f32 %v3616, %v3680
    %v3713 = vadd.f32 %v3617, %v3681
    %v3714 = vadd.f32 %v3618, %v3682
    %v3715 = vadd.f32 %v3619, %v3683
    %v3716 = vadd.f32 %v3620, %v3684
    %v3717 = vadd.f32 %v3621, %v3685
    %v3718 = vadd.f32 %v3622, %v3686
    %v3719 = vadd.f32 %v3623, %v3687
    %v3720 = vadd.f32 %v3624, %v3688
    %v3721 = vadd.f32 %v3625, %v3689
    %v3722 = vadd.f32 %v3626, %v3690
    %v3723 = vadd.f32 %v3627, %v3691
    %v3724 = vadd.f32 %v3628, %v3692
    %v3725 = vadd.f32 %v3629, %v3693
    %v3726 = vadd.f32 %v3630, %v3694
    %v3727 = vadd.f32 %v3631, %v3695
    %v3728 = vld [vmem:[#allocation2 + $0xd8] sm:$0x7f]
    %v3729 = vld [vmem:[#allocation2 + $0xe0] sm:$0x1]
    %v3730 = vlaneseq
    %v3731 = vshrl.u32 %v3730, 7
    %v3732 = vsub.s32 0, %v3731
    %v3733 = vrot.slane %v3729, %v3732
    %vm3734 = vcmask 56320
    %v3736 = vsel %vm3734, %v131, 0
    %v3739 = vsel %vm3734, %v132, 0
    %v3742 = vsel %vm3734, %v133, 0
    %v3745 = vsel %vm3734, %v134, 0
    %v3748 = vsel %vm3734, %v135, 0
    %v3751 = vsel %vm3734, %v136, 0
    %v3754 = vsel %vm3734, %v137, 0
    %v3757 = vsel %vm3734, %v138, 0
    %v3760 = vsel %vm3734, %v139, 0
    %v3763 = vsel %vm3734, %v140, 0
    %v3766 = vsel %vm3734, %v141, 0
    %v3769 = vsel %vm3734, %v142, 0
    %v3772 = vsel %vm3734, %v143, 0
    %v3775 = vsel %vm3734, %v144, 0
    %v3778 = vsel %vm3734, %v145, 0
    %v3781 = vsel %vm3734, %v146, 0
    %vm3783 = vcmask 1046528
    %v3785 = vsel %vm3783, %v3728, 0
    %3787 = vmatprep.subr.mxu0 0.0
    %3788 = vmatpush1.msra.mxu0 %v3785
    %3789 = vmatprep.subr.mxu0 0.0
    %3790 = vmatpush1.msra.mxu0 0.0
    %3791 = vmatprep.subr.mxu0 0.0
    %3792 = vmatpush1.msra.mxu0 0.0
    %3793 = vmatprep.subr.mxu0 0.0
    %3794 = vmatpush1.msra.mxu0 0.0
    %3795 = vmatprep.subr.mxu0 0.0
    %3796 = vmatpush1.msra.mxu0 0.0
    %3797 = vmatprep.subr.mxu0 0.0
    %3798 = vmatpush1.msra.mxu0 0.0
    %3799 = vmatprep.subr.mxu0 0.0
    %3800 = vmatpush1.msra.mxu0 0.0
    %3801 = vmatprep.subr.mxu0 0.0
    %3802 = vmatpush1.msra.mxu0 0.0
    %3803 = vmatprep.subr.mxu0 0.0
    %3804 = vmatpush1.msra.mxu0 0.0
    %3805 = vmatprep.subr.mxu0 0.0
    %3806 = vmatpush1.msra.mxu0 0.0
    %3807 = vmatprep.subr.mxu0 0.0
    %3808 = vmatpush1.msra.mxu0 0.0
    %3809 = vmatprep.subr.mxu0 0.0
    %3810 = vmatpush1.msra.mxu0 0.0
    %3811 = vmatprep.subr.mxu0 0.0
    %3812 = vmatpush1.msra.mxu0 0.0
    %3813 = vmatprep.subr.mxu0 0.0
    %3814 = vmatpush1.msra.mxu0 0.0
    %3815 = vmatprep.subr.mxu0 0.0
    %3816 = vmatpush1.msra.mxu0 0.0
    %3817 = vmatprep.subr.mxu0 0.0
    %3818 = vmatpush1.msra.mxu0 0.0
    %3819 = vmatprep.subr.mxu0 0.0
    %3820 = vmatpush1.msra.mxu0 0.0
    %3821 = vmatprep.subr.mxu0 0.0
    %3822 = vmatpush1.msra.mxu0 0.0
    %3823 = vmatprep.subr.mxu0 0.0
    %3824 = vmatpush1.msra.mxu0 0.0
    %3825 = vmatprep.subr.mxu0 0.0
    %3826 = vmatpush1.msra.mxu0 0.0
    %3827 = vmatprep.subr.mxu0 0.0
    %3828 = vmatpush1.msra.mxu0 0.0
    %3829 = vmatprep.subr.mxu0 0.0
    %3830 = vmatpush1.msra.mxu0 0.0
    %3831 = vmatprep.subr.mxu0 0.0
    %3832 = vmatpush1.msra.mxu0 0.0
    %3833 = vmatprep.subr.mxu0 0.0
    %3834 = vmatpush1.msra.mxu0 0.0
    %3835 = vmatprep.subr.mxu0 0.0
    %3836 = vmatpush1.msra.mxu0 0.0
    %3837 = vmatprep.subr.mxu0 0.0
    %3838 = vmatpush1.msra.mxu0 0.0
    %3839 = vmatprep.subr.mxu0 0.0
    %3840 = vmatpush1.msra.mxu0 0.0
    %3841 = vmatprep.subr.mxu0 0.0
    %3842 = vmatpush1.msra.mxu0 0.0
    %3843 = vmatprep.subr.mxu0 0.0
    %3844 = vmatpush1.msra.mxu0 0.0
    %3845 = vmatprep.subr.mxu0 0.0
    %3846 = vmatpush1.msra.mxu0 0.0
    %3847 = vmatprep.subr.mxu0 0.0
    %3848 = vmatpush1.msra.mxu0 0.0
    %3849 = vmatprep.subr.mxu0 0.0
    %3850 = vmatpush1.msra.mxu0 0.0
    %3851 = vmatprep.mubr.f32.mxu0 0.0
    %3852 = vmatmul.mubr.f32.gmra.mrb[0].mxu0 %v3736
    %v3853 = vpop.f32.mrb[0].mxu0
    %v3854 = vadd.f32 %v3733, %v3853
    %v3855 = vpop.f32.mrb[0].mxu0
    %3856 = vmatprep.mubr.f32.mxu0 0.0
    %3857 = vmatmul.mubr.f32.gmra.mrb[0].mxu0 %v3739
    %v3858 = vpop.f32.mrb[0].mxu0
    %v3859 = vadd.f32 %v3733, %v3858
    %v3860 = vpop.f32.mrb[0].mxu0
    %3861 = vmatprep.mubr.f32.mxu0 0.0
    %3862 = vmatmul.mubr.f32.gmra.mrb[0].mxu0 %v3742
    %v3863 = vpop.f32.mrb[0].mxu0
    %v3864 = vadd.f32 %v3733, %v3863
    %v3865 = vpop.f32.mrb[0].mxu0
    %3866 = vmatprep.mubr.f32.mxu0 0.0
    %3867 = vmatmul.mubr.f32.gmra.mrb[0].mxu0 %v3745
    %v3868 = vpop.f32.mrb[0].mxu0
    %v3869 = vadd.f32 %v3733, %v3868
    %v3870 = vpop.f32.mrb[0].mxu0
    %3871 = vmatprep.mubr.f32.mxu0 0.0
    %3872 = vmatmul.mubr.f32.gmra.mrb[0].mxu0 %v3748
    %v3873 = vpop.f32.mrb[0].mxu0
    %v3874 = vadd.f32 %v3733, %v3873
    %v3875 = vpop.f32.mrb[0].mxu0
    %3876 = vmatprep.mubr.f32.mxu0 0.0
    %3877 = vmatmul.mubr.f32.gmra.mrb[0].mxu0 %v3751
    %v3878 = vpop.f32.mrb[0].mxu0
    %v3879 = vadd.f32 %v3733, %v3878
    %v3880 = vpop.f32.mrb[0].mxu0
    %3881 = vmatprep.mubr.f32.mxu0 0.0
    %3882 = vmatmul.mubr.f32.gmra.mrb[0].mxu0 %v3754
    %v3883 = vpop.f32.mrb[0].mxu0
    %v3884 = vadd.f32 %v3733, %v3883
    %v3885 = vpop.f32.mrb[0].mxu0
    %3886 = vmatprep.mubr.f32.mxu0 0.0
    %3887 = vmatmul.mubr.f32.gmra.mrb[0].mxu0 %v3757
    %v3888 = vpop.f32.mrb[0].mxu0
    %v3889 = vadd.f32 %v3733, %v3888
    %v3890 = vpop.f32.mrb[0].mxu0
    %3891 = vmatprep.mubr.f32.mxu0 0.0
    %3892 = vmatmul.mubr.f32.gmra.mrb[0].mxu0 %v3760
    %v3893 = vpop.f32.mrb[0].mxu0
    %v3894 = vadd.f32 %v3733, %v3893
    %v3895 = vpop.f32.mrb[0].mxu0
    %3896 = vmatprep.mubr.f32.mxu0 0.0
    %3897 = vmatmul.mubr.f32.gmra.mrb[0].mxu0 %v3763
    %v3898 = vpop.f32.mrb[0].mxu0
    %v3899 = vadd.f32 %v3733, %v3898
    %v3900 = vpop.f32.mrb[0].mxu0
    %3901 = vmatprep.mubr.f32.mxu0 0.0
    %3902 = vmatmul.mubr.f32.gmra.mrb[0].mxu0 %v3766
    %v3903 = vpop.f32.mrb[0].mxu0
    %v3904 = vadd.f32 %v3733, %v3903
    %v3905 = vpop.f32.mrb[0].mxu0
    %3906 = vmatprep.mubr.f32.mxu0 0.0
    %3907 = vmatmul.mubr.f32.gmra.mrb[0].mxu0 %v3769
    %v3908 = vpop.f32.mrb[0].mxu0
    %v3909 = vadd.f32 %v3733, %v3908
    %v3910 = vpop.f32.mrb[0].mxu0
    %3911 = vmatprep.mubr.f32.mxu0 0.0
    %3912 = vmatmul.mubr.f32.gmra.mrb[0].mxu0 %v3772
    %v3913 = vpop.f32.mrb[0].mxu0
    %v3914 = vadd.f32 %v3733, %v3913
    %v3915 = vpop.f32.mrb[0].mxu0
    %3916 = vmatprep.mubr.f32.mxu0 0.0
    %3917 = vmatmul.mubr.f32.gmra.mrb[0].mxu0 %v3775
    %v3918 = vpop.f32.mrb[0].mxu0
    %v3919 = vadd.f32 %v3733, %v3918
    %v3920 = vpop.f32.mrb[0].mxu0
    %3921 = vmatprep.mubr.f32.mxu0 0.0
    %3922 = vmatmul.mubr.f32.gmra.mrb[0].mxu0 %v3778
    %v3923 = vpop.f32.mrb[0].mxu0
    %v3924 = vadd.f32 %v3733, %v3923
    %v3925 = vpop.f32.mrb[0].mxu0
    %3926 = vmatprep.mubr.f32.mxu0 0.0
    %3927 = vmatmul.mubr.f32.gmra.mrb[0].mxu0 %v3781
    %v3928 = vpop.f32.mrb[0].mxu0
    %v3929 = vadd.f32 %v3733, %v3928
    %v3930 = vpop.f32.mrb[0].mxu0
    %3931 = vdwg.mxu0
    %v3932 = vld [vmem:[#allocation2 + $0xe8] sm:$0xff]
    %v3933 = vld [vmem:[#allocation2 + $0xf0] sm:$0xff]
    %v3934 = vld [vmem:[#allocation2 + $0xf8] sm:$0xff]
    %v3935 = vld [vmem:[#allocation2 + $0x100] sm:$0xff]
    %v3936 = vld [vmem:[#allocation2 + $0x108] sm:$0xff]
    %v3937 = vld [vmem:[#allocation2 + $0x110] sm:$0xff]
    %v3938 = vld [vmem:[#allocation2 + $0x118] sm:$0xff]
    %v3939 = vld [vmem:[#allocation2 + $0x120] sm:$0xff]
    %v3940 = vld [vmem:[#allocation2 + $0x128] sm:$0xff]
    %v3941 = vld [vmem:[#allocation2 + $0x130] sm:$0xff]
    %v3942 = vld [vmem:[#allocation2 + $0x138] sm:$0xff]
    %v3943 = vld [vmem:[#allocation2 + $0x140] sm:$0xff]
    %v3944 = vld [vmem:[#allocation2 + $0x148] sm:$0xff]
    %v3945 = vld [vmem:[#allocation2 + $0x150] sm:$0xff]
    %v3946 = vld [vmem:[#allocation2 + $0x158] sm:$0xff]
    %v3947 = vld [vmem:[#allocation2 + $0x160] sm:$0xff]
    %v3949 = vsel %vm395, %v3712, 0
    %v3952 = vsel %vm395, %v3713, 0
    %v3955 = vsel %vm395, %v3714, 0
    %v3958 = vsel %vm395, %v3715, 0
    %v3961 = vsel %vm395, %v3716, 0
    %v3964 = vsel %vm395, %v3717, 0
    %v3967 = vsel %vm395, %v3718, 0
    %v3970 = vsel %vm395, %v3719, 0
    %v3973 = vsel %vm395, %v3720, 0
    %v3976 = vsel %vm395, %v3721, 0
    %v3979 = vsel %vm395, %v3722, 0
    %v3982 = vsel %vm395, %v3723, 0
    %v3985 = vsel %vm395, %v3724, 0
    %v3988 = vsel %vm395, %v3725, 0
    %v3991 = vsel %vm395, %v3726, 0
    %v3994 = vsel %vm395, %v3727, 0
    %3996 = vmatprep.subr.mxu0 0.0
    %3997 = vmatpush1.msra.mxu0 %v3940
    %3998 = vmatprep.subr.mxu0 0.0
    %3999 = vmatpush1.msra.mxu0 %v3941
    %4000 = vmatprep.subr.mxu0 0.0
    %4001 = vmatpush1.msra.mxu0 %v3942
    %4002 = vmatprep.subr.mxu0 0.0
    %4003 = vmatpush1.msra.mxu0 %v3943
    %4004 = vmatprep.subr.mxu0 0.0
    %4005 = vmatpush1.msra.mxu0 %v3944
    %4006 = vmatprep.subr.mxu0 0.0
    %4007 = vmatpush1.msra.mxu0 %v3945
    %4008 = vmatprep.subr.mxu0 0.0
    %4009 = vmatpush1.msra.mxu0 %v3946
    %4010 = vmatprep.subr.mxu0 0.0
    %4011 = vmatpush1.msra.mxu0 %v3947
    %4012 = vmatprep.subr.mxu0 0.0
    %4013 = vmatpush1.msra.mxu0 0.0
    %4014 = vmatprep.subr.mxu0 0.0
    %4015 = vmatpush1.msra.mxu0 0.0
    %4016 = vmatprep.subr.mxu0 0.0
    %4017 = vmatpush1.msra.mxu0 0.0
    %4018 = vmatprep.subr.mxu0 0.0
    %4019 = vmatpush1.msra.mxu0 0.0
    %4020 = vmatprep.subr.mxu0 0.0
    %4021 = vmatpush1.msra.mxu0 0.0
    %4022 = vmatprep.subr.mxu0 0.0
    %4023 = vmatpush1.msra.mxu0 0.0
    %4024 = vmatprep.subr.mxu0 0.0
    %4025 = vmatpush1.msra.mxu0 0.0
    %4026 = vmatprep.subr.mxu0 0.0
    %4027 = vmatpush1.msra.mxu0 0.0
    %4028 = vmatprep.subr.mxu0 0.0
    %4029 = vmatpush1.msra.mxu0 0.0
    %4030 = vmatprep.subr.mxu0 0.0
    %4031 = vmatpush1.msra.mxu0 0.0
    %4032 = vmatprep.subr.mxu0 0.0
    %4033 = vmatpush1.msra.mxu0 0.0
    %4034 = vmatprep.subr.mxu0 0.0
    %4035 = vmatpush1.msra.mxu0 0.0
    %4036 = vmatprep.subr.mxu0 0.0
    %4037 = vmatpush1.msra.mxu0 0.0
    %4038 = vmatprep.subr.mxu0 0.0
    %4039 = vmatpush1.msra.mxu0 0.0
    %4040 = vmatprep.subr.mxu0 0.0
    %4041 = vmatpush1.msra.mxu0 0.0
    %4042 = vmatprep.subr.mxu0 0.0
    %4043 = vmatpush1.msra.mxu0 0.0
    %4044 = vmatprep.subr.mxu0 0.0
    %4045 = vmatpush1.msra.mxu0 0.0
    %4046 = vmatprep.subr.mxu0 0.0
    %4047 = vmatpush1.msra.mxu0 0.0
    %4048 = vmatprep.subr.mxu0 0.0
    %4049 = vmatpush1.msra.mxu0 0.0
    %4050 = vmatprep.subr.mxu0 0.0
    %4051 = vmatpush1.msra.mxu0 0.0
    %4052 = vmatprep.subr.mxu0 0.0
    %4053 = vmatpush1.msra.mxu0 0.0
    %4054 = vmatprep.subr.mxu0 0.0
    %4055 = vmatpush1.msra.mxu0 0.0
    %4056 = vmatprep.subr.mxu0 0.0
    %4057 = vmatpush1.msra.mxu0 0.0
    %4058 = vmatprep.subr.mxu0 0.0
    %4059 = vmatpush1.msra.mxu0 0.0
    %4060 = vmatprep.mubr.f32.mxu0 0.0
    %4061 = vmatmul.mubr.f32.gmra.mrb[0].mxu0 %v3949
    %v4062 = vpop.f32.mrb[0].mxu0
    %v4063 = vadd.f32 0.0, %v4062
    %v4064 = vpop.f32.mrb[0].mxu0
    %4065 = vmatprep.mubr.f32.mxu0 0.0
    %4066 = vmatmul.mubr.f32.gmra.mrb[0].mxu0 %v3952
    %v4067 = vpop.f32.mrb[0].mxu0
    %v4068 = vadd.f32 0.0, %v4067
    %v4069 = vpop.f32.mrb[0].mxu0
    %4070 = vmatprep.mubr.f32.mxu0 0.0
    %4071 = vmatmul.mubr.f32.gmra.mrb[0].mxu0 %v3955
    %v4072 = vpop.f32.mrb[0].mxu0
    %v4073 = vadd.f32 0.0, %v4072
    %v4074 = vpop.f32.mrb[0].mxu0
    %4075 = vmatprep.mubr.f32.mxu0 0.0
    %4076 = vmatmul.mubr.f32.gmra.mrb[0].mxu0 %v3958
    %v4077 = vpop.f32.mrb[0].mxu0
    %v4078 = vadd.f32 0.0, %v4077
    %v4079 = vpop.f32.mrb[0].mxu0
    %4080 = vmatprep.mubr.f32.mxu0 0.0
    %4081 = vmatmul.mubr.f32.gmra.mrb[0].mxu0 %v3961
    %v4082 = vpop.f32.mrb[0].mxu0
    %v4083 = vadd.f32 0.0, %v4082
    %v4084 = vpop.f32.mrb[0].mxu0
    %4085 = vmatprep.mubr.f32.mxu0 0.0
    %4086 = vmatmul.mubr.f32.gmra.mrb[0].mxu0 %v3964
    %v4087 = vpop.f32.mrb[0].mxu0
    %v4088 = vadd.f32 0.0, %v4087
    %v4089 = vpop.f32.mrb[0].mxu0
    %4090 = vmatprep.mubr.f32.mxu0 0.0
    %4091 = vmatmul.mubr.f32.gmra.mrb[0].mxu0 %v3967
    %v4092 = vpop.f32.mrb[0].mxu0
    %v4093 = vadd.f32 0.0, %v4092
    %v4094 = vpop.f32.mrb[0].mxu0
    %4095 = vmatprep.mubr.f32.mxu0 0.0
    %4096 = vmatmul.mubr.f32.gmra.mrb[0].mxu0 %v3970
    %v4097 = vpop.f32.mrb[0].mxu0
    %v4098 = vadd.f32 0.0, %v4097
    %v4099 = vpop.f32.mrb[0].mxu0
    %4100 = vmatprep.mubr.f32.mxu0 0.0
    %4101 = vmatmul.mubr.f32.gmra.mrb[0].mxu0 %v3973
    %v4102 = vpop.f32.mrb[0].mxu0
    %v4103 = vadd.f32 0.0, %v4102
    %v4104 = vpop.f32.mrb[0].mxu0
    %4105 = vmatprep.mubr.f32.mxu0 0.0
    %4106 = vmatmul.mubr.f32.gmra.mrb[0].mxu0 %v3976
    %v4107 = vpop.f32.mrb[0].mxu0
    %v4108 = vadd.f32 0.0, %v4107
    %v4109 = vpop.f32.mrb[0].mxu0
    %4110 = vmatprep.mubr.f32.mxu0 0.0
    %4111 = vmatmul.mubr.f32.gmra.mrb[0].mxu0 %v3979
    %v4112 = vpop.f32.mrb[0].mxu0
    %v4113 = vadd.f32 0.0, %v4112
    %v4114 = vpop.f32.mrb[0].mxu0
    %4115 = vmatprep.mubr.f32.mxu0 0.0
    %4116 = vmatmul.mubr.f32.gmra.mrb[0].mxu0 %v3982
    %v4117 = vpop.f32.mrb[0].mxu0
    %v4118 = vadd.f32 0.0, %v4117
    %v4119 = vpop.f32.mrb[0].mxu0
    %4120 = vmatprep.mubr.f32.mxu0 0.0
    %4121 = vmatmul.mubr.f32.gmra.mrb[0].mxu0 %v3985
    %v4122 = vpop.f32.mrb[0].mxu0
    %v4123 = vadd.f32 0.0, %v4122
    %v4124 = vpop.f32.mrb[0].mxu0
    %4125 = vmatprep.mubr.f32.mxu0 0.0
    %4126 = vmatmul.mubr.f32.gmra.mrb[0].mxu0 %v3988
    %v4127 = vpop.f32.mrb[0].mxu0
    %v4128 = vadd.f32 0.0, %v4127
    %v4129 = vpop.f32.mrb[0].mxu0
    %4130 = vmatprep.mubr.f32.mxu0 0.0
    %4131 = vmatmul.mubr.f32.gmra.mrb[0].mxu0 %v3991
    %v4132 = vpop.f32.mrb[0].mxu0
    %v4133 = vadd.f32 0.0, %v4132
    %v4134 = vpop.f32.mrb[0].mxu0
    %4135 = vmatprep.mubr.f32.mxu0 0.0
    %4136 = vmatmul.mubr.f32.gmra.mrb[0].mxu0 %v3994
    %v4137 = vpop.f32.mrb[0].mxu0
    %v4138 = vadd.f32 0.0, %v4137
    %v4139 = vpop.f32.mrb[0].mxu0
    %4140 = vdwg.mxu0
    %v4142 = vsel %vm395, %v3696, 0
    %v4145 = vsel %vm395, %v3697, 0
    %v4148 = vsel %vm395, %v3698, 0
    %v4151 = vsel %vm395, %v3699, 0
    %v4154 = vsel %vm395, %v3700, 0
    %v4157 = vsel %vm395, %v3701, 0
    %v4160 = vsel %vm395, %v3702, 0
    %v4163 = vsel %vm395, %v3703, 0
    %v4166 = vsel %vm395, %v3704, 0
    %v4169 = vsel %vm395, %v3705, 0
    %v4172 = vsel %vm395, %v3706, 0
    %v4175 = vsel %vm395, %v3707, 0
    %v4178 = vsel %vm395, %v3708, 0
    %v4181 = vsel %vm395, %v3709, 0
    %v4184 = vsel %vm395, %v3710, 0
    %v4187 = vsel %vm395, %v3711, 0
    %4189 = vmatprep.subr.mxu0 0.0
    %4190 = vmatpush1.msra.mxu0 %v3932
    %4191 = vmatprep.subr.mxu0 0.0
    %4192 = vmatpush1.msra.mxu0 %v3933
    %4193 = vmatprep.subr.mxu0 0.0
    %4194 = vmatpush1.msra.mxu0 %v3934
    %4195 = vmatprep.subr.mxu0 0.0
    %4196 = vmatpush1.msra.mxu0 %v3935
    %4197 = vmatprep.subr.mxu0 0.0
    %4198 = vmatpush1.msra.mxu0 %v3936
    %4199 = vmatprep.subr.mxu0 0.0
    %4200 = vmatpush1.msra.mxu0 %v3937
    %4201 = vmatprep.subr.mxu0 0.0
    %4202 = vmatpush1.msra.mxu0 %v3938
    %4203 = vmatprep.subr.mxu0 0.0
    %4204 = vmatpush1.msra.mxu0 %v3939
    %4205 = vmatprep.subr.mxu0 0.0
    %4206 = vmatpush1.msra.mxu0 0.0
    %4207 = vmatprep.subr.mxu0 0.0
    %4208 = vmatpush1.msra.mxu0 0.0
    %4209 = vmatprep.subr.mxu0 0.0
    %4210 = vmatpush1.msra.mxu0 0.0
    %4211 = vmatprep.subr.mxu0 0.0
    %4212 = vmatpush1.msra.mxu0 0.0
    %4213 = vmatprep.subr.mxu0 0.0
    %4214 = vmatpush1.msra.mxu0 0.0
    %4215 = vmatprep.subr.mxu0 0.0
    %4216 = vmatpush1.msra.mxu0 0.0
    %4217 = vmatprep.subr.mxu0 0.0
    %4218 = vmatpush1.msra.mxu0 0.0
    %4219 = vmatprep.subr.mxu0 0.0
    %4220 = vmatpush1.msra.mxu0 0.0
    %4221 = vmatprep.subr.mxu0 0.0
    %4222 = vmatpush1.msra.mxu0 0.0
    %4223 = vmatprep.subr.mxu0 0.0
    %4224 = vmatpush1.msra.mxu0 0.0
    %4225 = vmatprep.subr.mxu0 0.0
    %4226 = vmatpush1.msra.mxu0 0.0
    %4227 = vmatprep.subr.mxu0 0.0
    %4228 = vmatpush1.msra.mxu0 0.0
    %4229 = vmatprep.subr.mxu0 0.0
    %4230 = vmatpush1.msra.mxu0 0.0
    %4231 = vmatprep.subr.mxu0 0.0
    %4232 = vmatpush1.msra.mxu0 0.0
    %4233 = vmatprep.subr.mxu0 0.0
    %4234 = vmatpush1.msra.mxu0 0.0
    %4235 = vmatprep.subr.mxu0 0.0
    %4236 = vmatpush1.msra.mxu0 0.0
    %4237 = vmatprep.subr.mxu0 0.0
    %4238 = vmatpush1.msra.mxu0 0.0
    %4239 = vmatprep.subr.mxu0 0.0
    %4240 = vmatpush1.msra.mxu0 0.0
    %4241 = vmatprep.subr.mxu0 0.0
    %4242 = vmatpush1.msra.mxu0 0.0
    %4243 = vmatprep.subr.mxu0 0.0
    %4244 = vmatpush1.msra.mxu0 0.0
    %4245 = vmatprep.subr.mxu0 0.0
    %4246 = vmatpush1.msra.mxu0 0.0
    %4247 = vmatprep.subr.mxu0 0.0
    %4248 = vmatpush1.msra.mxu0 0.0
    %4249 = vmatprep.subr.mxu0 0.0
    %4250 = vmatpush1.msra.mxu0 0.0
    %4251 = vmatprep.subr.mxu0 0.0
    %4252 = vmatpush1.msra.mxu0 0.0
    %4253 = vmatprep.mubr.f32.mxu0 0.0
    %4254 = vmatmul.mubr.f32.gmra.mrb[0].mxu0 %v4142
    %v4255 = vpop.f32.mrb[0].mxu0
    %v4256 = vadd.f32 %v4063, %v4255
    %v4257 = vpop.f32.mrb[0].mxu0
    %4258 = vmatprep.mubr.f32.mxu0 0.0
    %4259 = vmatmul.mubr.f32.gmra.mrb[0].mxu0 %v4145
    %v4260 = vpop.f32.mrb[0].mxu0
    %v4261 = vadd.f32 %v4068, %v4260
    %v4262 = vpop.f32.mrb[0].mxu0
    %4263 = vmatprep.mubr.f32.mxu0 0.0
    %4264 = vmatmul.mubr.f32.gmra.mrb[0].mxu0 %v4148
    %v4265 = vpop.f32.mrb[0].mxu0
    %v4266 = vadd.f32 %v4073, %v4265
    %v4267 = vpop.f32.mrb[0].mxu0
    %4268 = vmatprep.mubr.f32.mxu0 0.0
    %4269 = vmatmul.mubr.f32.gmra.mrb[0].mxu0 %v4151
    %v4270 = vpop.f32.mrb[0].mxu0
    %v4271 = vadd.f32 %v4078, %v4270
    %v4272 = vpop.f32.mrb[0].mxu0
    %4273 = vmatprep.mubr.f32.mxu0 0.0
    %4274 = vmatmul.mubr.f32.gmra.mrb[0].mxu0 %v4154
    %v4275 = vpop.f32.mrb[0].mxu0
    %v4276 = vadd.f32 %v4083, %v4275
    %v4277 = vpop.f32.mrb[0].mxu0
    %4278 = vmatprep.mubr.f32.mxu0 0.0
    %4279 = vmatmul.mubr.f32.gmra.mrb[0].mxu0 %v4157
    %v4280 = vpop.f32.mrb[0].mxu0
    %v4281 = vadd.f32 %v4088, %v4280
    %v4282 = vpop.f32.mrb[0].mxu0
    %4283 = vmatprep.mubr.f32.mxu0 0.0
    %4284 = vmatmul.mubr.f32.gmra.mrb[0].mxu0 %v4160
    %v4285 = vpop.f32.mrb[0].mxu0
    %v4286 = vadd.f32 %v4093, %v4285
    %v4287 = vpop.f32.mrb[0].mxu0
    %4288 = vmatprep.mubr.f32.mxu0 0.0
    %4289 = vmatmul.mubr.f32.gmra.mrb[0].mxu0 %v4163
    %v4290 = vpop.f32.mrb[0].mxu0
    %v4291 = vadd.f32 %v4098, %v4290
    %v4292 = vpop.f32.mrb[0].mxu0
    %4293 = vmatprep.mubr.f32.mxu0 0.0
    %4294 = vmatmul.mubr.f32.gmra.mrb[0].mxu0 %v4166
    %v4295 = vpop.f32.mrb[0].mxu0
    %v4296 = vadd.f32 %v4103, %v4295
    %v4297 = vpop.f32.mrb[0].mxu0
    %4298 = vmatprep.mubr.f32.mxu0 0.0
    %4299 = vmatmul.mubr.f32.gmra.mrb[0].mxu0 %v4169
    %v4300 = vpop.f32.mrb[0].mxu0
    %v4301 = vadd.f32 %v4108, %v4300
    %v4302 = vpop.f32.mrb[0].mxu0
    %4303 = vmatprep.mubr.f32.mxu0 0.0
    %4304 = vmatmul.mubr.f32.gmra.mrb[0].mxu0 %v4172
    %v4305 = vpop.f32.mrb[0].mxu0
    %v4306 = vadd.f32 %v4113, %v4305
    %v4307 = vpop.f32.mrb[0].mxu0
    %4308 = vmatprep.mubr.f32.mxu0 0.0
    %4309 = vmatmul.mubr.f32.gmra.mrb[0].mxu0 %v4175
    %v4310 = vpop.f32.mrb[0].mxu0
    %v4311 = vadd.f32 %v4118, %v4310
    %v4312 = vpop.f32.mrb[0].mxu0
    %4313 = vmatprep.mubr.f32.mxu0 0.0
    %4314 = vmatmul.mubr.f32.gmra.mrb[0].mxu0 %v4178
    %v4315 = vpop.f32.mrb[0].mxu0
    %v4316 = vadd.f32 %v4123, %v4315
    %v4317 = vpop.f32.mrb[0].mxu0
    %4318 = vmatprep.mubr.f32.mxu0 0.0
    %4319 = vmatmul.mubr.f32.gmra.mrb[0].mxu0 %v4181
    %v4320 = vpop.f32.mrb[0].mxu0
    %v4321 = vadd.f32 %v4128, %v4320
    %v4322 = vpop.f32.mrb[0].mxu0
    %4323 = vmatprep.mubr.f32.mxu0 0.0
    %4324 = vmatmul.mubr.f32.gmra.mrb[0].mxu0 %v4184
    %v4325 = vpop.f32.mrb[0].mxu0
    %v4326 = vadd.f32 %v4133, %v4325
    %v4327 = vpop.f32.mrb[0].mxu0
    %4328 = vmatprep.mubr.f32.mxu0 0.0
    %4329 = vmatmul.mubr.f32.gmra.mrb[0].mxu0 %v4187
    %v4330 = vpop.f32.mrb[0].mxu0
    %v4331 = vadd.f32 %v4138, %v4330
    %v4332 = vpop.f32.mrb[0].mxu0
    %4333 = vdwg.mxu0
    %v4334 = vld [vmem:[#allocation2 + $0x168] sm:$0xff]
    %v4335 = vld [vmem:[#allocation2 + $0x170] sm:$0xff]
    %v4336 = vld [vmem:[#allocation2 + $0x178] sm:$0xff]
    %v4337 = vld [vmem:[#allocation2 + $0x180] sm:$0xff]
    %v4338 = vld [vmem:[#allocation2 + $0x188] sm:$0xff]
    %v4339 = vld [vmem:[#allocation2 + $0x190] sm:$0xff]
    %v4340 = vld [vmem:[#allocation2 + $0x198] sm:$0xff]
    %v4341 = vld [vmem:[#allocation2 + $0x1a0] sm:$0xff]
    %v4343 = vsel %vm395, %v3854, 0
    %v4346 = vsel %vm395, %v3859, 0
    %v4349 = vsel %vm395, %v3864, 0
    %v4352 = vsel %vm395, %v3869, 0
    %v4355 = vsel %vm395, %v3874, 0
    %v4358 = vsel %vm395, %v3879, 0
    %v4361 = vsel %vm395, %v3884, 0
    %v4364 = vsel %vm395, %v3889, 0
    %v4367 = vsel %vm395, %v3894, 0
    %v4370 = vsel %vm395, %v3899, 0
    %v4373 = vsel %vm395, %v3904, 0
    %v4376 = vsel %vm395, %v3909, 0
    %v4379 = vsel %vm395, %v3914, 0
    %v4382 = vsel %vm395, %v3919, 0
    %v4385 = vsel %vm395, %v3924, 0
    %v4388 = vsel %vm395, %v3929, 0
    %4390 = vmatprep.subr.mxu0 0.0
    %4391 = vmatpush1.msra.mxu0 %v4334
    %4392 = vmatprep.subr.mxu0 0.0
    %4393 = vmatpush1.msra.mxu0 %v4335
    %4394 = vmatprep.subr.mxu0 0.0
    %4395 = vmatpush1.msra.mxu0 %v4336
    %4396 = vmatprep.subr.mxu0 0.0
    %4397 = vmatpush1.msra.mxu0 %v4337
    %4398 = vmatprep.subr.mxu0 0.0
    %4399 = vmatpush1.msra.mxu0 %v4338
    %4400 = vmatprep.subr.mxu0 0.0
    %4401 = vmatpush1.msra.mxu0 %v4339
    %4402 = vmatprep.subr.mxu0 0.0
    %4403 = vmatpush1.msra.mxu0 %v4340
    %4404 = vmatprep.subr.mxu0 0.0
    %4405 = vmatpush1.msra.mxu0 %v4341
    %4406 = vmatprep.subr.mxu0 0.0
    %4407 = vmatpush1.msra.mxu0 0.0
    %4408 = vmatprep.subr.mxu0 0.0
    %4409 = vmatpush1.msra.mxu0 0.0
    %4410 = vmatprep.subr.mxu0 0.0
    %4411 = vmatpush1.msra.mxu0 0.0
    %4412 = vmatprep.subr.mxu0 0.0
    %4413 = vmatpush1.msra.mxu0 0.0
    %4414 = vmatprep.subr.mxu0 0.0
    %4415 = vmatpush1.msra.mxu0 0.0
    %4416 = vmatprep.subr.mxu0 0.0
    %4417 = vmatpush1.msra.mxu0 0.0
    %4418 = vmatprep.subr.mxu0 0.0
    %4419 = vmatpush1.msra.mxu0 0.0
    %4420 = vmatprep.subr.mxu0 0.0
    %4421 = vmatpush1.msra.mxu0 0.0
    %4422 = vmatprep.subr.mxu0 0.0
    %4423 = vmatpush1.msra.mxu0 0.0
    %4424 = vmatprep.subr.mxu0 0.0
    %4425 = vmatpush1.msra.mxu0 0.0
    %4426 = vmatprep.subr.mxu0 0.0
    %4427 = vmatpush1.msra.mxu0 0.0
    %4428 = vmatprep.subr.mxu0 0.0
    %4429 = vmatpush1.msra.mxu0 0.0
    %4430 = vmatprep.subr.mxu0 0.0
    %4431 = vmatpush1.msra.mxu0 0.0
    %4432 = vmatprep.subr.mxu0 0.0
    %4433 = vmatpush1.msra.mxu0 0.0
    %4434 = vmatprep.subr.mxu0 0.0
    %4435 = vmatpush1.msra.mxu0 0.0
    %4436 = vmatprep.subr.mxu0 0.0
    %4437 = vmatpush1.msra.mxu0 0.0
    %4438 = vmatprep.subr.mxu0 0.0
    %4439 = vmatpush1.msra.mxu0 0.0
    %4440 = vmatprep.subr.mxu0 0.0
    %4441 = vmatpush1.msra.mxu0 0.0
    %4442 = vmatprep.subr.mxu0 0.0
    %4443 = vmatpush1.msra.mxu0 0.0
    %4444 = vmatprep.subr.mxu0 0.0
    %4445 = vmatpush1.msra.mxu0 0.0
    %4446 = vmatprep.subr.mxu0 0.0
    %4447 = vmatpush1.msra.mxu0 0.0
    %4448 = vmatprep.subr.mxu0 0.0
    %4449 = vmatpush1.msra.mxu0 0.0
    %4450 = vmatprep.subr.mxu0 0.0
    %4451 = vmatpush1.msra.mxu0 0.0
    %4452 = vmatprep.subr.mxu0 0.0
    %4453 = vmatpush1.msra.mxu0 0.0
    %4454 = vmatprep.mubr.f32.mxu0 0.0
    %4455 = vmatmul.mubr.f32.gmra.mrb[0].mxu0 %v4343
    %v4456 = vpop.f32.mrb[0].mxu0
    %v4457 = vadd.f32 0.0, %v4456
    %v4458 = vpop.f32.mrb[0].mxu0
    %4459 = vmatprep.mubr.f32.mxu0 0.0
    %4460 = vmatmul.mubr.f32.gmra.mrb[0].mxu0 %v4346
    %v4461 = vpop.f32.mrb[0].mxu0
    %v4462 = vadd.f32 0.0, %v4461
    %v4463 = vpop.f32.mrb[0].mxu0
    %4464 = vmatprep.mubr.f32.mxu0 0.0
    %4465 = vmatmul.mubr.f32.gmra.mrb[0].mxu0 %v4349
    %v4466 = vpop.f32.mrb[0].mxu0
    %v4467 = vadd.f32 0.0, %v4466
    %v4468 = vpop.f32.mrb[0].mxu0
    %4469 = vmatprep.mubr.f32.mxu0 0.0
    %4470 = vmatmul.mubr.f32.gmra.mrb[0].mxu0 %v4352
    %v4471 = vpop.f32.mrb[0].mxu0
    %v4472 = vadd.f32 0.0, %v4471
    %v4473 = vpop.f32.mrb[0].mxu0
    %4474 = vmatprep.mubr.f32.mxu0 0.0
    %4475 = vmatmul.mubr.f32.gmra.mrb[0].mxu0 %v4355
    %v4476 = vpop.f32.mrb[0].mxu0
    %v4477 = vadd.f32 0.0, %v4476
    %v4478 = vpop.f32.mrb[0].mxu0
    %4479 = vmatprep.mubr.f32.mxu0 0.0
    %4480 = vmatmul.mubr.f32.gmra.mrb[0].mxu0 %v4358
    %v4481 = vpop.f32.mrb[0].mxu0
    %v4482 = vadd.f32 0.0, %v4481
    %v4483 = vpop.f32.mrb[0].mxu0
    %4484 = vmatprep.mubr.f32.mxu0 0.0
    %4485 = vmatmul.mubr.f32.gmra.mrb[0].mxu0 %v4361
    %v4486 = vpop.f32.mrb[0].mxu0
    %v4487 = vadd.f32 0.0, %v4486
    %v4488 = vpop.f32.mrb[0].mxu0
    %4489 = vmatprep.mubr.f32.mxu0 0.0
    %4490 = vmatmul.mubr.f32.gmra.mrb[0].mxu0 %v4364
    %v4491 = vpop.f32.mrb[0].mxu0
    %v4492 = vadd.f32 0.0, %v4491
    %v4493 = vpop.f32.mrb[0].mxu0
    %4494 = vmatprep.mubr.f32.mxu0 0.0
    %4495 = vmatmul.mubr.f32.gmra.mrb[0].mxu0 %v4367
    %v4496 = vpop.f32.mrb[0].mxu0
    %v4497 = vadd.f32 0.0, %v4496
    %v4498 = vpop.f32.mrb[0].mxu0
    %4499 = vmatprep.mubr.f32.mxu0 0.0
    %4500 = vmatmul.mubr.f32.gmra.mrb[0].mxu0 %v4370
    %v4501 = vpop.f32.mrb[0].mxu0
    %v4502 = vadd.f32 0.0, %v4501
    %v4503 = vpop.f32.mrb[0].mxu0
    %4504 = vmatprep.mubr.f32.mxu0 0.0
    %4505 = vmatmul.mubr.f32.gmra.mrb[0].mxu0 %v4373
    %v4506 = vpop.f32.mrb[0].mxu0
    %v4507 = vadd.f32 0.0, %v4506
    %v4508 = vpop.f32.mrb[0].mxu0
    %4509 = vmatprep.mubr.f32.mxu0 0.0
    %4510 = vmatmul.mubr.f32.gmra.mrb[0].mxu0 %v4376
    %v4511 = vpop.f32.mrb[0].mxu0
    %v4512 = vadd.f32 0.0, %v4511
    %v4513 = vpop.f32.mrb[0].mxu0
    %4514 = vmatprep.mubr.f32.mxu0 0.0
    %4515 = vmatmul.mubr.f32.gmra.mrb[0].mxu0 %v4379
    %v4516 = vpop.f32.mrb[0].mxu0
    %v4517 = vadd.f32 0.0, %v4516
    %v4518 = vpop.f32.mrb[0].mxu0
    %4519 = vmatprep.mubr.f32.mxu0 0.0
    %4520 = vmatmul.mubr.f32.gmra.mrb[0].mxu0 %v4382
    %v4521 = vpop.f32.mrb[0].mxu0
    %v4522 = vadd.f32 0.0, %v4521
    %v4523 = vpop.f32.mrb[0].mxu0
    %4524 = vmatprep.mubr.f32.mxu0 0.0
    %4525 = vmatmul.mubr.f32.gmra.mrb[0].mxu0 %v4385
    %v4526 = vpop.f32.mrb[0].mxu0
    %v4527 = vadd.f32 0.0, %v4526
    %v4528 = vpop.f32.mrb[0].mxu0
    %4529 = vmatprep.mubr.f32.mxu0 0.0
    %4530 = vmatmul.mubr.f32.gmra.mrb[0].mxu0 %v4388
    %v4531 = vpop.f32.mrb[0].mxu0
    %v4532 = vadd.f32 0.0, %v4531
    %v4533 = vpop.f32.mrb[0].mxu0
    %4534 = vdwg.mxu0
    %v4535 = vadd.f32 %v4256, %v4457
    %v4536 = vadd.f32 %v4261, %v4462
    %v4537 = vadd.f32 %v4266, %v4467
    %v4538 = vadd.f32 %v4271, %v4472
    %v4539 = vadd.f32 %v4276, %v4477
    %v4540 = vadd.f32 %v4281, %v4482
    %v4541 = vadd.f32 %v4286, %v4487
    %v4542 = vadd.f32 %v4291, %v4492
    %v4543 = vadd.f32 %v4296, %v4497
    %v4544 = vadd.f32 %v4301, %v4502
    %v4545 = vadd.f32 %v4306, %v4507
    %v4546 = vadd.f32 %v4311, %v4512
    %v4547 = vadd.f32 %v4316, %v4517
    %v4548 = vadd.f32 %v4321, %v4522
    %v4549 = vadd.f32 %v4326, %v4527
    %v4550 = vadd.f32 %v4331, %v4532
    %v4551 = vld [vmem:[#allocation2 + $0x1e8] sm:$0x1]
    %v4552 = vlaneseq
    %v4553 = vshrl.u32 %v4552, 7
    %v4554 = vsub.s32 0, %v4553
    %v4555 = vrot.slane %v4551, %v4554
    %v4556 = vadd.f32 %v4535, %v4555
    %v4557 = vadd.f32 %v4536, %v4555
    %v4558 = vadd.f32 %v4537, %v4555
    %v4559 = vadd.f32 %v4538, %v4555
    %v4560 = vadd.f32 %v4539, %v4555
    %v4561 = vadd.f32 %v4540, %v4555
    %v4562 = vadd.f32 %v4541, %v4555
    %v4563 = vadd.f32 %v4542, %v4555
    %v4564 = vadd.f32 %v4543, %v4555
    %v4565 = vadd.f32 %v4544, %v4555
    %v4566 = vadd.f32 %v4545, %v4555
    %v4567 = vadd.f32 %v4546, %v4555
    %v4568 = vadd.f32 %v4547, %v4555
    %v4569 = vadd.f32 %v4548, %v4555
    %v4570 = vadd.f32 %v4549, %v4555
    %v4571 = vadd.f32 %v4550, %v4555
    %v4572 = vld [vmem:[#allocation2 + $0x1a8] sm:$0xff]
    %v4573 = vld [vmem:[#allocation2 + $0x1b0] sm:$0xff]
    %v4574 = vld [vmem:[#allocation2 + $0x1b8] sm:$0xff]
    %v4575 = vld [vmem:[#allocation2 + $0x1c0] sm:$0xff]
    %v4576 = vld [vmem:[#allocation2 + $0x1c8] sm:$0xff]
    %v4577 = vld [vmem:[#allocation2 + $0x1d0] sm:$0xff]
    %v4578 = vld [vmem:[#allocation2 + $0x1d8] sm:$0xff]
    %v4579 = vld [vmem:[#allocation2 + $0x1e0] sm:$0xff]
    %v4580 = vld [vmem:[#allocation2 + $0x1f0] sm:$0x1]
    %v4581 = vlaneseq
    %v4582 = vshrl.u32 %v4581, 7
    %v4583 = vsub.s32 0, %v4582
    %v4584 = vrot.slane %v4580, %v4583
    %v4586 = vsel %vm395, %v147, 0
    %v4589 = vsel %vm395, %v148, 0
    %v4592 = vsel %vm395, %v149, 0
    %v4595 = vsel %vm395, %v150, 0
    %v4598 = vsel %vm395, %v151, 0
    %v4601 = vsel %vm395, %v152, 0
    %v4604 = vsel %vm395, %v153, 0
    %v4607 = vsel %vm395, %v154, 0
    %v4610 = vsel %vm395, %v155, 0
    %v4613 = vsel %vm395, %v156, 0
    %v4616 = vsel %vm395, %v157, 0
    %v4619 = vsel %vm395, %v158, 0
    %v4622 = vsel %vm395, %v159, 0
    %v4625 = vsel %vm395, %v160, 0
    %v4628 = vsel %vm395, %v161, 0
    %v4631 = vsel %vm395, %v162, 0
    %4633 = vmatprep.subr.mxu0 0.0
    %4634 = vmatpush1.msra.mxu0 %v4572
    %4635 = vmatprep.subr.mxu0 0.0
    %4636 = vmatpush1.msra.mxu0 %v4573
    %4637 = vmatprep.subr.mxu0 0.0
    %4638 = vmatpush1.msra.mxu0 %v4574
    %4639 = vmatprep.subr.mxu0 0.0
    %4640 = vmatpush1.msra.mxu0 %v4575
    %4641 = vmatprep.subr.mxu0 0.0
    %4642 = vmatpush1.msra.mxu0 %v4576
    %4643 = vmatprep.subr.mxu0 0.0
    %4644 = vmatpush1.msra.mxu0 %v4577
    %4645 = vmatprep.subr.mxu0 0.0
    %4646 = vmatpush1.msra.mxu0 %v4578
    %4647 = vmatprep.subr.mxu0 0.0
    %4648 = vmatpush1.msra.mxu0 %v4579
    %4649 = vmatprep.subr.mxu0 0.0
    %4650 = vmatpush1.msra.mxu0 0.0
    %4651 = vmatprep.subr.mxu0 0.0
    %4652 = vmatpush1.msra.mxu0 0.0
    %4653 = vmatprep.subr.mxu0 0.0
    %4654 = vmatpush1.msra.mxu0 0.0
    %4655 = vmatprep.subr.mxu0 0.0
    %4656 = vmatpush1.msra.mxu0 0.0
    %4657 = vmatprep.subr.mxu0 0.0
    %4658 = vmatpush1.msra.mxu0 0.0
    %4659 = vmatprep.subr.mxu0 0.0
    %4660 = vmatpush1.msra.mxu0 0.0
    %4661 = vmatprep.subr.mxu0 0.0
    %4662 = vmatpush1.msra.mxu0 0.0
    %4663 = vmatprep.subr.mxu0 0.0
    %4664 = vmatpush1.msra.mxu0 0.0
    %4665 = vmatprep.subr.mxu0 0.0
    %4666 = vmatpush1.msra.mxu0 0.0
    %4667 = vmatprep.subr.mxu0 0.0
    %4668 = vmatpush1.msra.mxu0 0.0
    %4669 = vmatprep.subr.mxu0 0.0
    %4670 = vmatpush1.msra.mxu0 0.0
    %4671 = vmatprep.subr.mxu0 0.0
    %4672 = vmatpush1.msra.mxu0 0.0
    %4673 = vmatprep.subr.mxu0 0.0
    %4674 = vmatpush1.msra.mxu0 0.0
    %4675 = vmatprep.subr.mxu0 0.0
    %4676 = vmatpush1.msra.mxu0 0.0
    %4677 = vmatprep.subr.mxu0 0.0
    %4678 = vmatpush1.msra.mxu0 0.0
    %4679 = vmatprep.subr.mxu0 0.0
    %4680 = vmatpush1.msra.mxu0 0.0
    %4681 = vmatprep.subr.mxu0 0.0
    %4682 = vmatpush1.msra.mxu0 0.0
    %4683 = vmatprep.subr.mxu0 0.0
    %4684 = vmatpush1.msra.mxu0 0.0
    %4685 = vmatprep.subr.mxu0 0.0
    %4686 = vmatpush1.msra.mxu0 0.0
    %4687 = vmatprep.subr.mxu0 0.0
    %4688 = vmatpush1.msra.mxu0 0.0
    %4689 = vmatprep.subr.mxu0 0.0
    %4690 = vmatpush1.msra.mxu0 0.0
    %4691 = vmatprep.subr.mxu0 0.0
    %4692 = vmatpush1.msra.mxu0 0.0
    %4693 = vmatprep.subr.mxu0 0.0
    %4694 = vmatpush1.msra.mxu0 0.0
    %4695 = vmatprep.subr.mxu0 0.0
    %4696 = vmatpush1.msra.mxu0 0.0
    %4697 = vmatprep.mubr.f32.mxu0 0.0
    %4698 = vmatmul.mubr.f32.gmra.mrb[0].mxu0 %v4586
    %v4699 = vpop.f32.mrb[0].mxu0
    %v4700 = vadd.f32 %v4584, %v4699
    %v4701 = vpop.f32.mrb[0].mxu0
    %4702 = vmatprep.mubr.f32.mxu0 0.0
    %4703 = vmatmul.mubr.f32.gmra.mrb[0].mxu0 %v4589
    %v4704 = vpop.f32.mrb[0].mxu0
    %v4705 = vadd.f32 %v4584, %v4704
    %v4706 = vpop.f32.mrb[0].mxu0
    %4707 = vmatprep.mubr.f32.mxu0 0.0
    %4708 = vmatmul.mubr.f32.gmra.mrb[0].mxu0 %v4592
    %v4709 = vpop.f32.mrb[0].mxu0
    %v4710 = vadd.f32 %v4584, %v4709
    %v4711 = vpop.f32.mrb[0].mxu0
    %4712 = vmatprep.mubr.f32.mxu0 0.0
    %4713 = vmatmul.mubr.f32.gmra.mrb[0].mxu0 %v4595
    %v4714 = vpop.f32.mrb[0].mxu0
    %v4715 = vadd.f32 %v4584, %v4714
    %v4716 = vpop.f32.mrb[0].mxu0
    %4717 = vmatprep.mubr.f32.mxu0 0.0
    %4718 = vmatmul.mubr.f32.gmra.mrb[0].mxu0 %v4598
    %v4719 = vpop.f32.mrb[0].mxu0
    %v4720 = vadd.f32 %v4584, %v4719
    %v4721 = vpop.f32.mrb[0].mxu0
    %4722 = vmatprep.mubr.f32.mxu0 0.0
    %4723 = vmatmul.mubr.f32.gmra.mrb[0].mxu0 %v4601
    %v4724 = vpop.f32.mrb[0].mxu0
    %v4725 = vadd.f32 %v4584, %v4724
    %v4726 = vpop.f32.mrb[0].mxu0
    %4727 = vmatprep.mubr.f32.mxu0 0.0
    %4728 = vmatmul.mubr.f32.gmra.mrb[0].mxu0 %v4604
    %v4729 = vpop.f32.mrb[0].mxu0
    %v4730 = vadd.f32 %v4584, %v4729
    %v4731 = vpop.f32.mrb[0].mxu0
    %4732 = vmatprep.mubr.f32.mxu0 0.0
    %4733 = vmatmul.mubr.f32.gmra.mrb[0].mxu0 %v4607
    %v4734 = vpop.f32.mrb[0].mxu0
    %v4735 = vadd.f32 %v4584, %v4734
    %v4736 = vpop.f32.mrb[0].mxu0
    %4737 = vmatprep.mubr.f32.mxu0 0.0
    %4738 = vmatmul.mubr.f32.gmra.mrb[0].mxu0 %v4610
    %v4739 = vpop.f32.mrb[0].mxu0
    %v4740 = vadd.f32 %v4584, %v4739
    %v4741 = vpop.f32.mrb[0].mxu0
    %4742 = vmatprep.mubr.f32.mxu0 0.0
    %4743 = vmatmul.mubr.f32.gmra.mrb[0].mxu0 %v4613
    %v4744 = vpop.f32.mrb[0].mxu0
    %v4745 = vadd.f32 %v4584, %v4744
    %v4746 = vpop.f32.mrb[0].mxu0
    %4747 = vmatprep.mubr.f32.mxu0 0.0
    %4748 = vmatmul.mubr.f32.gmra.mrb[0].mxu0 %v4616
    %v4749 = vpop.f32.mrb[0].mxu0
    %v4750 = vadd.f32 %v4584, %v4749
    %v4751 = vpop.f32.mrb[0].mxu0
    %4752 = vmatprep.mubr.f32.mxu0 0.0
    %4753 = vmatmul.mubr.f32.gmra.mrb[0].mxu0 %v4619
    %v4754 = vpop.f32.mrb[0].mxu0
    %v4755 = vadd.f32 %v4584, %v4754
    %v4756 = vpop.f32.mrb[0].mxu0
    %4757 = vmatprep.mubr.f32.mxu0 0.0
    %4758 = vmatmul.mubr.f32.gmra.mrb[0].mxu0 %v4622
    %v4759 = vpop.f32.mrb[0].mxu0
    %v4760 = vadd.f32 %v4584, %v4759
    %v4761 = vpop.f32.mrb[0].mxu0
    %4762 = vmatprep.mubr.f32.mxu0 0.0
    %4763 = vmatmul.mubr.f32.gmra.mrb[0].mxu0 %v4625
    %v4764 = vpop.f32.mrb[0].mxu0
    %v4765 = vadd.f32 %v4584, %v4764
    %v4766 = vpop.f32.mrb[0].mxu0
    %4767 = vmatprep.mubr.f32.mxu0 0.0
    %4768 = vmatmul.mubr.f32.gmra.mrb[0].mxu0 %v4628
    %v4769 = vpop.f32.mrb[0].mxu0
    %v4770 = vadd.f32 %v4584, %v4769
    %v4771 = vpop.f32.mrb[0].mxu0
    %4772 = vmatprep.mubr.f32.mxu0 0.0
    %4773 = vmatmul.mubr.f32.gmra.mrb[0].mxu0 %v4631
    %v4774 = vpop.f32.mrb[0].mxu0
    %v4775 = vadd.f32 %v4584, %v4774
    %v4776 = vpop.f32.mrb[0].mxu0
    %4777 = vdwg.mxu0
    %v4778 = vld [vmem:[#allocation2 + $0x1f8] sm:$0xff]
    %v4779 = vld [vmem:[#allocation2 + $0x200] sm:$0xff]
    %v4780 = vld [vmem:[#allocation2 + $0x208] sm:$0xff]
    %v4781 = vld [vmem:[#allocation2 + $0x210] sm:$0xff]
    %v4782 = vld [vmem:[#allocation2 + $0x218] sm:$0xff]
    %v4783 = vld [vmem:[#allocation2 + $0x220] sm:$0xff]
    %v4784 = vld [vmem:[#allocation2 + $0x228] sm:$0xff]
    %v4785 = vld [vmem:[#allocation2 + $0x230] sm:$0xff]
    %v4786 = vld [vmem:[#allocation2 + $0x238] sm:$0xff]
    %v4787 = vld [vmem:[#allocation2 + $0x240] sm:$0xff]
    %v4788 = vld [vmem:[#allocation2 + $0x248] sm:$0xff]
    %v4789 = vld [vmem:[#allocation2 + $0x250] sm:$0xff]
    %v4790 = vld [vmem:[#allocation2 + $0x258] sm:$0xff]
    %v4791 = vld [vmem:[#allocation2 + $0x260] sm:$0xff]
    %v4792 = vld [vmem:[#allocation2 + $0x268] sm:$0xff]
    %v4793 = vld [vmem:[#allocation2 + $0x270] sm:$0xff]
    %4794 = vmatprep.subr.mxu0 0.0
    %4795 = vmatpush1.msra.mxu0 %v4786
    %4796 = vmatprep.subr.mxu0 0.0
    %4797 = vmatpush1.msra.mxu0 %v4787
    %4798 = vmatprep.subr.mxu0 0.0
    %4799 = vmatpush1.msra.mxu0 %v4788
    %4800 = vmatprep.subr.mxu0 0.0
    %4801 = vmatpush1.msra.mxu0 %v4789
    %4802 = vmatprep.subr.mxu0 0.0
    %4803 = vmatpush1.msra.mxu0 %v4790
    %4804 = vmatprep.subr.mxu0 0.0
    %4805 = vmatpush1.msra.mxu0 %v4791
    %4806 = vmatprep.subr.mxu0 0.0
    %4807 = vmatpush1.msra.mxu0 %v4792
    %4808 = vmatprep.subr.mxu0 0.0
    %4809 = vmatpush1.msra.mxu0 %v4793
    %4810 = vmatprep.subr.mxu0 0.0
    %4811 = vmatpush1.msra.mxu0 0.0
    %4812 = vmatprep.subr.mxu0 0.0
    %4813 = vmatpush1.msra.mxu0 0.0
    %4814 = vmatprep.subr.mxu0 0.0
    %4815 = vmatpush1.msra.mxu0 0.0
    %4816 = vmatprep.subr.mxu0 0.0
    %4817 = vmatpush1.msra.mxu0 0.0
    %4818 = vmatprep.subr.mxu0 0.0
    %4819 = vmatpush1.msra.mxu0 0.0
    %4820 = vmatprep.subr.mxu0 0.0
    %4821 = vmatpush1.msra.mxu0 0.0
    %4822 = vmatprep.subr.mxu0 0.0
    %4823 = vmatpush1.msra.mxu0 0.0
    %4824 = vmatprep.subr.mxu0 0.0
    %4825 = vmatpush1.msra.mxu0 0.0
    %4826 = vmatprep.subr.mxu0 0.0
    %4827 = vmatpush1.msra.mxu0 0.0
    %4828 = vmatprep.subr.mxu0 0.0
    %4829 = vmatpush1.msra.mxu0 0.0
    %4830 = vmatprep.subr.mxu0 0.0
    %4831 = vmatpush1.msra.mxu0 0.0
    %4832 = vmatprep.subr.mxu0 0.0
    %4833 = vmatpush1.msra.mxu0 0.0
    %4834 = vmatprep.subr.mxu0 0.0
    %4835 = vmatpush1.msra.mxu0 0.0
    %4836 = vmatprep.subr.mxu0 0.0
    %4837 = vmatpush1.msra.mxu0 0.0
    %4838 = vmatprep.subr.mxu0 0.0
    %4839 = vmatpush1.msra.mxu0 0.0
    %4840 = vmatprep.subr.mxu0 0.0
    %4841 = vmatpush1.msra.mxu0 0.0
    %4842 = vmatprep.subr.mxu0 0.0
    %4843 = vmatpush1.msra.mxu0 0.0
    %4844 = vmatprep.subr.mxu0 0.0
    %4845 = vmatpush1.msra.mxu0 0.0
    %4846 = vmatprep.subr.mxu0 0.0
    %4847 = vmatpush1.msra.mxu0 0.0
    %4848 = vmatprep.subr.mxu0 0.0
    %4849 = vmatpush1.msra.mxu0 0.0
    %4850 = vmatprep.subr.mxu0 0.0
    %4851 = vmatpush1.msra.mxu0 0.0
    %4852 = vmatprep.subr.mxu0 0.0
    %4853 = vmatpush1.msra.mxu0 0.0
    %4854 = vmatprep.subr.mxu0 0.0
    %4855 = vmatpush1.msra.mxu0 0.0
    %4856 = vmatprep.subr.mxu0 0.0
    %4857 = vmatpush1.msra.mxu0 0.0
    %4858 = vmatprep.mubr.f32.mxu0 0.0
    %4859 = vmatmul.mubr.f32.gmra.mrb[0].mxu0 %v3949
    %v4860 = vpop.f32.mrb[0].mxu0
    %v4861 = vadd.f32 0.0, %v4860
    %v4862 = vpop.f32.mrb[0].mxu0
    %4863 = vmatprep.mubr.f32.mxu0 0.0
    %4864 = vmatmul.mubr.f32.gmra.mrb[0].mxu0 %v3952
    %v4865 = vpop.f32.mrb[0].mxu0
    %v4866 = vadd.f32 0.0, %v4865
    %v4867 = vpop.f32.mrb[0].mxu0
    %4868 = vmatprep.mubr.f32.mxu0 0.0
    %4869 = vmatmul.mubr.f32.gmra.mrb[0].mxu0 %v3955
    %v4870 = vpop.f32.mrb[0].mxu0
    %v4871 = vadd.f32 0.0, %v4870
    %v4872 = vpop.f32.mrb[0].mxu0
    %4873 = vmatprep.mubr.f32.mxu0 0.0
    %4874 = vmatmul.mubr.f32.gmra.mrb[0].mxu0 %v3958
    %v4875 = vpop.f32.mrb[0].mxu0
    %v4876 = vadd.f32 0.0, %v4875
    %v4877 = vpop.f32.mrb[0].mxu0
    %4878 = vmatprep.mubr.f32.mxu0 0.0
    %4879 = vmatmul.mubr.f32.gmra.mrb[0].mxu0 %v3961
    %v4880 = vpop.f32.mrb[0].mxu0
    %v4881 = vadd.f32 0.0, %v4880
    %v4882 = vpop.f32.mrb[0].mxu0
    %4883 = vmatprep.mubr.f32.mxu0 0.0
    %4884 = vmatmul.mubr.f32.gmra.mrb[0].mxu0 %v3964
    %v4885 = vpop.f32.mrb[0].mxu0
    %v4886 = vadd.f32 0.0, %v4885
    %v4887 = vpop.f32.mrb[0].mxu0
    %4888 = vmatprep.mubr.f32.mxu0 0.0
    %4889 = vmatmul.mubr.f32.gmra.mrb[0].mxu0 %v3967
    %v4890 = vpop.f32.mrb[0].mxu0
    %v4891 = vadd.f32 0.0, %v4890
    %v4892 = vpop.f32.mrb[0].mxu0
    %4893 = vmatprep.mubr.f32.mxu0 0.0
    %4894 = vmatmul.mubr.f32.gmra.mrb[0].mxu0 %v3970
    %v4895 = vpop.f32.mrb[0].mxu0
    %v4896 = vadd.f32 0.0, %v4895
    %v4897 = vpop.f32.mrb[0].mxu0
    %4898 = vmatprep.mubr.f32.mxu0 0.0
    %4899 = vmatmul.mubr.f32.gmra.mrb[0].mxu0 %v3973
    %v4900 = vpop.f32.mrb[0].mxu0
    %v4901 = vadd.f32 0.0, %v4900
    %v4902 = vpop.f32.mrb[0].mxu0
    %4903 = vmatprep.mubr.f32.mxu0 0.0
    %4904 = vmatmul.mubr.f32.gmra.mrb[0].mxu0 %v3976
    %v4905 = vpop.f32.mrb[0].mxu0
    %v4906 = vadd.f32 0.0, %v4905
    %v4907 = vpop.f32.mrb[0].mxu0
    %4908 = vmatprep.mubr.f32.mxu0 0.0
    %4909 = vmatmul.mubr.f32.gmra.mrb[0].mxu0 %v3979
    %v4910 = vpop.f32.mrb[0].mxu0
    %v4911 = vadd.f32 0.0, %v4910
    %v4912 = vpop.f32.mrb[0].mxu0
    %4913 = vmatprep.mubr.f32.mxu0 0.0
    %4914 = vmatmul.mubr.f32.gmra.mrb[0].mxu0 %v3982
    %v4915 = vpop.f32.mrb[0].mxu0
    %v4916 = vadd.f32 0.0, %v4915
    %v4917 = vpop.f32.mrb[0].mxu0
    %4918 = vmatprep.mubr.f32.mxu0 0.0
    %4919 = vmatmul.mubr.f32.gmra.mrb[0].mxu0 %v3985
    %v4920 = vpop.f32.mrb[0].mxu0
    %v4921 = vadd.f32 0.0, %v4920
    %v4922 = vpop.f32.mrb[0].mxu0
    %4923 = vmatprep.mubr.f32.mxu0 0.0
    %4924 = vmatmul.mubr.f32.gmra.mrb[0].mxu0 %v3988
    %v4925 = vpop.f32.mrb[0].mxu0
    %v4926 = vadd.f32 0.0, %v4925
    %v4927 = vpop.f32.mrb[0].mxu0
    %4928 = vmatprep.mubr.f32.mxu0 0.0
    %4929 = vmatmul.mubr.f32.gmra.mrb[0].mxu0 %v3991
    %v4930 = vpop.f32.mrb[0].mxu0
    %v4931 = vadd.f32 0.0, %v4930
    %v4932 = vpop.f32.mrb[0].mxu0
    %4933 = vmatprep.mubr.f32.mxu0 0.0
    %4934 = vmatmul.mubr.f32.gmra.mrb[0].mxu0 %v3994
    %v4935 = vpop.f32.mrb[0].mxu0
    %v4936 = vadd.f32 0.0, %v4935
    %v4937 = vpop.f32.mrb[0].mxu0
    %4938 = vdwg.mxu0
    %4939 = vmatprep.subr.mxu0 0.0
    %4940 = vmatpush1.msra.mxu0 %v4778
    %4941 = vmatprep.subr.mxu0 0.0
    %4942 = vmatpush1.msra.mxu0 %v4779
    %4943 = vmatprep.subr.mxu0 0.0
    %4944 = vmatpush1.msra.mxu0 %v4780
    %4945 = vmatprep.subr.mxu0 0.0
    %4946 = vmatpush1.msra.mxu0 %v4781
    %4947 = vmatprep.subr.mxu0 0.0
    %4948 = vmatpush1.msra.mxu0 %v4782
    %4949 = vmatprep.subr.mxu0 0.0
    %4950 = vmatpush1.msra.mxu0 %v4783
    %4951 = vmatprep.subr.mxu0 0.0
    %4952 = vmatpush1.msra.mxu0 %v4784
    %4953 = vmatprep.subr.mxu0 0.0
    %4954 = vmatpush1.msra.mxu0 %v4785
    %4955 = vmatprep.subr.mxu0 0.0
    %4956 = vmatpush1.msra.mxu0 0.0
    %4957 = vmatprep.subr.mxu0 0.0
    %4958 = vmatpush1.msra.mxu0 0.0
    %4959 = vmatprep.subr.mxu0 0.0
    %4960 = vmatpush1.msra.mxu0 0.0
    %4961 = vmatprep.subr.mxu0 0.0
    %4962 = vmatpush1.msra.mxu0 0.0
    %4963 = vmatprep.subr.mxu0 0.0
    %4964 = vmatpush1.msra.mxu0 0.0
    %4965 = vmatprep.subr.mxu0 0.0
    %4966 = vmatpush1.msra.mxu0 0.0
    %4967 = vmatprep.subr.mxu0 0.0
    %4968 = vmatpush1.msra.mxu0 0.0
    %4969 = vmatprep.subr.mxu0 0.0
    %4970 = vmatpush1.msra.mxu0 0.0
    %4971 = vmatprep.subr.mxu0 0.0
    %4972 = vmatpush1.msra.mxu0 0.0
    %4973 = vmatprep.subr.mxu0 0.0
    %4974 = vmatpush1.msra.mxu0 0.0
    %4975 = vmatprep.subr.mxu0 0.0
    %4976 = vmatpush1.msra.mxu0 0.0
    %4977 = vmatprep.subr.mxu0 0.0
    %4978 = vmatpush1.msra.mxu0 0.0
    %4979 = vmatprep.subr.mxu0 0.0
    %4980 = vmatpush1.msra.mxu0 0.0
    %4981 = vmatprep.subr.mxu0 0.0
    %4982 = vmatpush1.msra.mxu0 0.0
    %4983 = vmatprep.subr.mxu0 0.0
    %4984 = vmatpush1.msra.mxu0 0.0
    %4985 = vmatprep.subr.mxu0 0.0
    %4986 = vmatpush1.msra.mxu0 0.0
    %4987 = vmatprep.subr.mxu0 0.0
    %4988 = vmatpush1.msra.mxu0 0.0
    %4989 = vmatprep.subr.mxu0 0.0
    %4990 = vmatpush1.msra.mxu0 0.0
    %4991 = vmatprep.subr.mxu0 0.0
    %4992 = vmatpush1.msra.mxu0 0.0
    %4993 = vmatprep.subr.mxu0 0.0
    %4994 = vmatpush1.msra.mxu0 0.0
    %4995 = vmatprep.subr.mxu0 0.0
    %4996 = vmatpush1.msra.mxu0 0.0
    %4997 = vmatprep.subr.mxu0 0.0
    %4998 = vmatpush1.msra.mxu0 0.0
    %4999 = vmatprep.subr.mxu0 0.0
    %5000 = vmatpush1.msra.mxu0 0.0
    %5001 = vmatprep.subr.mxu0 0.0
    %5002 = vmatpush1.msra.mxu0 0.0
    %5003 = vmatprep.mubr.f32.mxu0 0.0
    %5004 = vmatmul.mubr.f32.gmra.mrb[0].mxu0 %v4142
    %v5005 = vpop.f32.mrb[0].mxu0
    %v5006 = vadd.f32 %v4861, %v5005
    %v5007 = vpop.f32.mrb[0].mxu0
    %5008 = vmatprep.mubr.f32.mxu0 0.0
    %5009 = vmatmul.mubr.f32.gmra.mrb[0].mxu0 %v4145
    %v5010 = vpop.f32.mrb[0].mxu0
    %v5011 = vadd.f32 %v4866, %v5010
    %v5012 = vpop.f32.mrb[0].mxu0
    %5013 = vmatprep.mubr.f32.mxu0 0.0
    %5014 = vmatmul.mubr.f32.gmra.mrb[0].mxu0 %v4148
    %v5015 = vpop.f32.mrb[0].mxu0
    %v5016 = vadd.f32 %v4871, %v5015
    %v5017 = vpop.f32.mrb[0].mxu0
    %5018 = vmatprep.mubr.f32.mxu0 0.0
    %5019 = vmatmul.mubr.f32.gmra.mrb[0].mxu0 %v4151
    %v5020 = vpop.f32.mrb[0].mxu0
    %v5021 = vadd.f32 %v4876, %v5020
    %v5022 = vpop.f32.mrb[0].mxu0
    %5023 = vmatprep.mubr.f32.mxu0 0.0
    %5024 = vmatmul.mubr.f32.gmra.mrb[0].mxu0 %v4154
    %v5025 = vpop.f32.mrb[0].mxu0
    %v5026 = vadd.f32 %v4881, %v5025
    %v5027 = vpop.f32.mrb[0].mxu0
    %5028 = vmatprep.mubr.f32.mxu0 0.0
    %5029 = vmatmul.mubr.f32.gmra.mrb[0].mxu0 %v4157
    %v5030 = vpop.f32.mrb[0].mxu0
    %v5031 = vadd.f32 %v4886, %v5030
    %v5032 = vpop.f32.mrb[0].mxu0
    %5033 = vmatprep.mubr.f32.mxu0 0.0
    %5034 = vmatmul.mubr.f32.gmra.mrb[0].mxu0 %v4160
    %v5035 = vpop.f32.mrb[0].mxu0
    %v5036 = vadd.f32 %v4891, %v5035
    %v5037 = vpop.f32.mrb[0].mxu0
    %5038 = vmatprep.mubr.f32.mxu0 0.0
    %5039 = vmatmul.mubr.f32.gmra.mrb[0].mxu0 %v4163
    %v5040 = vpop.f32.mrb[0].mxu0
    %v5041 = vadd.f32 %v4896, %v5040
    %v5042 = vpop.f32.mrb[0].mxu0
    %5043 = vmatprep.mubr.f32.mxu0 0.0
    %5044 = vmatmul.mubr.f32.gmra.mrb[0].mxu0 %v4166
    %v5045 = vpop.f32.mrb[0].mxu0
    %v5046 = vadd.f32 %v4901, %v5045
    %v5047 = vpop.f32.mrb[0].mxu0
    %5048 = vmatprep.mubr.f32.mxu0 0.0
    %5049 = vmatmul.mubr.f32.gmra.mrb[0].mxu0 %v4169
    %v5050 = vpop.f32.mrb[0].mxu0
    %v5051 = vadd.f32 %v4906, %v5050
    %v5052 = vpop.f32.mrb[0].mxu0
    %5053 = vmatprep.mubr.f32.mxu0 0.0
    %5054 = vmatmul.mubr.f32.gmra.mrb[0].mxu0 %v4172
    %v5055 = vpop.f32.mrb[0].mxu0
    %v5056 = vadd.f32 %v4911, %v5055
    %v5057 = vpop.f32.mrb[0].mxu0
    %5058 = vmatprep.mubr.f32.mxu0 0.0
    %5059 = vmatmul.mubr.f32.gmra.mrb[0].mxu0 %v4175
    %v5060 = vpop.f32.mrb[0].mxu0
    %v5061 = vadd.f32 %v4916, %v5060
    %v5062 = vpop.f32.mrb[0].mxu0
    %5063 = vmatprep.mubr.f32.mxu0 0.0
    %5064 = vmatmul.mubr.f32.gmra.mrb[0].mxu0 %v4178
    %v5065 = vpop.f32.mrb[0].mxu0
    %v5066 = vadd.f32 %v4921, %v5065
    %v5067 = vpop.f32.mrb[0].mxu0
    %5068 = vmatprep.mubr.f32.mxu0 0.0
    %5069 = vmatmul.mubr.f32.gmra.mrb[0].mxu0 %v4181
    %v5070 = vpop.f32.mrb[0].mxu0
    %v5071 = vadd.f32 %v4926, %v5070
    %v5072 = vpop.f32.mrb[0].mxu0
    %5073 = vmatprep.mubr.f32.mxu0 0.0
    %5074 = vmatmul.mubr.f32.gmra.mrb[0].mxu0 %v4184
    %v5075 = vpop.f32.mrb[0].mxu0
    %v5076 = vadd.f32 %v4931, %v5075
    %v5077 = vpop.f32.mrb[0].mxu0
    %5078 = vmatprep.mubr.f32.mxu0 0.0
    %5079 = vmatmul.mubr.f32.gmra.mrb[0].mxu0 %v4187
    %v5080 = vpop.f32.mrb[0].mxu0
    %v5081 = vadd.f32 %v4936, %v5080
    %v5082 = vpop.f32.mrb[0].mxu0
    %5083 = vdwg.mxu0
    %v5084 = vld [vmem:[#allocation2 + $0x278] sm:$0xff]
    %v5085 = vld [vmem:[#allocation2 + $0x280] sm:$0xff]
    %v5086 = vld [vmem:[#allocation2 + $0x288] sm:$0xff]
    %v5087 = vld [vmem:[#allocation2 + $0x290] sm:$0xff]
    %v5088 = vld [vmem:[#allocation2 + $0x298] sm:$0xff]
    %v5089 = vld [vmem:[#allocation2 + $0x2a0] sm:$0xff]
    %v5090 = vld [vmem:[#allocation2 + $0x2a8] sm:$0xff]
    %v5091 = vld [vmem:[#allocation2 + $0x2b0] sm:$0xff]
    %5092 = vmatprep.subr.mxu0 0.0
    %5093 = vmatpush1.msra.mxu0 %v5084
    %5094 = vmatprep.subr.mxu0 0.0
    %5095 = vmatpush1.msra.mxu0 %v5085
    %5096 = vmatprep.subr.mxu0 0.0
    %5097 = vmatpush1.msra.mxu0 %v5086
    %5098 = vmatprep.subr.mxu0 0.0
    %5099 = vmatpush1.msra.mxu0 %v5087
    %5100 = vmatprep.subr.mxu0 0.0
    %5101 = vmatpush1.msra.mxu0 %v5088
    %5102 = vmatprep.subr.mxu0 0.0
    %5103 = vmatpush1.msra.mxu0 %v5089
    %5104 = vmatprep.subr.mxu0 0.0
    %5105 = vmatpush1.msra.mxu0 %v5090
    %5106 = vmatprep.subr.mxu0 0.0
    %5107 = vmatpush1.msra.mxu0 %v5091
    %5108 = vmatprep.subr.mxu0 0.0
    %5109 = vmatpush1.msra.mxu0 0.0
    %5110 = vmatprep.subr.mxu0 0.0
    %5111 = vmatpush1.msra.mxu0 0.0
    %5112 = vmatprep.subr.mxu0 0.0
    %5113 = vmatpush1.msra.mxu0 0.0
    %5114 = vmatprep.subr.mxu0 0.0
    %5115 = vmatpush1.msra.mxu0 0.0
    %5116 = vmatprep.subr.mxu0 0.0
    %5117 = vmatpush1.msra.mxu0 0.0
    %5118 = vmatprep.subr.mxu0 0.0
    %5119 = vmatpush1.msra.mxu0 0.0
    %5120 = vmatprep.subr.mxu0 0.0
    %5121 = vmatpush1.msra.mxu0 0.0
    %5122 = vmatprep.subr.mxu0 0.0
    %5123 = vmatpush1.msra.mxu0 0.0
    %5124 = vmatprep.subr.mxu0 0.0
    %5125 = vmatpush1.msra.mxu0 0.0
    %5126 = vmatprep.subr.mxu0 0.0
    %5127 = vmatpush1.msra.mxu0 0.0
    %5128 = vmatprep.subr.mxu0 0.0
    %5129 = vmatpush1.msra.mxu0 0.0
    %5130 = vmatprep.subr.mxu0 0.0
    %5131 = vmatpush1.msra.mxu0 0.0
    %5132 = vmatprep.subr.mxu0 0.0
    %5133 = vmatpush1.msra.mxu0 0.0
    %5134 = vmatprep.subr.mxu0 0.0
    %5135 = vmatpush1.msra.mxu0 0.0
    %5136 = vmatprep.subr.mxu0 0.0
    %5137 = vmatpush1.msra.mxu0 0.0
    %5138 = vmatprep.subr.mxu0 0.0
    %5139 = vmatpush1.msra.mxu0 0.0
    %5140 = vmatprep.subr.mxu0 0.0
    %5141 = vmatpush1.msra.mxu0 0.0
    %5142 = vmatprep.subr.mxu0 0.0
    %5143 = vmatpush1.msra.mxu0 0.0
    %5144 = vmatprep.subr.mxu0 0.0
    %5145 = vmatpush1.msra.mxu0 0.0
    %5146 = vmatprep.subr.mxu0 0.0
    %5147 = vmatpush1.msra.mxu0 0.0
    %5148 = vmatprep.subr.mxu0 0.0
    %5149 = vmatpush1.msra.mxu0 0.0
    %5150 = vmatprep.subr.mxu0 0.0
    %5151 = vmatpush1.msra.mxu0 0.0
    %5152 = vmatprep.subr.mxu0 0.0
    %5153 = vmatpush1.msra.mxu0 0.0
    %5154 = vmatprep.subr.mxu0 0.0
    %5155 = vmatpush1.msra.mxu0 0.0
    %5156 = vmatprep.mubr.f32.mxu0 0.0
    %5157 = vmatmul.mubr.f32.gmra.mrb[0].mxu0 %v4343
    %v5158 = vpop.f32.mrb[0].mxu0
    %v5159 = vadd.f32 0.0, %v5158
    %v5160 = vpop.f32.mrb[0].mxu0
    %5161 = vmatprep.mubr.f32.mxu0 0.0
    %5162 = vmatmul.mubr.f32.gmra.mrb[0].mxu0 %v4346
    %v5163 = vpop.f32.mrb[0].mxu0
    %v5164 = vadd.f32 0.0, %v5163
    %v5165 = vpop.f32.mrb[0].mxu0
    %5166 = vmatprep.mubr.f32.mxu0 0.0
    %5167 = vmatmul.mubr.f32.gmra.mrb[0].mxu0 %v4349
    %v5168 = vpop.f32.mrb[0].mxu0
    %v5169 = vadd.f32 0.0, %v5168
    %v5170 = vpop.f32.mrb[0].mxu0
    %5171 = vmatprep.mubr.f32.mxu0 0.0
    %5172 = vmatmul.mubr.f32.gmra.mrb[0].mxu0 %v4352
    %v5173 = vpop.f32.mrb[0].mxu0
    %v5174 = vadd.f32 0.0, %v5173
    %v5175 = vpop.f32.mrb[0].mxu0
    %5176 = vmatprep.mubr.f32.mxu0 0.0
    %5177 = vmatmul.mubr.f32.gmra.mrb[0].mxu0 %v4355
    %v5178 = vpop.f32.mrb[0].mxu0
    %v5179 = vadd.f32 0.0, %v5178
    %v5180 = vpop.f32.mrb[0].mxu0
    %5181 = vmatprep.mubr.f32.mxu0 0.0
    %5182 = vmatmul.mubr.f32.gmra.mrb[0].mxu0 %v4358
    %v5183 = vpop.f32.mrb[0].mxu0
    %v5184 = vadd.f32 0.0, %v5183
    %v5185 = vpop.f32.mrb[0].mxu0
    %5186 = vmatprep.mubr.f32.mxu0 0.0
    %5187 = vmatmul.mubr.f32.gmra.mrb[0].mxu0 %v4361
    %v5188 = vpop.f32.mrb[0].mxu0
    %v5189 = vadd.f32 0.0, %v5188
    %v5190 = vpop.f32.mrb[0].mxu0
    %5191 = vmatprep.mubr.f32.mxu0 0.0
    %5192 = vmatmul.mubr.f32.gmra.mrb[0].mxu0 %v4364
    %v5193 = vpop.f32.mrb[0].mxu0
    %v5194 = vadd.f32 0.0, %v5193
    %v5195 = vpop.f32.mrb[0].mxu0
    %5196 = vmatprep.mubr.f32.mxu0 0.0
    %5197 = vmatmul.mubr.f32.gmra.mrb[0].mxu0 %v4367
    %v5198 = vpop.f32.mrb[0].mxu0
    %v5199 = vadd.f32 0.0, %v5198
    %v5200 = vpop.f32.mrb[0].mxu0
    %5201 = vmatprep.mubr.f32.mxu0 0.0
    %5202 = vmatmul.mubr.f32.gmra.mrb[0].mxu0 %v4370
    %v5203 = vpop.f32.mrb[0].mxu0
    %v5204 = vadd.f32 0.0, %v5203
    %v5205 = vpop.f32.mrb[0].mxu0
    %5206 = vmatprep.mubr.f32.mxu0 0.0
    %5207 = vmatmul.mubr.f32.gmra.mrb[0].mxu0 %v4373
    %v5208 = vpop.f32.mrb[0].mxu0
    %v5209 = vadd.f32 0.0, %v5208
    %v5210 = vpop.f32.mrb[0].mxu0
    %5211 = vmatprep.mubr.f32.mxu0 0.0
    %5212 = vmatmul.mubr.f32.gmra.mrb[0].mxu0 %v4376
    %v5213 = vpop.f32.mrb[0].mxu0
    %v5214 = vadd.f32 0.0, %v5213
    %v5215 = vpop.f32.mrb[0].mxu0
    %5216 = vmatprep.mubr.f32.mxu0 0.0
    %5217 = vmatmul.mubr.f32.gmra.mrb[0].mxu0 %v4379
    %v5218 = vpop.f32.mrb[0].mxu0
    %v5219 = vadd.f32 0.0, %v5218
    %v5220 = vpop.f32.mrb[0].mxu0
    %5221 = vmatprep.mubr.f32.mxu0 0.0
    %5222 = vmatmul.mubr.f32.gmra.mrb[0].mxu0 %v4382
    %v5223 = vpop.f32.mrb[0].mxu0
    %v5224 = vadd.f32 0.0, %v5223
    %v5225 = vpop.f32.mrb[0].mxu0
    %5226 = vmatprep.mubr.f32.mxu0 0.0
    %5227 = vmatmul.mubr.f32.gmra.mrb[0].mxu0 %v4385
    %v5228 = vpop.f32.mrb[0].mxu0
    %v5229 = vadd.f32 0.0, %v5228
    %v5230 = vpop.f32.mrb[0].mxu0
    %5231 = vmatprep.mubr.f32.mxu0 0.0
    %5232 = vmatmul.mubr.f32.gmra.mrb[0].mxu0 %v4388
    %v5233 = vpop.f32.mrb[0].mxu0
    %v5234 = vadd.f32 0.0, %v5233
    %v5235 = vpop.f32.mrb[0].mxu0
    %5236 = vdwg.mxu0
    %v5237 = vadd.f32 %v5006, %v5159
    %v5238 = vadd.f32 %v5011, %v5164
    %v5239 = vadd.f32 %v5016, %v5169
    %v5240 = vadd.f32 %v5021, %v5174
    %v5241 = vadd.f32 %v5026, %v5179
    %v5242 = vadd.f32 %v5031, %v5184
    %v5243 = vadd.f32 %v5036, %v5189
    %v5244 = vadd.f32 %v5041, %v5194
    %v5245 = vadd.f32 %v5046, %v5199
    %v5246 = vadd.f32 %v5051, %v5204
    %v5247 = vadd.f32 %v5056, %v5209
    %v5248 = vadd.f32 %v5061, %v5214
    %v5249 = vadd.f32 %v5066, %v5219
    %v5250 = vadd.f32 %v5071, %v5224
    %v5251 = vadd.f32 %v5076, %v5229
    %v5252 = vadd.f32 %v5081, %v5234
    %v5253 = vld [vmem:[#allocation2 + $0x2f8] sm:$0x1]
    %v5254 = vlaneseq
    %v5255 = vshrl.u32 %v5254, 7
    %v5256 = vsub.s32 0, %v5255
    %v5257 = vrot.slane %v5253, %v5256
    %v5258 = vadd.f32 %v5237, %v5257
    %v5259 = vadd.f32 %v5238, %v5257
    %v5260 = vadd.f32 %v5239, %v5257
    %v5261 = vadd.f32 %v5240, %v5257
    %v5262 = vadd.f32 %v5241, %v5257
    %v5263 = vadd.f32 %v5242, %v5257
    %v5264 = vadd.f32 %v5243, %v5257
    %v5265 = vadd.f32 %v5244, %v5257
    %v5266 = vadd.f32 %v5245, %v5257
    %v5267 = vadd.f32 %v5246, %v5257
    %v5268 = vadd.f32 %v5247, %v5257
    %v5269 = vadd.f32 %v5248, %v5257
    %v5270 = vadd.f32 %v5249, %v5257
    %v5271 = vadd.f32 %v5250, %v5257
    %v5272 = vadd.f32 %v5251, %v5257
    %v5273 = vadd.f32 %v5252, %v5257
    %v5274 = vld [vmem:[#allocation2 + $0x2b8] sm:$0xff]
    %v5275 = vld [vmem:[#allocation2 + $0x2c0] sm:$0xff]
    %v5276 = vld [vmem:[#allocation2 + $0x2c8] sm:$0xff]
    %v5277 = vld [vmem:[#allocation2 + $0x2d0] sm:$0xff]
    %v5278 = vld [vmem:[#allocation2 + $0x2d8] sm:$0xff]
    %v5279 = vld [vmem:[#allocation2 + $0x2e0] sm:$0xff]
    %v5280 = vld [vmem:[#allocation2 + $0x2e8] sm:$0xff]
    %v5281 = vld [vmem:[#allocation2 + $0x2f0] sm:$0xff]
    %v5282 = vld [vmem:[#allocation2 + $0x300] sm:$0x1]
    %v5283 = vlaneseq
    %v5284 = vshrl.u32 %v5283, 7
    %v5285 = vsub.s32 0, %v5284
    %v5286 = vrot.slane %v5282, %v5285
    %5287 = vmatprep.subr.mxu0 0.0
    %5288 = vmatpush1.msra.mxu0 %v5274
    %5289 = vmatprep.subr.mxu0 0.0
    %5290 = vmatpush1.msra.mxu0 %v5275
    %5291 = vmatprep.subr.mxu0 0.0
    %5292 = vmatpush1.msra.mxu0 %v5276
    %5293 = vmatprep.subr.mxu0 0.0
    %5294 = vmatpush1.msra.mxu0 %v5277
    %5295 = vmatprep.subr.mxu0 0.0
    %5296 = vmatpush1.msra.mxu0 %v5278
    %5297 = vmatprep.subr.mxu0 0.0
    %5298 = vmatpush1.msra.mxu0 %v5279
    %5299 = vmatprep.subr.mxu0 0.0
    %5300 = vmatpush1.msra.mxu0 %v5280
    %5301 = vmatprep.subr.mxu0 0.0
    %5302 = vmatpush1.msra.mxu0 %v5281
    %5303 = vmatprep.subr.mxu0 0.0
    %5304 = vmatpush1.msra.mxu0 0.0
    %5305 = vmatprep.subr.mxu0 0.0
    %5306 = vmatpush1.msra.mxu0 0.0
    %5307 = vmatprep.subr.mxu0 0.0
    %5308 = vmatpush1.msra.mxu0 0.0
    %5309 = vmatprep.subr.mxu0 0.0
    %5310 = vmatpush1.msra.mxu0 0.0
    %5311 = vmatprep.subr.mxu0 0.0
    %5312 = vmatpush1.msra.mxu0 0.0
    %5313 = vmatprep.subr.mxu0 0.0
    %5314 = vmatpush1.msra.mxu0 0.0
    %5315 = vmatprep.subr.mxu0 0.0
    %5316 = vmatpush1.msra.mxu0 0.0
    %5317 = vmatprep.subr.mxu0 0.0
    %5318 = vmatpush1.msra.mxu0 0.0
    %5319 = vmatprep.subr.mxu0 0.0
    %5320 = vmatpush1.msra.mxu0 0.0
    %5321 = vmatprep.subr.mxu0 0.0
    %5322 = vmatpush1.msra.mxu0 0.0
    %5323 = vmatprep.subr.mxu0 0.0
    %5324 = vmatpush1.msra.mxu0 0.0
    %5325 = vmatprep.subr.mxu0 0.0
    %5326 = vmatpush1.msra.mxu0 0.0
    %5327 = vmatprep.subr.mxu0 0.0
    %5328 = vmatpush1.msra.mxu0 0.0
    %5329 = vmatprep.subr.mxu0 0.0
    %5330 = vmatpush1.msra.mxu0 0.0
    %5331 = vmatprep.subr.mxu0 0.0
    %5332 = vmatpush1.msra.mxu0 0.0
    %5333 = vmatprep.subr.mxu0 0.0
    %5334 = vmatpush1.msra.mxu0 0.0
    %5335 = vmatprep.subr.mxu0 0.0
    %5336 = vmatpush1.msra.mxu0 0.0
    %5337 = vmatprep.subr.mxu0 0.0
    %5338 = vmatpush1.msra.mxu0 0.0
    %5339 = vmatprep.subr.mxu0 0.0
    %5340 = vmatpush1.msra.mxu0 0.0
    %5341 = vmatprep.subr.mxu0 0.0
    %5342 = vmatpush1.msra.mxu0 0.0
    %5343 = vmatprep.subr.mxu0 0.0
    %5344 = vmatpush1.msra.mxu0 0.0
    %5345 = vmatprep.subr.mxu0 0.0
    %5346 = vmatpush1.msra.mxu0 0.0
    %5347 = vmatprep.subr.mxu0 0.0
    %5348 = vmatpush1.msra.mxu0 0.0
    %5349 = vmatprep.subr.mxu0 0.0
    %5350 = vmatpush1.msra.mxu0 0.0
    %5351 = vmatprep.mubr.f32.mxu0 0.0
    %5352 = vmatmul.mubr.f32.gmra.mrb[0].mxu0 %v4586
    %v5353 = vpop.f32.mrb[0].mxu0
    %v5354 = vadd.f32 %v5286, %v5353
    %v5355 = vpop.f32.mrb[0].mxu0
    %5356 = vmatprep.mubr.f32.mxu0 0.0
    %5357 = vmatmul.mubr.f32.gmra.mrb[0].mxu0 %v4589
    %v5358 = vpop.f32.mrb[0].mxu0
    %v5359 = vadd.f32 %v5286, %v5358
    %v5360 = vpop.f32.mrb[0].mxu0
    %5361 = vmatprep.mubr.f32.mxu0 0.0
    %5362 = vmatmul.mubr.f32.gmra.mrb[0].mxu0 %v4592
    %v5363 = vpop.f32.mrb[0].mxu0
    %v5364 = vadd.f32 %v5286, %v5363
    %v5365 = vpop.f32.mrb[0].mxu0
    %5366 = vmatprep.mubr.f32.mxu0 0.0
    %5367 = vmatmul.mubr.f32.gmra.mrb[0].mxu0 %v4595
    %v5368 = vpop.f32.mrb[0].mxu0
    %v5369 = vadd.f32 %v5286, %v5368
    %v5370 = vpop.f32.mrb[0].mxu0
    %5371 = vmatprep.mubr.f32.mxu0 0.0
    %5372 = vmatmul.mubr.f32.gmra.mrb[0].mxu0 %v4598
    %v5373 = vpop.f32.mrb[0].mxu0
    %v5374 = vadd.f32 %v5286, %v5373
    %v5375 = vpop.f32.mrb[0].mxu0
    %5376 = vmatprep.mubr.f32.mxu0 0.0
    %5377 = vmatmul.mubr.f32.gmra.mrb[0].mxu0 %v4601
    %v5378 = vpop.f32.mrb[0].mxu0
    %v5379 = vadd.f32 %v5286, %v5378
    %v5380 = vpop.f32.mrb[0].mxu0
    %5381 = vmatprep.mubr.f32.mxu0 0.0
    %5382 = vmatmul.mubr.f32.gmra.mrb[0].mxu0 %v4604
    %v5383 = vpop.f32.mrb[0].mxu0
    %v5384 = vadd.f32 %v5286, %v5383
    %v5385 = vpop.f32.mrb[0].mxu0
    %5386 = vmatprep.mubr.f32.mxu0 0.0
    %5387 = vmatmul.mubr.f32.gmra.mrb[0].mxu0 %v4607
    %v5388 = vpop.f32.mrb[0].mxu0
    %v5389 = vadd.f32 %v5286, %v5388
    %v5390 = vpop.f32.mrb[0].mxu0
    %5391 = vmatprep.mubr.f32.mxu0 0.0
    %5392 = vmatmul.mubr.f32.gmra.mrb[0].mxu0 %v4610
    %v5393 = vpop.f32.mrb[0].mxu0
    %v5394 = vadd.f32 %v5286, %v5393
    %v5395 = vpop.f32.mrb[0].mxu0
    %5396 = vmatprep.mubr.f32.mxu0 0.0
    %5397 = vmatmul.mubr.f32.gmra.mrb[0].mxu0 %v4613
    %v5398 = vpop.f32.mrb[0].mxu0
    %v5399 = vadd.f32 %v5286, %v5398
    %v5400 = vpop.f32.mrb[0].mxu0
    %5401 = vmatprep.mubr.f32.mxu0 0.0
    %5402 = vmatmul.mubr.f32.gmra.mrb[0].mxu0 %v4616
    %v5403 = vpop.f32.mrb[0].mxu0
    %v5404 = vadd.f32 %v5286, %v5403
    %v5405 = vpop.f32.mrb[0].mxu0
    %5406 = vmatprep.mubr.f32.mxu0 0.0
    %5407 = vmatmul.mubr.f32.gmra.mrb[0].mxu0 %v4619
    %v5408 = vpop.f32.mrb[0].mxu0
    %v5409 = vadd.f32 %v5286, %v5408
    %v5410 = vpop.f32.mrb[0].mxu0
    %5411 = vmatprep.mubr.f32.mxu0 0.0
    %5412 = vmatmul.mubr.f32.gmra.mrb[0].mxu0 %v4622
    %v5413 = vpop.f32.mrb[0].mxu0
    %v5414 = vadd.f32 %v5286, %v5413
    %v5415 = vpop.f32.mrb[0].mxu0
    %5416 = vmatprep.mubr.f32.mxu0 0.0
    %5417 = vmatmul.mubr.f32.gmra.mrb[0].mxu0 %v4625
    %v5418 = vpop.f32.mrb[0].mxu0
    %v5419 = vadd.f32 %v5286, %v5418
    %v5420 = vpop.f32.mrb[0].mxu0
    %5421 = vmatprep.mubr.f32.mxu0 0.0
    %5422 = vmatmul.mubr.f32.gmra.mrb[0].mxu0 %v4628
    %v5423 = vpop.f32.mrb[0].mxu0
    %v5424 = vadd.f32 %v5286, %v5423
    %v5425 = vpop.f32.mrb[0].mxu0
    %5426 = vmatprep.mubr.f32.mxu0 0.0
    %5427 = vmatmul.mubr.f32.gmra.mrb[0].mxu0 %v4631
    %v5428 = vpop.f32.mrb[0].mxu0
    %v5429 = vadd.f32 %v5286, %v5428
    %v5430 = vpop.f32.mrb[0].mxu0
    %5431 = vdwg.mxu0
    %v5432 = vld [vmem:[#allocation2 + $0x308] sm:$0xff]
    %v5433 = vld [vmem:[#allocation2 + $0x310] sm:$0xff]
    %v5434 = vld [vmem:[#allocation2 + $0x318] sm:$0xff]
    %v5435 = vld [vmem:[#allocation2 + $0x320] sm:$0xff]
    %v5436 = vld [vmem:[#allocation2 + $0x328] sm:$0xff]
    %v5437 = vld [vmem:[#allocation2 + $0x330] sm:$0xff]
    %v5438 = vld [vmem:[#allocation2 + $0x338] sm:$0xff]
    %v5439 = vld [vmem:[#allocation2 + $0x340] sm:$0xff]
    %v5440 = vld [vmem:[#allocation2 + $0x348] sm:$0xff]
    %v5441 = vld [vmem:[#allocation2 + $0x350] sm:$0xff]
    %v5442 = vld [vmem:[#allocation2 + $0x358] sm:$0xff]
    %v5443 = vld [vmem:[#allocation2 + $0x360] sm:$0xff]
    %v5444 = vld [vmem:[#allocation2 + $0x368] sm:$0xff]
    %v5445 = vld [vmem:[#allocation2 + $0x370] sm:$0xff]
    %v5446 = vld [vmem:[#allocation2 + $0x378] sm:$0xff]
    %v5447 = vld [vmem:[#allocation2 + $0x380] sm:$0xff]
    %5448 = vmatprep.subr.mxu0 0.0
    %5449 = vmatpush1.msra.mxu0 %v5440
    %5450 = vmatprep.subr.mxu0 0.0
    %5451 = vmatpush1.msra.mxu0 %v5441
    %5452 = vmatprep.subr.mxu0 0.0
    %5453 = vmatpush1.msra.mxu0 %v5442
    %5454 = vmatprep.subr.mxu0 0.0
    %5455 = vmatpush1.msra.mxu0 %v5443
    %5456 = vmatprep.subr.mxu0 0.0
    %5457 = vmatpush1.msra.mxu0 %v5444
    %5458 = vmatprep.subr.mxu0 0.0
    %5459 = vmatpush1.msra.mxu0 %v5445
    %5460 = vmatprep.subr.mxu0 0.0
    %5461 = vmatpush1.msra.mxu0 %v5446
    %5462 = vmatprep.subr.mxu0 0.0
    %5463 = vmatpush1.msra.mxu0 %v5447
    %5464 = vmatprep.subr.mxu0 0.0
    %5465 = vmatpush1.msra.mxu0 0.0
    %5466 = vmatprep.subr.mxu0 0.0
    %5467 = vmatpush1.msra.mxu0 0.0
    %5468 = vmatprep.subr.mxu0 0.0
    %5469 = vmatpush1.msra.mxu0 0.0
    %5470 = vmatprep.subr.mxu0 0.0
    %5471 = vmatpush1.msra.mxu0 0.0
    %5472 = vmatprep.subr.mxu0 0.0
    %5473 = vmatpush1.msra.mxu0 0.0
    %5474 = vmatprep.subr.mxu0 0.0
    %5475 = vmatpush1.msra.mxu0 0.0
    %5476 = vmatprep.subr.mxu0 0.0
    %5477 = vmatpush1.msra.mxu0 0.0
    %5478 = vmatprep.subr.mxu0 0.0
    %5479 = vmatpush1.msra.mxu0 0.0
    %5480 = vmatprep.subr.mxu0 0.0
    %5481 = vmatpush1.msra.mxu0 0.0
    %5482 = vmatprep.subr.mxu0 0.0
    %5483 = vmatpush1.msra.mxu0 0.0
    %5484 = vmatprep.subr.mxu0 0.0
    %5485 = vmatpush1.msra.mxu0 0.0
    %5486 = vmatprep.subr.mxu0 0.0
    %5487 = vmatpush1.msra.mxu0 0.0
    %5488 = vmatprep.subr.mxu0 0.0
    %5489 = vmatpush1.msra.mxu0 0.0
    %5490 = vmatprep.subr.mxu0 0.0
    %5491 = vmatpush1.msra.mxu0 0.0
    %5492 = vmatprep.subr.mxu0 0.0
    %5493 = vmatpush1.msra.mxu0 0.0
    %5494 = vmatprep.subr.mxu0 0.0
    %5495 = vmatpush1.msra.mxu0 0.0
    %5496 = vmatprep.subr.mxu0 0.0
    %5497 = vmatpush1.msra.mxu0 0.0
    %5498 = vmatprep.subr.mxu0 0.0
    %5499 = vmatpush1.msra.mxu0 0.0
    %5500 = vmatprep.subr.mxu0 0.0
    %5501 = vmatpush1.msra.mxu0 0.0
    %5502 = vmatprep.subr.mxu0 0.0
    %5503 = vmatpush1.msra.mxu0 0.0
    %5504 = vmatprep.subr.mxu0 0.0
    %5505 = vmatpush1.msra.mxu0 0.0
    %5506 = vmatprep.subr.mxu0 0.0
    %5507 = vmatpush1.msra.mxu0 0.0
    %5508 = vmatprep.subr.mxu0 0.0
    %5509 = vmatpush1.msra.mxu0 0.0
    %5510 = vmatprep.subr.mxu0 0.0
    %5511 = vmatpush1.msra.mxu0 0.0
    %5512 = vmatprep.mubr.f32.mxu0 0.0
    %5513 = vmatmul.mubr.f32.gmra.mrb[0].mxu0 %v3949
    %v5514 = vpop.f32.mrb[0].mxu0
    %v5515 = vadd.f32 0.0, %v5514
    %v5516 = vpop.f32.mrb[0].mxu0
    %5517 = vmatprep.mubr.f32.mxu0 0.0
    %5518 = vmatmul.mubr.f32.gmra.mrb[0].mxu0 %v3952
    %v5519 = vpop.f32.mrb[0].mxu0
    %v5520 = vadd.f32 0.0, %v5519
    %v5521 = vpop.f32.mrb[0].mxu0
    %5522 = vmatprep.mubr.f32.mxu0 0.0
    %5523 = vmatmul.mubr.f32.gmra.mrb[0].mxu0 %v3955
    %v5524 = vpop.f32.mrb[0].mxu0
    %v5525 = vadd.f32 0.0, %v5524
    %v5526 = vpop.f32.mrb[0].mxu0
    %5527 = vmatprep.mubr.f32.mxu0 0.0
    %5528 = vmatmul.mubr.f32.gmra.mrb[0].mxu0 %v3958
    %v5529 = vpop.f32.mrb[0].mxu0
    %v5530 = vadd.f32 0.0, %v5529
    %v5531 = vpop.f32.mrb[0].mxu0
    %5532 = vmatprep.mubr.f32.mxu0 0.0
    %5533 = vmatmul.mubr.f32.gmra.mrb[0].mxu0 %v3961
    %v5534 = vpop.f32.mrb[0].mxu0
    %v5535 = vadd.f32 0.0, %v5534
    %v5536 = vpop.f32.mrb[0].mxu0
    %5537 = vmatprep.mubr.f32.mxu0 0.0
    %5538 = vmatmul.mubr.f32.gmra.mrb[0].mxu0 %v3964
    %v5539 = vpop.f32.mrb[0].mxu0
    %v5540 = vadd.f32 0.0, %v5539
    %v5541 = vpop.f32.mrb[0].mxu0
    %5542 = vmatprep.mubr.f32.mxu0 0.0
    %5543 = vmatmul.mubr.f32.gmra.mrb[0].mxu0 %v3967
    %v5544 = vpop.f32.mrb[0].mxu0
    %v5545 = vadd.f32 0.0, %v5544
    %v5546 = vpop.f32.mrb[0].mxu0
    %5547 = vmatprep.mubr.f32.mxu0 0.0
    %5548 = vmatmul.mubr.f32.gmra.mrb[0].mxu0 %v3970
    %v5549 = vpop.f32.mrb[0].mxu0
    %v5550 = vadd.f32 0.0, %v5549
    %v5551 = vpop.f32.mrb[0].mxu0
    %5552 = vmatprep.mubr.f32.mxu0 0.0
    %5553 = vmatmul.mubr.f32.gmra.mrb[0].mxu0 %v3973
    %v5554 = vpop.f32.mrb[0].mxu0
    %v5555 = vadd.f32 0.0, %v5554
    %v5556 = vpop.f32.mrb[0].mxu0
    %5557 = vmatprep.mubr.f32.mxu0 0.0
    %5558 = vmatmul.mubr.f32.gmra.mrb[0].mxu0 %v3976
    %v5559 = vpop.f32.mrb[0].mxu0
    %v5560 = vadd.f32 0.0, %v5559
    %v5561 = vpop.f32.mrb[0].mxu0
    %5562 = vmatprep.mubr.f32.mxu0 0.0
    %5563 = vmatmul.mubr.f32.gmra.mrb[0].mxu0 %v3979
    %v5564 = vpop.f32.mrb[0].mxu0
    %v5565 = vadd.f32 0.0, %v5564
    %v5566 = vpop.f32.mrb[0].mxu0
    %5567 = vmatprep.mubr.f32.mxu0 0.0
    %5568 = vmatmul.mubr.f32.gmra.mrb[0].mxu0 %v3982
    %v5569 = vpop.f32.mrb[0].mxu0
    %v5570 = vadd.f32 0.0, %v5569
    %v5571 = vpop.f32.mrb[0].mxu0
    %5572 = vmatprep.mubr.f32.mxu0 0.0
    %5573 = vmatmul.mubr.f32.gmra.mrb[0].mxu0 %v3985
    %v5574 = vpop.f32.mrb[0].mxu0
    %v5575 = vadd.f32 0.0, %v5574
    %v5576 = vpop.f32.mrb[0].mxu0
    %5577 = vmatprep.mubr.f32.mxu0 0.0
    %5578 = vmatmul.mubr.f32.gmra.mrb[0].mxu0 %v3988
    %v5579 = vpop.f32.mrb[0].mxu0
    %v5580 = vadd.f32 0.0, %v5579
    %v5581 = vpop.f32.mrb[0].mxu0
    %5582 = vmatprep.mubr.f32.mxu0 0.0
    %5583 = vmatmul.mubr.f32.gmra.mrb[0].mxu0 %v3991
    %v5584 = vpop.f32.mrb[0].mxu0
    %v5585 = vadd.f32 0.0, %v5584
    %v5586 = vpop.f32.mrb[0].mxu0
    %5587 = vmatprep.mubr.f32.mxu0 0.0
    %5588 = vmatmul.mubr.f32.gmra.mrb[0].mxu0 %v3994
    %v5589 = vpop.f32.mrb[0].mxu0
    %v5590 = vadd.f32 0.0, %v5589
    %v5591 = vpop.f32.mrb[0].mxu0
    %5592 = vdwg.mxu0
    %5593 = vmatprep.subr.mxu0 0.0
    %5594 = vmatpush1.msra.mxu0 %v5432
    %5595 = vmatprep.subr.mxu0 0.0
    %5596 = vmatpush1.msra.mxu0 %v5433
    %5597 = vmatprep.subr.mxu0 0.0
    %5598 = vmatpush1.msra.mxu0 %v5434
    %5599 = vmatprep.subr.mxu0 0.0
    %5600 = vmatpush1.msra.mxu0 %v5435
    %5601 = vmatprep.subr.mxu0 0.0
    %5602 = vmatpush1.msra.mxu0 %v5436
    %5603 = vmatprep.subr.mxu0 0.0
    %5604 = vmatpush1.msra.mxu0 %v5437
    %5605 = vmatprep.subr.mxu0 0.0
    %5606 = vmatpush1.msra.mxu0 %v5438
    %5607 = vmatprep.subr.mxu0 0.0
    %5608 = vmatpush1.msra.mxu0 %v5439
    %5609 = vmatprep.subr.mxu0 0.0
    %5610 = vmatpush1.msra.mxu0 0.0
    %5611 = vmatprep.subr.mxu0 0.0
    %5612 = vmatpush1.msra.mxu0 0.0
    %5613 = vmatprep.subr.mxu0 0.0
    %5614 = vmatpush1.msra.mxu0 0.0
    %5615 = vmatprep.subr.mxu0 0.0
    %5616 = vmatpush1.msra.mxu0 0.0
    %5617 = vmatprep.subr.mxu0 0.0
    %5618 = vmatpush1.msra.mxu0 0.0
    %5619 = vmatprep.subr.mxu0 0.0
    %5620 = vmatpush1.msra.mxu0 0.0
    %5621 = vmatprep.subr.mxu0 0.0
    %5622 = vmatpush1.msra.mxu0 0.0
    %5623 = vmatprep.subr.mxu0 0.0
    %5624 = vmatpush1.msra.mxu0 0.0
    %5625 = vmatprep.subr.mxu0 0.0
    %5626 = vmatpush1.msra.mxu0 0.0
    %5627 = vmatprep.subr.mxu0 0.0
    %5628 = vmatpush1.msra.mxu0 0.0
    %5629 = vmatprep.subr.mxu0 0.0
    %5630 = vmatpush1.msra.mxu0 0.0
    %5631 = vmatprep.subr.mxu0 0.0
    %5632 = vmatpush1.msra.mxu0 0.0
    %5633 = vmatprep.subr.mxu0 0.0
    %5634 = vmatpush1.msra.mxu0 0.0
    %5635 = vmatprep.subr.mxu0 0.0
    %5636 = vmatpush1.msra.mxu0 0.0
    %5637 = vmatprep.subr.mxu0 0.0
    %5638 = vmatpush1.msra.mxu0 0.0
    %5639 = vmatprep.subr.mxu0 0.0
    %5640 = vmatpush1.msra.mxu0 0.0
    %5641 = vmatprep.subr.mxu0 0.0
    %5642 = vmatpush1.msra.mxu0 0.0
    %5643 = vmatprep.subr.mxu0 0.0
    %5644 = vmatpush1.msra.mxu0 0.0
    %5645 = vmatprep.subr.mxu0 0.0
    %5646 = vmatpush1.msra.mxu0 0.0
    %5647 = vmatprep.subr.mxu0 0.0
    %5648 = vmatpush1.msra.mxu0 0.0
    %5649 = vmatprep.subr.mxu0 0.0
    %5650 = vmatpush1.msra.mxu0 0.0
    %5651 = vmatprep.subr.mxu0 0.0
    %5652 = vmatpush1.msra.mxu0 0.0
    %5653 = vmatprep.subr.mxu0 0.0
    %5654 = vmatpush1.msra.mxu0 0.0
    %5655 = vmatprep.subr.mxu0 0.0
    %5656 = vmatpush1.msra.mxu0 0.0
    %5657 = vmatprep.mubr.f32.mxu0 0.0
    %5658 = vmatmul.mubr.f32.gmra.mrb[0].mxu0 %v4142
    %v5659 = vpop.f32.mrb[0].mxu0
    %v5660 = vadd.f32 %v5515, %v5659
    %v5661 = vpop.f32.mrb[0].mxu0
    %5662 = vmatprep.mubr.f32.mxu0 0.0
    %5663 = vmatmul.mubr.f32.gmra.mrb[0].mxu0 %v4145
    %v5664 = vpop.f32.mrb[0].mxu0
    %v5665 = vadd.f32 %v5520, %v5664
    %v5666 = vpop.f32.mrb[0].mxu0
    %5667 = vmatprep.mubr.f32.mxu0 0.0
    %5668 = vmatmul.mubr.f32.gmra.mrb[0].mxu0 %v4148
    %v5669 = vpop.f32.mrb[0].mxu0
    %v5670 = vadd.f32 %v5525, %v5669
    %v5671 = vpop.f32.mrb[0].mxu0
    %5672 = vmatprep.mubr.f32.mxu0 0.0
    %5673 = vmatmul.mubr.f32.gmra.mrb[0].mxu0 %v4151
    %v5674 = vpop.f32.mrb[0].mxu0
    %v5675 = vadd.f32 %v5530, %v5674
    %v5676 = vpop.f32.mrb[0].mxu0
    %5677 = vmatprep.mubr.f32.mxu0 0.0
    %5678 = vmatmul.mubr.f32.gmra.mrb[0].mxu0 %v4154
    %v5679 = vpop.f32.mrb[0].mxu0
    %v5680 = vadd.f32 %v5535, %v5679
    %v5681 = vpop.f32.mrb[0].mxu0
    %5682 = vmatprep.mubr.f32.mxu0 0.0
    %5683 = vmatmul.mubr.f32.gmra.mrb[0].mxu0 %v4157
    %v5684 = vpop.f32.mrb[0].mxu0
    %v5685 = vadd.f32 %v5540, %v5684
    %v5686 = vpop.f32.mrb[0].mxu0
    %5687 = vmatprep.mubr.f32.mxu0 0.0
    %5688 = vmatmul.mubr.f32.gmra.mrb[0].mxu0 %v4160
    %v5689 = vpop.f32.mrb[0].mxu0
    %v5690 = vadd.f32 %v5545, %v5689
    %v5691 = vpop.f32.mrb[0].mxu0
    %5692 = vmatprep.mubr.f32.mxu0 0.0
    %5693 = vmatmul.mubr.f32.gmra.mrb[0].mxu0 %v4163
    %v5694 = vpop.f32.mrb[0].mxu0
    %v5695 = vadd.f32 %v5550, %v5694
    %v5696 = vpop.f32.mrb[0].mxu0
    %5697 = vmatprep.mubr.f32.mxu0 0.0
    %5698 = vmatmul.mubr.f32.gmra.mrb[0].mxu0 %v4166
    %v5699 = vpop.f32.mrb[0].mxu0
    %v5700 = vadd.f32 %v5555, %v5699
    %v5701 = vpop.f32.mrb[0].mxu0
    %5702 = vmatprep.mubr.f32.mxu0 0.0
    %5703 = vmatmul.mubr.f32.gmra.mrb[0].mxu0 %v4169
    %v5704 = vpop.f32.mrb[0].mxu0
    %v5705 = vadd.f32 %v5560, %v5704
    %v5706 = vpop.f32.mrb[0].mxu0
    %5707 = vmatprep.mubr.f32.mxu0 0.0
    %5708 = vmatmul.mubr.f32.gmra.mrb[0].mxu0 %v4172
    %v5709 = vpop.f32.mrb[0].mxu0
    %v5710 = vadd.f32 %v5565, %v5709
    %v5711 = vpop.f32.mrb[0].mxu0
    %5712 = vmatprep.mubr.f32.mxu0 0.0
    %5713 = vmatmul.mubr.f32.gmra.mrb[0].mxu0 %v4175
    %v5714 = vpop.f32.mrb[0].mxu0
    %v5715 = vadd.f32 %v5570, %v5714
    %v5716 = vpop.f32.mrb[0].mxu0
    %5717 = vmatprep.mubr.f32.mxu0 0.0
    %5718 = vmatmul.mubr.f32.gmra.mrb[0].mxu0 %v4178
    %v5719 = vpop.f32.mrb[0].mxu0
    %v5720 = vadd.f32 %v5575, %v5719
    %v5721 = vpop.f32.mrb[0].mxu0
    %5722 = vmatprep.mubr.f32.mxu0 0.0
    %5723 = vmatmul.mubr.f32.gmra.mrb[0].mxu0 %v4181
    %v5724 = vpop.f32.mrb[0].mxu0
    %v5725 = vadd.f32 %v5580, %v5724
    %v5726 = vpop.f32.mrb[0].mxu0
    %5727 = vmatprep.mubr.f32.mxu0 0.0
    %5728 = vmatmul.mubr.f32.gmra.mrb[0].mxu0 %v4184
    %v5729 = vpop.f32.mrb[0].mxu0
    %v5730 = vadd.f32 %v5585, %v5729
    %v5731 = vpop.f32.mrb[0].mxu0
    %5732 = vmatprep.mubr.f32.mxu0 0.0
    %5733 = vmatmul.mubr.f32.gmra.mrb[0].mxu0 %v4187
    %v5734 = vpop.f32.mrb[0].mxu0
    %v5735 = vadd.f32 %v5590, %v5734
    %v5736 = vpop.f32.mrb[0].mxu0
    %5737 = vdwg.mxu0
    %v5738 = vld [vmem:[#allocation2 + $0x388] sm:$0xff]
    %v5739 = vld [vmem:[#allocation2 + $0x390] sm:$0xff]
    %v5740 = vld [vmem:[#allocation2 + $0x398] sm:$0xff]
    %v5741 = vld [vmem:[#allocation2 + $0x3a0] sm:$0xff]
    %v5742 = vld [vmem:[#allocation2 + $0x3a8] sm:$0xff]
    %v5743 = vld [vmem:[#allocation2 + $0x3b0] sm:$0xff]
    %v5744 = vld [vmem:[#allocation2 + $0x3b8] sm:$0xff]
    %v5745 = vld [vmem:[#allocation2 + $0x3c0] sm:$0xff]
    %5746 = vmatprep.subr.mxu0 0.0
    %5747 = vmatpush1.msra.mxu0 %v5738
    %5748 = vmatprep.subr.mxu0 0.0
    %5749 = vmatpush1.msra.mxu0 %v5739
    %5750 = vmatprep.subr.mxu0 0.0
    %5751 = vmatpush1.msra.mxu0 %v5740
    %5752 = vmatprep.subr.mxu0 0.0
    %5753 = vmatpush1.msra.mxu0 %v5741
    %5754 = vmatprep.subr.mxu0 0.0
    %5755 = vmatpush1.msra.mxu0 %v5742
    %5756 = vmatprep.subr.mxu0 0.0
    %5757 = vmatpush1.msra.mxu0 %v5743
    %5758 = vmatprep.subr.mxu0 0.0
    %5759 = vmatpush1.msra.mxu0 %v5744
    %5760 = vmatprep.subr.mxu0 0.0
    %5761 = vmatpush1.msra.mxu0 %v5745
    %5762 = vmatprep.subr.mxu0 0.0
    %5763 = vmatpush1.msra.mxu0 0.0
    %5764 = vmatprep.subr.mxu0 0.0
    %5765 = vmatpush1.msra.mxu0 0.0
    %5766 = vmatprep.subr.mxu0 0.0
    %5767 = vmatpush1.msra.mxu0 0.0
    %5768 = vmatprep.subr.mxu0 0.0
    %5769 = vmatpush1.msra.mxu0 0.0
    %5770 = vmatprep.subr.mxu0 0.0
    %5771 = vmatpush1.msra.mxu0 0.0
    %5772 = vmatprep.subr.mxu0 0.0
    %5773 = vmatpush1.msra.mxu0 0.0
    %5774 = vmatprep.subr.mxu0 0.0
    %5775 = vmatpush1.msra.mxu0 0.0
    %5776 = vmatprep.subr.mxu0 0.0
    %5777 = vmatpush1.msra.mxu0 0.0
    %5778 = vmatprep.subr.mxu0 0.0
    %5779 = vmatpush1.msra.mxu0 0.0
    %5780 = vmatprep.subr.mxu0 0.0
    %5781 = vmatpush1.msra.mxu0 0.0
    %5782 = vmatprep.subr.mxu0 0.0
    %5783 = vmatpush1.msra.mxu0 0.0
    %5784 = vmatprep.subr.mxu0 0.0
    %5785 = vmatpush1.msra.mxu0 0.0
    %5786 = vmatprep.subr.mxu0 0.0
    %5787 = vmatpush1.msra.mxu0 0.0
    %5788 = vmatprep.subr.mxu0 0.0
    %5789 = vmatpush1.msra.mxu0 0.0
    %5790 = vmatprep.subr.mxu0 0.0
    %5791 = vmatpush1.msra.mxu0 0.0
    %5792 = vmatprep.subr.mxu0 0.0
    %5793 = vmatpush1.msra.mxu0 0.0
    %5794 = vmatprep.subr.mxu0 0.0
    %5795 = vmatpush1.msra.mxu0 0.0
    %5796 = vmatprep.subr.mxu0 0.0
    %5797 = vmatpush1.msra.mxu0 0.0
    %5798 = vmatprep.subr.mxu0 0.0
    %5799 = vmatpush1.msra.mxu0 0.0
    %5800 = vmatprep.subr.mxu0 0.0
    %5801 = vmatpush1.msra.mxu0 0.0
    %5802 = vmatprep.subr.mxu0 0.0
    %5803 = vmatpush1.msra.mxu0 0.0
    %5804 = vmatprep.subr.mxu0 0.0
    %5805 = vmatpush1.msra.mxu0 0.0
    %5806 = vmatprep.subr.mxu0 0.0
    %5807 = vmatpush1.msra.mxu0 0.0
    %5808 = vmatprep.subr.mxu0 0.0
    %5809 = vmatpush1.msra.mxu0 0.0
    %5810 = vmatprep.mubr.f32.mxu0 0.0
    %5811 = vmatmul.mubr.f32.gmra.mrb[0].mxu0 %v4343
    %v5812 = vpop.f32.mrb[0].mxu0
    %v5813 = vadd.f32 0.0, %v5812
    %v5814 = vpop.f32.mrb[0].mxu0
    %5815 = vmatprep.mubr.f32.mxu0 0.0
    %5816 = vmatmul.mubr.f32.gmra.mrb[0].mxu0 %v4346
    %v5817 = vpop.f32.mrb[0].mxu0
    %v5818 = vadd.f32 0.0, %v5817
    %v5819 = vpop.f32.mrb[0].mxu0
    %5820 = vmatprep.mubr.f32.mxu0 0.0
    %5821 = vmatmul.mubr.f32.gmra.mrb[0].mxu0 %v4349
    %v5822 = vpop.f32.mrb[0].mxu0
    %v5823 = vadd.f32 0.0, %v5822
    %v5824 = vpop.f32.mrb[0].mxu0
    %5825 = vmatprep.mubr.f32.mxu0 0.0
    %5826 = vmatmul.mubr.f32.gmra.mrb[0].mxu0 %v4352
    %v5827 = vpop.f32.mrb[0].mxu0
    %v5828 = vadd.f32 0.0, %v5827
    %v5829 = vpop.f32.mrb[0].mxu0
    %5830 = vmatprep.mubr.f32.mxu0 0.0
    %5831 = vmatmul.mubr.f32.gmra.mrb[0].mxu0 %v4355
    %v5832 = vpop.f32.mrb[0].mxu0
    %v5833 = vadd.f32 0.0, %v5832
    %v5834 = vpop.f32.mrb[0].mxu0
    %5835 = vmatprep.mubr.f32.mxu0 0.0
    %5836 = vmatmul.mubr.f32.gmra.mrb[0].mxu0 %v4358
    %v5837 = vpop.f32.mrb[0].mxu0
    %v5838 = vadd.f32 0.0, %v5837
    %v5839 = vpop.f32.mrb[0].mxu0
    %5840 = vmatprep.mubr.f32.mxu0 0.0
    %5841 = vmatmul.mubr.f32.gmra.mrb[0].mxu0 %v4361
    %v5842 = vpop.f32.mrb[0].mxu0
    %v5843 = vadd.f32 0.0, %v5842
    %v5844 = vpop.f32.mrb[0].mxu0
    %5845 = vmatprep.mubr.f32.mxu0 0.0
    %5846 = vmatmul.mubr.f32.gmra.mrb[0].mxu0 %v4364
    %v5847 = vpop.f32.mrb[0].mxu0
    %v5848 = vadd.f32 0.0, %v5847
    %v5849 = vpop.f32.mrb[0].mxu0
    %5850 = vmatprep.mubr.f32.mxu0 0.0
    %5851 = vmatmul.mubr.f32.gmra.mrb[0].mxu0 %v4367
    %v5852 = vpop.f32.mrb[0].mxu0
    %v5853 = vadd.f32 0.0, %v5852
    %v5854 = vpop.f32.mrb[0].mxu0
    %5855 = vmatprep.mubr.f32.mxu0 0.0
    %5856 = vmatmul.mubr.f32.gmra.mrb[0].mxu0 %v4370
    %v5857 = vpop.f32.mrb[0].mxu0
    %v5858 = vadd.f32 0.0, %v5857
    %v5859 = vpop.f32.mrb[0].mxu0
    %5860 = vmatprep.mubr.f32.mxu0 0.0
    %5861 = vmatmul.mubr.f32.gmra.mrb[0].mxu0 %v4373
    %v5862 = vpop.f32.mrb[0].mxu0
    %v5863 = vadd.f32 0.0, %v5862
    %v5864 = vpop.f32.mrb[0].mxu0
    %5865 = vmatprep.mubr.f32.mxu0 0.0
    %5866 = vmatmul.mubr.f32.gmra.mrb[0].mxu0 %v4376
    %v5867 = vpop.f32.mrb[0].mxu0
    %v5868 = vadd.f32 0.0, %v5867
    %v5869 = vpop.f32.mrb[0].mxu0
    %5870 = vmatprep.mubr.f32.mxu0 0.0
    %5871 = vmatmul.mubr.f32.gmra.mrb[0].mxu0 %v4379
    %v5872 = vpop.f32.mrb[0].mxu0
    %v5873 = vadd.f32 0.0, %v5872
    %v5874 = vpop.f32.mrb[0].mxu0
    %5875 = vmatprep.mubr.f32.mxu0 0.0
    %5876 = vmatmul.mubr.f32.gmra.mrb[0].mxu0 %v4382
    %v5877 = vpop.f32.mrb[0].mxu0
    %v5878 = vadd.f32 0.0, %v5877
    %v5879 = vpop.f32.mrb[0].mxu0
    %5880 = vmatprep.mubr.f32.mxu0 0.0
    %5881 = vmatmul.mubr.f32.gmra.mrb[0].mxu0 %v4385
    %v5882 = vpop.f32.mrb[0].mxu0
    %v5883 = vadd.f32 0.0, %v5882
    %v5884 = vpop.f32.mrb[0].mxu0
    %5885 = vmatprep.mubr.f32.mxu0 0.0
    %5886 = vmatmul.mubr.f32.gmra.mrb[0].mxu0 %v4388
    %v5887 = vpop.f32.mrb[0].mxu0
    %v5888 = vadd.f32 0.0, %v5887
    %v5889 = vpop.f32.mrb[0].mxu0
    %5890 = vdwg.mxu0
    %v5891 = vadd.f32 %v5660, %v5813
    %v5892 = vadd.f32 %v5665, %v5818
    %v5893 = vadd.f32 %v5670, %v5823
    %v5894 = vadd.f32 %v5675, %v5828
    %v5895 = vadd.f32 %v5680, %v5833
    %v5896 = vadd.f32 %v5685, %v5838
    %v5897 = vadd.f32 %v5690, %v5843
    %v5898 = vadd.f32 %v5695, %v5848
    %v5899 = vadd.f32 %v5700, %v5853
    %v5900 = vadd.f32 %v5705, %v5858
    %v5901 = vadd.f32 %v5710, %v5863
    %v5902 = vadd.f32 %v5715, %v5868
    %v5903 = vadd.f32 %v5720, %v5873
    %v5904 = vadd.f32 %v5725, %v5878
    %v5905 = vadd.f32 %v5730, %v5883
    %v5906 = vadd.f32 %v5735, %v5888
    %v5907 = vld [vmem:[#allocation2 + $0x408] sm:$0x1]
    %v5908 = vlaneseq
    %v5909 = vshrl.u32 %v5908, 7
    %v5910 = vsub.s32 0, %v5909
    %v5911 = vrot.slane %v5907, %v5910
    %v5912 = vadd.f32 %v5891, %v5911
    %v5913 = vadd.f32 %v5892, %v5911
    %v5914 = vadd.f32 %v5893, %v5911
    %v5915 = vadd.f32 %v5894, %v5911
    %v5916 = vadd.f32 %v5895, %v5911
    %v5917 = vadd.f32 %v5896, %v5911
    %v5918 = vadd.f32 %v5897, %v5911
    %v5919 = vadd.f32 %v5898, %v5911
    %v5920 = vadd.f32 %v5899, %v5911
    %v5921 = vadd.f32 %v5900, %v5911
    %v5922 = vadd.f32 %v5901, %v5911
    %v5923 = vadd.f32 %v5902, %v5911
    %v5924 = vadd.f32 %v5903, %v5911
    %v5925 = vadd.f32 %v5904, %v5911
    %v5926 = vadd.f32 %v5905, %v5911
    %v5927 = vadd.f32 %v5906, %v5911
    %v5928 = vld [vmem:[#allocation2 + $0x3c8] sm:$0xff]
    %v5929 = vld [vmem:[#allocation2 + $0x3d0] sm:$0xff]
    %v5930 = vld [vmem:[#allocation2 + $0x3d8] sm:$0xff]
    %v5931 = vld [vmem:[#allocation2 + $0x3e0] sm:$0xff]
    %v5932 = vld [vmem:[#allocation2 + $0x3e8] sm:$0xff]
    %v5933 = vld [vmem:[#allocation2 + $0x3f0] sm:$0xff]
    %v5934 = vld [vmem:[#allocation2 + $0x3f8] sm:$0xff]
    %v5935 = vld [vmem:[#allocation2 + $0x400] sm:$0xff]
    %v5936 = vld [vmem:[#allocation2 + $0x410] sm:$0x1]
    %v5937 = vlaneseq
    %v5938 = vshrl.u32 %v5937, 7
    %v5939 = vsub.s32 0, %v5938
    %v5940 = vrot.slane %v5936, %v5939
    %5941 = vmatprep.subr.mxu0 0.0
    %5942 = vmatpush1.msra.mxu0 %v5928
    %5943 = vmatprep.subr.mxu0 0.0
    %5944 = vmatpush1.msra.mxu0 %v5929
    %5945 = vmatprep.subr.mxu0 0.0
    %5946 = vmatpush1.msra.mxu0 %v5930
    %5947 = vmatprep.subr.mxu0 0.0
    %5948 = vmatpush1.msra.mxu0 %v5931
    %5949 = vmatprep.subr.mxu0 0.0
    %5950 = vmatpush1.msra.mxu0 %v5932
    %5951 = vmatprep.subr.mxu0 0.0
    %5952 = vmatpush1.msra.mxu0 %v5933
    %5953 = vmatprep.subr.mxu0 0.0
    %5954 = vmatpush1.msra.mxu0 %v5934
    %5955 = vmatprep.subr.mxu0 0.0
    %5956 = vmatpush1.msra.mxu0 %v5935
    %5957 = vmatprep.subr.mxu0 0.0
    %5958 = vmatpush1.msra.mxu0 0.0
    %5959 = vmatprep.subr.mxu0 0.0
    %5960 = vmatpush1.msra.mxu0 0.0
    %5961 = vmatprep.subr.mxu0 0.0
    %5962 = vmatpush1.msra.mxu0 0.0
    %5963 = vmatprep.subr.mxu0 0.0
    %5964 = vmatpush1.msra.mxu0 0.0
    %5965 = vmatprep.subr.mxu0 0.0
    %5966 = vmatpush1.msra.mxu0 0.0
    %5967 = vmatprep.subr.mxu0 0.0
    %5968 = vmatpush1.msra.mxu0 0.0
    %5969 = vmatprep.subr.mxu0 0.0
    %5970 = vmatpush1.msra.mxu0 0.0
    %5971 = vmatprep.subr.mxu0 0.0
    %5972 = vmatpush1.msra.mxu0 0.0
    %5973 = vmatprep.subr.mxu0 0.0
    %5974 = vmatpush1.msra.mxu0 0.0
    %5975 = vmatprep.subr.mxu0 0.0
    %5976 = vmatpush1.msra.mxu0 0.0
    %5977 = vmatprep.subr.mxu0 0.0
    %5978 = vmatpush1.msra.mxu0 0.0
    %5979 = vmatprep.subr.mxu0 0.0
    %5980 = vmatpush1.msra.mxu0 0.0
    %5981 = vmatprep.subr.mxu0 0.0
    %5982 = vmatpush1.msra.mxu0 0.0
    %5983 = vmatprep.subr.mxu0 0.0
    %5984 = vmatpush1.msra.mxu0 0.0
    %5985 = vmatprep.subr.mxu0 0.0
    %5986 = vmatpush1.msra.mxu0 0.0
    %5987 = vmatprep.subr.mxu0 0.0
    %5988 = vmatpush1.msra.mxu0 0.0
    %5989 = vmatprep.subr.mxu0 0.0
    %5990 = vmatpush1.msra.mxu0 0.0
    %5991 = vmatprep.subr.mxu0 0.0
    %5992 = vmatpush1.msra.mxu0 0.0
    %5993 = vmatprep.subr.mxu0 0.0
    %5994 = vmatpush1.msra.mxu0 0.0
    %5995 = vmatprep.subr.mxu0 0.0
    %5996 = vmatpush1.msra.mxu0 0.0
    %5997 = vmatprep.subr.mxu0 0.0
    %5998 = vmatpush1.msra.mxu0 0.0
    %5999 = vmatprep.subr.mxu0 0.0
    %6000 = vmatpush1.msra.mxu0 0.0
    %6001 = vmatprep.subr.mxu0 0.0
    %6002 = vmatpush1.msra.mxu0 0.0
    %6003 = vmatprep.subr.mxu0 0.0
    %6004 = vmatpush1.msra.mxu0 0.0
    %6005 = vmatprep.mubr.f32.mxu0 0.0
    %6006 = vmatmul.mubr.f32.gmra.mrb[0].mxu0 %v4586
    %v6007 = vpop.f32.mrb[0].mxu0
    %v6008 = vadd.f32 %v5940, %v6007
    %v6009 = vpop.f32.mrb[0].mxu0
    %6010 = vmatprep.mubr.f32.mxu0 0.0
    %6011 = vmatmul.mubr.f32.gmra.mrb[0].mxu0 %v4589
    %v6012 = vpop.f32.mrb[0].mxu0
    %v6013 = vadd.f32 %v5940, %v6012
    %v6014 = vpop.f32.mrb[0].mxu0
    %6015 = vmatprep.mubr.f32.mxu0 0.0
    %6016 = vmatmul.mubr.f32.gmra.mrb[0].mxu0 %v4592
    %v6017 = vpop.f32.mrb[0].mxu0
    %v6018 = vadd.f32 %v5940, %v6017
    %v6019 = vpop.f32.mrb[0].mxu0
    %6020 = vmatprep.mubr.f32.mxu0 0.0
    %6021 = vmatmul.mubr.f32.gmra.mrb[0].mxu0 %v4595
    %v6022 = vpop.f32.mrb[0].mxu0
    %v6023 = vadd.f32 %v5940, %v6022
    %v6024 = vpop.f32.mrb[0].mxu0
    %6025 = vmatprep.mubr.f32.mxu0 0.0
    %6026 = vmatmul.mubr.f32.gmra.mrb[0].mxu0 %v4598
    %v6027 = vpop.f32.mrb[0].mxu0
    %v6028 = vadd.f32 %v5940, %v6027
    %v6029 = vpop.f32.mrb[0].mxu0
    %6030 = vmatprep.mubr.f32.mxu0 0.0
    %6031 = vmatmul.mubr.f32.gmra.mrb[0].mxu0 %v4601
    %v6032 = vpop.f32.mrb[0].mxu0
    %v6033 = vadd.f32 %v5940, %v6032
    %v6034 = vpop.f32.mrb[0].mxu0
    %6035 = vmatprep.mubr.f32.mxu0 0.0
    %6036 = vmatmul.mubr.f32.gmra.mrb[0].mxu0 %v4604
    %v6037 = vpop.f32.mrb[0].mxu0
    %v6038 = vadd.f32 %v5940, %v6037
    %v6039 = vpop.f32.mrb[0].mxu0
    %6040 = vmatprep.mubr.f32.mxu0 0.0
    %6041 = vmatmul.mubr.f32.gmra.mrb[0].mxu0 %v4607
    %v6042 = vpop.f32.mrb[0].mxu0
    %v6043 = vadd.f32 %v5940, %v6042
    %v6044 = vpop.f32.mrb[0].mxu0
    %6045 = vmatprep.mubr.f32.mxu0 0.0
    %6046 = vmatmul.mubr.f32.gmra.mrb[0].mxu0 %v4610
    %v6047 = vpop.f32.mrb[0].mxu0
    %v6048 = vadd.f32 %v5940, %v6047
    %v6049 = vpop.f32.mrb[0].mxu0
    %6050 = vmatprep.mubr.f32.mxu0 0.0
    %6051 = vmatmul.mubr.f32.gmra.mrb[0].mxu0 %v4613
    %v6052 = vpop.f32.mrb[0].mxu0
    %v6053 = vadd.f32 %v5940, %v6052
    %v6054 = vpop.f32.mrb[0].mxu0
    %6055 = vmatprep.mubr.f32.mxu0 0.0
    %6056 = vmatmul.mubr.f32.gmra.mrb[0].mxu0 %v4616
    %v6057 = vpop.f32.mrb[0].mxu0
    %v6058 = vadd.f32 %v5940, %v6057
    %v6059 = vpop.f32.mrb[0].mxu0
    %6060 = vmatprep.mubr.f32.mxu0 0.0
    %6061 = vmatmul.mubr.f32.gmra.mrb[0].mxu0 %v4619
    %v6062 = vpop.f32.mrb[0].mxu0
    %v6063 = vadd.f32 %v5940, %v6062
    %v6064 = vpop.f32.mrb[0].mxu0
    %6065 = vmatprep.mubr.f32.mxu0 0.0
    %6066 = vmatmul.mubr.f32.gmra.mrb[0].mxu0 %v4622
    %v6067 = vpop.f32.mrb[0].mxu0
    %v6068 = vadd.f32 %v5940, %v6067
    %v6069 = vpop.f32.mrb[0].mxu0
    %6070 = vmatprep.mubr.f32.mxu0 0.0
    %6071 = vmatmul.mubr.f32.gmra.mrb[0].mxu0 %v4625
    %v6072 = vpop.f32.mrb[0].mxu0
    %v6073 = vadd.f32 %v5940, %v6072
    %v6074 = vpop.f32.mrb[0].mxu0
    %6075 = vmatprep.mubr.f32.mxu0 0.0
    %6076 = vmatmul.mubr.f32.gmra.mrb[0].mxu0 %v4628
    %v6077 = vpop.f32.mrb[0].mxu0
    %v6078 = vadd.f32 %v5940, %v6077
    %v6079 = vpop.f32.mrb[0].mxu0
    %6080 = vmatprep.mubr.f32.mxu0 0.0
    %6081 = vmatmul.mubr.f32.gmra.mrb[0].mxu0 %v4631
    %v6082 = vpop.f32.mrb[0].mxu0
    %v6083 = vadd.f32 %v5940, %v6082
    %v6084 = vpop.f32.mrb[0].mxu0
    %6085 = vdwg.mxu0
    %v6086 = vadd.f32 %v4556, %v4700
    %v6087 = vadd.f32 %v4557, %v4705
    %v6088 = vadd.f32 %v4558, %v4710
    %v6089 = vadd.f32 %v4559, %v4715
    %v6090 = vadd.f32 %v4560, %v4720
    %v6091 = vadd.f32 %v4561, %v4725
    %v6092 = vadd.f32 %v4562, %v4730
    %v6093 = vadd.f32 %v4563, %v4735
    %v6094 = vadd.f32 %v4564, %v4740
    %v6095 = vadd.f32 %v4565, %v4745
    %v6096 = vadd.f32 %v4566, %v4750
    %v6097 = vadd.f32 %v4567, %v4755
    %v6098 = vadd.f32 %v4568, %v4760
    %v6099 = vadd.f32 %v4569, %v4765
    %v6100 = vadd.f32 %v4570, %v4770
    %v6101 = vadd.f32 %v4571, %v4775
    %v6102 = vxor.u32 %v6086, 2147483648
    %v6103 = vxor.u32 %v6087, 2147483648
    %v6104 = vxor.u32 %v6088, 2147483648
    %v6105 = vxor.u32 %v6089, 2147483648
    %v6106 = vxor.u32 %v6090, 2147483648
    %v6107 = vxor.u32 %v6091, 2147483648
    %v6108 = vxor.u32 %v6092, 2147483648
    %v6109 = vxor.u32 %v6093, 2147483648
    %v6110 = vxor.u32 %v6094, 2147483648
    %v6111 = vxor.u32 %v6095, 2147483648
    %v6112 = vxor.u32 %v6096, 2147483648
    %v6113 = vxor.u32 %v6097, 2147483648
    %v6114 = vxor.u32 %v6098, 2147483648
    %v6115 = vxor.u32 %v6099, 2147483648
    %v6116 = vxor.u32 %v6100, 2147483648
    %v6117 = vxor.u32 %v6101, 2147483648
    %v6118 = vmul.f32 %v6102, 1.442695
    %v6119 = vpow.pop %v6118
    %v6120 = vmul.f32 %v6103, 1.442695
    %v6121 = vpow.pop %v6120
    %v6122 = vmul.f32 %v6104, 1.442695
    %v6123 = vpow.pop %v6122
    %v6124 = vmul.f32 %v6105, 1.442695
    %v6125 = vpow.pop %v6124
    %v6126 = vmul.f32 %v6106, 1.442695
    %v6127 = vpow.pop %v6126
    %v6128 = vmul.f32 %v6107, 1.442695
    %v6129 = vpow.pop %v6128
    %v6130 = vmul.f32 %v6108, 1.442695
    %v6131 = vpow.pop %v6130
    %v6132 = vmul.f32 %v6109, 1.442695
    %v6133 = vpow.pop %v6132
    %v6134 = vmul.f32 %v6110, 1.442695
    %v6135 = vpow.pop %v6134
    %v6136 = vmul.f32 %v6111, 1.442695
    %v6137 = vpow.pop %v6136
    %v6138 = vmul.f32 %v6112, 1.442695
    %v6139 = vpow.pop %v6138
    %v6140 = vmul.f32 %v6113, 1.442695
    %v6141 = vpow.pop %v6140
    %v6142 = vmul.f32 %v6114, 1.442695
    %v6143 = vpow.pop %v6142
    %v6144 = vmul.f32 %v6115, 1.442695
    %v6145 = vpow.pop %v6144
    %v6146 = vmul.f32 %v6116, 1.442695
    %v6147 = vpow.pop %v6146
    %v6148 = vmul.f32 %v6117, 1.442695
    %v6149 = vpow.pop %v6148
    %v6150 = vadd.f32 %v6119, 1.0
    %v6151 = vadd.f32 %v6121, 1.0
    %v6152 = vadd.f32 %v6123, 1.0
    %v6153 = vadd.f32 %v6125, 1.0
    %v6154 = vadd.f32 %v6127, 1.0
    %v6155 = vadd.f32 %v6129, 1.0
    %v6156 = vadd.f32 %v6131, 1.0
    %v6157 = vadd.f32 %v6133, 1.0
    %v6158 = vadd.f32 %v6135, 1.0
    %v6159 = vadd.f32 %v6137, 1.0
    %v6160 = vadd.f32 %v6139, 1.0
    %v6161 = vadd.f32 %v6141, 1.0
    %v6162 = vadd.f32 %v6143, 1.0
    %v6163 = vadd.f32 %v6145, 1.0
    %v6164 = vadd.f32 %v6147, 1.0
    %v6165 = vadd.f32 %v6149, 1.0
    %v6166 = vrcp.pop %v6150
    %v6167 = vmul.f32 1.0, %v6166
    %v6168 = vrcp.pop %v6151
    %v6169 = vmul.f32 1.0, %v6168
    %v6170 = vrcp.pop %v6152
    %v6171 = vmul.f32 1.0, %v6170
    %v6172 = vrcp.pop %v6153
    %v6173 = vmul.f32 1.0, %v6172
    %v6174 = vrcp.pop %v6154
    %v6175 = vmul.f32 1.0, %v6174
    %v6176 = vrcp.pop %v6155
    %v6177 = vmul.f32 1.0, %v6176
    %v6178 = vrcp.pop %v6156
    %v6179 = vmul.f32 1.0, %v6178
    %v6180 = vrcp.pop %v6157
    %v6181 = vmul.f32 1.0, %v6180
    %v6182 = vrcp.pop %v6158
    %v6183 = vmul.f32 1.0, %v6182
    %v6184 = vrcp.pop %v6159
    %v6185 = vmul.f32 1.0, %v6184
    %v6186 = vrcp.pop %v6160
    %v6187 = vmul.f32 1.0, %v6186
    %v6188 = vrcp.pop %v6161
    %v6189 = vmul.f32 1.0, %v6188
    %v6190 = vrcp.pop %v6162
    %v6191 = vmul.f32 1.0, %v6190
    %v6192 = vrcp.pop %v6163
    %v6193 = vmul.f32 1.0, %v6192
    %v6194 = vrcp.pop %v6164
    %v6195 = vmul.f32 1.0, %v6194
    %v6196 = vrcp.pop %v6165
    %v6197 = vmul.f32 1.0, %v6196
    %v6198 = vadd.f32 %v5258, %v5354
    %v6199 = vadd.f32 %v5259, %v5359
    %v6200 = vadd.f32 %v5260, %v5364
    %v6201 = vadd.f32 %v5261, %v5369
    %v6202 = vadd.f32 %v5262, %v5374
    %v6203 = vadd.f32 %v5263, %v5379
    %v6204 = vadd.f32 %v5264, %v5384
    %v6205 = vadd.f32 %v5265, %v5389
    %v6206 = vadd.f32 %v5266, %v5394
    %v6207 = vadd.f32 %v5267, %v5399
    %v6208 = vadd.f32 %v5268, %v5404
    %v6209 = vadd.f32 %v5269, %v5409
    %v6210 = vadd.f32 %v5270, %v5414
    %v6211 = vadd.f32 %v5271, %v5419
    %v6212 = vadd.f32 %v5272, %v5424
    %v6213 = vadd.f32 %v5273, %v5429
    %v6214 = vxor.u32 %v6198, 2147483648
    %v6215 = vxor.u32 %v6199, 2147483648
    %v6216 = vxor.u32 %v6200, 2147483648
    %v6217 = vxor.u32 %v6201, 2147483648
    %v6218 = vxor.u32 %v6202, 2147483648
    %v6219 = vxor.u32 %v6203, 2147483648
    %v6220 = vxor.u32 %v6204, 2147483648
    %v6221 = vxor.u32 %v6205, 2147483648
    %v6222 = vxor.u32 %v6206, 2147483648
    %v6223 = vxor.u32 %v6207, 2147483648
    %v6224 = vxor.u32 %v6208, 2147483648
    %v6225 = vxor.u32 %v6209, 2147483648
    %v6226 = vxor.u32 %v6210, 2147483648
    %v6227 = vxor.u32 %v6211, 2147483648
    %v6228 = vxor.u32 %v6212, 2147483648
    %v6229 = vxor.u32 %v6213, 2147483648
    %v6230 = vmul.f32 %v6214, 1.442695
    %v6231 = vpow.pop %v6230
    %v6232 = vmul.f32 %v6215, 1.442695
    %v6233 = vpow.pop %v6232
    %v6234 = vmul.f32 %v6216, 1.442695
    %v6235 = vpow.pop %v6234
    %v6236 = vmul.f32 %v6217, 1.442695
    %v6237 = vpow.pop %v6236
    %v6238 = vmul.f32 %v6218, 1.442695
    %v6239 = vpow.pop %v6238
    %v6240 = vmul.f32 %v6219, 1.442695
    %v6241 = vpow.pop %v6240
    %v6242 = vmul.f32 %v6220, 1.442695
    %v6243 = vpow.pop %v6242
    %v6244 = vmul.f32 %v6221, 1.442695
    %v6245 = vpow.pop %v6244
    %v6246 = vmul.f32 %v6222, 1.442695
    %v6247 = vpow.pop %v6246
    %v6248 = vmul.f32 %v6223, 1.442695
    %v6249 = vpow.pop %v6248
    %v6250 = vmul.f32 %v6224, 1.442695
    %v6251 = vpow.pop %v6250
    %v6252 = vmul.f32 %v6225, 1.442695
    %v6253 = vpow.pop %v6252
    %v6254 = vmul.f32 %v6226, 1.442695
    %v6255 = vpow.pop %v6254
    %v6256 = vmul.f32 %v6227, 1.442695
    %v6257 = vpow.pop %v6256
    %v6258 = vmul.f32 %v6228, 1.442695
    %v6259 = vpow.pop %v6258
    %v6260 = vmul.f32 %v6229, 1.442695
    %v6261 = vpow.pop %v6260
    %v6262 = vadd.f32 %v6231, 1.0
    %v6263 = vadd.f32 %v6233, 1.0
    %v6264 = vadd.f32 %v6235, 1.0
    %v6265 = vadd.f32 %v6237, 1.0
    %v6266 = vadd.f32 %v6239, 1.0
    %v6267 = vadd.f32 %v6241, 1.0
    %v6268 = vadd.f32 %v6243, 1.0
    %v6269 = vadd.f32 %v6245, 1.0
    %v6270 = vadd.f32 %v6247, 1.0
    %v6271 = vadd.f32 %v6249, 1.0
    %v6272 = vadd.f32 %v6251, 1.0
    %v6273 = vadd.f32 %v6253, 1.0
    %v6274 = vadd.f32 %v6255, 1.0
    %v6275 = vadd.f32 %v6257, 1.0
    %v6276 = vadd.f32 %v6259, 1.0
    %v6277 = vadd.f32 %v6261, 1.0
    %v6278 = vrcp.pop %v6262
    %v6279 = vmul.f32 1.0, %v6278
    %v6280 = vrcp.pop %v6263
    %v6281 = vmul.f32 1.0, %v6280
    %v6282 = vrcp.pop %v6264
    %v6283 = vmul.f32 1.0, %v6282
    %v6284 = vrcp.pop %v6265
    %v6285 = vmul.f32 1.0, %v6284
    %v6286 = vrcp.pop %v6266
    %v6287 = vmul.f32 1.0, %v6286
    %v6288 = vrcp.pop %v6267
    %v6289 = vmul.f32 1.0, %v6288
    %v6290 = vrcp.pop %v6268
    %v6291 = vmul.f32 1.0, %v6290
    %v6292 = vrcp.pop %v6269
    %v6293 = vmul.f32 1.0, %v6292
    %v6294 = vrcp.pop %v6270
    %v6295 = vmul.f32 1.0, %v6294
    %v6296 = vrcp.pop %v6271
    %v6297 = vmul.f32 1.0, %v6296
    %v6298 = vrcp.pop %v6272
    %v6299 = vmul.f32 1.0, %v6298
    %v6300 = vrcp.pop %v6273
    %v6301 = vmul.f32 1.0, %v6300
    %v6302 = vrcp.pop %v6274
    %v6303 = vmul.f32 1.0, %v6302
    %v6304 = vrcp.pop %v6275
    %v6305 = vmul.f32 1.0, %v6304
    %v6306 = vrcp.pop %v6276
    %v6307 = vmul.f32 1.0, %v6306
    %v6308 = vrcp.pop %v6277
    %v6309 = vmul.f32 1.0, %v6308
    %v6310 = vmul.f32 %v6167, %v6008
    %v6311 = vmul.f32 %v6169, %v6013
    %v6312 = vmul.f32 %v6171, %v6018
    %v6313 = vmul.f32 %v6173, %v6023
    %v6314 = vmul.f32 %v6175, %v6028
    %v6315 = vmul.f32 %v6177, %v6033
    %v6316 = vmul.f32 %v6179, %v6038
    %v6317 = vmul.f32 %v6181, %v6043
    %v6318 = vmul.f32 %v6183, %v6048
    %v6319 = vmul.f32 %v6185, %v6053
    %v6320 = vmul.f32 %v6187, %v6058
    %v6321 = vmul.f32 %v6189, %v6063
    %v6322 = vmul.f32 %v6191, %v6068
    %v6323 = vmul.f32 %v6193, %v6073
    %v6324 = vmul.f32 %v6195, %v6078
    %v6325 = vmul.f32 %v6197, %v6083
    %v6326 = vadd.f32 %v5912, %v6310
    %v6327 = vadd.f32 %v5913, %v6311
    %v6328 = vadd.f32 %v5914, %v6312
    %v6329 = vadd.f32 %v5915, %v6313
    %v6330 = vadd.f32 %v5916, %v6314
    %v6331 = vadd.f32 %v5917, %v6315
    %v6332 = vadd.f32 %v5918, %v6316
    %v6333 = vadd.f32 %v5919, %v6317
    %v6334 = vadd.f32 %v5920, %v6318
    %v6335 = vadd.f32 %v5921, %v6319
    %v6336 = vadd.f32 %v5922, %v6320
    %v6337 = vadd.f32 %v5923, %v6321
    %v6338 = vadd.f32 %v5924, %v6322
    %v6339 = vadd.f32 %v5925, %v6323
    %v6340 = vadd.f32 %v5926, %v6324
    %v6341 = vadd.f32 %v5927, %v6325
    %v6342 = vtanh.pop %v6326
    %v6343 = vtanh.pop %v6327
    %v6344 = vtanh.pop %v6328
    %v6345 = vtanh.pop %v6329
    %v6346 = vtanh.pop %v6330
    %v6347 = vtanh.pop %v6331
    %v6348 = vtanh.pop %v6332
    %v6349 = vtanh.pop %v6333
    %v6350 = vtanh.pop %v6334
    %v6351 = vtanh.pop %v6335
    %v6352 = vtanh.pop %v6336
    %v6353 = vtanh.pop %v6337
    %v6354 = vtanh.pop %v6338
    %v6355 = vtanh.pop %v6339
    %v6356 = vtanh.pop %v6340
    %v6357 = vtanh.pop %v6341
    %v6358 = vsub.f32 1.0, %v6279
    %v6359 = vsub.f32 1.0, %v6281
    %v6360 = vsub.f32 1.0, %v6283
    %v6361 = vsub.f32 1.0, %v6285
    %v6362 = vsub.f32 1.0, %v6287
    %v6363 = vsub.f32 1.0, %v6289
    %v6364 = vsub.f32 1.0, %v6291
    %v6365 = vsub.f32 1.0, %v6293
    %v6366 = vsub.f32 1.0, %v6295
    %v6367 = vsub.f32 1.0, %v6297
    %v6368 = vsub.f32 1.0, %v6299
    %v6369 = vsub.f32 1.0, %v6301
    %v6370 = vsub.f32 1.0, %v6303
    %v6371 = vsub.f32 1.0, %v6305
    %v6372 = vsub.f32 1.0, %v6307
    %v6373 = vsub.f32 1.0, %v6309
    %v6374 = vmul.f32 %v6358, %v6342
    %v6375 = vmul.f32 %v6359, %v6343
    %v6376 = vmul.f32 %v6360, %v6344
    %v6377 = vmul.f32 %v6361, %v6345
    %v6378 = vmul.f32 %v6362, %v6346
    %v6379 = vmul.f32 %v6363, %v6347
    %v6380 = vmul.f32 %v6364, %v6348
    %v6381 = vmul.f32 %v6365, %v6349
    %v6382 = vmul.f32 %v6366, %v6350
    %v6383 = vmul.f32 %v6367, %v6351
    %v6384 = vmul.f32 %v6368, %v6352
    %v6385 = vmul.f32 %v6369, %v6353
    %v6386 = vmul.f32 %v6370, %v6354
    %v6387 = vmul.f32 %v6371, %v6355
    %v6388 = vmul.f32 %v6372, %v6356
    %v6389 = vmul.f32 %v6373, %v6357
    %v6390 = vmul.f32 %v6279, %v147
    %v6391 = vmul.f32 %v6281, %v148
    %v6392 = vmul.f32 %v6283, %v149
    %v6393 = vmul.f32 %v6285, %v150
    %v6394 = vmul.f32 %v6287, %v151
    %v6395 = vmul.f32 %v6289, %v152
    %v6396 = vmul.f32 %v6291, %v153
    %v6397 = vmul.f32 %v6293, %v154
    %v6398 = vmul.f32 %v6295, %v155
    %v6399 = vmul.f32 %v6297, %v156
    %v6400 = vmul.f32 %v6299, %v157
    %v6401 = vmul.f32 %v6301, %v158
    %v6402 = vmul.f32 %v6303, %v159
    %v6403 = vmul.f32 %v6305, %v160
    %v6404 = vmul.f32 %v6307, %v161
    %v6405 = vmul.f32 %v6309, %v162
    %v6406 = vadd.f32 %v6374, %v6390
    %v6407 = vadd.f32 %v6375, %v6391
    %v6408 = vadd.f32 %v6376, %v6392
    %v6409 = vadd.f32 %v6377, %v6393
    %v6410 = vadd.f32 %v6378, %v6394
    %v6411 = vadd.f32 %v6379, %v6395
    %v6412 = vadd.f32 %v6380, %v6396
    %v6413 = vadd.f32 %v6381, %v6397
    %v6414 = vadd.f32 %v6382, %v6398
    %v6415 = vadd.f32 %v6383, %v6399
    %v6416 = vadd.f32 %v6384, %v6400
    %v6417 = vadd.f32 %v6385, %v6401
    %v6418 = vadd.f32 %v6386, %v6402
    %v6419 = vadd.f32 %v6387, %v6403
    %v6420 = vadd.f32 %v6388, %v6404
    %v6421 = vadd.f32 %v6389, %v6405
    %v6422 = vld [vmem:[#allocation2 + $0x418] sm:$0xff]
    %v6423 = vld [vmem:[#allocation2 + $0x420] sm:$0xff]
    %v6424 = vld [vmem:[#allocation2 + $0x428] sm:$0xff]
    %v6425 = vld [vmem:[#allocation2 + $0x430] sm:$0xff]
    %v6426 = vld [vmem:[#allocation2 + $0x438] sm:$0xff]
    %v6427 = vld [vmem:[#allocation2 + $0x440] sm:$0xff]
    %v6428 = vld [vmem:[#allocation2 + $0x448] sm:$0xff]
    %v6429 = vld [vmem:[#allocation2 + $0x450] sm:$0xff]
    %v6430 = vld [vmem:[#allocation2 + $0x458] sm:$0x1]
    %v6431 = vlaneseq
    %v6432 = vshrl.u32 %v6431, 7
    %v6433 = vsub.s32 0, %v6432
    %v6434 = vrot.slane %v6430, %v6433
    %v6436 = vsel %vm395, %v6406, 0
    %v6439 = vsel %vm395, %v6407, 0
    %v6442 = vsel %vm395, %v6408, 0
    %v6445 = vsel %vm395, %v6409, 0
    %v6448 = vsel %vm395, %v6410, 0
    %v6451 = vsel %vm395, %v6411, 0
    %v6454 = vsel %vm395, %v6412, 0
    %v6457 = vsel %vm395, %v6413, 0
    %v6460 = vsel %vm395, %v6414, 0
    %v6463 = vsel %vm395, %v6415, 0
    %v6466 = vsel %vm395, %v6416, 0
    %v6469 = vsel %vm395, %v6417, 0
    %v6472 = vsel %vm395, %v6418, 0
    %v6475 = vsel %vm395, %v6419, 0
    %v6478 = vsel %vm395, %v6420, 0
    %v6481 = vsel %vm395, %v6421, 0
    %6483 = vmatprep.subr.mxu0 0.0
    %6484 = vmatpush1.msra.mxu0 %v6422
    %6485 = vmatprep.subr.mxu0 0.0
    %6486 = vmatpush1.msra.mxu0 %v6423
    %6487 = vmatprep.subr.mxu0 0.0
    %6488 = vmatpush1.msra.mxu0 %v6424
    %6489 = vmatprep.subr.mxu0 0.0
    %6490 = vmatpush1.msra.mxu0 %v6425
    %6491 = vmatprep.subr.mxu0 0.0
    %6492 = vmatpush1.msra.mxu0 %v6426
    %6493 = vmatprep.subr.mxu0 0.0
    %6494 = vmatpush1.msra.mxu0 %v6427
    %6495 = vmatprep.subr.mxu0 0.0
    %6496 = vmatpush1.msra.mxu0 %v6428
    %6497 = vmatprep.subr.mxu0 0.0
    %6498 = vmatpush1.msra.mxu0 %v6429
    %6499 = vmatprep.subr.mxu0 0.0
    %6500 = vmatpush1.msra.mxu0 0.0
    %6501 = vmatprep.subr.mxu0 0.0
    %6502 = vmatpush1.msra.mxu0 0.0
    %6503 = vmatprep.subr.mxu0 0.0
    %6504 = vmatpush1.msra.mxu0 0.0
    %6505 = vmatprep.subr.mxu0 0.0
    %6506 = vmatpush1.msra.mxu0 0.0
    %6507 = vmatprep.subr.mxu0 0.0
    %6508 = vmatpush1.msra.mxu0 0.0
    %6509 = vmatprep.subr.mxu0 0.0
    %6510 = vmatpush1.msra.mxu0 0.0
    %6511 = vmatprep.subr.mxu0 0.0
    %6512 = vmatpush1.msra.mxu0 0.0
    %6513 = vmatprep.subr.mxu0 0.0
    %6514 = vmatpush1.msra.mxu0 0.0
    %6515 = vmatprep.subr.mxu0 0.0
    %6516 = vmatpush1.msra.mxu0 0.0
    %6517 = vmatprep.subr.mxu0 0.0
    %6518 = vmatpush1.msra.mxu0 0.0
    %6519 = vmatprep.subr.mxu0 0.0
    %6520 = vmatpush1.msra.mxu0 0.0
    %6521 = vmatprep.subr.mxu0 0.0
    %6522 = vmatpush1.msra.mxu0 0.0
    %6523 = vmatprep.subr.mxu0 0.0
    %6524 = vmatpush1.msra.mxu0 0.0
    %6525 = vmatprep.subr.mxu0 0.0
    %6526 = vmatpush1.msra.mxu0 0.0
    %6527 = vmatprep.subr.mxu0 0.0
    %6528 = vmatpush1.msra.mxu0 0.0
    %6529 = vmatprep.subr.mxu0 0.0
    %6530 = vmatpush1.msra.mxu0 0.0
    %6531 = vmatprep.subr.mxu0 0.0
    %6532 = vmatpush1.msra.mxu0 0.0
    %6533 = vmatprep.subr.mxu0 0.0
    %6534 = vmatpush1.msra.mxu0 0.0
    %6535 = vmatprep.subr.mxu0 0.0
    %6536 = vmatpush1.msra.mxu0 0.0
    %6537 = vmatprep.subr.mxu0 0.0
    %6538 = vmatpush1.msra.mxu0 0.0
    %6539 = vmatprep.subr.mxu0 0.0
    %6540 = vmatpush1.msra.mxu0 0.0
    %6541 = vmatprep.subr.mxu0 0.0
    %6542 = vmatpush1.msra.mxu0 0.0
    %6543 = vmatprep.subr.mxu0 0.0
    %6544 = vmatpush1.msra.mxu0 0.0
    %6545 = vmatprep.subr.mxu0 0.0
    %6546 = vmatpush1.msra.mxu0 0.0
    %6547 = vmatprep.mubr.f32.mxu0 0.0
    %6548 = vmatmul.mubr.f32.gmra.mrb[0].mxu0 %v6436
    %v6549 = vpop.f32.mrb[0].mxu0
    %v6550 = vadd.f32 %v6434, %v6549
    %v6551 = vpop.f32.mrb[0].mxu0
    %6552 = vmatprep.mubr.f32.mxu0 0.0
    %6553 = vmatmul.mubr.f32.gmra.mrb[0].mxu0 %v6439
    %v6554 = vpop.f32.mrb[0].mxu0
    %v6555 = vadd.f32 %v6434, %v6554
    %v6556 = vpop.f32.mrb[0].mxu0
    %6557 = vmatprep.mubr.f32.mxu0 0.0
    %6558 = vmatmul.mubr.f32.gmra.mrb[0].mxu0 %v6442
    %v6559 = vpop.f32.mrb[0].mxu0
    %v6560 = vadd.f32 %v6434, %v6559
    %v6561 = vpop.f32.mrb[0].mxu0
    %6562 = vmatprep.mubr.f32.mxu0 0.0
    %6563 = vmatmul.mubr.f32.gmra.mrb[0].mxu0 %v6445
    %v6564 = vpop.f32.mrb[0].mxu0
    %v6565 = vadd.f32 %v6434, %v6564
    %v6566 = vpop.f32.mrb[0].mxu0
    %6567 = vmatprep.mubr.f32.mxu0 0.0
    %6568 = vmatmul.mubr.f32.gmra.mrb[0].mxu0 %v6448
    %v6569 = vpop.f32.mrb[0].mxu0
    %v6570 = vadd.f32 %v6434, %v6569
    %v6571 = vpop.f32.mrb[0].mxu0
    %6572 = vmatprep.mubr.f32.mxu0 0.0
    %6573 = vmatmul.mubr.f32.gmra.mrb[0].mxu0 %v6451
    %v6574 = vpop.f32.mrb[0].mxu0
    %v6575 = vadd.f32 %v6434, %v6574
    %v6576 = vpop.f32.mrb[0].mxu0
    %6577 = vmatprep.mubr.f32.mxu0 0.0
    %6578 = vmatmul.mubr.f32.gmra.mrb[0].mxu0 %v6454
    %v6579 = vpop.f32.mrb[0].mxu0
    %v6580 = vadd.f32 %v6434, %v6579
    %v6581 = vpop.f32.mrb[0].mxu0
    %6582 = vmatprep.mubr.f32.mxu0 0.0
    %6583 = vmatmul.mubr.f32.gmra.mrb[0].mxu0 %v6457
    %v6584 = vpop.f32.mrb[0].mxu0
    %v6585 = vadd.f32 %v6434, %v6584
    %v6586 = vpop.f32.mrb[0].mxu0
    %6587 = vmatprep.mubr.f32.mxu0 0.0
    %6588 = vmatmul.mubr.f32.gmra.mrb[0].mxu0 %v6460
    %v6589 = vpop.f32.mrb[0].mxu0
    %v6590 = vadd.f32 %v6434, %v6589
    %v6591 = vpop.f32.mrb[0].mxu0
    %6592 = vmatprep.mubr.f32.mxu0 0.0
    %6593 = vmatmul.mubr.f32.gmra.mrb[0].mxu0 %v6463
    %v6594 = vpop.f32.mrb[0].mxu0
    %v6595 = vadd.f32 %v6434, %v6594
    %v6596 = vpop.f32.mrb[0].mxu0
    %6597 = vmatprep.mubr.f32.mxu0 0.0
    %6598 = vmatmul.mubr.f32.gmra.mrb[0].mxu0 %v6466
    %v6599 = vpop.f32.mrb[0].mxu0
    %v6600 = vadd.f32 %v6434, %v6599
    %v6601 = vpop.f32.mrb[0].mxu0
    %6602 = vmatprep.mubr.f32.mxu0 0.0
    %6603 = vmatmul.mubr.f32.gmra.mrb[0].mxu0 %v6469
    %v6604 = vpop.f32.mrb[0].mxu0
    %v6605 = vadd.f32 %v6434, %v6604
    %v6606 = vpop.f32.mrb[0].mxu0
    %6607 = vmatprep.mubr.f32.mxu0 0.0
    %6608 = vmatmul.mubr.f32.gmra.mrb[0].mxu0 %v6472
    %v6609 = vpop.f32.mrb[0].mxu0
    %v6610 = vadd.f32 %v6434, %v6609
    %v6611 = vpop.f32.mrb[0].mxu0
    %6612 = vmatprep.mubr.f32.mxu0 0.0
    %6613 = vmatmul.mubr.f32.gmra.mrb[0].mxu0 %v6475
    %v6614 = vpop.f32.mrb[0].mxu0
    %v6615 = vadd.f32 %v6434, %v6614
    %v6616 = vpop.f32.mrb[0].mxu0
    %6617 = vmatprep.mubr.f32.mxu0 0.0
    %6618 = vmatmul.mubr.f32.gmra.mrb[0].mxu0 %v6478
    %v6619 = vpop.f32.mrb[0].mxu0
    %v6620 = vadd.f32 %v6434, %v6619
    %v6621 = vpop.f32.mrb[0].mxu0
    %6622 = vmatprep.mubr.f32.mxu0 0.0
    %6623 = vmatmul.mubr.f32.gmra.mrb[0].mxu0 %v6481
    %v6624 = vpop.f32.mrb[0].mxu0
    %v6625 = vadd.f32 %v6434, %v6624
    %v6626 = vpop.f32.mrb[0].mxu0
    %6627 = vdwg.mxu0
    %v6628 = vtanh.pop %v6550
    %v6629 = vtanh.pop %v6555
    %v6630 = vtanh.pop %v6560
    %v6631 = vtanh.pop %v6565
    %v6632 = vtanh.pop %v6570
    %v6633 = vtanh.pop %v6575
    %v6634 = vtanh.pop %v6580
    %v6635 = vtanh.pop %v6585
    %v6636 = vtanh.pop %v6590
    %v6637 = vtanh.pop %v6595
    %v6638 = vtanh.pop %v6600
    %v6639 = vtanh.pop %v6605
    %v6640 = vtanh.pop %v6610
    %v6641 = vtanh.pop %v6615
    %v6642 = vtanh.pop %v6620
    %v6643 = vtanh.pop %v6625
    %v6644 = vld [vmem:[#allocation2 + $0x460] sm:$0xff]
    %v6645 = vld [vmem:[#allocation2 + $0x468] sm:$0xff]
    %v6646 = vld [vmem:[#allocation2 + $0x470] sm:$0xff]
    %v6647 = vld [vmem:[#allocation2 + $0x478] sm:$0xff]
    %v6648 = vld [vmem:[#allocation2 + $0x480] sm:$0xff]
    %v6649 = vld [vmem:[#allocation2 + $0x488] sm:$0xff]
    %v6650 = vld [vmem:[#allocation2 + $0x490] sm:$0xff]
    %v6651 = vld [vmem:[#allocation2 + $0x498] sm:$0xff]
    %v6652 = vld [vmem:[#allocation2 + $0x4a0] sm:$0xff]
    %v6653 = vld [vmem:[#allocation2 + $0x4a8] sm:$0xff]
    %v6654 = vld [vmem:[#allocation2 + $0x4b0] sm:$0xff]
    %v6655 = vld [vmem:[#allocation2 + $0x4b8] sm:$0xff]
    %v6656 = vld [vmem:[#allocation2 + $0x4c0] sm:$0xff]
    %v6657 = vld [vmem:[#allocation2 + $0x4c8] sm:$0xff]
    %v6658 = vld [vmem:[#allocation2 + $0x4d0] sm:$0xff]
    %v6659 = vld [vmem:[#allocation2 + $0x4d8] sm:$0xff]
    %v6660 = vld [vmem:[#allocation2 + $0x4e0] sm:$0x1]
    %v6661 = vlaneseq
    %v6662 = vshrl.u32 %v6661, 7
    %v6663 = vsub.s32 0, %v6662
    %v6664 = vrot.slane %v6660, %v6663
    %6665 = vmatprep.subr.mxu0 0.0
    %6666 = vmatpush1.msra.mxu0 %v6644
    %6667 = vmatprep.subr.mxu0 0.0
    %6668 = vmatpush1.msra.mxu0 %v6645
    %6669 = vmatprep.subr.mxu0 0.0
    %6670 = vmatpush1.msra.mxu0 %v6646
    %6671 = vmatprep.subr.mxu0 0.0
    %6672 = vmatpush1.msra.mxu0 %v6647
    %6673 = vmatprep.subr.mxu0 0.0
    %6674 = vmatpush1.msra.mxu0 %v6648
    %6675 = vmatprep.subr.mxu0 0.0
    %6676 = vmatpush1.msra.mxu0 %v6649
    %6677 = vmatprep.subr.mxu0 0.0
    %6678 = vmatpush1.msra.mxu0 %v6650
    %6679 = vmatprep.subr.mxu0 0.0
    %6680 = vmatpush1.msra.mxu0 %v6651
    %6681 = vmatprep.subr.mxu0 0.0
    %6682 = vmatpush1.msra.mxu0 %v6652
    %6683 = vmatprep.subr.mxu0 0.0
    %6684 = vmatpush1.msra.mxu0 %v6653
    %6685 = vmatprep.subr.mxu0 0.0
    %6686 = vmatpush1.msra.mxu0 %v6654
    %6687 = vmatprep.subr.mxu0 0.0
    %6688 = vmatpush1.msra.mxu0 %v6655
    %6689 = vmatprep.subr.mxu0 0.0
    %6690 = vmatpush1.msra.mxu0 %v6656
    %6691 = vmatprep.subr.mxu0 0.0
    %6692 = vmatpush1.msra.mxu0 %v6657
    %6693 = vmatprep.subr.mxu0 0.0
    %6694 = vmatpush1.msra.mxu0 %v6658
    %6695 = vmatprep.subr.mxu0 0.0
    %6696 = vmatpush1.msra.mxu0 %v6659
    %6697 = vmatprep.subr.mxu0 0.0
    %6698 = vmatpush1.msra.mxu0 0.0
    %6699 = vmatprep.subr.mxu0 0.0
    %6700 = vmatpush1.msra.mxu0 0.0
    %6701 = vmatprep.subr.mxu0 0.0
    %6702 = vmatpush1.msra.mxu0 0.0
    %6703 = vmatprep.subr.mxu0 0.0
    %6704 = vmatpush1.msra.mxu0 0.0
    %6705 = vmatprep.subr.mxu0 0.0
    %6706 = vmatpush1.msra.mxu0 0.0
    %6707 = vmatprep.subr.mxu0 0.0
    %6708 = vmatpush1.msra.mxu0 0.0
    %6709 = vmatprep.subr.mxu0 0.0
    %6710 = vmatpush1.msra.mxu0 0.0
    %6711 = vmatprep.subr.mxu0 0.0
    %6712 = vmatpush1.msra.mxu0 0.0
    %6713 = vmatprep.subr.mxu0 0.0
    %6714 = vmatpush1.msra.mxu0 0.0
    %6715 = vmatprep.subr.mxu0 0.0
    %6716 = vmatpush1.msra.mxu0 0.0
    %6717 = vmatprep.subr.mxu0 0.0
    %6718 = vmatpush1.msra.mxu0 0.0
    %6719 = vmatprep.subr.mxu0 0.0
    %6720 = vmatpush1.msra.mxu0 0.0
    %6721 = vmatprep.subr.mxu0 0.0
    %6722 = vmatpush1.msra.mxu0 0.0
    %6723 = vmatprep.subr.mxu0 0.0
    %6724 = vmatpush1.msra.mxu0 0.0
    %6725 = vmatprep.subr.mxu0 0.0
    %6726 = vmatpush1.msra.mxu0 0.0
    %6727 = vmatprep.subr.mxu0 0.0
    %6728 = vmatpush1.msra.mxu0 0.0
    %6729 = vmatprep.mubr.f32.mxu0 0.0
    %6730 = vmatmul.mubr.f32.gmra.mrb[0].mxu0 %v6628
    %v6731 = vpop.f32.mrb[0].mxu0
    %v6732 = vadd.f32 %v6664, %v6731
    %v6733 = vpop.f32.mrb[0].mxu0
    %6734 = vmatprep.mubr.f32.mxu0 0.0
    %6735 = vmatmul.mubr.f32.gmra.mrb[0].mxu0 %v6629
    %v6736 = vpop.f32.mrb[0].mxu0
    %v6737 = vadd.f32 %v6664, %v6736
    %v6738 = vpop.f32.mrb[0].mxu0
    %6739 = vmatprep.mubr.f32.mxu0 0.0
    %6740 = vmatmul.mubr.f32.gmra.mrb[0].mxu0 %v6630
    %v6741 = vpop.f32.mrb[0].mxu0
    %v6742 = vadd.f32 %v6664, %v6741
    %v6743 = vpop.f32.mrb[0].mxu0
    %6744 = vmatprep.mubr.f32.mxu0 0.0
    %6745 = vmatmul.mubr.f32.gmra.mrb[0].mxu0 %v6631
    %v6746 = vpop.f32.mrb[0].mxu0
    %v6747 = vadd.f32 %v6664, %v6746
    %v6748 = vpop.f32.mrb[0].mxu0
    %6749 = vmatprep.mubr.f32.mxu0 0.0
    %6750 = vmatmul.mubr.f32.gmra.mrb[0].mxu0 %v6632
    %v6751 = vpop.f32.mrb[0].mxu0
    %v6752 = vadd.f32 %v6664, %v6751
    %v6753 = vpop.f32.mrb[0].mxu0
    %6754 = vmatprep.mubr.f32.mxu0 0.0
    %6755 = vmatmul.mubr.f32.gmra.mrb[0].mxu0 %v6633
    %v6756 = vpop.f32.mrb[0].mxu0
    %v6757 = vadd.f32 %v6664, %v6756
    %v6758 = vpop.f32.mrb[0].mxu0
    %6759 = vmatprep.mubr.f32.mxu0 0.0
    %6760 = vmatmul.mubr.f32.gmra.mrb[0].mxu0 %v6634
    %v6761 = vpop.f32.mrb[0].mxu0
    %v6762 = vadd.f32 %v6664, %v6761
    %v6763 = vpop.f32.mrb[0].mxu0
    %6764 = vmatprep.mubr.f32.mxu0 0.0
    %6765 = vmatmul.mubr.f32.gmra.mrb[0].mxu0 %v6635
    %v6766 = vpop.f32.mrb[0].mxu0
    %v6767 = vadd.f32 %v6664, %v6766
    %v6768 = vpop.f32.mrb[0].mxu0
    %6769 = vmatprep.mubr.f32.mxu0 0.0
    %6770 = vmatmul.mubr.f32.gmra.mrb[0].mxu0 %v6636
    %v6771 = vpop.f32.mrb[0].mxu0
    %v6772 = vadd.f32 %v6664, %v6771
    %v6773 = vpop.f32.mrb[0].mxu0
    %6774 = vmatprep.mubr.f32.mxu0 0.0
    %6775 = vmatmul.mubr.f32.gmra.mrb[0].mxu0 %v6637
    %v6776 = vpop.f32.mrb[0].mxu0
    %v6777 = vadd.f32 %v6664, %v6776
    %v6778 = vpop.f32.mrb[0].mxu0
    %6779 = vmatprep.mubr.f32.mxu0 0.0
    %6780 = vmatmul.mubr.f32.gmra.mrb[0].mxu0 %v6638
    %v6781 = vpop.f32.mrb[0].mxu0
    %v6782 = vadd.f32 %v6664, %v6781
    %v6783 = vpop.f32.mrb[0].mxu0
    %6784 = vmatprep.mubr.f32.mxu0 0.0
    %6785 = vmatmul.mubr.f32.gmra.mrb[0].mxu0 %v6639
    %v6786 = vpop.f32.mrb[0].mxu0
    %v6787 = vadd.f32 %v6664, %v6786
    %v6788 = vpop.f32.mrb[0].mxu0
    %6789 = vmatprep.mubr.f32.mxu0 0.0
    %6790 = vmatmul.mubr.f32.gmra.mrb[0].mxu0 %v6640
    %v6791 = vpop.f32.mrb[0].mxu0
    %v6792 = vadd.f32 %v6664, %v6791
    %v6793 = vpop.f32.mrb[0].mxu0
    %6794 = vmatprep.mubr.f32.mxu0 0.0
    %6795 = vmatmul.mubr.f32.gmra.mrb[0].mxu0 %v6641
    %v6796 = vpop.f32.mrb[0].mxu0
    %v6797 = vadd.f32 %v6664, %v6796
    %v6798 = vpop.f32.mrb[0].mxu0
    %6799 = vmatprep.mubr.f32.mxu0 0.0
    %6800 = vmatmul.mubr.f32.gmra.mrb[0].mxu0 %v6642
    %v6801 = vpop.f32.mrb[0].mxu0
    %v6802 = vadd.f32 %v6664, %v6801
    %v6803 = vpop.f32.mrb[0].mxu0
    %6804 = vmatprep.mubr.f32.mxu0 0.0
    %6805 = vmatmul.mubr.f32.gmra.mrb[0].mxu0 %v6643
    %v6806 = vpop.f32.mrb[0].mxu0
    %v6807 = vadd.f32 %v6664, %v6806
    %v6808 = vpop.f32.mrb[0].mxu0
    %6809 = vdwg.mxu0
    %v6810 = vtanh.pop %v6732
    %v6811 = vtanh.pop %v6737
    %v6812 = vtanh.pop %v6742
    %v6813 = vtanh.pop %v6747
    %v6814 = vtanh.pop %v6752
    %v6815 = vtanh.pop %v6757
    %v6816 = vtanh.pop %v6762
    %v6817 = vtanh.pop %v6767
    %v6818 = vtanh.pop %v6772
    %v6819 = vtanh.pop %v6777
    %v6820 = vtanh.pop %v6782
    %v6821 = vtanh.pop %v6787
    %v6822 = vtanh.pop %v6792
    %v6823 = vtanh.pop %v6797
    %v6824 = vtanh.pop %v6802
    %v6825 = vtanh.pop %v6807
    %v6826 = vld [vmem:[#allocation2 + $0x4e8] sm:$0xff]
    %v6827 = vld [vmem:[#allocation2 + $0x4f0] sm:$0xff]
    %v6828 = vld [vmem:[#allocation2 + $0x4f8] sm:$0xff]
    %v6829 = vld [vmem:[#allocation2 + $0x500] sm:$0xff]
    %v6830 = vld [vmem:[#allocation2 + $0x508] sm:$0xff]
    %v6831 = vld [vmem:[#allocation2 + $0x510] sm:$0xff]
    %v6832 = vld [vmem:[#allocation2 + $0x518] sm:$0xff]
    %v6833 = vld [vmem:[#allocation2 + $0x520] sm:$0xff]
    %v6834 = vld [vmem:[#allocation2 + $0x528] sm:$0xff]
    %v6835 = vld [vmem:[#allocation2 + $0x530] sm:$0xff]
    %v6836 = vld [vmem:[#allocation2 + $0x538] sm:$0xff]
    %v6837 = vld [vmem:[#allocation2 + $0x540] sm:$0xff]
    %v6838 = vld [vmem:[#allocation2 + $0x548] sm:$0xff]
    %v6839 = vld [vmem:[#allocation2 + $0x550] sm:$0xff]
    %v6840 = vld [vmem:[#allocation2 + $0x558] sm:$0xff]
    %v6841 = vld [vmem:[#allocation2 + $0x560] sm:$0xff]
    %v6842 = vld [vmem:[#allocation2 + $0x568] sm:$0x1]
    %v6843 = vlaneseq
    %v6844 = vshrl.u32 %v6843, 7
    %v6845 = vsub.s32 0, %v6844
    %v6846 = vrot.slane %v6842, %v6845
    %6847 = vmatprep.subr.mxu0 0.0
    %6848 = vmatpush1.msra.mxu0 %v6826
    %6849 = vmatprep.subr.mxu0 0.0
    %6850 = vmatpush1.msra.mxu0 %v6827
    %6851 = vmatprep.subr.mxu0 0.0
    %6852 = vmatpush1.msra.mxu0 %v6828
    %6853 = vmatprep.subr.mxu0 0.0
    %6854 = vmatpush1.msra.mxu0 %v6829
    %6855 = vmatprep.subr.mxu0 0.0
    %6856 = vmatpush1.msra.mxu0 %v6830
    %6857 = vmatprep.subr.mxu0 0.0
    %6858 = vmatpush1.msra.mxu0 %v6831
    %6859 = vmatprep.subr.mxu0 0.0
    %6860 = vmatpush1.msra.mxu0 %v6832
    %6861 = vmatprep.subr.mxu0 0.0
    %6862 = vmatpush1.msra.mxu0 %v6833
    %6863 = vmatprep.subr.mxu0 0.0
    %6864 = vmatpush1.msra.mxu0 %v6834
    %6865 = vmatprep.subr.mxu0 0.0
    %6866 = vmatpush1.msra.mxu0 %v6835
    %6867 = vmatprep.subr.mxu0 0.0
    %6868 = vmatpush1.msra.mxu0 %v6836
    %6869 = vmatprep.subr.mxu0 0.0
    %6870 = vmatpush1.msra.mxu0 %v6837
    %6871 = vmatprep.subr.mxu0 0.0
    %6872 = vmatpush1.msra.mxu0 %v6838
    %6873 = vmatprep.subr.mxu0 0.0
    %6874 = vmatpush1.msra.mxu0 %v6839
    %6875 = vmatprep.subr.mxu0 0.0
    %6876 = vmatpush1.msra.mxu0 %v6840
    %6877 = vmatprep.subr.mxu0 0.0
    %6878 = vmatpush1.msra.mxu0 %v6841
    %6879 = vmatprep.subr.mxu0 0.0
    %6880 = vmatpush1.msra.mxu0 0.0
    %6881 = vmatprep.subr.mxu0 0.0
    %6882 = vmatpush1.msra.mxu0 0.0
    %6883 = vmatprep.subr.mxu0 0.0
    %6884 = vmatpush1.msra.mxu0 0.0
    %6885 = vmatprep.subr.mxu0 0.0
    %6886 = vmatpush1.msra.mxu0 0.0
    %6887 = vmatprep.subr.mxu0 0.0
    %6888 = vmatpush1.msra.mxu0 0.0
    %6889 = vmatprep.subr.mxu0 0.0
    %6890 = vmatpush1.msra.mxu0 0.0
    %6891 = vmatprep.subr.mxu0 0.0
    %6892 = vmatpush1.msra.mxu0 0.0
    %6893 = vmatprep.subr.mxu0 0.0
    %6894 = vmatpush1.msra.mxu0 0.0
    %6895 = vmatprep.subr.mxu0 0.0
    %6896 = vmatpush1.msra.mxu0 0.0
    %6897 = vmatprep.subr.mxu0 0.0
    %6898 = vmatpush1.msra.mxu0 0.0
    %6899 = vmatprep.subr.mxu0 0.0
    %6900 = vmatpush1.msra.mxu0 0.0
    %6901 = vmatprep.subr.mxu0 0.0
    %6902 = vmatpush1.msra.mxu0 0.0
    %6903 = vmatprep.subr.mxu0 0.0
    %6904 = vmatpush1.msra.mxu0 0.0
    %6905 = vmatprep.subr.mxu0 0.0
    %6906 = vmatpush1.msra.mxu0 0.0
    %6907 = vmatprep.subr.mxu0 0.0
    %6908 = vmatpush1.msra.mxu0 0.0
    %6909 = vmatprep.subr.mxu0 0.0
    %6910 = vmatpush1.msra.mxu0 0.0
    %6911 = vmatprep.mubr.f32.mxu0 0.0
    %6912 = vmatmul.mubr.f32.gmra.mrb[0].mxu0 %v6628
    %v6913 = vpop.f32.mrb[0].mxu0
    %v6914 = vadd.f32 %v6846, %v6913
    %v6915 = vpop.f32.mrb[0].mxu0
    %6916 = vmatprep.mubr.f32.mxu0 0.0
    %6917 = vmatmul.mubr.f32.gmra.mrb[0].mxu0 %v6629
    %v6918 = vpop.f32.mrb[0].mxu0
    %v6919 = vadd.f32 %v6846, %v6918
    %v6920 = vpop.f32.mrb[0].mxu0
    %6921 = vmatprep.mubr.f32.mxu0 0.0
    %6922 = vmatmul.mubr.f32.gmra.mrb[0].mxu0 %v6630
    %v6923 = vpop.f32.mrb[0].mxu0
    %v6924 = vadd.f32 %v6846, %v6923
    %v6925 = vpop.f32.mrb[0].mxu0
    %6926 = vmatprep.mubr.f32.mxu0 0.0
    %6927 = vmatmul.mubr.f32.gmra.mrb[0].mxu0 %v6631
    %v6928 = vpop.f32.mrb[0].mxu0
    %v6929 = vadd.f32 %v6846, %v6928
    %v6930 = vpop.f32.mrb[0].mxu0
    %6931 = vmatprep.mubr.f32.mxu0 0.0
    %6932 = vmatmul.mubr.f32.gmra.mrb[0].mxu0 %v6632
    %v6933 = vpop.f32.mrb[0].mxu0
    %v6934 = vadd.f32 %v6846, %v6933
    %v6935 = vpop.f32.mrb[0].mxu0
    %6936 = vmatprep.mubr.f32.mxu0 0.0
    %6937 = vmatmul.mubr.f32.gmra.mrb[0].mxu0 %v6633
    %v6938 = vpop.f32.mrb[0].mxu0
    %v6939 = vadd.f32 %v6846, %v6938
    %v6940 = vpop.f32.mrb[0].mxu0
    %6941 = vmatprep.mubr.f32.mxu0 0.0
    %6942 = vmatmul.mubr.f32.gmra.mrb[0].mxu0 %v6634
    %v6943 = vpop.f32.mrb[0].mxu0
    %v6944 = vadd.f32 %v6846, %v6943
    %v6945 = vpop.f32.mrb[0].mxu0
    %6946 = vmatprep.mubr.f32.mxu0 0.0
    %6947 = vmatmul.mubr.f32.gmra.mrb[0].mxu0 %v6635
    %v6948 = vpop.f32.mrb[0].mxu0
    %v6949 = vadd.f32 %v6846, %v6948
    %v6950 = vpop.f32.mrb[0].mxu0
    %6951 = vmatprep.mubr.f32.mxu0 0.0
    %6952 = vmatmul.mubr.f32.gmra.mrb[0].mxu0 %v6636
    %v6953 = vpop.f32.mrb[0].mxu0
    %v6954 = vadd.f32 %v6846, %v6953
    %v6955 = vpop.f32.mrb[0].mxu0
    %6956 = vmatprep.mubr.f32.mxu0 0.0
    %6957 = vmatmul.mubr.f32.gmra.mrb[0].mxu0 %v6637
    %v6958 = vpop.f32.mrb[0].mxu0
    %v6959 = vadd.f32 %v6846, %v6958
    %v6960 = vpop.f32.mrb[0].mxu0
    %6961 = vmatprep.mubr.f32.mxu0 0.0
    %6962 = vmatmul.mubr.f32.gmra.mrb[0].mxu0 %v6638
    %v6963 = vpop.f32.mrb[0].mxu0
    %v6964 = vadd.f32 %v6846, %v6963
    %v6965 = vpop.f32.mrb[0].mxu0
    %6966 = vmatprep.mubr.f32.mxu0 0.0
    %6967 = vmatmul.mubr.f32.gmra.mrb[0].mxu0 %v6639
    %v6968 = vpop.f32.mrb[0].mxu0
    %v6969 = vadd.f32 %v6846, %v6968
    %v6970 = vpop.f32.mrb[0].mxu0
    %6971 = vmatprep.mubr.f32.mxu0 0.0
    %6972 = vmatmul.mubr.f32.gmra.mrb[0].mxu0 %v6640
    %v6973 = vpop.f32.mrb[0].mxu0
    %v6974 = vadd.f32 %v6846, %v6973
    %v6975 = vpop.f32.mrb[0].mxu0
    %6976 = vmatprep.mubr.f32.mxu0 0.0
    %6977 = vmatmul.mubr.f32.gmra.mrb[0].mxu0 %v6641
    %v6978 = vpop.f32.mrb[0].mxu0
    %v6979 = vadd.f32 %v6846, %v6978
    %v6980 = vpop.f32.mrb[0].mxu0
    %6981 = vmatprep.mubr.f32.mxu0 0.0
    %6982 = vmatmul.mubr.f32.gmra.mrb[0].mxu0 %v6642
    %v6983 = vpop.f32.mrb[0].mxu0
    %v6984 = vadd.f32 %v6846, %v6983
    %v6985 = vpop.f32.mrb[0].mxu0
    %6986 = vmatprep.mubr.f32.mxu0 0.0
    %6987 = vmatmul.mubr.f32.gmra.mrb[0].mxu0 %v6643
    %v6988 = vpop.f32.mrb[0].mxu0
    %v6989 = vadd.f32 %v6846, %v6988
    %v6990 = vpop.f32.mrb[0].mxu0
    %6991 = vdwg.mxu0
    %7008 = vrot.lane.b32.xlu0 %v6810, 64
    %v7009 = vpop.permute.xlu0 %7008
    %7010 = vrot.lane.b32.xlu0 %v6811, 64
    %v7011 = vpop.permute.xlu0 %7010
    %7012 = vrot.lane.b32.xlu0 %v6812, 64
    %v7013 = vpop.permute.xlu0 %7012
    %7014 = vrot.lane.b32.xlu0 %v6813, 64
    %v7015 = vpop.permute.xlu0 %7014
    %7016 = vrot.lane.b32.xlu0 %v6814, 64
    %v7017 = vpop.permute.xlu0 %7016
    %7018 = vrot.lane.b32.xlu0 %v6815, 64
    %v7019 = vpop.permute.xlu0 %7018
    %7020 = vrot.lane.b32.xlu0 %v6816, 64
    %v7021 = vpop.permute.xlu0 %7020
    %7022 = vrot.lane.b32.xlu0 %v6817, 64
    %v7023 = vpop.permute.xlu0 %7022
    %7024 = vrot.lane.b32.xlu0 %v6818, 64
    %v7025 = vpop.permute.xlu0 %7024
    %7026 = vrot.lane.b32.xlu0 %v6819, 64
    %v7027 = vpop.permute.xlu0 %7026
    %7028 = vrot.lane.b32.xlu0 %v6820, 64
    %v7029 = vpop.permute.xlu0 %7028
    %7030 = vrot.lane.b32.xlu0 %v6821, 64
    %v7031 = vpop.permute.xlu0 %7030
    %7032 = vrot.lane.b32.xlu0 %v6822, 64
    %v7033 = vpop.permute.xlu0 %7032
    %7034 = vrot.lane.b32.xlu0 %v6823, 64
    %v7035 = vpop.permute.xlu0 %7034
    %7036 = vrot.lane.b32.xlu0 %v6824, 64
    %v7037 = vpop.permute.xlu0 %7036
    %7038 = vrot.lane.b32.xlu0 %v6825, 64
    %v7039 = vpop.permute.xlu0 %7038
    %v7056 = vsel %vm395, %v6406, %v7009
    %v7057 = vsel %vm395, %v6407, %v7011
    %v7058 = vsel %vm395, %v6408, %v7013
    %v7059 = vsel %vm395, %v6409, %v7015
    %v7060 = vsel %vm395, %v6410, %v7017
    %v7061 = vsel %vm395, %v6411, %v7019
    %v7062 = vsel %vm395, %v6412, %v7021
    %v7063 = vsel %vm395, %v6413, %v7023
    %v7064 = vsel %vm395, %v6414, %v7025
    %v7065 = vsel %vm395, %v6415, %v7027
    %v7066 = vsel %vm395, %v6416, %v7029
    %v7067 = vsel %vm395, %v6417, %v7031
    %v7068 = vsel %vm395, %v6418, %v7033
    %v7069 = vsel %vm395, %v6419, %v7035
    %v7070 = vsel %vm395, %v6420, %v7037
    %v7071 = vsel %vm395, %v6421, %v7039
    %7072 = vst [vmem:[#allocation5] sm:$0xff] %v7056
    %7073 = vst [vmem:[#allocation5 + $0x8] sm:$0xff] %v6914
    %7074 = vst [vmem:[#allocation5 + $0x10] sm:$0xff] %v7057
    %7075 = vst [vmem:[#allocation5 + $0x18] sm:$0xff] %v6919
    %7076 = vst [vmem:[#allocation5 + $0x20] sm:$0xff] %v7058
    %7077 = vst [vmem:[#allocation5 + $0x28] sm:$0xff] %v6924
    %7078 = vst [vmem:[#allocation5 + $0x30] sm:$0xff] %v7059
    %7079 = vst [vmem:[#allocation5 + $0x38] sm:$0xff] %v6929
    %7080 = vst [vmem:[#allocation5 + $0x40] sm:$0xff] %v7060
    %7081 = vst [vmem:[#allocation5 + $0x48] sm:$0xff] %v6934
    %7082 = vst [vmem:[#allocation5 + $0x50] sm:$0xff] %v7061
    %7083 = vst [vmem:[#allocation5 + $0x58] sm:$0xff] %v6939
    %7084 = vst [vmem:[#allocation5 + $0x60] sm:$0xff] %v7062
    %7085 = vst [vmem:[#allocation5 + $0x68] sm:$0xff] %v6944
    %7086 = vst [vmem:[#allocation5 + $0x70] sm:$0xff] %v7063
    %7087 = vst [vmem:[#allocation5 + $0x78] sm:$0xff] %v6949
    %7088 = vst [vmem:[#allocation5 + $0x80] sm:$0xff] %v7064
    %7089 = vst [vmem:[#allocation5 + $0x88] sm:$0xff] %v6954
    %7090 = vst [vmem:[#allocation5 + $0x90] sm:$0xff] %v7065
    %7091 = vst [vmem:[#allocation5 + $0x98] sm:$0xff] %v6959
    %7092 = vst [vmem:[#allocation5 + $0xa0] sm:$0xff] %v7066
    %7093 = vst [vmem:[#allocation5 + $0xa8] sm:$0xff] %v6964
    %7094 = vst [vmem:[#allocation5 + $0xb0] sm:$0xff] %v7067
    %7095 = vst [vmem:[#allocation5 + $0xb8] sm:$0xff] %v6969
    %7096 = vst [vmem:[#allocation5 + $0xc0] sm:$0xff] %v7068
    %7097 = vst [vmem:[#allocation5 + $0xc8] sm:$0xff] %v6974
    %7098 = vst [vmem:[#allocation5 + $0xd0] sm:$0xff] %v7069
    %7099 = vst [vmem:[#allocation5 + $0xd8] sm:$0xff] %v6979
    %7100 = vst [vmem:[#allocation5 + $0xe0] sm:$0xff] %v7070
    %7101 = vst [vmem:[#allocation5 + $0xe8] sm:$0xff] %v6984
    %7102 = vst [vmem:[#allocation5 + $0xf0] sm:$0xff] %v7071
    %7103 = vst [vmem:[#allocation5 + $0xf8] sm:$0xff] %v6989
    // Predicated region
    $region26: #{tpu_custom_call.1} parent=1 // pred_check
      _
    $region27: #{tpu_custom_call.1} parent=1 // pred_check_branch
      %7105 = sbr.rel (0) target = $region29
    $region28: #{tpu_custom_call.1} parent=1 // pred_region
      %s7107 = ssub.s32 4096, 4096
      %7108 = vsyncadd [#allocation4], %s7107
      %s7109 = sshll.u32 [#allocation5], 4
      %s7110 = int_to_ptr.vmem [resolvable:$true] %s7109
      %7115 = dma.vmem_to_hbm [thread:$0]  %s7110, 4096, %s5, [#allocation4], 256, 256, 16
    $region29: #{tpu_custom_call.1} parent=1 // pred_fallthru
      _
    // Predicated region
    $region30: #{tpu_custom_call.1} parent=1 // pred_check
      _
    $region31: #{tpu_custom_call.1} parent=1 // pred_check_branch
      %7117 = sbr.rel (0) target = $region33
    $region32: #{tpu_custom_call.1} parent=1 // pred_region
      %7118 = dma.done [#allocation4], 4096
    $region33: #{tpu_custom_call.1} parent=1 // pred_fallthru
      _
    %7119 = vsyncpa [#allocation3], 1
    %7120 = vsyncpa [#allocation4], 1

</llo_original>
